<compile_context>
chip_gen: v7x
topology: tpu7x:2x2x1
jax: 0.10.0
libtpu: 0.0.40
codegen_flags: <defaults>
</compile_context>

<pallas_src>
import jax
import jax.numpy as jnp
from jax.experimental import pallas as pl
from jax.experimental.pallas import tpu as pltpu

# logical layer sizes (from the PyTorch module)
N1, N2, N3 = 920, 950, 32400
# padded sizes (sublane multiple of 8 for contraction dims; lane-dense output)
N1P = 920            # already a multiple of 8
N2P = 952            # 950 -> 952 (multiple of 8); only +0.2% extra w3 traffic
TN = 2048            # layer-3 output tile (multiple of 128), bf16 tile ~3.9 MB
N3P = ((N3 + TN - 1) // TN) * TN   # 32768


def _round_up(n, m):
    return ((n + m - 1) // m) * m


# -------------------- layers 1 + 2 fused (tiny, one block) --------------------
def _mlp12_kernel(z_ref, w1_ref, b1_ref, w2_ref, b2_ref, o_ref):
    # z: (Mp, K) f32;  w1: (K, N1P) bf16;  w2: (N1P, N2P) bf16;  biases f32
    z = z_ref[...].astype(jnp.bfloat16)
    h = jnp.dot(z, w1_ref[...], preferred_element_type=jnp.float32) + b1_ref[...]
    h = jnp.where(h >= 0, h, 0.01 * h)                      # leaky_relu (slope 0.01)
    h = jnp.dot(h.astype(jnp.bfloat16), w2_ref[...],
                preferred_element_type=jnp.float32) + b2_ref[...]
    h = jnp.where(h >= 0, h, 0.01 * h)
    o_ref[...] = h


# -------------- layer 3: 950 -> 32400, HBM-bandwidth bound, N-tiled --------------
def _linear3_kernel(x_ref, w_ref, b_ref, o_ref):
    # x: (Mp, N2P) f32 (resident);  w: (N2P, TN) bf16 tile;  b: (1, TN) f32
    acc = jnp.dot(x_ref[...].astype(jnp.bfloat16), w_ref[...],
                  preferred_element_type=jnp.float32)
    acc = acc + b_ref[...]
    o_ref[...] = jax.nn.sigmoid(acc)


# ------------------------------ params ------------------------------
def init_decoder_params(latent_dims, key):
    """Deterministic init mirroring nn.Linear default U(-1/sqrt(fan_in), 1/sqrt(fan_in)).
    Weights are stored as (in_features, out_features) = PyTorch weight^T."""
    dims = [(latent_dims, N1), (N1, N2), (N2, N3)]
    params = {}
    for i, (fan_in, fan_out) in enumerate(dims, start=1):
        key, kw, kb = jax.random.split(key, 3)
        bound = 1.0 / jnp.sqrt(jnp.float32(fan_in))
        params[f"w{i}"] = jax.random.uniform(
            kw, (fan_in, fan_out), jnp.float32, -bound, bound)
        params[f"b{i}"] = jax.random.uniform(
            kb, (fan_out,), jnp.float32, -bound, bound)
    return params


def prepare_decoder_params(params):
    """ONE-TIME: zero-pad to TPU-friendly shapes and cast weights to bf16
    (the dtype that is actually streamed from HBM)."""
    def pad_w(w, kp, np_):
        k, n = w.shape
        return jnp.zeros((kp, np_), jnp.bfloat16).at[:k, :n].set(
            w.astype(jnp.bfloat16))

    def pad_b(b, np_):
        return jnp.zeros((1, np_), jnp.float32).at[0, :b.shape[0]].set(
            b.astype(jnp.float32))

    k0 = params["w1"].shape[0]   # latent dim (no padding needed; full-array blocks)
    return {
        "w1": pad_w(params["w1"], k0, N1P), "b1": pad_b(params["b1"], N1P),
        "w2": pad_w(params["w2"], N1P, N2P), "b2": pad_b(params["b2"], N2P),
        "w3": pad_w(params["w3"], N2P, N3P), "b3": pad_b(params["b3"], N3P),
    }


# ------------------------------ forward ------------------------------
def decoder_forward(z, pp):
    """z: (M, latent) f32, pp: prepared (pre-padded, bf16) params."""
    M, K = z.shape
    Mp = max(8, _round_up(M, 8))
    zp = jnp.zeros((Mp, K), jnp.float32).at[:M].set(z.astype(jnp.float32))

    # ---- layers 1+2: single fused kernel, everything resident in VMEM ----
    h2 = pl.pallas_call(
        _mlp12_kernel,
        out_shape=jax.ShapeDtypeStruct((Mp, N2P), jnp.float32),
        grid=(1,),
        in_specs=[
            pl.BlockSpec((Mp, K), lambda i: (0, 0)),
            pl.BlockSpec((K, N1P), lambda i: (0, 0)),
            pl.BlockSpec((1, N1P), lambda i: (0, 0)),
            pl.BlockSpec((N1P, N2P), lambda i: (0, 0)),
            pl.BlockSpec((1, N2P), lambda i: (0, 0)),
        ],
        out_specs=pl.BlockSpec((Mp, N2P), lambda i: (0, 0)),
    )(zp, pp["w1"], pp["b1"], pp["w2"], pp["b2"])

    # ---- layer 3: stream the big bf16 weight, tile over output features ----
    n_tiles = N3P // TN
    flops = 2 * Mp * N2P * N3P
    bytes_accessed = (pp["w3"].size * 2        # bf16 weight stream (dominant)
                      + h2.size * 4 + pp["b3"].size * 4 + Mp * N3P * 4)
    out = pl.pallas_call(
        _linear3_kernel,
        out_shape=jax.ShapeDtypeStruct((Mp, N3P), jnp.float32),
        grid=(n_tiles,),
        in_specs=[
            pl.BlockSpec((Mp, N2P), lambda j: (0, 0)),   # activations resident
            pl.BlockSpec((N2P, TN), lambda j: (0, j)),   # weight tile (bf16)
            pl.BlockSpec((1, TN), lambda j: (0, j)),     # bias tile
        ],
        out_specs=pl.BlockSpec((Mp, TN), lambda j: (0, j)),
        compiler_params=pltpu.CompilerParams(
            dimension_semantics=("parallel",),           # megacore sharding on v7x
            vmem_limit_bytes=32 * 1024 * 1024,           # safe on v5e/v6e/v7x
        ),
        cost_estimate=pl.CostEstimate(
            flops=flops, transcendentals=Mp * N3P, bytes_accessed=bytes_accessed),
    )(h2, pp["w3"], pp["b3"])

    return out[:M, :N3].reshape((-1, 1, 180, 180))


# ------------------------------ references ------------------------------
def decoder_reference(z, params):
    """Pure-JAX reference with the SAME bf16-weight / f32-accumulate math."""
    def dot_bf16(x, w):
        return jnp.dot(x.astype(jnp.bfloat16), w.astype(jnp.bfloat16),
                       preferred_element_type=jnp.float32)
    h = dot_bf16(z, params["w1"]) + params["b1"]
    h = jnp.where(h >= 0, h, 0.01 * h)
    h = dot_bf16(h, params["w2"]) + params["b2"]
    h = jnp.where(h >= 0, h, 0.01 * h)
    h = jax.nn.sigmoid(dot_bf16(h, params["w3"]) + params["b3"])
    return h.reshape((-1, 1, 180, 180))


def decoder_reference_f32(z, params):
    """Full-f32 reference (original PyTorch semantics) for a looser sanity check."""
    h = z @ params["w1"] + params["b1"]
    h = jnp.where(h >= 0, h, 0.01 * h)
    h = h @ params["w2"] + params["b2"]
    h = jnp.where(h >= 0, h, 0.01 * h)
    h = jax.nn.sigmoid(h @ params["w3"] + params["b3"])
    return h.reshape((-1, 1, 180, 180))


if __name__ == "__main__":
    latent_dims = 32
    batch = 2

    key = jax.random.PRNGKey(0)
    key, kz = jax.random.split(key)
    params = init_decoder_params(latent_dims, key)
    pp = prepare_decoder_params(params)          # one-time pad + bf16 cast
    z = jax.random.normal(kz, (batch, latent_dims), jnp.float32)

    fwd = jax.jit(decoder_forward)
    out = jax.block_until_ready(fwd(z, pp))
    assert out.shape == (batch, 1, 180, 180), out.shape

    ref = decoder_reference(z, params)           # same bf16 math -> tight tolerance
    assert jnp.allclose(out, ref, atol=2e-3, rtol=2e-3), \
        float(jnp.max(jnp.abs(out - ref)))

    ref32 = decoder_reference_f32(z, params)     # original f32 semantics, loose tol
    assert jnp.allclose(out, ref32, atol=3e-2), \
        float(jnp.max(jnp.abs(out - ref32)))

    print("KERNEL_OK")
</pallas_src>

<mosaic_0001>
module attributes {stable_mosaic.version = 11 : i64} {
  func.func @_mlp12_kernel(%arg0: i32, %arg1: memref<8x32xf32, #tpu.memory_space<vmem>>, %arg2: memref<32x920xbf16, #tpu.memory_space<vmem>>, %arg3: memref<1x920xf32, #tpu.memory_space<vmem>>, %arg4: memref<920x952xbf16, #tpu.memory_space<vmem>>, %arg5: memref<1x952xf32, #tpu.memory_space<vmem>>, %arg6: memref<8x952xf32, #tpu.memory_space<vmem>>) attributes {dimension_semantics = [#tpu.dimension_semantics<arbitrary>], iteration_bounds = array<i64: 1>, scalar_prefetch = 0 : i64, scratch_operands = 0 : i64, tpu.core_type = #tpu.core_type<tc>, window_params = [{pipeline_mode = #tpu.pipeline_mode<synchronous>, transform_indices = @transform_0, window_bounds = array<i64: 8, 32>}, {pipeline_mode = #tpu.pipeline_mode<synchronous>, transform_indices = @transform_1, window_bounds = array<i64: 32, 920>}, {pipeline_mode = #tpu.pipeline_mode<synchronous>, transform_indices = @transform_2, window_bounds = array<i64: 1, 920>}, {pipeline_mode = #tpu.pipeline_mode<synchronous>, transform_indices = @transform_3, window_bounds = array<i64: 920, 952>}, {pipeline_mode = #tpu.pipeline_mode<synchronous>, transform_indices = @transform_4, window_bounds = array<i64: 1, 952>}, {pipeline_mode = #tpu.pipeline_mode<synchronous>, transform_indices = @transform_5, window_bounds = array<i64: 8, 952>}]} {
    %c0 = arith.constant 0 : index
    %c0_0 = arith.constant 0 : index
    %0 = vector.load %arg1[%c0, %c0_0] : memref<8x32xf32, #tpu.memory_space<vmem>>, vector<8x32xf32>
    %1 = arith.truncf %0 : vector<8x32xf32> to vector<8x32xbf16>
    %c0_1 = arith.constant 0 : index
    %c0_2 = arith.constant 0 : index
    %2 = vector.load %arg2[%c0_1, %c0_2] : memref<32x920xbf16, #tpu.memory_space<vmem>>, vector<32x920xbf16>
    %cst = arith.constant dense<0.000000e+00> : vector<8x920xf32>
    %3 = tpu.matmul %1, %2, %cst {dimension_numbers = #tpu.dot_dimension_numbers<[1], [0], [0], [1], [0, 0, 1, 1], [], []>} : vector<8x32xbf16>, vector<32x920xbf16>, vector<8x920xf32> -> vector<8x920xf32>
    %c0_3 = arith.constant 0 : index
    %c0_4 = arith.constant 0 : index
    %4 = vector.load %arg3[%c0_3, %c0_4] : memref<1x920xf32, #tpu.memory_space<vmem>>, vector<1x920xf32>
    %5 = vector.broadcast %4 : vector<1x920xf32> to vector<8x920xf32>
    %6 = arith.addf %3, %5 : vector<8x920xf32>
    %cst_5 = arith.constant 0.000000e+00 : f32
    %7 = vector.broadcast %cst_5 : f32 to vector<8x920xf32>
    %8 = arith.cmpf oge, %6, %7 : vector<8x920xf32>
    %cst_6 = arith.constant 0.00999999977 : f32
    %9 = vector.broadcast %cst_6 : f32 to vector<8x920xf32>
    %10 = arith.mulf %9, %6 : vector<8x920xf32>
    %11 = arith.select %8, %6, %10 : vector<8x920xi1>, vector<8x920xf32>
    %12 = arith.truncf %11 : vector<8x920xf32> to vector<8x920xbf16>
    %c0_7 = arith.constant 0 : index
    %c0_8 = arith.constant 0 : index
    %13 = vector.load %arg4[%c0_7, %c0_8] : memref<920x952xbf16, #tpu.memory_space<vmem>>, vector<920x952xbf16>
    %cst_9 = arith.constant dense<0.000000e+00> : vector<8x952xf32>
    %14 = tpu.matmul %12, %13, %cst_9 {dimension_numbers = #tpu.dot_dimension_numbers<[1], [0], [0], [1], [0, 0, 1, 1], [], []>} : vector<8x920xbf16>, vector<920x952xbf16>, vector<8x952xf32> -> vector<8x952xf32>
    %c0_10 = arith.constant 0 : index
    %c0_11 = arith.constant 0 : index
    %15 = vector.load %arg5[%c0_10, %c0_11] : memref<1x952xf32, #tpu.memory_space<vmem>>, vector<1x952xf32>
    %16 = vector.broadcast %15 : vector<1x952xf32> to vector<8x952xf32>
    %17 = arith.addf %14, %16 : vector<8x952xf32>
    %cst_12 = arith.constant 0.000000e+00 : f32
    %18 = vector.broadcast %cst_12 : f32 to vector<8x952xf32>
    %19 = arith.cmpf oge, %17, %18 : vector<8x952xf32>
    %cst_13 = arith.constant 0.00999999977 : f32
    %20 = vector.broadcast %cst_13 : f32 to vector<8x952xf32>
    %21 = arith.mulf %20, %17 : vector<8x952xf32>
    %22 = arith.select %19, %17, %21 : vector<8x952xi1>, vector<8x952xf32>
    %c0_14 = arith.constant 0 : index
    %c0_15 = arith.constant 0 : index
    %23 = vector.load %arg6[%c0_14, %c0_15] : memref<8x952xf32, #tpu.memory_space<vmem>>, vector<8x952xf32>
    tpu.vector_store %arg6[%c0_14, %c0_15], %22 {strides = array<i32>} : memref<8x952xf32, #tpu.memory_space<vmem>>, vector<8x952xf32>,
    return
  }
  func.func @transform_0(%arg0: i32) -> (i32, i32) {
    %c0_i32 = arith.constant 0 : i32
    %c0_i32_0 = arith.constant 0 : i32
    %c0_i32_1 = arith.constant 0 : i32
    return %c0_i32, %c0_i32_0 : i32, i32
  }
  func.func @transform_1(%arg0: i32) -> (i32, i32) {
    %c0_i32 = arith.constant 0 : i32
    %c0_i32_0 = arith.constant 0 : i32
    %c0_i32_1 = arith.constant 0 : i32
    return %c0_i32, %c0_i32_0 : i32, i32
  }
  func.func @transform_2(%arg0: i32) -> (i32, i32) {
    %c0_i32 = arith.constant 0 : i32
    %c0_i32_0 = arith.constant 0 : i32
    %c0_i32_1 = arith.constant 0 : i32
    return %c0_i32, %c0_i32_0 : i32, i32
  }
  func.func @transform_3(%arg0: i32) -> (i32, i32) {
    %c0_i32 = arith.constant 0 : i32
    %c0_i32_0 = arith.constant 0 : i32
    %c0_i32_1 = arith.constant 0 : i32
    return %c0_i32, %c0_i32_0 : i32, i32
  }
  func.func @transform_4(%arg0: i32) -> (i32, i32) {
    %c0_i32 = arith.constant 0 : i32
    %c0_i32_0 = arith.constant 0 : i32
    %c0_i32_1 = arith.constant 0 : i32
    return %c0_i32, %c0_i32_0 : i32, i32
  }
  func.func @transform_5(%arg0: i32) -> (i32, i32) {
    %c0_i32 = arith.constant 0 : i32
    %c0_i32_0 = arith.constant 0 : i32
    %c0_i32_1 = arith.constant 0 : i32
    return %c0_i32, %c0_i32_0 : i32, i32
  }
}

module attributes {stable_mosaic.version = 11 : i64} {
  func.func @_linear3_kernel(%arg0: i32, %arg1: memref<8x952xf32, #tpu.memory_space<vmem>>, %arg2: memref<952x2048xbf16, #tpu.memory_space<vmem>>, %arg3: memref<1x2048xf32, #tpu.memory_space<vmem>>, %arg4: memref<8x2048xf32, #tpu.memory_space<vmem>>) attributes {dimension_semantics = [#tpu.dimension_semantics<parallel>], iteration_bounds = array<i64: 16>, scalar_prefetch = 0 : i64, scratch_operands = 0 : i64, tpu.core_type = #tpu.core_type<tc>, window_params = [{pipeline_mode = #tpu.pipeline_mode<synchronous>, transform_indices = @transform_0, window_bounds = array<i64: 8, 952>}, {transform_indices = @transform_1, window_bounds = array<i64: 952, 2048>}, {transform_indices = @transform_2, window_bounds = array<i64: 1, 2048>}, {transform_indices = @transform_3, window_bounds = array<i64: 8, 2048>}]} {
    %c0 = arith.constant 0 : index
    %c0_0 = arith.constant 0 : index
    %0 = vector.load %arg1[%c0, %c0_0] : memref<8x952xf32, #tpu.memory_space<vmem>>, vector<8x952xf32>
    %1 = arith.truncf %0 : vector<8x952xf32> to vector<8x952xbf16>
    %c0_1 = arith.constant 0 : index
    %c0_2 = arith.constant 0 : index
    %2 = vector.load %arg2[%c0_1, %c0_2] : memref<952x2048xbf16, #tpu.memory_space<vmem>>, vector<952x2048xbf16>
    %cst = arith.constant dense<0.000000e+00> : vector<8x2048xf32>
    %3 = tpu.matmul %1, %2, %cst {dimension_numbers = #tpu.dot_dimension_numbers<[1], [0], [0], [1], [0, 0, 1, 1], [], []>} : vector<8x952xbf16>, vector<952x2048xbf16>, vector<8x2048xf32> -> vector<8x2048xf32>
    %c0_3 = arith.constant 0 : index
    %c0_4 = arith.constant 0 : index
    %4 = vector.load %arg3[%c0_3, %c0_4] : memref<1x2048xf32, #tpu.memory_space<vmem>>, vector<1x2048xf32>
    %5 = vector.broadcast %4 : vector<1x2048xf32> to vector<8x2048xf32>
    %6 = arith.addf %3, %5 : vector<8x2048xf32>
    %7 = arith.negf %6 : vector<8x2048xf32>
    %8 = math.exp %7 : vector<8x2048xf32>
    %cst_5 = arith.constant 1.000000e+00 : f32
    %9 = vector.broadcast %cst_5 : f32 to vector<8x2048xf32>
    %10 = arith.addf %9, %8 : vector<8x2048xf32>
    %11 = arith.divf %9, %10 : vector<8x2048xf32>
    %c0_6 = arith.constant 0 : index
    %c0_7 = arith.constant 0 : index
    %12 = vector.load %arg4[%c0_6, %c0_7] : memref<8x2048xf32, #tpu.memory_space<vmem>>, vector<8x2048xf32>
    tpu.vector_store %arg4[%c0_6, %c0_7], %11 {strides = array<i32>} : memref<8x2048xf32, #tpu.memory_space<vmem>>, vector<8x2048xf32>,
    return
  }
  func.func @transform_0(%arg0: i32) -> (i32, i32) {
    %c0_i32 = arith.constant 0 : i32
    %c0_i32_0 = arith.constant 0 : i32
    %c0_i32_1 = arith.constant 0 : i32
    return %c0_i32, %c0_i32_0 : i32, i32
  }
  func.func @transform_1(%arg0: i32) -> (i32, i32) {
    %c0_i32 = arith.constant 0 : i32
    %c0_i32_0 = arith.constant 0 : i32
    return %c0_i32, %arg0 : i32, i32
  }
  func.func @transform_2(%arg0: i32) -> (i32, i32) {
    %c0_i32 = arith.constant 0 : i32
    %c0_i32_0 = arith.constant 0 : i32
    return %c0_i32, %arg0 : i32, i32
  }
  func.func @transform_3(%arg0: i32) -> (i32, i32) {
    %c0_i32 = arith.constant 0 : i32
    %c0_i32_0 = arith.constant 0 : i32
    return %c0_i32, %arg0 : i32, i32
  }
}

</mosaic_0001>

<llo_original>
// kernel: decoder_forward.2
$region0: #{decoder_forward.2}
  #allocation0 [shape = 'u32[]', space=smem, size = 0x4, offset = 0x4, fixed_abs, tag = 'smem constant byte address 0x4 - core index']
  #allocation1 [shape = 'u32[144,128]{1,0:T(1,128)}', space=vmem, size = 0x12000, scoped, tag = 'internal scratch']
  %s0 = inlined_call_operand.vmem [shape: f32[8,32], index: 0, kind: input, shape index: {}]
  %s1 = inlined_call_operand.hbm [shape: bf16[32,920], index: 1, kind: input, shape index: {}]
  %s2 = inlined_call_operand.hbm [shape: f32[1,920], index: 2, kind: input, shape index: {}]
  %s3 = inlined_call_operand.hbm [shape: bf16[920,952], index: 3, kind: input, shape index: {}]
  %s4 = inlined_call_operand.hbm [shape: f32[1,952], index: 4, kind: input, shape index: {}]
  %s5 = inlined_call_operand.vmem [shape: f32[8,952], index: 5, kind: output, shape index: {}]
  %s6 = sld [smem:[#allocation0]]
  $region46: #{decoder_forward.2} parent=0
    _
  %s8 = ssub.s32 1, %s6
  %s9 = scalar_select 0, %s8, %s6
  $region1: #{decoder_forward.2} parent=0
    #allocation2 [shape = 'u8[65536]{0}', space=vmem, size = 0x10000, scoped, tag = 'input window, operand 1, single buffered']
    #allocation3 [shape = 's32[1]{0}', space=sflag, size = 0x4, scoped, tag = 'scoped memory for decoder_forward.2']
    #allocation4 [shape = 'u8[4096]{0}', space=vmem, size = 0x1000, scoped, tag = 'input window, operand 2, single buffered']
    #allocation5 [shape = 's32[1]{0}', space=sflag, size = 0x4, scoped, tag = 'scoped memory for decoder_forward.2']
    #allocation6 [shape = 'u8[1884160]{0}', space=vmem, size = 0x1cc000, scoped, tag = 'input window, operand 3, single buffered']
    #allocation7 [shape = 'u8[4096]{0}', space=vmem, size = 0x1000, scoped, tag = 'input window, operand 4, single buffered']
    #allocation8 [shape = 's32[1]{0}', space=sflag, size = 0x4, scoped, tag = 'scoped memory for decoder_forward.2']
    %10 = vsyncpa [#allocation3], 0
    %11 = vsyncpa [#allocation5], 0
    %12 = vsyncpa [#allocation8], 0
    // Predicated region
    $region2: #{decoder_forward.2} parent=1 // pred_check
      _
    $region3: #{decoder_forward.2} parent=1 // pred_check_branch
      %14 = sbr.rel (0) target = $region5
    $region4: #{decoder_forward.2} parent=1 // pred_region
      _
    $region5: #{decoder_forward.2} parent=1 // pred_fallthru
      _
    // Predicated region
    $region6: #{decoder_forward.2} parent=1 // pred_check
      _
    $region7: #{decoder_forward.2} parent=1 // pred_check_branch
      %16 = sbr.rel (0) target = $region9
    $region8: #{decoder_forward.2} parent=1 // pred_region
      %s18 = ssub.s32 2048, 2048
      %19 = vsyncadd [#allocation3], %s18
      %s20 = sshll.u32 [#allocation2], 4
      %s21 = int_to_ptr.vmem [resolvable:$true] %s20
      %26 = dma.hbm_to_vmem [thread:$0]  %s1, 2048, %s21, [#allocation3], 512, 512, 32
    $region9: #{decoder_forward.2} parent=1 // pred_fallthru
      _
    // Predicated region
    $region10: #{decoder_forward.2} parent=1 // pred_check
      _
    $region11: #{decoder_forward.2} parent=1 // pred_check_branch
      %28 = sbr.rel (0) target = $region13
    $region12: #{decoder_forward.2} parent=1 // pred_region
      %s30 = ssub.s32 128, 128
      %31 = vsyncadd [#allocation5], %s30
      %s33 = sshll.u32 [#allocation4], 4
      %s34 = int_to_ptr.vmem [resolvable:$true] %s33
      %36 = dma.hbm_to_vmem [thread:$0]  %s2, 128, %s34, [#allocation5]
    $region13: #{decoder_forward.2} parent=1 // pred_fallthru
      _
    // Predicated region
    $region14: #{decoder_forward.2} parent=1 // pred_check
      _
    $region15: #{decoder_forward.2} parent=1 // pred_check_branch
      %38 = sbr.rel (0) target = $region17
    $region16: #{decoder_forward.2} parent=1 // pred_region
      %s40 = ssub.s32 58880, 58880
      %41 = vsyncadd [#allocation5], %s40
      %s42 = sshll.u32 [#allocation6], 4
      %s43 = int_to_ptr.vmem [resolvable:$true] %s42
      %48 = dma.hbm_to_vmem [thread:$0]  %s3, 58880, %s43, [#allocation5], 512, 512, 32
    $region17: #{decoder_forward.2} parent=1 // pred_fallthru
      _
    // Predicated region
    $region18: #{decoder_forward.2} parent=1 // pred_check
      _
    $region19: #{decoder_forward.2} parent=1 // pred_check_branch
      %50 = sbr.rel (0) target = $region21
    $region20: #{decoder_forward.2} parent=1 // pred_region
      %s52 = ssub.s32 128, 128
      %53 = vsyncadd [#allocation8], %s52
      %s55 = sshll.u32 [#allocation7], 4
      %s56 = int_to_ptr.vmem [resolvable:$true] %s55
      %58 = dma.hbm_to_vmem [thread:$0]  %s4, 128, %s56, [#allocation8]
    $region21: #{decoder_forward.2} parent=1 // pred_fallthru
      _
    // Predicated region
    $region22: #{decoder_forward.2} parent=1 // pred_check
      _
    $region23: #{decoder_forward.2} parent=1 // pred_check_branch
      %60 = sbr.rel (0) target = $region25
    $region24: #{decoder_forward.2} parent=1 // pred_region
      %61 = dma.done [#allocation3], 2048
    $region25: #{decoder_forward.2} parent=1 // pred_fallthru
      _
    // Predicated region
    $region26: #{decoder_forward.2} parent=1 // pred_check
      _
    $region27: #{decoder_forward.2} parent=1 // pred_check_branch
      %63 = sbr.rel (0) target = $region29
    $region28: #{decoder_forward.2} parent=1 // pred_region
      %64 = dma.done [#allocation5], 128
    $region29: #{decoder_forward.2} parent=1 // pred_fallthru
      _
    // Predicated region
    $region30: #{decoder_forward.2} parent=1 // pred_check
      _
    $region31: #{decoder_forward.2} parent=1 // pred_check_branch
      %66 = sbr.rel (0) target = $region33
    $region32: #{decoder_forward.2} parent=1 // pred_region
      %67 = dma.done [#allocation5], 58880
    $region33: #{decoder_forward.2} parent=1 // pred_fallthru
      _
    // Predicated region
    $region34: #{decoder_forward.2} parent=1 // pred_check
      _
    $region35: #{decoder_forward.2} parent=1 // pred_check_branch
      %69 = sbr.rel (0) target = $region37
    $region36: #{decoder_forward.2} parent=1 // pred_region
      %70 = dma.done [#allocation8], 128
    $region37: #{decoder_forward.2} parent=1 // pred_fallthru
      _
    %v72 = vld [vmem:[%s0] sm:$0xff]
    %v73 = vpack.c.bf16 %v72, %v72
    %v74 = vld [vmem:[#allocation2] sm:$0xff]
    %v75 = vld [vmem:[#allocation2 + $0x8] sm:$0xff]
    %v76 = vld [vmem:[#allocation2 + $0x10] sm:$0xff]
    %v77 = vld [vmem:[#allocation2 + $0x18] sm:$0xff]
    %v78 = vld [vmem:[#allocation2 + $0x20] sm:$0xff]
    %v79 = vld [vmem:[#allocation2 + $0x28] sm:$0xff]
    %v80 = vld [vmem:[#allocation2 + $0x30] sm:$0xff]
    %v81 = vld [vmem:[#allocation2 + $0x38] sm:$0xff]
    %v82 = vld [vmem:[#allocation2 + $0x40] sm:$0xff]
    %v83 = vld [vmem:[#allocation2 + $0x48] sm:$0xff]
    %v84 = vld [vmem:[#allocation2 + $0x50] sm:$0xff]
    %v85 = vld [vmem:[#allocation2 + $0x58] sm:$0xff]
    %v86 = vld [vmem:[#allocation2 + $0x60] sm:$0xff]
    %v87 = vld [vmem:[#allocation2 + $0x68] sm:$0xff]
    %v88 = vld [vmem:[#allocation2 + $0x70] sm:$0xff]
    %v89 = vld [vmem:[#allocation2 + $0x78] sm:$0xff]
    %v90 = vld [vmem:[#allocation4] sm:$0xff]
    %v92 = vlaneseq
    %v93 = vshrl.u32 %v92, 7
    %v94 = vsub.s32 0, %v93
    %v95 = vrot.slane %v90, %v94
    %v96 = vlaneseq
    %v97 = vshrl.u32 %v96, 7
    %v98 = vsub.s32 1, %v97
    %v99 = vrot.slane %v90, %v98
    %v100 = vlaneseq
    %v101 = vshrl.u32 %v100, 7
    %v102 = vsub.s32 2, %v101
    %v103 = vrot.slane %v90, %v102
    %v104 = vlaneseq
    %v105 = vshrl.u32 %v104, 7
    %v106 = vsub.s32 3, %v105
    %v107 = vrot.slane %v90, %v106
    %v108 = vlaneseq
    %v109 = vshrl.u32 %v108, 7
    %v110 = vsub.s32 4, %v109
    %v111 = vrot.slane %v90, %v110
    %v112 = vlaneseq
    %v113 = vshrl.u32 %v112, 7
    %v114 = vsub.s32 5, %v113
    %v115 = vrot.slane %v90, %v114
    %v116 = vlaneseq
    %v117 = vshrl.u32 %v116, 7
    %v118 = vsub.s32 6, %v117
    %v119 = vrot.slane %v90, %v118
    %v120 = vlaneseq
    %v121 = vshrl.u32 %v120, 7
    %v122 = vsub.s32 7, %v121
    %v123 = vrot.slane %v90, %v122
    %v148 = vunpack.c.l.b16 %v74
    %v149 = vunpack.c.h.b16 %v74
    %v150 = vunpack.c.l.b16 %v75
    %v151 = vunpack.c.h.b16 %v75
    %v152 = vunpack.c.l.b16 %v76
    %v153 = vunpack.c.h.b16 %v76
    %v154 = vunpack.c.l.b16 %v77
    %v155 = vunpack.c.h.b16 %v77
    %v156 = vunpack.c.l.b16 %v78
    %v157 = vunpack.c.h.b16 %v78
    %v158 = vunpack.c.l.b16 %v79
    %v159 = vunpack.c.h.b16 %v79
    %v160 = vunpack.c.l.b16 %v80
    %v161 = vunpack.c.h.b16 %v80
    %v162 = vunpack.c.l.b16 %v81
    %v163 = vunpack.c.h.b16 %v81
    %v164 = vunpack.c.l.b16 %v82
    %v165 = vunpack.c.h.b16 %v82
    %v166 = vunpack.c.l.b16 %v83
    %v167 = vunpack.c.h.b16 %v83
    %v168 = vunpack.c.l.b16 %v84
    %v169 = vunpack.c.h.b16 %v84
    %v170 = vunpack.c.l.b16 %v85
    %v171 = vunpack.c.h.b16 %v85
    %v172 = vunpack.c.l.b16 %v86
    %v173 = vunpack.c.h.b16 %v86
    %v174 = vunpack.c.l.b16 %v87
    %v175 = vunpack.c.h.b16 %v87
    %v176 = vunpack.c.l.b16 %v88
    %v177 = vunpack.c.h.b16 %v88
    %v178 = vunpack.c.l.b16 %v89
    %v179 = vunpack.c.h.b16 %v89
    %v180 = vpack.c.b16 %v156, %v148
    %v181 = vpack.c.b16 %v157, %v149
    %v182 = vpack.c.b16 %v158, %v150
    %v183 = vpack.c.b16 %v159, %v151
    %v184 = vpack.c.b16 %v160, %v152
    %v185 = vpack.c.b16 %v161, %v153
    %v186 = vpack.c.b16 %v162, %v154
    %v187 = vpack.c.b16 %v163, %v155
    %v188 = vpack.c.b16 %v172, %v164
    %v189 = vpack.c.b16 %v173, %v165
    %v190 = vpack.c.b16 %v174, %v166
    %v191 = vpack.c.b16 %v175, %v167
    %v192 = vpack.c.b16 %v176, %v168
    %v193 = vpack.c.b16 %v177, %v169
    %v194 = vpack.c.b16 %v178, %v170
    %v195 = vpack.c.b16 %v179, %v171
    %vm212 = vcmask 261120
    %v214 = vsel %vm212, %v73, 0
    %216 = vmatprep.subr.bf16.mxu0 %v181
    %217 = vmatpush1.bf16.msra.mxu0 %v180
    %218 = vmatprep.subr.bf16.mxu0 %v189
    %219 = vmatpush1.bf16.msra.mxu0 %v188
    %220 = vmatprep.subr.bf16.mxu0 0
    %221 = vmatpush1.bf16.msra.mxu0 0
    %222 = vmatprep.subr.bf16.mxu0 0
    %223 = vmatpush1.bf16.msra.mxu0 0
    %224 = vmatprep.subr.bf16.mxu0 0
    %225 = vmatpush1.bf16.msra.mxu0 0
    %226 = vmatprep.subr.bf16.mxu0 0
    %227 = vmatpush1.bf16.msra.mxu0 0
    %228 = vmatprep.subr.bf16.mxu0 0
    %229 = vmatpush1.bf16.msra.mxu0 0
    %230 = vmatprep.subr.bf16.mxu0 0
    %231 = vmatpush1.bf16.msra.mxu0 0
    %232 = vmatprep.subr.bf16.mxu0 0
    %233 = vmatpush1.bf16.msra.mxu0 0
    %234 = vmatprep.subr.bf16.mxu0 0
    %235 = vmatpush1.bf16.msra.mxu0 0
    %236 = vmatprep.subr.bf16.mxu0 0
    %237 = vmatpush1.bf16.msra.mxu0 0
    %238 = vmatprep.subr.bf16.mxu0 0
    %239 = vmatpush1.bf16.msra.mxu0 0
    %240 = vmatprep.subr.bf16.mxu0 0
    %241 = vmatpush1.bf16.msra.mxu0 0
    %242 = vmatprep.subr.bf16.mxu0 0
    %243 = vmatpush1.bf16.msra.mxu0 0
    %244 = vmatprep.subr.bf16.mxu0 0
    %245 = vmatpush1.bf16.msra.mxu0 0
    %246 = vmatprep.subr.bf16.mxu0 0
    %247 = vmatpush1.bf16.msra.mxu0 0
    %248 = vmatprep.mubr.bf16.mxu0 0
    %249 = vmatmul.mubr.bf16.gmra.mrb[0].mxu0 %v214
    %v250 = vpop.f32.mrb[0].mxu0
    %v251 = vadd.f32 %v95, %v250
    %v252 = vpop.f32.mrb[0].mxu0
    %v253 = vadd.f32 %v99, %v252
    %v254 = vpop.f32.mrb[0].mxu0
    %v255 = vpop.f32.mrb[0].mxu0
    %256 = vdwg.mxu0
    %257 = vmatprep.subr.bf16.mxu0 %v183
    %258 = vmatpush1.bf16.msra.mxu0 %v182
    %259 = vmatprep.subr.bf16.mxu0 %v191
    %260 = vmatpush1.bf16.msra.mxu0 %v190
    %261 = vmatprep.subr.bf16.mxu0 0
    %262 = vmatpush1.bf16.msra.mxu0 0
    %263 = vmatprep.subr.bf16.mxu0 0
    %264 = vmatpush1.bf16.msra.mxu0 0
    %265 = vmatprep.subr.bf16.mxu0 0
    %266 = vmatpush1.bf16.msra.mxu0 0
    %267 = vmatprep.subr.bf16.mxu0 0
    %268 = vmatpush1.bf16.msra.mxu0 0
    %269 = vmatprep.subr.bf16.mxu0 0
    %270 = vmatpush1.bf16.msra.mxu0 0
    %271 = vmatprep.subr.bf16.mxu0 0
    %272 = vmatpush1.bf16.msra.mxu0 0
    %273 = vmatprep.subr.bf16.mxu0 0
    %274 = vmatpush1.bf16.msra.mxu0 0
    %275 = vmatprep.subr.bf16.mxu0 0
    %276 = vmatpush1.bf16.msra.mxu0 0
    %277 = vmatprep.subr.bf16.mxu0 0
    %278 = vmatpush1.bf16.msra.mxu0 0
    %279 = vmatprep.subr.bf16.mxu0 0
    %280 = vmatpush1.bf16.msra.mxu0 0
    %281 = vmatprep.subr.bf16.mxu0 0
    %282 = vmatpush1.bf16.msra.mxu0 0
    %283 = vmatprep.subr.bf16.mxu0 0
    %284 = vmatpush1.bf16.msra.mxu0 0
    %285 = vmatprep.subr.bf16.mxu0 0
    %286 = vmatpush1.bf16.msra.mxu0 0
    %287 = vmatprep.subr.bf16.mxu0 0
    %288 = vmatpush1.bf16.msra.mxu0 0
    %289 = vmatprep.mubr.bf16.mxu0 0
    %290 = vmatmul.mubr.bf16.gmra.mrb[0].mxu0 %v214
    %v291 = vpop.f32.mrb[0].mxu0
    %v292 = vadd.f32 %v103, %v291
    %v293 = vpop.f32.mrb[0].mxu0
    %v294 = vadd.f32 %v107, %v293
    %v295 = vpop.f32.mrb[0].mxu0
    %v296 = vpop.f32.mrb[0].mxu0
    %297 = vdwg.mxu0
    %298 = vmatprep.subr.bf16.mxu0 %v185
    %299 = vmatpush1.bf16.msra.mxu0 %v184
    %300 = vmatprep.subr.bf16.mxu0 %v193
    %301 = vmatpush1.bf16.msra.mxu0 %v192
    %302 = vmatprep.subr.bf16.mxu0 0
    %303 = vmatpush1.bf16.msra.mxu0 0
    %304 = vmatprep.subr.bf16.mxu0 0
    %305 = vmatpush1.bf16.msra.mxu0 0
    %306 = vmatprep.subr.bf16.mxu0 0
    %307 = vmatpush1.bf16.msra.mxu0 0
    %308 = vmatprep.subr.bf16.mxu0 0
    %309 = vmatpush1.bf16.msra.mxu0 0
    %310 = vmatprep.subr.bf16.mxu0 0
    %311 = vmatpush1.bf16.msra.mxu0 0
    %312 = vmatprep.subr.bf16.mxu0 0
    %313 = vmatpush1.bf16.msra.mxu0 0
    %314 = vmatprep.subr.bf16.mxu0 0
    %315 = vmatpush1.bf16.msra.mxu0 0
    %316 = vmatprep.subr.bf16.mxu0 0
    %317 = vmatpush1.bf16.msra.mxu0 0
    %318 = vmatprep.subr.bf16.mxu0 0
    %319 = vmatpush1.bf16.msra.mxu0 0
    %320 = vmatprep.subr.bf16.mxu0 0
    %321 = vmatpush1.bf16.msra.mxu0 0
    %322 = vmatprep.subr.bf16.mxu0 0
    %323 = vmatpush1.bf16.msra.mxu0 0
    %324 = vmatprep.subr.bf16.mxu0 0
    %325 = vmatpush1.bf16.msra.mxu0 0
    %326 = vmatprep.subr.bf16.mxu0 0
    %327 = vmatpush1.bf16.msra.mxu0 0
    %328 = vmatprep.subr.bf16.mxu0 0
    %329 = vmatpush1.bf16.msra.mxu0 0
    %330 = vmatprep.mubr.bf16.mxu0 0
    %331 = vmatmul.mubr.bf16.gmra.mrb[0].mxu0 %v214
    %v332 = vpop.f32.mrb[0].mxu0
    %v333 = vadd.f32 %v111, %v332
    %v334 = vpop.f32.mrb[0].mxu0
    %v335 = vadd.f32 %v115, %v334
    %v336 = vpop.f32.mrb[0].mxu0
    %v337 = vpop.f32.mrb[0].mxu0
    %338 = vdwg.mxu0
    %339 = vmatprep.subr.bf16.mxu0 %v187
    %340 = vmatpush1.bf16.msra.mxu0 %v186
    %341 = vmatprep.subr.bf16.mxu0 %v195
    %342 = vmatpush1.bf16.msra.mxu0 %v194
    %343 = vmatprep.subr.bf16.mxu0 0
    %344 = vmatpush1.bf16.msra.mxu0 0
    %345 = vmatprep.subr.bf16.mxu0 0
    %346 = vmatpush1.bf16.msra.mxu0 0
    %347 = vmatprep.subr.bf16.mxu0 0
    %348 = vmatpush1.bf16.msra.mxu0 0
    %349 = vmatprep.subr.bf16.mxu0 0
    %350 = vmatpush1.bf16.msra.mxu0 0
    %351 = vmatprep.subr.bf16.mxu0 0
    %352 = vmatpush1.bf16.msra.mxu0 0
    %353 = vmatprep.subr.bf16.mxu0 0
    %354 = vmatpush1.bf16.msra.mxu0 0
    %355 = vmatprep.subr.bf16.mxu0 0
    %356 = vmatpush1.bf16.msra.mxu0 0
    %357 = vmatprep.subr.bf16.mxu0 0
    %358 = vmatpush1.bf16.msra.mxu0 0
    %359 = vmatprep.subr.bf16.mxu0 0
    %360 = vmatpush1.bf16.msra.mxu0 0
    %361 = vmatprep.subr.bf16.mxu0 0
    %362 = vmatpush1.bf16.msra.mxu0 0
    %363 = vmatprep.subr.bf16.mxu0 0
    %364 = vmatpush1.bf16.msra.mxu0 0
    %365 = vmatprep.subr.bf16.mxu0 0
    %366 = vmatpush1.bf16.msra.mxu0 0
    %367 = vmatprep.subr.bf16.mxu0 0
    %368 = vmatpush1.bf16.msra.mxu0 0
    %369 = vmatprep.subr.bf16.mxu0 0
    %370 = vmatpush1.bf16.msra.mxu0 0
    %371 = vmatprep.mubr.bf16.mxu0 0
    %372 = vmatmul.mubr.bf16.gmra.mrb[0].mxu0 %v214
    %v373 = vpop.f32.mrb[0].mxu0
    %v374 = vadd.f32 %v119, %v373
    %v375 = vpop.f32.mrb[0].mxu0
    %v376 = vadd.f32 %v123, %v375
    %v377 = vpop.f32.mrb[0].mxu0
    %v378 = vpop.f32.mrb[0].mxu0
    %379 = vdwg.mxu0
    %vm380 = vcmp.ge.f32.partialorder %v251, 0.0
    %vm381 = vcmp.ge.f32.partialorder %v253, 0.0
    %vm382 = vcmp.ge.f32.partialorder %v292, 0.0
    %vm383 = vcmp.ge.f32.partialorder %v294, 0.0
    %vm384 = vcmp.ge.f32.partialorder %v333, 0.0
    %vm385 = vcmp.ge.f32.partialorder %v335, 0.0
    %vm386 = vcmp.ge.f32.partialorder %v374, 0.0
    %vm387 = vcmp.ge.f32.partialorder %v376, 0.0
    %v388 = vmul.f32 %v251, 0.01
    %v389 = vmul.f32 %v253, 0.01
    %v390 = vmul.f32 %v292, 0.01
    %v391 = vmul.f32 %v294, 0.01
    %v392 = vmul.f32 %v333, 0.01
    %v393 = vmul.f32 %v335, 0.01
    %v394 = vmul.f32 %v374, 0.01
    %v395 = vmul.f32 %v376, 0.01
    %v396 = vsel %vm380, %v251, %v388
    %v397 = vsel %vm381, %v253, %v389
    %v398 = vsel %vm382, %v292, %v390
    %v399 = vsel %vm383, %v294, %v391
    %v400 = vsel %vm384, %v333, %v392
    %v401 = vsel %vm385, %v335, %v393
    %v402 = vsel %vm386, %v374, %v394
    %v403 = vsel %vm387, %v376, %v395
    %v404 = vpack.c.bf16 %v396, %v396
    %v405 = vpack.c.bf16 %v397, %v397
    %v406 = vpack.c.bf16 %v398, %v398
    %v407 = vpack.c.bf16 %v399, %v399
    %v408 = vpack.c.bf16 %v400, %v400
    %v409 = vpack.c.bf16 %v401, %v401
    %v410 = vpack.c.bf16 %v402, %v402
    %v411 = vpack.c.bf16 %v403, %v403
    %v412 = vld [vmem:[#allocation6] sm:$0xff]
    %v413 = vld [vmem:[#allocation6 + $0x8] sm:$0xff]
    %v414 = vld [vmem:[#allocation6 + $0x10] sm:$0xff]
    %v415 = vld [vmem:[#allocation6 + $0x18] sm:$0xff]
    %v416 = vld [vmem:[#allocation6 + $0x20] sm:$0xff]
    %v417 = vld [vmem:[#allocation6 + $0x28] sm:$0xff]
    %v418 = vld [vmem:[#allocation6 + $0x30] sm:$0xff]
    %v419 = vld [vmem:[#allocation6 + $0x38] sm:$0xff]
    %v420 = vld [vmem:[#allocation6 + $0x40] sm:$0xff]
    %v421 = vld [vmem:[#allocation6 + $0x48] sm:$0xff]
    %v422 = vld [vmem:[#allocation6 + $0x50] sm:$0xff]
    %v423 = vld [vmem:[#allocation6 + $0x58] sm:$0xff]
    %v424 = vld [vmem:[#allocation6 + $0x60] sm:$0xff]
    %v425 = vld [vmem:[#allocation6 + $0x68] sm:$0xff]
    %v426 = vld [vmem:[#allocation6 + $0x70] sm:$0xff]
    %v427 = vld [vmem:[#allocation6 + $0x78] sm:$0xff]
    %v428 = vld [vmem:[#allocation6 + $0x80] sm:$0xff]
    %v429 = vld [vmem:[#allocation6 + $0x88] sm:$0xff]
    %v430 = vld [vmem:[#allocation6 + $0x90] sm:$0xff]
    %v431 = vld [vmem:[#allocation6 + $0x98] sm:$0xff]
    %v432 = vld [vmem:[#allocation6 + $0xa0] sm:$0xff]
    %v433 = vld [vmem:[#allocation6 + $0xa8] sm:$0xff]
    %v434 = vld [vmem:[#allocation6 + $0xb0] sm:$0xff]
    %v435 = vld [vmem:[#allocation6 + $0xb8] sm:$0xff]
    %v436 = vld [vmem:[#allocation6 + $0xc0] sm:$0xff]
    %v437 = vld [vmem:[#allocation6 + $0xc8] sm:$0xff]
    %v438 = vld [vmem:[#allocation6 + $0xd0] sm:$0xff]
    %v439 = vld [vmem:[#allocation6 + $0xd8] sm:$0xff]
    %v440 = vld [vmem:[#allocation6 + $0xe0] sm:$0xff]
    %v441 = vld [vmem:[#allocation6 + $0xe8] sm:$0xff]
    %v442 = vld [vmem:[#allocation6 + $0xf0] sm:$0xff]
    %v443 = vld [vmem:[#allocation6 + $0xf8] sm:$0xff]
    %v444 = vld [vmem:[#allocation6 + $0x100] sm:$0xff]
    %v445 = vld [vmem:[#allocation6 + $0x108] sm:$0xff]
    %v446 = vld [vmem:[#allocation6 + $0x110] sm:$0xff]
    %v447 = vld [vmem:[#allocation6 + $0x118] sm:$0xff]
    %v448 = vld [vmem:[#allocation6 + $0x120] sm:$0xff]
    %v449 = vld [vmem:[#allocation6 + $0x128] sm:$0xff]
    %v450 = vld [vmem:[#allocation6 + $0x130] sm:$0xff]
    %v451 = vld [vmem:[#allocation6 + $0x138] sm:$0xff]
    %v452 = vld [vmem:[#allocation6 + $0x140] sm:$0xff]
    %v453 = vld [vmem:[#allocation6 + $0x148] sm:$0xff]
    %v454 = vld [vmem:[#allocation6 + $0x150] sm:$0xff]
    %v455 = vld [vmem:[#allocation6 + $0x158] sm:$0xff]
    %v456 = vld [vmem:[#allocation6 + $0x160] sm:$0xff]
    %v457 = vld [vmem:[#allocation6 + $0x168] sm:$0xff]
    %v458 = vld [vmem:[#allocation6 + $0x170] sm:$0xff]
    %v459 = vld [vmem:[#allocation6 + $0x178] sm:$0xff]
    %v460 = vld [vmem:[#allocation6 + $0x180] sm:$0xff]
    %v461 = vld [vmem:[#allocation6 + $0x188] sm:$0xff]
    %v462 = vld [vmem:[#allocation6 + $0x190] sm:$0xff]
    %v463 = vld [vmem:[#allocation6 + $0x198] sm:$0xff]
    %v464 = vld [vmem:[#allocation6 + $0x1a0] sm:$0xff]
    %v465 = vld [vmem:[#allocation6 + $0x1a8] sm:$0xff]
    %v466 = vld [vmem:[#allocation6 + $0x1b0] sm:$0xff]
    %v467 = vld [vmem:[#allocation6 + $0x1b8] sm:$0xff]
    %v468 = vld [vmem:[#allocation6 + $0x1c0] sm:$0xff]
    %v469 = vld [vmem:[#allocation6 + $0x1c8] sm:$0xff]
    %v470 = vld [vmem:[#allocation6 + $0x1d0] sm:$0xff]
    %v471 = vld [vmem:[#allocation6 + $0x1d8] sm:$0xff]
    %v472 = vld [vmem:[#allocation6 + $0x1e0] sm:$0xff]
    %v473 = vld [vmem:[#allocation6 + $0x1e8] sm:$0xff]
    %v474 = vld [vmem:[#allocation6 + $0x1f0] sm:$0xff]
    %v475 = vld [vmem:[#allocation6 + $0x1f8] sm:$0xff]
    %v476 = vld [vmem:[#allocation6 + $0x200] sm:$0xff]
    %v477 = vld [vmem:[#allocation6 + $0x208] sm:$0xff]
    %v478 = vld [vmem:[#allocation6 + $0x210] sm:$0xff]
    %v479 = vld [vmem:[#allocation6 + $0x218] sm:$0xff]
    %v480 = vld [vmem:[#allocation6 + $0x220] sm:$0xff]
    %v481 = vld [vmem:[#allocation6 + $0x228] sm:$0xff]
    %v482 = vld [vmem:[#allocation6 + $0x230] sm:$0xff]
    %v483 = vld [vmem:[#allocation6 + $0x238] sm:$0xff]
    %v484 = vld [vmem:[#allocation6 + $0x240] sm:$0xff]
    %v485 = vld [vmem:[#allocation6 + $0x248] sm:$0xff]
    %v486 = vld [vmem:[#allocation6 + $0x250] sm:$0xff]
    %v487 = vld [vmem:[#allocation6 + $0x258] sm:$0xff]
    %v488 = vld [vmem:[#allocation6 + $0x260] sm:$0xff]
    %v489 = vld [vmem:[#allocation6 + $0x268] sm:$0xff]
    %v490 = vld [vmem:[#allocation6 + $0x270] sm:$0xff]
    %v491 = vld [vmem:[#allocation6 + $0x278] sm:$0xff]
    %v492 = vld [vmem:[#allocation6 + $0x280] sm:$0xff]
    %v493 = vld [vmem:[#allocation6 + $0x288] sm:$0xff]
    %v494 = vld [vmem:[#allocation6 + $0x290] sm:$0xff]
    %v495 = vld [vmem:[#allocation6 + $0x298] sm:$0xff]
    %v496 = vld [vmem:[#allocation6 + $0x2a0] sm:$0xff]
    %v497 = vld [vmem:[#allocation6 + $0x2a8] sm:$0xff]
    %v498 = vld [vmem:[#allocation6 + $0x2b0] sm:$0xff]
    %v499 = vld [vmem:[#allocation6 + $0x2b8] sm:$0xff]
    %v500 = vld [vmem:[#allocation6 + $0x2c0] sm:$0xff]
    %v501 = vld [vmem:[#allocation6 + $0x2c8] sm:$0xff]
    %v502 = vld [vmem:[#allocation6 + $0x2d0] sm:$0xff]
    %v503 = vld [vmem:[#allocation6 + $0x2d8] sm:$0xff]
    %v504 = vld [vmem:[#allocation6 + $0x2e0] sm:$0xff]
    %v505 = vld [vmem:[#allocation6 + $0x2e8] sm:$0xff]
    %v506 = vld [vmem:[#allocation6 + $0x2f0] sm:$0xff]
    %v507 = vld [vmem:[#allocation6 + $0x2f8] sm:$0xff]
    %v508 = vld [vmem:[#allocation6 + $0x300] sm:$0xff]
    %v509 = vld [vmem:[#allocation6 + $0x308] sm:$0xff]
    %v510 = vld [vmem:[#allocation6 + $0x310] sm:$0xff]
    %v511 = vld [vmem:[#allocation6 + $0x318] sm:$0xff]
    %v512 = vld [vmem:[#allocation6 + $0x320] sm:$0xff]
    %v513 = vld [vmem:[#allocation6 + $0x328] sm:$0xff]
    %v514 = vld [vmem:[#allocation6 + $0x330] sm:$0xff]
    %v515 = vld [vmem:[#allocation6 + $0x338] sm:$0xff]
    %v516 = vld [vmem:[#allocation6 + $0x340] sm:$0xff]
    %v517 = vld [vmem:[#allocation6 + $0x348] sm:$0xff]
    %v518 = vld [vmem:[#allocation6 + $0x350] sm:$0xff]
    %v519 = vld [vmem:[#allocation6 + $0x358] sm:$0xff]
    %v520 = vld [vmem:[#allocation6 + $0x360] sm:$0xff]
    %v521 = vld [vmem:[#allocation6 + $0x368] sm:$0xff]
    %v522 = vld [vmem:[#allocation6 + $0x370] sm:$0xff]
    %v523 = vld [vmem:[#allocation6 + $0x378] sm:$0xff]
    %v524 = vld [vmem:[#allocation6 + $0x380] sm:$0xff]
    %v525 = vld [vmem:[#allocation6 + $0x388] sm:$0xff]
    %v526 = vld [vmem:[#allocation6 + $0x390] sm:$0xff]
    %v527 = vld [vmem:[#allocation6 + $0x398] sm:$0xff]
    %v528 = vld [vmem:[#allocation6 + $0x3a0] sm:$0xff]
    %v529 = vld [vmem:[#allocation6 + $0x3a8] sm:$0xff]
    %v530 = vld [vmem:[#allocation6 + $0x3b0] sm:$0xff]
    %v531 = vld [vmem:[#allocation6 + $0x3b8] sm:$0xff]
    %v532 = vld [vmem:[#allocation6 + $0x3c0] sm:$0xff]
    %v533 = vld [vmem:[#allocation6 + $0x3c8] sm:$0xff]
    %v534 = vld [vmem:[#allocation6 + $0x3d0] sm:$0xff]
    %v535 = vld [vmem:[#allocation6 + $0x3d8] sm:$0xff]
    %v536 = vld [vmem:[#allocation6 + $0x3e0] sm:$0xff]
    %v537 = vld [vmem:[#allocation6 + $0x3e8] sm:$0xff]
    %v538 = vld [vmem:[#allocation6 + $0x3f0] sm:$0xff]
    %v539 = vld [vmem:[#allocation6 + $0x3f8] sm:$0xff]
    %v540 = vld [vmem:[#allocation6 + $0x400] sm:$0xff]
    %v541 = vld [vmem:[#allocation6 + $0x408] sm:$0xff]
    %v542 = vld [vmem:[#allocation6 + $0x410] sm:$0xff]
    %v543 = vld [vmem:[#allocation6 + $0x418] sm:$0xff]
    %v544 = vld [vmem:[#allocation6 + $0x420] sm:$0xff]
    %v545 = vld [vmem:[#allocation6 + $0x428] sm:$0xff]
    %v546 = vld [vmem:[#allocation6 + $0x430] sm:$0xff]
    %v547 = vld [vmem:[#allocation6 + $0x438] sm:$0xff]
    %v548 = vld [vmem:[#allocation6 + $0x440] sm:$0xff]
    %v549 = vld [vmem:[#allocation6 + $0x448] sm:$0xff]
    %v550 = vld [vmem:[#allocation6 + $0x450] sm:$0xff]
    %v551 = vld [vmem:[#allocation6 + $0x458] sm:$0xff]
    %v552 = vld [vmem:[#allocation6 + $0x460] sm:$0xff]
    %v553 = vld [vmem:[#allocation6 + $0x468] sm:$0xff]
    %v554 = vld [vmem:[#allocation6 + $0x470] sm:$0xff]
    %v555 = vld [vmem:[#allocation6 + $0x478] sm:$0xff]
    %v556 = vld [vmem:[#allocation6 + $0x480] sm:$0xff]
    %v557 = vld [vmem:[#allocation6 + $0x488] sm:$0xff]
    %v558 = vld [vmem:[#allocation6 + $0x490] sm:$0xff]
    %v559 = vld [vmem:[#allocation6 + $0x498] sm:$0xff]
    %v560 = vld [vmem:[#allocation6 + $0x4a0] sm:$0xff]
    %v561 = vld [vmem:[#allocation6 + $0x4a8] sm:$0xff]
    %v562 = vld [vmem:[#allocation6 + $0x4b0] sm:$0xff]
    %v563 = vld [vmem:[#allocation6 + $0x4b8] sm:$0xff]
    %v564 = vld [vmem:[#allocation6 + $0x4c0] sm:$0xff]
    %v565 = vld [vmem:[#allocation6 + $0x4c8] sm:$0xff]
    %v566 = vld [vmem:[#allocation6 + $0x4d0] sm:$0xff]
    %v567 = vld [vmem:[#allocation6 + $0x4d8] sm:$0xff]
    %v568 = vld [vmem:[#allocation6 + $0x4e0] sm:$0xff]
    %v569 = vld [vmem:[#allocation6 + $0x4e8] sm:$0xff]
    %v570 = vld [vmem:[#allocation6 + $0x4f0] sm:$0xff]
    %v571 = vld [vmem:[#allocation6 + $0x4f8] sm:$0xff]
    %v572 = vld [vmem:[#allocation6 + $0x500] sm:$0xff]
    %v573 = vld [vmem:[#allocation6 + $0x508] sm:$0xff]
    %v574 = vld [vmem:[#allocation6 + $0x510] sm:$0xff]
    %v575 = vld [vmem:[#allocation6 + $0x518] sm:$0xff]
    %v576 = vld [vmem:[#allocation6 + $0x520] sm:$0xff]
    %v577 = vld [vmem:[#allocation6 + $0x528] sm:$0xff]
    %v578 = vld [vmem:[#allocation6 + $0x530] sm:$0xff]
    %v579 = vld [vmem:[#allocation6 + $0x538] sm:$0xff]
    %v580 = vld [vmem:[#allocation6 + $0x540] sm:$0xff]
    %v581 = vld [vmem:[#allocation6 + $0x548] sm:$0xff]
    %v582 = vld [vmem:[#allocation6 + $0x550] sm:$0xff]
    %v583 = vld [vmem:[#allocation6 + $0x558] sm:$0xff]
    %v584 = vld [vmem:[#allocation6 + $0x560] sm:$0xff]
    %v585 = vld [vmem:[#allocation6 + $0x568] sm:$0xff]
    %v586 = vld [vmem:[#allocation6 + $0x570] sm:$0xff]
    %v587 = vld [vmem:[#allocation6 + $0x578] sm:$0xff]
    %v588 = vld [vmem:[#allocation6 + $0x580] sm:$0xff]
    %v589 = vld [vmem:[#allocation6 + $0x588] sm:$0xff]
    %v590 = vld [vmem:[#allocation6 + $0x590] sm:$0xff]
    %v591 = vld [vmem:[#allocation6 + $0x598] sm:$0xff]
    %v592 = vld [vmem:[#allocation6 + $0x5a0] sm:$0xff]
    %v593 = vld [vmem:[#allocation6 + $0x5a8] sm:$0xff]
    %v594 = vld [vmem:[#allocation6 + $0x5b0] sm:$0xff]
    %v595 = vld [vmem:[#allocation6 + $0x5b8] sm:$0xff]
    %v596 = vld [vmem:[#allocation6 + $0x5c0] sm:$0xff]
    %v597 = vld [vmem:[#allocation6 + $0x5c8] sm:$0xff]
    %v598 = vld [vmem:[#allocation6 + $0x5d0] sm:$0xff]
    %v599 = vld [vmem:[#allocation6 + $0x5d8] sm:$0xff]
    %v600 = vld [vmem:[#allocation6 + $0x5e0] sm:$0xff]
    %v601 = vld [vmem:[#allocation6 + $0x5e8] sm:$0xff]
    %v602 = vld [vmem:[#allocation6 + $0x5f0] sm:$0xff]
    %v603 = vld [vmem:[#allocation6 + $0x5f8] sm:$0xff]
    %v604 = vld [vmem:[#allocation6 + $0x600] sm:$0xff]
    %v605 = vld [vmem:[#allocation6 + $0x608] sm:$0xff]
    %v606 = vld [vmem:[#allocation6 + $0x610] sm:$0xff]
    %v607 = vld [vmem:[#allocation6 + $0x618] sm:$0xff]
    %v608 = vld [vmem:[#allocation6 + $0x620] sm:$0xff]
    %v609 = vld [vmem:[#allocation6 + $0x628] sm:$0xff]
    %v610 = vld [vmem:[#allocation6 + $0x630] sm:$0xff]
    %v611 = vld [vmem:[#allocation6 + $0x638] sm:$0xff]
    %v612 = vld [vmem:[#allocation6 + $0x640] sm:$0xff]
    %v613 = vld [vmem:[#allocation6 + $0x648] sm:$0xff]
    %v614 = vld [vmem:[#allocation6 + $0x650] sm:$0xff]
    %v615 = vld [vmem:[#allocation6 + $0x658] sm:$0xff]
    %v616 = vld [vmem:[#allocation6 + $0x660] sm:$0xff]
    %v617 = vld [vmem:[#allocation6 + $0x668] sm:$0xff]
    %v618 = vld [vmem:[#allocation6 + $0x670] sm:$0xff]
    %v619 = vld [vmem:[#allocation6 + $0x678] sm:$0xff]
    %v620 = vld [vmem:[#allocation6 + $0x680] sm:$0xff]
    %v621 = vld [vmem:[#allocation6 + $0x688] sm:$0xff]
    %v622 = vld [vmem:[#allocation6 + $0x690] sm:$0xff]
    %v623 = vld [vmem:[#allocation6 + $0x698] sm:$0xff]
    %v624 = vld [vmem:[#allocation6 + $0x6a0] sm:$0xff]
    %v625 = vld [vmem:[#allocation6 + $0x6a8] sm:$0xff]
    %v626 = vld [vmem:[#allocation6 + $0x6b0] sm:$0xff]
    %v627 = vld [vmem:[#allocation6 + $0x6b8] sm:$0xff]
    %v628 = vld [vmem:[#allocation6 + $0x6c0] sm:$0xff]
    %v629 = vld [vmem:[#allocation6 + $0x6c8] sm:$0xff]
    %v630 = vld [vmem:[#allocation6 + $0x6d0] sm:$0xff]
    %v631 = vld [vmem:[#allocation6 + $0x6d8] sm:$0xff]
    %v632 = vld [vmem:[#allocation6 + $0x6e0] sm:$0xff]
    %v633 = vld [vmem:[#allocation6 + $0x6e8] sm:$0xff]
    %v634 = vld [vmem:[#allocation6 + $0x6f0] sm:$0xff]
    %v635 = vld [vmem:[#allocation6 + $0x6f8] sm:$0xff]
    %v636 = vld [vmem:[#allocation6 + $0x700] sm:$0xff]
    %v637 = vld [vmem:[#allocation6 + $0x708] sm:$0xff]
    %v638 = vld [vmem:[#allocation6 + $0x710] sm:$0xff]
    %v639 = vld [vmem:[#allocation6 + $0x718] sm:$0xff]
    %v640 = vld [vmem:[#allocation6 + $0x720] sm:$0xff]
    %v641 = vld [vmem:[#allocation6 + $0x728] sm:$0xff]
    %v642 = vld [vmem:[#allocation6 + $0x730] sm:$0xff]
    %v643 = vld [vmem:[#allocation6 + $0x738] sm:$0xff]
    %v644 = vld [vmem:[#allocation6 + $0x740] sm:$0xff]
    %v645 = vld [vmem:[#allocation6 + $0x748] sm:$0xff]
    %v646 = vld [vmem:[#allocation6 + $0x750] sm:$0xff]
    %v647 = vld [vmem:[#allocation6 + $0x758] sm:$0xff]
    %v648 = vld [vmem:[#allocation6 + $0x760] sm:$0xff]
    %v649 = vld [vmem:[#allocation6 + $0x768] sm:$0xff]
    %v650 = vld [vmem:[#allocation6 + $0x770] sm:$0xff]
    %v651 = vld [vmem:[#allocation6 + $0x778] sm:$0xff]
    %v652 = vld [vmem:[#allocation6 + $0x780] sm:$0xff]
    %v653 = vld [vmem:[#allocation6 + $0x788] sm:$0xff]
    %v654 = vld [vmem:[#allocation6 + $0x790] sm:$0xff]
    %v655 = vld [vmem:[#allocation6 + $0x798] sm:$0xff]
    %v656 = vld [vmem:[#allocation6 + $0x7a0] sm:$0xff]
    %v657 = vld [vmem:[#allocation6 + $0x7a8] sm:$0xff]
    %v658 = vld [vmem:[#allocation6 + $0x7b0] sm:$0xff]
    %v659 = vld [vmem:[#allocation6 + $0x7b8] sm:$0xff]
    %v660 = vld [vmem:[#allocation6 + $0x7c0] sm:$0xff]
    %v661 = vld [vmem:[#allocation6 + $0x7c8] sm:$0xff]
    %v662 = vld [vmem:[#allocation6 + $0x7d0] sm:$0xff]
    %v663 = vld [vmem:[#allocation6 + $0x7d8] sm:$0xff]
    %v664 = vld [vmem:[#allocation6 + $0x7e0] sm:$0xff]
    %v665 = vld [vmem:[#allocation6 + $0x7e8] sm:$0xff]
    %v666 = vld [vmem:[#allocation6 + $0x7f0] sm:$0xff]
    %v667 = vld [vmem:[#allocation6 + $0x7f8] sm:$0xff]
    %v668 = vld [vmem:[#allocation6 + $0x800] sm:$0xff]
    %v669 = vld [vmem:[#allocation6 + $0x808] sm:$0xff]
    %v670 = vld [vmem:[#allocation6 + $0x810] sm:$0xff]
    %v671 = vld [vmem:[#allocation6 + $0x818] sm:$0xff]
    %v672 = vld [vmem:[#allocation6 + $0x820] sm:$0xff]
    %v673 = vld [vmem:[#allocation6 + $0x828] sm:$0xff]
    %v674 = vld [vmem:[#allocation6 + $0x830] sm:$0xff]
    %v675 = vld [vmem:[#allocation6 + $0x838] sm:$0xff]
    %v676 = vld [vmem:[#allocation6 + $0x840] sm:$0xff]
    %v677 = vld [vmem:[#allocation6 + $0x848] sm:$0xff]
    %v678 = vld [vmem:[#allocation6 + $0x850] sm:$0xff]
    %v679 = vld [vmem:[#allocation6 + $0x858] sm:$0xff]
    %v680 = vld [vmem:[#allocation6 + $0x860] sm:$0xff]
    %v681 = vld [vmem:[#allocation6 + $0x868] sm:$0xff]
    %v682 = vld [vmem:[#allocation6 + $0x870] sm:$0xff]
    %v683 = vld [vmem:[#allocation6 + $0x878] sm:$0xff]
    %v684 = vld [vmem:[#allocation6 + $0x880] sm:$0xff]
    %v685 = vld [vmem:[#allocation6 + $0x888] sm:$0xff]
    %v686 = vld [vmem:[#allocation6 + $0x890] sm:$0xff]
    %v687 = vld [vmem:[#allocation6 + $0x898] sm:$0xff]
    %v688 = vld [vmem:[#allocation6 + $0x8a0] sm:$0xff]
    %v689 = vld [vmem:[#allocation6 + $0x8a8] sm:$0xff]
    %v690 = vld [vmem:[#allocation6 + $0x8b0] sm:$0xff]
    %v691 = vld [vmem:[#allocation6 + $0x8b8] sm:$0xff]
    %v692 = vld [vmem:[#allocation6 + $0x8c0] sm:$0xff]
    %v693 = vld [vmem:[#allocation6 + $0x8c8] sm:$0xff]
    %v694 = vld [vmem:[#allocation6 + $0x8d0] sm:$0xff]
    %v695 = vld [vmem:[#allocation6 + $0x8d8] sm:$0xff]
    %v696 = vld [vmem:[#allocation6 + $0x8e0] sm:$0xff]
    %v697 = vld [vmem:[#allocation6 + $0x8e8] sm:$0xff]
    %v698 = vld [vmem:[#allocation6 + $0x8f0] sm:$0xff]
    %v699 = vld [vmem:[#allocation6 + $0x8f8] sm:$0xff]
    %v700 = vld [vmem:[#allocation6 + $0x900] sm:$0xff]
    %v701 = vld [vmem:[#allocation6 + $0x908] sm:$0xff]
    %v702 = vld [vmem:[#allocation6 + $0x910] sm:$0xff]
    %v703 = vld [vmem:[#allocation6 + $0x918] sm:$0xff]
    %v704 = vld [vmem:[#allocation6 + $0x920] sm:$0xff]
    %v705 = vld [vmem:[#allocation6 + $0x928] sm:$0xff]
    %v706 = vld [vmem:[#allocation6 + $0x930] sm:$0xff]
    %v707 = vld [vmem:[#allocation6 + $0x938] sm:$0xff]
    %v708 = vld [vmem:[#allocation6 + $0x940] sm:$0xff]
    %v709 = vld [vmem:[#allocation6 + $0x948] sm:$0xff]
    %v710 = vld [vmem:[#allocation6 + $0x950] sm:$0xff]
    %v711 = vld [vmem:[#allocation6 + $0x958] sm:$0xff]
    %v712 = vld [vmem:[#allocation6 + $0x960] sm:$0xff]
    %v713 = vld [vmem:[#allocation6 + $0x968] sm:$0xff]
    %v714 = vld [vmem:[#allocation6 + $0x970] sm:$0xff]
    %v715 = vld [vmem:[#allocation6 + $0x978] sm:$0xff]
    %v716 = vld [vmem:[#allocation6 + $0x980] sm:$0xff]
    %v717 = vld [vmem:[#allocation6 + $0x988] sm:$0xff]
    %v718 = vld [vmem:[#allocation6 + $0x990] sm:$0xff]
    %v719 = vld [vmem:[#allocation6 + $0x998] sm:$0xff]
    %v720 = vld [vmem:[#allocation6 + $0x9a0] sm:$0xff]
    %v721 = vld [vmem:[#allocation6 + $0x9a8] sm:$0xff]
    %v722 = vld [vmem:[#allocation6 + $0x9b0] sm:$0xff]
    %v723 = vld [vmem:[#allocation6 + $0x9b8] sm:$0xff]
    %v724 = vld [vmem:[#allocation6 + $0x9c0] sm:$0xff]
    %v725 = vld [vmem:[#allocation6 + $0x9c8] sm:$0xff]
    %v726 = vld [vmem:[#allocation6 + $0x9d0] sm:$0xff]
    %v727 = vld [vmem:[#allocation6 + $0x9d8] sm:$0xff]
    %v728 = vld [vmem:[#allocation6 + $0x9e0] sm:$0xff]
    %v729 = vld [vmem:[#allocation6 + $0x9e8] sm:$0xff]
    %v730 = vld [vmem:[#allocation6 + $0x9f0] sm:$0xff]
    %v731 = vld [vmem:[#allocation6 + $0x9f8] sm:$0xff]
    %v732 = vld [vmem:[#allocation6 + $0xa00] sm:$0xff]
    %v733 = vld [vmem:[#allocation6 + $0xa08] sm:$0xff]
    %v734 = vld [vmem:[#allocation6 + $0xa10] sm:$0xff]
    %v735 = vld [vmem:[#allocation6 + $0xa18] sm:$0xff]
    %v736 = vld [vmem:[#allocation6 + $0xa20] sm:$0xff]
    %v737 = vld [vmem:[#allocation6 + $0xa28] sm:$0xff]
    %v738 = vld [vmem:[#allocation6 + $0xa30] sm:$0xff]
    %v739 = vld [vmem:[#allocation6 + $0xa38] sm:$0xff]
    %v740 = vld [vmem:[#allocation6 + $0xa40] sm:$0xff]
    %v741 = vld [vmem:[#allocation6 + $0xa48] sm:$0xff]
    %v742 = vld [vmem:[#allocation6 + $0xa50] sm:$0xff]
    %v743 = vld [vmem:[#allocation6 + $0xa58] sm:$0xff]
    %v744 = vld [vmem:[#allocation6 + $0xa60] sm:$0xff]
    %v745 = vld [vmem:[#allocation6 + $0xa68] sm:$0xff]
    %v746 = vld [vmem:[#allocation6 + $0xa70] sm:$0xff]
    %v747 = vld [vmem:[#allocation6 + $0xa78] sm:$0xff]
    %v748 = vld [vmem:[#allocation6 + $0xa80] sm:$0xff]
    %v749 = vld [vmem:[#allocation6 + $0xa88] sm:$0xff]
    %v750 = vld [vmem:[#allocation6 + $0xa90] sm:$0xff]
    %v751 = vld [vmem:[#allocation6 + $0xa98] sm:$0xff]
    %v752 = vld [vmem:[#allocation6 + $0xaa0] sm:$0xff]
    %v753 = vld [vmem:[#allocation6 + $0xaa8] sm:$0xff]
    %v754 = vld [vmem:[#allocation6 + $0xab0] sm:$0xff]
    %v755 = vld [vmem:[#allocation6 + $0xab8] sm:$0xff]
    %v756 = vld [vmem:[#allocation6 + $0xac0] sm:$0xff]
    %v757 = vld [vmem:[#allocation6 + $0xac8] sm:$0xff]
    %v758 = vld [vmem:[#allocation6 + $0xad0] sm:$0xff]
    %v759 = vld [vmem:[#allocation6 + $0xad8] sm:$0xff]
    %v760 = vld [vmem:[#allocation6 + $0xae0] sm:$0xff]
    %v761 = vld [vmem:[#allocation6 + $0xae8] sm:$0xff]
    %v762 = vld [vmem:[#allocation6 + $0xaf0] sm:$0xff]
    %v763 = vld [vmem:[#allocation6 + $0xaf8] sm:$0xff]
    %v764 = vld [vmem:[#allocation6 + $0xb00] sm:$0xff]
    %v765 = vld [vmem:[#allocation6 + $0xb08] sm:$0xff]
    %v766 = vld [vmem:[#allocation6 + $0xb10] sm:$0xff]
    %v767 = vld [vmem:[#allocation6 + $0xb18] sm:$0xff]
    %v768 = vld [vmem:[#allocation6 + $0xb20] sm:$0xff]
    %v769 = vld [vmem:[#allocation6 + $0xb28] sm:$0xff]
    %v770 = vld [vmem:[#allocation6 + $0xb30] sm:$0xff]
    %v771 = vld [vmem:[#allocation6 + $0xb38] sm:$0xff]
    %v772 = vld [vmem:[#allocation6 + $0xb40] sm:$0xff]
    %v773 = vld [vmem:[#allocation6 + $0xb48] sm:$0xff]
    %v774 = vld [vmem:[#allocation6 + $0xb50] sm:$0xff]
    %v775 = vld [vmem:[#allocation6 + $0xb58] sm:$0xff]
    %v776 = vld [vmem:[#allocation6 + $0xb60] sm:$0xff]
    %v777 = vld [vmem:[#allocation6 + $0xb68] sm:$0xff]
    %v778 = vld [vmem:[#allocation6 + $0xb70] sm:$0xff]
    %v779 = vld [vmem:[#allocation6 + $0xb78] sm:$0xff]
    %v780 = vld [vmem:[#allocation6 + $0xb80] sm:$0xff]
    %v781 = vld [vmem:[#allocation6 + $0xb88] sm:$0xff]
    %v782 = vld [vmem:[#allocation6 + $0xb90] sm:$0xff]
    %v783 = vld [vmem:[#allocation6 + $0xb98] sm:$0xff]
    %v784 = vld [vmem:[#allocation6 + $0xba0] sm:$0xff]
    %v785 = vld [vmem:[#allocation6 + $0xba8] sm:$0xff]
    %v786 = vld [vmem:[#allocation6 + $0xbb0] sm:$0xff]
    %v787 = vld [vmem:[#allocation6 + $0xbb8] sm:$0xff]
    %v788 = vld [vmem:[#allocation6 + $0xbc0] sm:$0xff]
    %v789 = vld [vmem:[#allocation6 + $0xbc8] sm:$0xff]
    %v790 = vld [vmem:[#allocation6 + $0xbd0] sm:$0xff]
    %v791 = vld [vmem:[#allocation6 + $0xbd8] sm:$0xff]
    %v792 = vld [vmem:[#allocation6 + $0xbe0] sm:$0xff]
    %v793 = vld [vmem:[#allocation6 + $0xbe8] sm:$0xff]
    %v794 = vld [vmem:[#allocation6 + $0xbf0] sm:$0xff]
    %v795 = vld [vmem:[#allocation6 + $0xbf8] sm:$0xff]
    %v796 = vld [vmem:[#allocation6 + $0xc00] sm:$0xff]
    %v797 = vld [vmem:[#allocation6 + $0xc08] sm:$0xff]
    %v798 = vld [vmem:[#allocation6 + $0xc10] sm:$0xff]
    %v799 = vld [vmem:[#allocation6 + $0xc18] sm:$0xff]
    %v800 = vld [vmem:[#allocation6 + $0xc20] sm:$0xff]
    %v801 = vld [vmem:[#allocation6 + $0xc28] sm:$0xff]
    %v802 = vld [vmem:[#allocation6 + $0xc30] sm:$0xff]
    %v803 = vld [vmem:[#allocation6 + $0xc38] sm:$0xff]
    %v804 = vld [vmem:[#allocation6 + $0xc40] sm:$0xff]
    %v805 = vld [vmem:[#allocation6 + $0xc48] sm:$0xff]
    %v806 = vld [vmem:[#allocation6 + $0xc50] sm:$0xff]
    %v807 = vld [vmem:[#allocation6 + $0xc58] sm:$0xff]
    %v808 = vld [vmem:[#allocation6 + $0xc60] sm:$0xff]
    %v809 = vld [vmem:[#allocation6 + $0xc68] sm:$0xff]
    %v810 = vld [vmem:[#allocation6 + $0xc70] sm:$0xff]
    %v811 = vld [vmem:[#allocation6 + $0xc78] sm:$0xff]
    %v812 = vld [vmem:[#allocation6 + $0xc80] sm:$0xff]
    %v813 = vld [vmem:[#allocation6 + $0xc88] sm:$0xff]
    %v814 = vld [vmem:[#allocation6 + $0xc90] sm:$0xff]
    %v815 = vld [vmem:[#allocation6 + $0xc98] sm:$0xff]
    %v816 = vld [vmem:[#allocation6 + $0xca0] sm:$0xff]
    %v817 = vld [vmem:[#allocation6 + $0xca8] sm:$0xff]
    %v818 = vld [vmem:[#allocation6 + $0xcb0] sm:$0xff]
    %v819 = vld [vmem:[#allocation6 + $0xcb8] sm:$0xff]
    %v820 = vld [vmem:[#allocation6 + $0xcc0] sm:$0xff]
    %v821 = vld [vmem:[#allocation6 + $0xcc8] sm:$0xff]
    %v822 = vld [vmem:[#allocation6 + $0xcd0] sm:$0xff]
    %v823 = vld [vmem:[#allocation6 + $0xcd8] sm:$0xff]
    %v824 = vld [vmem:[#allocation6 + $0xce0] sm:$0xff]
    %v825 = vld [vmem:[#allocation6 + $0xce8] sm:$0xff]
    %v826 = vld [vmem:[#allocation6 + $0xcf0] sm:$0xff]
    %v827 = vld [vmem:[#allocation6 + $0xcf8] sm:$0xff]
    %v828 = vld [vmem:[#allocation6 + $0xd00] sm:$0xff]
    %v829 = vld [vmem:[#allocation6 + $0xd08] sm:$0xff]
    %v830 = vld [vmem:[#allocation6 + $0xd10] sm:$0xff]
    %v831 = vld [vmem:[#allocation6 + $0xd18] sm:$0xff]
    %v832 = vld [vmem:[#allocation6 + $0xd20] sm:$0xff]
    %v833 = vld [vmem:[#allocation6 + $0xd28] sm:$0xff]
    %v834 = vld [vmem:[#allocation6 + $0xd30] sm:$0xff]
    %v835 = vld [vmem:[#allocation6 + $0xd38] sm:$0xff]
    %v836 = vld [vmem:[#allocation6 + $0xd40] sm:$0xff]
    %v837 = vld [vmem:[#allocation6 + $0xd48] sm:$0xff]
    %v838 = vld [vmem:[#allocation6 + $0xd50] sm:$0xff]
    %v839 = vld [vmem:[#allocation6 + $0xd58] sm:$0xff]
    %v840 = vld [vmem:[#allocation6 + $0xd60] sm:$0xff]
    %v841 = vld [vmem:[#allocation6 + $0xd68] sm:$0xff]
    %v842 = vld [vmem:[#allocation6 + $0xd70] sm:$0xff]
    %v843 = vld [vmem:[#allocation6 + $0xd78] sm:$0xff]
    %v844 = vld [vmem:[#allocation6 + $0xd80] sm:$0xff]
    %v845 = vld [vmem:[#allocation6 + $0xd88] sm:$0xff]
    %v846 = vld [vmem:[#allocation6 + $0xd90] sm:$0xff]
    %v847 = vld [vmem:[#allocation6 + $0xd98] sm:$0xff]
    %v848 = vld [vmem:[#allocation6 + $0xda0] sm:$0xff]
    %v849 = vld [vmem:[#allocation6 + $0xda8] sm:$0xff]
    %v850 = vld [vmem:[#allocation6 + $0xdb0] sm:$0xff]
    %v851 = vld [vmem:[#allocation6 + $0xdb8] sm:$0xff]
    %v852 = vld [vmem:[#allocation6 + $0xdc0] sm:$0xff]
    %v853 = vld [vmem:[#allocation6 + $0xdc8] sm:$0xff]
    %v854 = vld [vmem:[#allocation6 + $0xdd0] sm:$0xff]
    %v855 = vld [vmem:[#allocation6 + $0xdd8] sm:$0xff]
    %v856 = vld [vmem:[#allocation6 + $0xde0] sm:$0xff]
    %v857 = vld [vmem:[#allocation6 + $0xde8] sm:$0xff]
    %v858 = vld [vmem:[#allocation6 + $0xdf0] sm:$0xff]
    %v859 = vld [vmem:[#allocation6 + $0xdf8] sm:$0xff]
    %v860 = vld [vmem:[#allocation6 + $0xe00] sm:$0xff]
    %v861 = vld [vmem:[#allocation6 + $0xe08] sm:$0xff]
    %v862 = vld [vmem:[#allocation6 + $0xe10] sm:$0xff]
    %v863 = vld [vmem:[#allocation6 + $0xe18] sm:$0xff]
    %v864 = vld [vmem:[#allocation6 + $0xe20] sm:$0xff]
    %v865 = vld [vmem:[#allocation6 + $0xe28] sm:$0xff]
    %v866 = vld [vmem:[#allocation6 + $0xe30] sm:$0xff]
    %v867 = vld [vmem:[#allocation6 + $0xe38] sm:$0xff]
    %v868 = vld [vmem:[#allocation6 + $0xe40] sm:$0xff]
    %v869 = vld [vmem:[#allocation6 + $0xe48] sm:$0xff]
    %v870 = vld [vmem:[#allocation6 + $0xe50] sm:$0xff]
    %v871 = vld [vmem:[#allocation6 + $0xe58] sm:$0xff]
    %v872 = vld [vmem:[#allocation7] sm:$0xff]
    %v874 = vlaneseq
    %v875 = vshrl.u32 %v874, 7
    %v876 = vsub.s32 0, %v875
    %v877 = vrot.slane %v872, %v876
    %v878 = vlaneseq
    %v879 = vshrl.u32 %v878, 7
    %v880 = vsub.s32 1, %v879
    %v881 = vrot.slane %v872, %v880
    %v882 = vlaneseq
    %v883 = vshrl.u32 %v882, 7
    %v884 = vsub.s32 2, %v883
    %v885 = vrot.slane %v872, %v884
    %v886 = vlaneseq
    %v887 = vshrl.u32 %v886, 7
    %v888 = vsub.s32 3, %v887
    %v889 = vrot.slane %v872, %v888
    %v890 = vlaneseq
    %v891 = vshrl.u32 %v890, 7
    %v892 = vsub.s32 4, %v891
    %v893 = vrot.slane %v872, %v892
    %v894 = vlaneseq
    %v895 = vshrl.u32 %v894, 7
    %v896 = vsub.s32 5, %v895
    %v897 = vrot.slane %v872, %v896
    %v898 = vlaneseq
    %v899 = vshrl.u32 %v898, 7
    %v900 = vsub.s32 6, %v899
    %v901 = vrot.slane %v872, %v900
    %v902 = vlaneseq
    %v903 = vshrl.u32 %v902, 7
    %v904 = vsub.s32 7, %v903
    %v905 = vrot.slane %v872, %v904
    %v1374 = vunpack.c.l.b16 %v412
    %v1375 = vunpack.c.h.b16 %v412
    %v1376 = vunpack.c.l.b16 %v413
    %v1377 = vunpack.c.h.b16 %v413
    %v1378 = vunpack.c.l.b16 %v414
    %v1379 = vunpack.c.h.b16 %v414
    %v1380 = vunpack.c.l.b16 %v415
    %v1381 = vunpack.c.h.b16 %v415
    %v1382 = vunpack.c.l.b16 %v416
    %v1383 = vunpack.c.h.b16 %v416
    %v1384 = vunpack.c.l.b16 %v417
    %v1385 = vunpack.c.h.b16 %v417
    %v1386 = vunpack.c.l.b16 %v418
    %v1387 = vunpack.c.h.b16 %v418
    %v1388 = vunpack.c.l.b16 %v419
    %v1389 = vunpack.c.h.b16 %v419
    %v1390 = vunpack.c.l.b16 %v420
    %v1391 = vunpack.c.h.b16 %v420
    %v1392 = vunpack.c.l.b16 %v421
    %v1393 = vunpack.c.h.b16 %v421
    %v1394 = vunpack.c.l.b16 %v422
    %v1395 = vunpack.c.h.b16 %v422
    %v1396 = vunpack.c.l.b16 %v423
    %v1397 = vunpack.c.h.b16 %v423
    %v1398 = vunpack.c.l.b16 %v424
    %v1399 = vunpack.c.h.b16 %v424
    %v1400 = vunpack.c.l.b16 %v425
    %v1401 = vunpack.c.h.b16 %v425
    %v1402 = vunpack.c.l.b16 %v426
    %v1403 = vunpack.c.h.b16 %v426
    %v1404 = vunpack.c.l.b16 %v427
    %v1405 = vunpack.c.h.b16 %v427
    %v1406 = vunpack.c.l.b16 %v428
    %v1407 = vunpack.c.h.b16 %v428
    %v1408 = vunpack.c.l.b16 %v429
    %v1409 = vunpack.c.h.b16 %v429
    %v1410 = vunpack.c.l.b16 %v430
    %v1411 = vunpack.c.h.b16 %v430
    %v1412 = vunpack.c.l.b16 %v431
    %v1413 = vunpack.c.h.b16 %v431
    %v1414 = vunpack.c.l.b16 %v432
    %v1415 = vunpack.c.h.b16 %v432
    %v1416 = vunpack.c.l.b16 %v433
    %v1417 = vunpack.c.h.b16 %v433
    %v1418 = vunpack.c.l.b16 %v434
    %v1419 = vunpack.c.h.b16 %v434
    %v1420 = vunpack.c.l.b16 %v435
    %v1421 = vunpack.c.h.b16 %v435
    %v1422 = vunpack.c.l.b16 %v436
    %v1423 = vunpack.c.h.b16 %v436
    %v1424 = vunpack.c.l.b16 %v437
    %v1425 = vunpack.c.h.b16 %v437
    %v1426 = vunpack.c.l.b16 %v438
    %v1427 = vunpack.c.h.b16 %v438
    %v1428 = vunpack.c.l.b16 %v439
    %v1429 = vunpack.c.h.b16 %v439
    %v1430 = vunpack.c.l.b16 %v440
    %v1431 = vunpack.c.h.b16 %v440
    %v1432 = vunpack.c.l.b16 %v441
    %v1433 = vunpack.c.h.b16 %v441
    %v1434 = vunpack.c.l.b16 %v442
    %v1435 = vunpack.c.h.b16 %v442
    %v1436 = vunpack.c.l.b16 %v443
    %v1437 = vunpack.c.h.b16 %v443
    %v1438 = vunpack.c.l.b16 %v444
    %v1439 = vunpack.c.h.b16 %v444
    %v1440 = vunpack.c.l.b16 %v445
    %v1441 = vunpack.c.h.b16 %v445
    %v1442 = vunpack.c.l.b16 %v446
    %v1443 = vunpack.c.h.b16 %v446
    %v1444 = vunpack.c.l.b16 %v447
    %v1445 = vunpack.c.h.b16 %v447
    %v1446 = vunpack.c.l.b16 %v448
    %v1447 = vunpack.c.h.b16 %v448
    %v1448 = vunpack.c.l.b16 %v449
    %v1449 = vunpack.c.h.b16 %v449
    %v1450 = vunpack.c.l.b16 %v450
    %v1451 = vunpack.c.h.b16 %v450
    %v1452 = vunpack.c.l.b16 %v451
    %v1453 = vunpack.c.h.b16 %v451
    %v1454 = vunpack.c.l.b16 %v452
    %v1455 = vunpack.c.h.b16 %v452
    %v1456 = vunpack.c.l.b16 %v453
    %v1457 = vunpack.c.h.b16 %v453
    %v1458 = vunpack.c.l.b16 %v454
    %v1459 = vunpack.c.h.b16 %v454
    %v1460 = vunpack.c.l.b16 %v455
    %v1461 = vunpack.c.h.b16 %v455
    %v1462 = vunpack.c.l.b16 %v456
    %v1463 = vunpack.c.h.b16 %v456
    %v1464 = vunpack.c.l.b16 %v457
    %v1465 = vunpack.c.h.b16 %v457
    %v1466 = vunpack.c.l.b16 %v458
    %v1467 = vunpack.c.h.b16 %v458
    %v1468 = vunpack.c.l.b16 %v459
    %v1469 = vunpack.c.h.b16 %v459
    %v1470 = vunpack.c.l.b16 %v460
    %v1471 = vunpack.c.h.b16 %v460
    %v1472 = vunpack.c.l.b16 %v461
    %v1473 = vunpack.c.h.b16 %v461
    %v1474 = vunpack.c.l.b16 %v462
    %v1475 = vunpack.c.h.b16 %v462
    %v1476 = vunpack.c.l.b16 %v463
    %v1477 = vunpack.c.h.b16 %v463
    %v1478 = vunpack.c.l.b16 %v464
    %v1479 = vunpack.c.h.b16 %v464
    %v1480 = vunpack.c.l.b16 %v465
    %v1481 = vunpack.c.h.b16 %v465
    %v1482 = vunpack.c.l.b16 %v466
    %v1483 = vunpack.c.h.b16 %v466
    %v1484 = vunpack.c.l.b16 %v467
    %v1485 = vunpack.c.h.b16 %v467
    %v1486 = vunpack.c.l.b16 %v468
    %v1487 = vunpack.c.h.b16 %v468
    %v1488 = vunpack.c.l.b16 %v469
    %v1489 = vunpack.c.h.b16 %v469
    %v1490 = vunpack.c.l.b16 %v470
    %v1491 = vunpack.c.h.b16 %v470
    %v1492 = vunpack.c.l.b16 %v471
    %v1493 = vunpack.c.h.b16 %v471
    %v1494 = vunpack.c.l.b16 %v472
    %v1495 = vunpack.c.h.b16 %v472
    %v1496 = vunpack.c.l.b16 %v473
    %v1497 = vunpack.c.h.b16 %v473
    %v1498 = vunpack.c.l.b16 %v474
    %v1499 = vunpack.c.h.b16 %v474
    %v1500 = vunpack.c.l.b16 %v475
    %v1501 = vunpack.c.h.b16 %v475
    %v1502 = vunpack.c.l.b16 %v476
    %v1503 = vunpack.c.h.b16 %v476
    %v1504 = vunpack.c.l.b16 %v477
    %v1505 = vunpack.c.h.b16 %v477
    %v1506 = vunpack.c.l.b16 %v478
    %v1507 = vunpack.c.h.b16 %v478
    %v1508 = vunpack.c.l.b16 %v479
    %v1509 = vunpack.c.h.b16 %v479
    %v1510 = vunpack.c.l.b16 %v480
    %v1511 = vunpack.c.h.b16 %v480
    %v1512 = vunpack.c.l.b16 %v481
    %v1513 = vunpack.c.h.b16 %v481
    %v1514 = vunpack.c.l.b16 %v482
    %v1515 = vunpack.c.h.b16 %v482
    %v1516 = vunpack.c.l.b16 %v483
    %v1517 = vunpack.c.h.b16 %v483
    %v1518 = vunpack.c.l.b16 %v484
    %v1519 = vunpack.c.h.b16 %v484
    %v1520 = vunpack.c.l.b16 %v485
    %v1521 = vunpack.c.h.b16 %v485
    %v1522 = vunpack.c.l.b16 %v486
    %v1523 = vunpack.c.h.b16 %v486
    %v1524 = vunpack.c.l.b16 %v487
    %v1525 = vunpack.c.h.b16 %v487
    %v1526 = vunpack.c.l.b16 %v488
    %v1527 = vunpack.c.h.b16 %v488
    %v1528 = vunpack.c.l.b16 %v489
    %v1529 = vunpack.c.h.b16 %v489
    %v1530 = vunpack.c.l.b16 %v490
    %v1531 = vunpack.c.h.b16 %v490
    %v1532 = vunpack.c.l.b16 %v491
    %v1533 = vunpack.c.h.b16 %v491
    %v1534 = vunpack.c.l.b16 %v492
    %v1535 = vunpack.c.h.b16 %v492
    %v1536 = vunpack.c.l.b16 %v493
    %v1537 = vunpack.c.h.b16 %v493
    %v1538 = vunpack.c.l.b16 %v494
    %v1539 = vunpack.c.h.b16 %v494
    %v1540 = vunpack.c.l.b16 %v495
    %v1541 = vunpack.c.h.b16 %v495
    %v1542 = vunpack.c.l.b16 %v496
    %v1543 = vunpack.c.h.b16 %v496
    %v1544 = vunpack.c.l.b16 %v497
    %v1545 = vunpack.c.h.b16 %v497
    %v1546 = vunpack.c.l.b16 %v498
    %v1547 = vunpack.c.h.b16 %v498
    %v1548 = vunpack.c.l.b16 %v499
    %v1549 = vunpack.c.h.b16 %v499
    %v1550 = vunpack.c.l.b16 %v500
    %v1551 = vunpack.c.h.b16 %v500
    %v1552 = vunpack.c.l.b16 %v501
    %v1553 = vunpack.c.h.b16 %v501
    %v1554 = vunpack.c.l.b16 %v502
    %v1555 = vunpack.c.h.b16 %v502
    %v1556 = vunpack.c.l.b16 %v503
    %v1557 = vunpack.c.h.b16 %v503
    %v1558 = vunpack.c.l.b16 %v504
    %v1559 = vunpack.c.h.b16 %v504
    %v1560 = vunpack.c.l.b16 %v505
    %v1561 = vunpack.c.h.b16 %v505
    %v1562 = vunpack.c.l.b16 %v506
    %v1563 = vunpack.c.h.b16 %v506
    %v1564 = vunpack.c.l.b16 %v507
    %v1565 = vunpack.c.h.b16 %v507
    %v1566 = vunpack.c.l.b16 %v508
    %v1567 = vunpack.c.h.b16 %v508
    %v1568 = vunpack.c.l.b16 %v509
    %v1569 = vunpack.c.h.b16 %v509
    %v1570 = vunpack.c.l.b16 %v510
    %v1571 = vunpack.c.h.b16 %v510
    %v1572 = vunpack.c.l.b16 %v511
    %v1573 = vunpack.c.h.b16 %v511
    %v1574 = vunpack.c.l.b16 %v512
    %v1575 = vunpack.c.h.b16 %v512
    %v1576 = vunpack.c.l.b16 %v513
    %v1577 = vunpack.c.h.b16 %v513
    %v1578 = vunpack.c.l.b16 %v514
    %v1579 = vunpack.c.h.b16 %v514
    %v1580 = vunpack.c.l.b16 %v515
    %v1581 = vunpack.c.h.b16 %v515
    %v1582 = vunpack.c.l.b16 %v516
    %v1583 = vunpack.c.h.b16 %v516
    %v1584 = vunpack.c.l.b16 %v517
    %v1585 = vunpack.c.h.b16 %v517
    %v1586 = vunpack.c.l.b16 %v518
    %v1587 = vunpack.c.h.b16 %v518
    %v1588 = vunpack.c.l.b16 %v519
    %v1589 = vunpack.c.h.b16 %v519
    %v1590 = vunpack.c.l.b16 %v520
    %v1591 = vunpack.c.h.b16 %v520
    %v1592 = vunpack.c.l.b16 %v521
    %v1593 = vunpack.c.h.b16 %v521
    %v1594 = vunpack.c.l.b16 %v522
    %v1595 = vunpack.c.h.b16 %v522
    %v1596 = vunpack.c.l.b16 %v523
    %v1597 = vunpack.c.h.b16 %v523
    %v1598 = vunpack.c.l.b16 %v524
    %v1599 = vunpack.c.h.b16 %v524
    %v1600 = vunpack.c.l.b16 %v525
    %v1601 = vunpack.c.h.b16 %v525
    %v1602 = vunpack.c.l.b16 %v526
    %v1603 = vunpack.c.h.b16 %v526
    %v1604 = vunpack.c.l.b16 %v527
    %v1605 = vunpack.c.h.b16 %v527
    %v1606 = vunpack.c.l.b16 %v528
    %v1607 = vunpack.c.h.b16 %v528
    %v1608 = vunpack.c.l.b16 %v529
    %v1609 = vunpack.c.h.b16 %v529
    %v1610 = vunpack.c.l.b16 %v530
    %v1611 = vunpack.c.h.b16 %v530
    %v1612 = vunpack.c.l.b16 %v531
    %v1613 = vunpack.c.h.b16 %v531
    %v1614 = vunpack.c.l.b16 %v532
    %v1615 = vunpack.c.h.b16 %v532
    %v1616 = vunpack.c.l.b16 %v533
    %v1617 = vunpack.c.h.b16 %v533
    %v1618 = vunpack.c.l.b16 %v534
    %v1619 = vunpack.c.h.b16 %v534
    %v1620 = vunpack.c.l.b16 %v535
    %v1621 = vunpack.c.h.b16 %v535
    %v1622 = vunpack.c.l.b16 %v536
    %v1623 = vunpack.c.h.b16 %v536
    %v1624 = vunpack.c.l.b16 %v537
    %v1625 = vunpack.c.h.b16 %v537
    %v1626 = vunpack.c.l.b16 %v538
    %v1627 = vunpack.c.h.b16 %v538
    %v1628 = vunpack.c.l.b16 %v539
    %v1629 = vunpack.c.h.b16 %v539
    %v1630 = vunpack.c.l.b16 %v540
    %v1631 = vunpack.c.h.b16 %v540
    %v1632 = vunpack.c.l.b16 %v541
    %v1633 = vunpack.c.h.b16 %v541
    %v1634 = vunpack.c.l.b16 %v542
    %v1635 = vunpack.c.h.b16 %v542
    %v1636 = vunpack.c.l.b16 %v543
    %v1637 = vunpack.c.h.b16 %v543
    %v1638 = vunpack.c.l.b16 %v544
    %v1639 = vunpack.c.h.b16 %v544
    %v1640 = vunpack.c.l.b16 %v545
    %v1641 = vunpack.c.h.b16 %v545
    %v1642 = vunpack.c.l.b16 %v546
    %v1643 = vunpack.c.h.b16 %v546
    %v1644 = vunpack.c.l.b16 %v547
    %v1645 = vunpack.c.h.b16 %v547
    %v1646 = vunpack.c.l.b16 %v548
    %v1647 = vunpack.c.h.b16 %v548
    %v1648 = vunpack.c.l.b16 %v549
    %v1649 = vunpack.c.h.b16 %v549
    %v1650 = vunpack.c.l.b16 %v550
    %v1651 = vunpack.c.h.b16 %v550
    %v1652 = vunpack.c.l.b16 %v551
    %v1653 = vunpack.c.h.b16 %v551
    %v1654 = vunpack.c.l.b16 %v552
    %v1655 = vunpack.c.h.b16 %v552
    %v1656 = vunpack.c.l.b16 %v553
    %v1657 = vunpack.c.h.b16 %v553
    %v1658 = vunpack.c.l.b16 %v554
    %v1659 = vunpack.c.h.b16 %v554
    %v1660 = vunpack.c.l.b16 %v555
    %v1661 = vunpack.c.h.b16 %v555
    %v1662 = vunpack.c.l.b16 %v556
    %v1663 = vunpack.c.h.b16 %v556
    %v1664 = vunpack.c.l.b16 %v557
    %v1665 = vunpack.c.h.b16 %v557
    %v1666 = vunpack.c.l.b16 %v558
    %v1667 = vunpack.c.h.b16 %v558
    %v1668 = vunpack.c.l.b16 %v559
    %v1669 = vunpack.c.h.b16 %v559
    %v1670 = vunpack.c.l.b16 %v560
    %v1671 = vunpack.c.h.b16 %v560
    %v1672 = vunpack.c.l.b16 %v561
    %v1673 = vunpack.c.h.b16 %v561
    %v1674 = vunpack.c.l.b16 %v562
    %v1675 = vunpack.c.h.b16 %v562
    %v1676 = vunpack.c.l.b16 %v563
    %v1677 = vunpack.c.h.b16 %v563
    %v1678 = vunpack.c.l.b16 %v564
    %v1679 = vunpack.c.h.b16 %v564
    %v1680 = vunpack.c.l.b16 %v565
    %v1681 = vunpack.c.h.b16 %v565
    %v1682 = vunpack.c.l.b16 %v566
    %v1683 = vunpack.c.h.b16 %v566
    %v1684 = vunpack.c.l.b16 %v567
    %v1685 = vunpack.c.h.b16 %v567
    %v1686 = vunpack.c.l.b16 %v568
    %v1687 = vunpack.c.h.b16 %v568
    %v1688 = vunpack.c.l.b16 %v569
    %v1689 = vunpack.c.h.b16 %v569
    %v1690 = vunpack.c.l.b16 %v570
    %v1691 = vunpack.c.h.b16 %v570
    %v1692 = vunpack.c.l.b16 %v571
    %v1693 = vunpack.c.h.b16 %v571
    %v1694 = vunpack.c.l.b16 %v572
    %v1695 = vunpack.c.h.b16 %v572
    %v1696 = vunpack.c.l.b16 %v573
    %v1697 = vunpack.c.h.b16 %v573
    %v1698 = vunpack.c.l.b16 %v574
    %v1699 = vunpack.c.h.b16 %v574
    %v1700 = vunpack.c.l.b16 %v575
    %v1701 = vunpack.c.h.b16 %v575
    %v1702 = vunpack.c.l.b16 %v576
    %v1703 = vunpack.c.h.b16 %v576
    %v1704 = vunpack.c.l.b16 %v577
    %v1705 = vunpack.c.h.b16 %v577
    %v1706 = vunpack.c.l.b16 %v578
    %v1707 = vunpack.c.h.b16 %v578
    %v1708 = vunpack.c.l.b16 %v579
    %v1709 = vunpack.c.h.b16 %v579
    %v1710 = vunpack.c.l.b16 %v580
    %v1711 = vunpack.c.h.b16 %v580
    %v1712 = vunpack.c.l.b16 %v581
    %v1713 = vunpack.c.h.b16 %v581
    %v1714 = vunpack.c.l.b16 %v582
    %v1715 = vunpack.c.h.b16 %v582
    %v1716 = vunpack.c.l.b16 %v583
    %v1717 = vunpack.c.h.b16 %v583
    %v1718 = vunpack.c.l.b16 %v584
    %v1719 = vunpack.c.h.b16 %v584
    %v1720 = vunpack.c.l.b16 %v585
    %v1721 = vunpack.c.h.b16 %v585
    %v1722 = vunpack.c.l.b16 %v586
    %v1723 = vunpack.c.h.b16 %v586
    %v1724 = vunpack.c.l.b16 %v587
    %v1725 = vunpack.c.h.b16 %v587
    %v1726 = vunpack.c.l.b16 %v588
    %v1727 = vunpack.c.h.b16 %v588
    %v1728 = vunpack.c.l.b16 %v589
    %v1729 = vunpack.c.h.b16 %v589
    %v1730 = vunpack.c.l.b16 %v590
    %v1731 = vunpack.c.h.b16 %v590
    %v1732 = vunpack.c.l.b16 %v591
    %v1733 = vunpack.c.h.b16 %v591
    %v1734 = vunpack.c.l.b16 %v592
    %v1735 = vunpack.c.h.b16 %v592
    %v1736 = vunpack.c.l.b16 %v593
    %v1737 = vunpack.c.h.b16 %v593
    %v1738 = vunpack.c.l.b16 %v594
    %v1739 = vunpack.c.h.b16 %v594
    %v1740 = vunpack.c.l.b16 %v595
    %v1741 = vunpack.c.h.b16 %v595
    %v1742 = vunpack.c.l.b16 %v596
    %v1743 = vunpack.c.h.b16 %v596
    %v1744 = vunpack.c.l.b16 %v597
    %v1745 = vunpack.c.h.b16 %v597
    %v1746 = vunpack.c.l.b16 %v598
    %v1747 = vunpack.c.h.b16 %v598
    %v1748 = vunpack.c.l.b16 %v599
    %v1749 = vunpack.c.h.b16 %v599
    %v1750 = vunpack.c.l.b16 %v600
    %v1751 = vunpack.c.h.b16 %v600
    %v1752 = vunpack.c.l.b16 %v601
    %v1753 = vunpack.c.h.b16 %v601
    %v1754 = vunpack.c.l.b16 %v602
    %v1755 = vunpack.c.h.b16 %v602
    %v1756 = vunpack.c.l.b16 %v603
    %v1757 = vunpack.c.h.b16 %v603
    %v1758 = vunpack.c.l.b16 %v604
    %v1759 = vunpack.c.h.b16 %v604
    %v1760 = vunpack.c.l.b16 %v605
    %v1761 = vunpack.c.h.b16 %v605
    %v1762 = vunpack.c.l.b16 %v606
    %v1763 = vunpack.c.h.b16 %v606
    %v1764 = vunpack.c.l.b16 %v607
    %v1765 = vunpack.c.h.b16 %v607
    %v1766 = vunpack.c.l.b16 %v608
    %v1767 = vunpack.c.h.b16 %v608
    %v1768 = vunpack.c.l.b16 %v609
    %v1769 = vunpack.c.h.b16 %v609
    %v1770 = vunpack.c.l.b16 %v610
    %v1771 = vunpack.c.h.b16 %v610
    %v1772 = vunpack.c.l.b16 %v611
    %v1773 = vunpack.c.h.b16 %v611
    %v1774 = vunpack.c.l.b16 %v612
    %v1775 = vunpack.c.h.b16 %v612
    %v1776 = vunpack.c.l.b16 %v613
    %v1777 = vunpack.c.h.b16 %v613
    %v1778 = vunpack.c.l.b16 %v614
    %v1779 = vunpack.c.h.b16 %v614
    %v1780 = vunpack.c.l.b16 %v615
    %v1781 = vunpack.c.h.b16 %v615
    %v1782 = vunpack.c.l.b16 %v616
    %v1783 = vunpack.c.h.b16 %v616
    %v1784 = vunpack.c.l.b16 %v617
    %v1785 = vunpack.c.h.b16 %v617
    %v1786 = vunpack.c.l.b16 %v618
    %v1787 = vunpack.c.h.b16 %v618
    %v1788 = vunpack.c.l.b16 %v619
    %v1789 = vunpack.c.h.b16 %v619
    %v1790 = vunpack.c.l.b16 %v620
    %v1791 = vunpack.c.h.b16 %v620
    %v1792 = vunpack.c.l.b16 %v621
    %v1793 = vunpack.c.h.b16 %v621
    %v1794 = vunpack.c.l.b16 %v622
    %v1795 = vunpack.c.h.b16 %v622
    %v1796 = vunpack.c.l.b16 %v623
    %v1797 = vunpack.c.h.b16 %v623
    %v1798 = vunpack.c.l.b16 %v624
    %v1799 = vunpack.c.h.b16 %v624
    %v1800 = vunpack.c.l.b16 %v625
    %v1801 = vunpack.c.h.b16 %v625
    %v1802 = vunpack.c.l.b16 %v626
    %v1803 = vunpack.c.h.b16 %v626
    %v1804 = vunpack.c.l.b16 %v627
    %v1805 = vunpack.c.h.b16 %v627
    %v1806 = vunpack.c.l.b16 %v628
    %v1807 = vunpack.c.h.b16 %v628
    %v1808 = vunpack.c.l.b16 %v629
    %v1809 = vunpack.c.h.b16 %v629
    %v1810 = vunpack.c.l.b16 %v630
    %v1811 = vunpack.c.h.b16 %v630
    %v1812 = vunpack.c.l.b16 %v631
    %v1813 = vunpack.c.h.b16 %v631
    %v1814 = vunpack.c.l.b16 %v632
    %v1815 = vunpack.c.h.b16 %v632
    %v1816 = vunpack.c.l.b16 %v633
    %v1817 = vunpack.c.h.b16 %v633
    %v1818 = vunpack.c.l.b16 %v634
    %v1819 = vunpack.c.h.b16 %v634
    %v1820 = vunpack.c.l.b16 %v635
    %v1821 = vunpack.c.h.b16 %v635
    %v1822 = vunpack.c.l.b16 %v636
    %v1823 = vunpack.c.h.b16 %v636
    %v1824 = vunpack.c.l.b16 %v637
    %v1825 = vunpack.c.h.b16 %v637
    %v1826 = vunpack.c.l.b16 %v638
    %v1827 = vunpack.c.h.b16 %v638
    %v1828 = vunpack.c.l.b16 %v639
    %v1829 = vunpack.c.h.b16 %v639
    %v1830 = vunpack.c.l.b16 %v640
    %v1831 = vunpack.c.h.b16 %v640
    %v1832 = vunpack.c.l.b16 %v641
    %v1833 = vunpack.c.h.b16 %v641
    %v1834 = vunpack.c.l.b16 %v642
    %v1835 = vunpack.c.h.b16 %v642
    %v1836 = vunpack.c.l.b16 %v643
    %v1837 = vunpack.c.h.b16 %v643
    %v1838 = vunpack.c.l.b16 %v644
    %v1839 = vunpack.c.h.b16 %v644
    %v1840 = vunpack.c.l.b16 %v645
    %v1841 = vunpack.c.h.b16 %v645
    %v1842 = vunpack.c.l.b16 %v646
    %v1843 = vunpack.c.h.b16 %v646
    %v1844 = vunpack.c.l.b16 %v647
    %v1845 = vunpack.c.h.b16 %v647
    %v1846 = vunpack.c.l.b16 %v648
    %v1847 = vunpack.c.h.b16 %v648
    %v1848 = vunpack.c.l.b16 %v649
    %v1849 = vunpack.c.h.b16 %v649
    %v1850 = vunpack.c.l.b16 %v650
    %v1851 = vunpack.c.h.b16 %v650
    %v1852 = vunpack.c.l.b16 %v651
    %v1853 = vunpack.c.h.b16 %v651
    %v1854 = vunpack.c.l.b16 %v652
    %v1855 = vunpack.c.h.b16 %v652
    %v1856 = vunpack.c.l.b16 %v653
    %v1857 = vunpack.c.h.b16 %v653
    %v1858 = vunpack.c.l.b16 %v654
    %v1859 = vunpack.c.h.b16 %v654
    %v1860 = vunpack.c.l.b16 %v655
    %v1861 = vunpack.c.h.b16 %v655
    %v1862 = vunpack.c.l.b16 %v656
    %v1863 = vunpack.c.h.b16 %v656
    %v1864 = vunpack.c.l.b16 %v657
    %v1865 = vunpack.c.h.b16 %v657
    %v1866 = vunpack.c.l.b16 %v658
    %v1867 = vunpack.c.h.b16 %v658
    %v1868 = vunpack.c.l.b16 %v659
    %v1869 = vunpack.c.h.b16 %v659
    %v1870 = vunpack.c.l.b16 %v660
    %v1871 = vunpack.c.h.b16 %v660
    %v1872 = vunpack.c.l.b16 %v661
    %v1873 = vunpack.c.h.b16 %v661
    %v1874 = vunpack.c.l.b16 %v662
    %v1875 = vunpack.c.h.b16 %v662
    %v1876 = vunpack.c.l.b16 %v663
    %v1877 = vunpack.c.h.b16 %v663
    %v1878 = vunpack.c.l.b16 %v664
    %v1879 = vunpack.c.h.b16 %v664
    %v1880 = vunpack.c.l.b16 %v665
    %v1881 = vunpack.c.h.b16 %v665
    %v1882 = vunpack.c.l.b16 %v666
    %v1883 = vunpack.c.h.b16 %v666
    %v1884 = vunpack.c.l.b16 %v667
    %v1885 = vunpack.c.h.b16 %v667
    %v1886 = vunpack.c.l.b16 %v668
    %v1887 = vunpack.c.h.b16 %v668
    %v1888 = vunpack.c.l.b16 %v669
    %v1889 = vunpack.c.h.b16 %v669
    %v1890 = vunpack.c.l.b16 %v670
    %v1891 = vunpack.c.h.b16 %v670
    %v1892 = vunpack.c.l.b16 %v671
    %v1893 = vunpack.c.h.b16 %v671
    %v1894 = vunpack.c.l.b16 %v672
    %v1895 = vunpack.c.h.b16 %v672
    %v1896 = vunpack.c.l.b16 %v673
    %v1897 = vunpack.c.h.b16 %v673
    %v1898 = vunpack.c.l.b16 %v674
    %v1899 = vunpack.c.h.b16 %v674
    %v1900 = vunpack.c.l.b16 %v675
    %v1901 = vunpack.c.h.b16 %v675
    %v1902 = vunpack.c.l.b16 %v676
    %v1903 = vunpack.c.h.b16 %v676
    %v1904 = vunpack.c.l.b16 %v677
    %v1905 = vunpack.c.h.b16 %v677
    %v1906 = vunpack.c.l.b16 %v678
    %v1907 = vunpack.c.h.b16 %v678
    %v1908 = vunpack.c.l.b16 %v679
    %v1909 = vunpack.c.h.b16 %v679
    %v1910 = vunpack.c.l.b16 %v680
    %v1911 = vunpack.c.h.b16 %v680
    %v1912 = vunpack.c.l.b16 %v681
    %v1913 = vunpack.c.h.b16 %v681
    %v1914 = vunpack.c.l.b16 %v682
    %v1915 = vunpack.c.h.b16 %v682
    %v1916 = vunpack.c.l.b16 %v683
    %v1917 = vunpack.c.h.b16 %v683
    %v1918 = vunpack.c.l.b16 %v684
    %v1919 = vunpack.c.h.b16 %v684
    %v1920 = vunpack.c.l.b16 %v685
    %v1921 = vunpack.c.h.b16 %v685
    %v1922 = vunpack.c.l.b16 %v686
    %v1923 = vunpack.c.h.b16 %v686
    %v1924 = vunpack.c.l.b16 %v687
    %v1925 = vunpack.c.h.b16 %v687
    %v1926 = vunpack.c.l.b16 %v688
    %v1927 = vunpack.c.h.b16 %v688
    %v1928 = vunpack.c.l.b16 %v689
    %v1929 = vunpack.c.h.b16 %v689
    %v1930 = vunpack.c.l.b16 %v690
    %v1931 = vunpack.c.h.b16 %v690
    %v1932 = vunpack.c.l.b16 %v691
    %v1933 = vunpack.c.h.b16 %v691
    %v1934 = vunpack.c.l.b16 %v692
    %v1935 = vunpack.c.h.b16 %v692
    %v1936 = vunpack.c.l.b16 %v693
    %v1937 = vunpack.c.h.b16 %v693
    %v1938 = vunpack.c.l.b16 %v694
    %v1939 = vunpack.c.h.b16 %v694
    %v1940 = vunpack.c.l.b16 %v695
    %v1941 = vunpack.c.h.b16 %v695
    %v1942 = vunpack.c.l.b16 %v696
    %v1943 = vunpack.c.h.b16 %v696
    %v1944 = vunpack.c.l.b16 %v697
    %v1945 = vunpack.c.h.b16 %v697
    %v1946 = vunpack.c.l.b16 %v698
    %v1947 = vunpack.c.h.b16 %v698
    %v1948 = vunpack.c.l.b16 %v699
    %v1949 = vunpack.c.h.b16 %v699
    %v1950 = vunpack.c.l.b16 %v700
    %v1951 = vunpack.c.h.b16 %v700
    %v1952 = vunpack.c.l.b16 %v701
    %v1953 = vunpack.c.h.b16 %v701
    %v1954 = vunpack.c.l.b16 %v702
    %v1955 = vunpack.c.h.b16 %v702
    %v1956 = vunpack.c.l.b16 %v703
    %v1957 = vunpack.c.h.b16 %v703
    %v1958 = vunpack.c.l.b16 %v704
    %v1959 = vunpack.c.h.b16 %v704
    %v1960 = vunpack.c.l.b16 %v705
    %v1961 = vunpack.c.h.b16 %v705
    %v1962 = vunpack.c.l.b16 %v706
    %v1963 = vunpack.c.h.b16 %v706
    %v1964 = vunpack.c.l.b16 %v707
    %v1965 = vunpack.c.h.b16 %v707
    %v1966 = vunpack.c.l.b16 %v708
    %v1967 = vunpack.c.h.b16 %v708
    %v1968 = vunpack.c.l.b16 %v709
    %v1969 = vunpack.c.h.b16 %v709
    %v1970 = vunpack.c.l.b16 %v710
    %v1971 = vunpack.c.h.b16 %v710
    %v1972 = vunpack.c.l.b16 %v711
    %v1973 = vunpack.c.h.b16 %v711
    %v1974 = vunpack.c.l.b16 %v712
    %v1975 = vunpack.c.h.b16 %v712
    %v1976 = vunpack.c.l.b16 %v713
    %v1977 = vunpack.c.h.b16 %v713
    %v1978 = vunpack.c.l.b16 %v714
    %v1979 = vunpack.c.h.b16 %v714
    %v1980 = vunpack.c.l.b16 %v715
    %v1981 = vunpack.c.h.b16 %v715
    %v1982 = vunpack.c.l.b16 %v716
    %v1983 = vunpack.c.h.b16 %v716
    %v1984 = vunpack.c.l.b16 %v717
    %v1985 = vunpack.c.h.b16 %v717
    %v1986 = vunpack.c.l.b16 %v718
    %v1987 = vunpack.c.h.b16 %v718
    %v1988 = vunpack.c.l.b16 %v719
    %v1989 = vunpack.c.h.b16 %v719
    %v1990 = vunpack.c.l.b16 %v720
    %v1991 = vunpack.c.h.b16 %v720
    %v1992 = vunpack.c.l.b16 %v721
    %v1993 = vunpack.c.h.b16 %v721
    %v1994 = vunpack.c.l.b16 %v722
    %v1995 = vunpack.c.h.b16 %v722
    %v1996 = vunpack.c.l.b16 %v723
    %v1997 = vunpack.c.h.b16 %v723
    %v1998 = vunpack.c.l.b16 %v724
    %v1999 = vunpack.c.h.b16 %v724
    %v2000 = vunpack.c.l.b16 %v725
    %v2001 = vunpack.c.h.b16 %v725
    %v2002 = vunpack.c.l.b16 %v726
    %v2003 = vunpack.c.h.b16 %v726
    %v2004 = vunpack.c.l.b16 %v727
    %v2005 = vunpack.c.h.b16 %v727
    %v2006 = vunpack.c.l.b16 %v728
    %v2007 = vunpack.c.h.b16 %v728
    %v2008 = vunpack.c.l.b16 %v729
    %v2009 = vunpack.c.h.b16 %v729
    %v2010 = vunpack.c.l.b16 %v730
    %v2011 = vunpack.c.h.b16 %v730
    %v2012 = vunpack.c.l.b16 %v731
    %v2013 = vunpack.c.h.b16 %v731
    %v2014 = vunpack.c.l.b16 %v732
    %v2015 = vunpack.c.h.b16 %v732
    %v2016 = vunpack.c.l.b16 %v733
    %v2017 = vunpack.c.h.b16 %v733
    %v2018 = vunpack.c.l.b16 %v734
    %v2019 = vunpack.c.h.b16 %v734
    %v2020 = vunpack.c.l.b16 %v735
    %v2021 = vunpack.c.h.b16 %v735
    %v2022 = vunpack.c.l.b16 %v736
    %v2023 = vunpack.c.h.b16 %v736
    %v2024 = vunpack.c.l.b16 %v737
    %v2025 = vunpack.c.h.b16 %v737
    %v2026 = vunpack.c.l.b16 %v738
    %v2027 = vunpack.c.h.b16 %v738
    %v2028 = vunpack.c.l.b16 %v739
    %v2029 = vunpack.c.h.b16 %v739
    %v2030 = vunpack.c.l.b16 %v740
    %v2031 = vunpack.c.h.b16 %v740
    %v2032 = vunpack.c.l.b16 %v741
    %v2033 = vunpack.c.h.b16 %v741
    %v2034 = vunpack.c.l.b16 %v742
    %v2035 = vunpack.c.h.b16 %v742
    %v2036 = vunpack.c.l.b16 %v743
    %v2037 = vunpack.c.h.b16 %v743
    %v2038 = vunpack.c.l.b16 %v744
    %v2039 = vunpack.c.h.b16 %v744
    %v2040 = vunpack.c.l.b16 %v745
    %v2041 = vunpack.c.h.b16 %v745
    %v2042 = vunpack.c.l.b16 %v746
    %v2043 = vunpack.c.h.b16 %v746
    %v2044 = vunpack.c.l.b16 %v747
    %v2045 = vunpack.c.h.b16 %v747
    %v2046 = vunpack.c.l.b16 %v748
    %v2047 = vunpack.c.h.b16 %v748
    %v2048 = vunpack.c.l.b16 %v749
    %v2049 = vunpack.c.h.b16 %v749
    %v2050 = vunpack.c.l.b16 %v750
    %v2051 = vunpack.c.h.b16 %v750
    %v2052 = vunpack.c.l.b16 %v751
    %v2053 = vunpack.c.h.b16 %v751
    %v2054 = vunpack.c.l.b16 %v752
    %v2055 = vunpack.c.h.b16 %v752
    %v2056 = vunpack.c.l.b16 %v753
    %v2057 = vunpack.c.h.b16 %v753
    %v2058 = vunpack.c.l.b16 %v754
    %v2059 = vunpack.c.h.b16 %v754
    %v2060 = vunpack.c.l.b16 %v755
    %v2061 = vunpack.c.h.b16 %v755
    %v2062 = vunpack.c.l.b16 %v756
    %v2063 = vunpack.c.h.b16 %v756
    %v2064 = vunpack.c.l.b16 %v757
    %v2065 = vunpack.c.h.b16 %v757
    %v2066 = vunpack.c.l.b16 %v758
    %v2067 = vunpack.c.h.b16 %v758
    %v2068 = vunpack.c.l.b16 %v759
    %v2069 = vunpack.c.h.b16 %v759
    %v2070 = vunpack.c.l.b16 %v760
    %v2071 = vunpack.c.h.b16 %v760
    %v2072 = vunpack.c.l.b16 %v761
    %v2073 = vunpack.c.h.b16 %v761
    %v2074 = vunpack.c.l.b16 %v762
    %v2075 = vunpack.c.h.b16 %v762
    %v2076 = vunpack.c.l.b16 %v763
    %v2077 = vunpack.c.h.b16 %v763
    %v2078 = vunpack.c.l.b16 %v764
    %v2079 = vunpack.c.h.b16 %v764
    %v2080 = vunpack.c.l.b16 %v765
    %v2081 = vunpack.c.h.b16 %v765
    %v2082 = vunpack.c.l.b16 %v766
    %v2083 = vunpack.c.h.b16 %v766
    %v2084 = vunpack.c.l.b16 %v767
    %v2085 = vunpack.c.h.b16 %v767
    %v2086 = vunpack.c.l.b16 %v768
    %v2087 = vunpack.c.h.b16 %v768
    %v2088 = vunpack.c.l.b16 %v769
    %v2089 = vunpack.c.h.b16 %v769
    %v2090 = vunpack.c.l.b16 %v770
    %v2091 = vunpack.c.h.b16 %v770
    %v2092 = vunpack.c.l.b16 %v771
    %v2093 = vunpack.c.h.b16 %v771
    %v2094 = vunpack.c.l.b16 %v772
    %v2095 = vunpack.c.h.b16 %v772
    %v2096 = vunpack.c.l.b16 %v773
    %v2097 = vunpack.c.h.b16 %v773
    %v2098 = vunpack.c.l.b16 %v774
    %v2099 = vunpack.c.h.b16 %v774
    %v2100 = vunpack.c.l.b16 %v775
    %v2101 = vunpack.c.h.b16 %v775
    %v2102 = vunpack.c.l.b16 %v776
    %v2103 = vunpack.c.h.b16 %v776
    %v2104 = vunpack.c.l.b16 %v777
    %v2105 = vunpack.c.h.b16 %v777
    %v2106 = vunpack.c.l.b16 %v778
    %v2107 = vunpack.c.h.b16 %v778
    %v2108 = vunpack.c.l.b16 %v779
    %v2109 = vunpack.c.h.b16 %v779
    %v2110 = vunpack.c.l.b16 %v780
    %v2111 = vunpack.c.h.b16 %v780
    %v2112 = vunpack.c.l.b16 %v781
    %v2113 = vunpack.c.h.b16 %v781
    %v2114 = vunpack.c.l.b16 %v782
    %v2115 = vunpack.c.h.b16 %v782
    %v2116 = vunpack.c.l.b16 %v783
    %v2117 = vunpack.c.h.b16 %v783
    %v2118 = vunpack.c.l.b16 %v784
    %v2119 = vunpack.c.h.b16 %v784
    %v2120 = vunpack.c.l.b16 %v785
    %v2121 = vunpack.c.h.b16 %v785
    %v2122 = vunpack.c.l.b16 %v786
    %v2123 = vunpack.c.h.b16 %v786
    %v2124 = vunpack.c.l.b16 %v787
    %v2125 = vunpack.c.h.b16 %v787
    %v2126 = vunpack.c.l.b16 %v788
    %v2127 = vunpack.c.h.b16 %v788
    %v2128 = vunpack.c.l.b16 %v789
    %v2129 = vunpack.c.h.b16 %v789
    %v2130 = vunpack.c.l.b16 %v790
    %v2131 = vunpack.c.h.b16 %v790
    %v2132 = vunpack.c.l.b16 %v791
    %v2133 = vunpack.c.h.b16 %v791
    %v2134 = vunpack.c.l.b16 %v792
    %v2135 = vunpack.c.h.b16 %v792
    %v2136 = vunpack.c.l.b16 %v793
    %v2137 = vunpack.c.h.b16 %v793
    %v2138 = vunpack.c.l.b16 %v794
    %v2139 = vunpack.c.h.b16 %v794
    %v2140 = vunpack.c.l.b16 %v795
    %v2141 = vunpack.c.h.b16 %v795
    %v2142 = vunpack.c.l.b16 %v796
    %v2143 = vunpack.c.h.b16 %v796
    %v2144 = vunpack.c.l.b16 %v797
    %v2145 = vunpack.c.h.b16 %v797
    %v2146 = vunpack.c.l.b16 %v798
    %v2147 = vunpack.c.h.b16 %v798
    %v2148 = vunpack.c.l.b16 %v799
    %v2149 = vunpack.c.h.b16 %v799
    %v2150 = vunpack.c.l.b16 %v800
    %v2151 = vunpack.c.h.b16 %v800
    %v2152 = vunpack.c.l.b16 %v801
    %v2153 = vunpack.c.h.b16 %v801
    %v2154 = vunpack.c.l.b16 %v802
    %v2155 = vunpack.c.h.b16 %v802
    %v2156 = vunpack.c.l.b16 %v803
    %v2157 = vunpack.c.h.b16 %v803
    %v2158 = vunpack.c.l.b16 %v804
    %v2159 = vunpack.c.h.b16 %v804
    %v2160 = vunpack.c.l.b16 %v805
    %v2161 = vunpack.c.h.b16 %v805
    %v2162 = vunpack.c.l.b16 %v806
    %v2163 = vunpack.c.h.b16 %v806
    %v2164 = vunpack.c.l.b16 %v807
    %v2165 = vunpack.c.h.b16 %v807
    %v2166 = vunpack.c.l.b16 %v808
    %v2167 = vunpack.c.h.b16 %v808
    %v2168 = vunpack.c.l.b16 %v809
    %v2169 = vunpack.c.h.b16 %v809
    %v2170 = vunpack.c.l.b16 %v810
    %v2171 = vunpack.c.h.b16 %v810
    %v2172 = vunpack.c.l.b16 %v811
    %v2173 = vunpack.c.h.b16 %v811
    %v2174 = vunpack.c.l.b16 %v812
    %v2175 = vunpack.c.h.b16 %v812
    %v2176 = vunpack.c.l.b16 %v813
    %v2177 = vunpack.c.h.b16 %v813
    %v2178 = vunpack.c.l.b16 %v814
    %v2179 = vunpack.c.h.b16 %v814
    %v2180 = vunpack.c.l.b16 %v815
    %v2181 = vunpack.c.h.b16 %v815
    %v2182 = vunpack.c.l.b16 %v816
    %v2183 = vunpack.c.h.b16 %v816
    %v2184 = vunpack.c.l.b16 %v817
    %v2185 = vunpack.c.h.b16 %v817
    %v2186 = vunpack.c.l.b16 %v818
    %v2187 = vunpack.c.h.b16 %v818
    %v2188 = vunpack.c.l.b16 %v819
    %v2189 = vunpack.c.h.b16 %v819
    %v2190 = vunpack.c.l.b16 %v820
    %v2191 = vunpack.c.h.b16 %v820
    %v2192 = vunpack.c.l.b16 %v821
    %v2193 = vunpack.c.h.b16 %v821
    %v2194 = vunpack.c.l.b16 %v822
    %v2195 = vunpack.c.h.b16 %v822
    %v2196 = vunpack.c.l.b16 %v823
    %v2197 = vunpack.c.h.b16 %v823
    %v2198 = vunpack.c.l.b16 %v824
    %v2199 = vunpack.c.h.b16 %v824
    %v2200 = vunpack.c.l.b16 %v825
    %v2201 = vunpack.c.h.b16 %v825
    %v2202 = vunpack.c.l.b16 %v826
    %v2203 = vunpack.c.h.b16 %v826
    %v2204 = vunpack.c.l.b16 %v827
    %v2205 = vunpack.c.h.b16 %v827
    %v2206 = vunpack.c.l.b16 %v828
    %v2207 = vunpack.c.h.b16 %v828
    %v2208 = vunpack.c.l.b16 %v829
    %v2209 = vunpack.c.h.b16 %v829
    %v2210 = vunpack.c.l.b16 %v830
    %v2211 = vunpack.c.h.b16 %v830
    %v2212 = vunpack.c.l.b16 %v831
    %v2213 = vunpack.c.h.b16 %v831
    %v2214 = vunpack.c.l.b16 %v832
    %v2215 = vunpack.c.h.b16 %v832
    %v2216 = vunpack.c.l.b16 %v833
    %v2217 = vunpack.c.h.b16 %v833
    %v2218 = vunpack.c.l.b16 %v834
    %v2219 = vunpack.c.h.b16 %v834
    %v2220 = vunpack.c.l.b16 %v835
    %v2221 = vunpack.c.h.b16 %v835
    %v2222 = vunpack.c.l.b16 %v836
    %v2223 = vunpack.c.h.b16 %v836
    %v2224 = vunpack.c.l.b16 %v837
    %v2225 = vunpack.c.h.b16 %v837
    %v2226 = vunpack.c.l.b16 %v838
    %v2227 = vunpack.c.h.b16 %v838
    %v2228 = vunpack.c.l.b16 %v839
    %v2229 = vunpack.c.h.b16 %v839
    %v2230 = vunpack.c.l.b16 %v840
    %v2231 = vunpack.c.h.b16 %v840
    %v2232 = vunpack.c.l.b16 %v841
    %v2233 = vunpack.c.h.b16 %v841
    %v2234 = vunpack.c.l.b16 %v842
    %v2235 = vunpack.c.h.b16 %v842
    %v2236 = vunpack.c.l.b16 %v843
    %v2237 = vunpack.c.h.b16 %v843
    %v2238 = vunpack.c.l.b16 %v844
    %v2239 = vunpack.c.h.b16 %v844
    %v2240 = vunpack.c.l.b16 %v845
    %v2241 = vunpack.c.h.b16 %v845
    %v2242 = vunpack.c.l.b16 %v846
    %v2243 = vunpack.c.h.b16 %v846
    %v2244 = vunpack.c.l.b16 %v847
    %v2245 = vunpack.c.h.b16 %v847
    %v2246 = vunpack.c.l.b16 %v848
    %v2247 = vunpack.c.h.b16 %v848
    %v2248 = vunpack.c.l.b16 %v849
    %v2249 = vunpack.c.h.b16 %v849
    %v2250 = vunpack.c.l.b16 %v850
    %v2251 = vunpack.c.h.b16 %v850
    %v2252 = vunpack.c.l.b16 %v851
    %v2253 = vunpack.c.h.b16 %v851
    %v2254 = vunpack.c.l.b16 %v852
    %v2255 = vunpack.c.h.b16 %v852
    %v2256 = vunpack.c.l.b16 %v853
    %v2257 = vunpack.c.h.b16 %v853
    %v2258 = vunpack.c.l.b16 %v854
    %v2259 = vunpack.c.h.b16 %v854
    %v2260 = vunpack.c.l.b16 %v855
    %v2261 = vunpack.c.h.b16 %v855
    %v2262 = vunpack.c.l.b16 %v856
    %v2263 = vunpack.c.h.b16 %v856
    %v2264 = vunpack.c.l.b16 %v857
    %v2265 = vunpack.c.h.b16 %v857
    %v2266 = vunpack.c.l.b16 %v858
    %v2267 = vunpack.c.h.b16 %v858
    %v2268 = vunpack.c.l.b16 %v859
    %v2269 = vunpack.c.h.b16 %v859
    %v2270 = vunpack.c.l.b16 %v860
    %v2271 = vunpack.c.h.b16 %v860
    %v2272 = vunpack.c.l.b16 %v861
    %v2273 = vunpack.c.h.b16 %v861
    %v2274 = vunpack.c.l.b16 %v862
    %v2275 = vunpack.c.h.b16 %v862
    %v2276 = vunpack.c.l.b16 %v863
    %v2277 = vunpack.c.h.b16 %v863
    %v2278 = vunpack.c.l.b16 %v864
    %v2279 = vunpack.c.h.b16 %v864
    %v2280 = vunpack.c.l.b16 %v865
    %v2281 = vunpack.c.h.b16 %v865
    %v2282 = vunpack.c.l.b16 %v866
    %v2283 = vunpack.c.h.b16 %v866
    %v2284 = vunpack.c.l.b16 %v867
    %v2285 = vunpack.c.h.b16 %v867
    %v2286 = vunpack.c.l.b16 %v868
    %v2287 = vunpack.c.h.b16 %v868
    %v2288 = vunpack.c.l.b16 %v869
    %v2289 = vunpack.c.h.b16 %v869
    %v2290 = vunpack.c.l.b16 %v870
    %v2291 = vunpack.c.h.b16 %v870
    %v2292 = vunpack.c.l.b16 %v871
    %v2293 = vunpack.c.h.b16 %v871
    %v2294 = vpack.c.b16 %v1382, %v1374
    %v2295 = vpack.c.b16 %v1383, %v1375
    %v2296 = vpack.c.b16 %v1384, %v1376
    %v2297 = vpack.c.b16 %v1385, %v1377
    %v2298 = vpack.c.b16 %v1386, %v1378
    %v2299 = vpack.c.b16 %v1387, %v1379
    %v2300 = vpack.c.b16 %v1388, %v1380
    %v2301 = vpack.c.b16 %v1389, %v1381
    %v2302 = vpack.c.b16 %v1398, %v1390
    %v2303 = vpack.c.b16 %v1399, %v1391
    %v2304 = vpack.c.b16 %v1400, %v1392
    %v2305 = vpack.c.b16 %v1401, %v1393
    %v2306 = vpack.c.b16 %v1402, %v1394
    %v2307 = vpack.c.b16 %v1403, %v1395
    %v2308 = vpack.c.b16 %v1404, %v1396
    %v2309 = vpack.c.b16 %v1405, %v1397
    %v2310 = vpack.c.b16 %v1414, %v1406
    %v2311 = vpack.c.b16 %v1415, %v1407
    %v2312 = vpack.c.b16 %v1416, %v1408
    %v2313 = vpack.c.b16 %v1417, %v1409
    %v2314 = vpack.c.b16 %v1418, %v1410
    %v2315 = vpack.c.b16 %v1419, %v1411
    %v2316 = vpack.c.b16 %v1420, %v1412
    %v2317 = vpack.c.b16 %v1421, %v1413
    %v2318 = vpack.c.b16 %v1430, %v1422
    %v2319 = vpack.c.b16 %v1431, %v1423
    %v2320 = vpack.c.b16 %v1432, %v1424
    %v2321 = vpack.c.b16 %v1433, %v1425
    %v2322 = vpack.c.b16 %v1434, %v1426
    %v2323 = vpack.c.b16 %v1435, %v1427
    %v2324 = vpack.c.b16 %v1436, %v1428
    %v2325 = vpack.c.b16 %v1437, %v1429
    %v2326 = vpack.c.b16 %v1446, %v1438
    %v2327 = vpack.c.b16 %v1447, %v1439
    %v2328 = vpack.c.b16 %v1448, %v1440
    %v2329 = vpack.c.b16 %v1449, %v1441
    %v2330 = vpack.c.b16 %v1450, %v1442
    %v2331 = vpack.c.b16 %v1451, %v1443
    %v2332 = vpack.c.b16 %v1452, %v1444
    %v2333 = vpack.c.b16 %v1453, %v1445
    %v2334 = vpack.c.b16 %v1462, %v1454
    %v2335 = vpack.c.b16 %v1463, %v1455
    %v2336 = vpack.c.b16 %v1464, %v1456
    %v2337 = vpack.c.b16 %v1465, %v1457
    %v2338 = vpack.c.b16 %v1466, %v1458
    %v2339 = vpack.c.b16 %v1467, %v1459
    %v2340 = vpack.c.b16 %v1468, %v1460
    %v2341 = vpack.c.b16 %v1469, %v1461
    %v2342 = vpack.c.b16 %v1478, %v1470
    %v2343 = vpack.c.b16 %v1479, %v1471
    %v2344 = vpack.c.b16 %v1480, %v1472
    %v2345 = vpack.c.b16 %v1481, %v1473
    %v2346 = vpack.c.b16 %v1482, %v1474
    %v2347 = vpack.c.b16 %v1483, %v1475
    %v2348 = vpack.c.b16 %v1484, %v1476
    %v2349 = vpack.c.b16 %v1485, %v1477
    %v2350 = vpack.c.b16 %v1494, %v1486
    %v2351 = vpack.c.b16 %v1495, %v1487
    %v2352 = vpack.c.b16 %v1496, %v1488
    %v2353 = vpack.c.b16 %v1497, %v1489
    %v2354 = vpack.c.b16 %v1498, %v1490
    %v2355 = vpack.c.b16 %v1499, %v1491
    %v2356 = vpack.c.b16 %v1500, %v1492
    %v2357 = vpack.c.b16 %v1501, %v1493
    %v2358 = vpack.c.b16 %v1510, %v1502
    %v2359 = vpack.c.b16 %v1511, %v1503
    %v2360 = vpack.c.b16 %v1512, %v1504
    %v2361 = vpack.c.b16 %v1513, %v1505
    %v2362 = vpack.c.b16 %v1514, %v1506
    %v2363 = vpack.c.b16 %v1515, %v1507
    %v2364 = vpack.c.b16 %v1516, %v1508
    %v2365 = vpack.c.b16 %v1517, %v1509
    %v2366 = vpack.c.b16 %v1526, %v1518
    %v2367 = vpack.c.b16 %v1527, %v1519
    %v2368 = vpack.c.b16 %v1528, %v1520
    %v2369 = vpack.c.b16 %v1529, %v1521
    %v2370 = vpack.c.b16 %v1530, %v1522
    %v2371 = vpack.c.b16 %v1531, %v1523
    %v2372 = vpack.c.b16 %v1532, %v1524
    %v2373 = vpack.c.b16 %v1533, %v1525
    %v2374 = vpack.c.b16 %v1542, %v1534
    %v2375 = vpack.c.b16 %v1543, %v1535
    %v2376 = vpack.c.b16 %v1544, %v1536
    %v2377 = vpack.c.b16 %v1545, %v1537
    %v2378 = vpack.c.b16 %v1546, %v1538
    %v2379 = vpack.c.b16 %v1547, %v1539
    %v2380 = vpack.c.b16 %v1548, %v1540
    %v2381 = vpack.c.b16 %v1549, %v1541
    %v2382 = vpack.c.b16 %v1558, %v1550
    %v2383 = vpack.c.b16 %v1559, %v1551
    %v2384 = vpack.c.b16 %v1560, %v1552
    %v2385 = vpack.c.b16 %v1561, %v1553
    %v2386 = vpack.c.b16 %v1562, %v1554
    %v2387 = vpack.c.b16 %v1563, %v1555
    %v2388 = vpack.c.b16 %v1564, %v1556
    %v2389 = vpack.c.b16 %v1565, %v1557
    %v2390 = vpack.c.b16 %v1574, %v1566
    %v2391 = vpack.c.b16 %v1575, %v1567
    %v2392 = vpack.c.b16 %v1576, %v1568
    %v2393 = vpack.c.b16 %v1577, %v1569
    %v2394 = vpack.c.b16 %v1578, %v1570
    %v2395 = vpack.c.b16 %v1579, %v1571
    %v2396 = vpack.c.b16 %v1580, %v1572
    %v2397 = vpack.c.b16 %v1581, %v1573
    %v2398 = vpack.c.b16 %v1590, %v1582
    %v2399 = vpack.c.b16 %v1591, %v1583
    %v2400 = vpack.c.b16 %v1592, %v1584
    %v2401 = vpack.c.b16 %v1593, %v1585
    %v2402 = vpack.c.b16 %v1594, %v1586
    %v2403 = vpack.c.b16 %v1595, %v1587
    %v2404 = vpack.c.b16 %v1596, %v1588
    %v2405 = vpack.c.b16 %v1597, %v1589
    %v2406 = vpack.c.b16 %v1606, %v1598
    %v2407 = vpack.c.b16 %v1607, %v1599
    %v2408 = vpack.c.b16 %v1608, %v1600
    %v2409 = vpack.c.b16 %v1609, %v1601
    %v2410 = vpack.c.b16 %v1610, %v1602
    %v2411 = vpack.c.b16 %v1611, %v1603
    %v2412 = vpack.c.b16 %v1612, %v1604
    %v2413 = vpack.c.b16 %v1613, %v1605
    %v2414 = vpack.c.b16 %v1622, %v1614
    %v2415 = vpack.c.b16 %v1623, %v1615
    %v2416 = vpack.c.b16 %v1624, %v1616
    %v2417 = vpack.c.b16 %v1625, %v1617
    %v2418 = vpack.c.b16 %v1626, %v1618
    %v2419 = vpack.c.b16 %v1627, %v1619
    %v2420 = vpack.c.b16 %v1628, %v1620
    %v2421 = vpack.c.b16 %v1629, %v1621
    %v2422 = vpack.c.b16 %v1638, %v1630
    %v2423 = vpack.c.b16 %v1639, %v1631
    %v2424 = vpack.c.b16 %v1640, %v1632
    %v2425 = vpack.c.b16 %v1641, %v1633
    %v2426 = vpack.c.b16 %v1642, %v1634
    %v2427 = vpack.c.b16 %v1643, %v1635
    %v2428 = vpack.c.b16 %v1644, %v1636
    %v2429 = vpack.c.b16 %v1645, %v1637
    %v2430 = vpack.c.b16 %v1654, %v1646
    %v2431 = vpack.c.b16 %v1655, %v1647
    %v2432 = vpack.c.b16 %v1656, %v1648
    %v2433 = vpack.c.b16 %v1657, %v1649
    %v2434 = vpack.c.b16 %v1658, %v1650
    %v2435 = vpack.c.b16 %v1659, %v1651
    %v2436 = vpack.c.b16 %v1660, %v1652
    %v2437 = vpack.c.b16 %v1661, %v1653
    %v2438 = vpack.c.b16 %v1670, %v1662
    %v2439 = vpack.c.b16 %v1671, %v1663
    %v2440 = vpack.c.b16 %v1672, %v1664
    %v2441 = vpack.c.b16 %v1673, %v1665
    %v2442 = vpack.c.b16 %v1674, %v1666
    %v2443 = vpack.c.b16 %v1675, %v1667
    %v2444 = vpack.c.b16 %v1676, %v1668
    %v2445 = vpack.c.b16 %v1677, %v1669
    %v2446 = vpack.c.b16 %v1686, %v1678
    %v2447 = vpack.c.b16 %v1687, %v1679
    %v2448 = vpack.c.b16 %v1688, %v1680
    %v2449 = vpack.c.b16 %v1689, %v1681
    %v2450 = vpack.c.b16 %v1690, %v1682
    %v2451 = vpack.c.b16 %v1691, %v1683
    %v2452 = vpack.c.b16 %v1692, %v1684
    %v2453 = vpack.c.b16 %v1693, %v1685
    %v2454 = vpack.c.b16 %v1702, %v1694
    %v2455 = vpack.c.b16 %v1703, %v1695
    %v2456 = vpack.c.b16 %v1704, %v1696
    %v2457 = vpack.c.b16 %v1705, %v1697
    %v2458 = vpack.c.b16 %v1706, %v1698
    %v2459 = vpack.c.b16 %v1707, %v1699
    %v2460 = vpack.c.b16 %v1708, %v1700
    %v2461 = vpack.c.b16 %v1709, %v1701
    %v2462 = vpack.c.b16 %v1718, %v1710
    %v2463 = vpack.c.b16 %v1719, %v1711
    %v2464 = vpack.c.b16 %v1720, %v1712
    %v2465 = vpack.c.b16 %v1721, %v1713
    %v2466 = vpack.c.b16 %v1722, %v1714
    %v2467 = vpack.c.b16 %v1723, %v1715
    %v2468 = vpack.c.b16 %v1724, %v1716
    %v2469 = vpack.c.b16 %v1725, %v1717
    %v2470 = vpack.c.b16 %v1734, %v1726
    %v2471 = vpack.c.b16 %v1735, %v1727
    %v2472 = vpack.c.b16 %v1736, %v1728
    %v2473 = vpack.c.b16 %v1737, %v1729
    %v2474 = vpack.c.b16 %v1738, %v1730
    %v2475 = vpack.c.b16 %v1739, %v1731
    %v2476 = vpack.c.b16 %v1740, %v1732
    %v2477 = vpack.c.b16 %v1741, %v1733
    %v2478 = vpack.c.b16 %v1750, %v1742
    %v2479 = vpack.c.b16 %v1751, %v1743
    %v2480 = vpack.c.b16 %v1752, %v1744
    %v2481 = vpack.c.b16 %v1753, %v1745
    %v2482 = vpack.c.b16 %v1754, %v1746
    %v2483 = vpack.c.b16 %v1755, %v1747
    %v2484 = vpack.c.b16 %v1756, %v1748
    %v2485 = vpack.c.b16 %v1757, %v1749
    %v2486 = vpack.c.b16 %v1766, %v1758
    %v2487 = vpack.c.b16 %v1767, %v1759
    %v2488 = vpack.c.b16 %v1768, %v1760
    %v2489 = vpack.c.b16 %v1769, %v1761
    %v2490 = vpack.c.b16 %v1770, %v1762
    %v2491 = vpack.c.b16 %v1771, %v1763
    %v2492 = vpack.c.b16 %v1772, %v1764
    %v2493 = vpack.c.b16 %v1773, %v1765
    %v2494 = vpack.c.b16 %v1782, %v1774
    %v2495 = vpack.c.b16 %v1783, %v1775
    %v2496 = vpack.c.b16 %v1784, %v1776
    %v2497 = vpack.c.b16 %v1785, %v1777
    %v2498 = vpack.c.b16 %v1786, %v1778
    %v2499 = vpack.c.b16 %v1787, %v1779
    %v2500 = vpack.c.b16 %v1788, %v1780
    %v2501 = vpack.c.b16 %v1789, %v1781
    %v2502 = vpack.c.b16 %v1798, %v1790
    %v2503 = vpack.c.b16 %v1799, %v1791
    %v2504 = vpack.c.b16 %v1800, %v1792
    %v2505 = vpack.c.b16 %v1801, %v1793
    %v2506 = vpack.c.b16 %v1802, %v1794
    %v2507 = vpack.c.b16 %v1803, %v1795
    %v2508 = vpack.c.b16 %v1804, %v1796
    %v2509 = vpack.c.b16 %v1805, %v1797
    %v2510 = vpack.c.b16 %v1814, %v1806
    %v2511 = vpack.c.b16 %v1815, %v1807
    %v2512 = vpack.c.b16 %v1816, %v1808
    %v2513 = vpack.c.b16 %v1817, %v1809
    %v2514 = vpack.c.b16 %v1818, %v1810
    %v2515 = vpack.c.b16 %v1819, %v1811
    %v2516 = vpack.c.b16 %v1820, %v1812
    %v2517 = vpack.c.b16 %v1821, %v1813
    %v2518 = vpack.c.b16 %v1830, %v1822
    %v2519 = vpack.c.b16 %v1831, %v1823
    %v2520 = vpack.c.b16 %v1832, %v1824
    %v2521 = vpack.c.b16 %v1833, %v1825
    %v2522 = vpack.c.b16 %v1834, %v1826
    %v2523 = vpack.c.b16 %v1835, %v1827
    %v2524 = vpack.c.b16 %v1836, %v1828
    %v2525 = vpack.c.b16 %v1837, %v1829
    %v2526 = vpack.c.b16 %v1846, %v1838
    %v2527 = vpack.c.b16 %v1847, %v1839
    %v2528 = vpack.c.b16 %v1848, %v1840
    %v2529 = vpack.c.b16 %v1849, %v1841
    %v2530 = vpack.c.b16 %v1850, %v1842
    %v2531 = vpack.c.b16 %v1851, %v1843
    %v2532 = vpack.c.b16 %v1852, %v1844
    %v2533 = vpack.c.b16 %v1853, %v1845
    %v2534 = vpack.c.b16 %v1862, %v1854
    %v2535 = vpack.c.b16 %v1863, %v1855
    %v2536 = vpack.c.b16 %v1864, %v1856
    %v2537 = vpack.c.b16 %v1865, %v1857
    %v2538 = vpack.c.b16 %v1866, %v1858
    %v2539 = vpack.c.b16 %v1867, %v1859
    %v2540 = vpack.c.b16 %v1868, %v1860
    %v2541 = vpack.c.b16 %v1869, %v1861
    %v2542 = vpack.c.b16 %v1878, %v1870
    %v2543 = vpack.c.b16 %v1879, %v1871
    %v2544 = vpack.c.b16 %v1880, %v1872
    %v2545 = vpack.c.b16 %v1881, %v1873
    %v2546 = vpack.c.b16 %v1882, %v1874
    %v2547 = vpack.c.b16 %v1883, %v1875
    %v2548 = vpack.c.b16 %v1884, %v1876
    %v2549 = vpack.c.b16 %v1885, %v1877
    %v2550 = vpack.c.b16 %v1894, %v1886
    %v2551 = vpack.c.b16 %v1895, %v1887
    %v2552 = vpack.c.b16 %v1896, %v1888
    %v2553 = vpack.c.b16 %v1897, %v1889
    %v2554 = vpack.c.b16 %v1898, %v1890
    %v2555 = vpack.c.b16 %v1899, %v1891
    %v2556 = vpack.c.b16 %v1900, %v1892
    %v2557 = vpack.c.b16 %v1901, %v1893
    %v2558 = vpack.c.b16 %v1910, %v1902
    %v2559 = vpack.c.b16 %v1911, %v1903
    %v2560 = vpack.c.b16 %v1912, %v1904
    %v2561 = vpack.c.b16 %v1913, %v1905
    %v2562 = vpack.c.b16 %v1914, %v1906
    %v2563 = vpack.c.b16 %v1915, %v1907
    %v2564 = vpack.c.b16 %v1916, %v1908
    %v2565 = vpack.c.b16 %v1917, %v1909
    %v2566 = vpack.c.b16 %v1926, %v1918
    %v2567 = vpack.c.b16 %v1927, %v1919
    %v2568 = vpack.c.b16 %v1928, %v1920
    %v2569 = vpack.c.b16 %v1929, %v1921
    %v2570 = vpack.c.b16 %v1930, %v1922
    %v2571 = vpack.c.b16 %v1931, %v1923
    %v2572 = vpack.c.b16 %v1932, %v1924
    %v2573 = vpack.c.b16 %v1933, %v1925
    %v2574 = vpack.c.b16 %v1942, %v1934
    %v2575 = vpack.c.b16 %v1943, %v1935
    %v2576 = vpack.c.b16 %v1944, %v1936
    %v2577 = vpack.c.b16 %v1945, %v1937
    %v2578 = vpack.c.b16 %v1946, %v1938
    %v2579 = vpack.c.b16 %v1947, %v1939
    %v2580 = vpack.c.b16 %v1948, %v1940
    %v2581 = vpack.c.b16 %v1949, %v1941
    %v2582 = vpack.c.b16 %v1958, %v1950
    %v2583 = vpack.c.b16 %v1959, %v1951
    %v2584 = vpack.c.b16 %v1960, %v1952
    %v2585 = vpack.c.b16 %v1961, %v1953
    %v2586 = vpack.c.b16 %v1962, %v1954
    %v2587 = vpack.c.b16 %v1963, %v1955
    %v2588 = vpack.c.b16 %v1964, %v1956
    %v2589 = vpack.c.b16 %v1965, %v1957
    %v2590 = vpack.c.b16 %v1974, %v1966
    %v2591 = vpack.c.b16 %v1975, %v1967
    %v2592 = vpack.c.b16 %v1976, %v1968
    %v2593 = vpack.c.b16 %v1977, %v1969
    %v2594 = vpack.c.b16 %v1978, %v1970
    %v2595 = vpack.c.b16 %v1979, %v1971
    %v2596 = vpack.c.b16 %v1980, %v1972
    %v2597 = vpack.c.b16 %v1981, %v1973
    %v2598 = vpack.c.b16 %v1990, %v1982
    %v2599 = vpack.c.b16 %v1991, %v1983
    %v2600 = vpack.c.b16 %v1992, %v1984
    %v2601 = vpack.c.b16 %v1993, %v1985
    %v2602 = vpack.c.b16 %v1994, %v1986
    %v2603 = vpack.c.b16 %v1995, %v1987
    %v2604 = vpack.c.b16 %v1996, %v1988
    %v2605 = vpack.c.b16 %v1997, %v1989
    %v2606 = vpack.c.b16 %v2006, %v1998
    %v2607 = vpack.c.b16 %v2007, %v1999
    %v2608 = vpack.c.b16 %v2008, %v2000
    %v2609 = vpack.c.b16 %v2009, %v2001
    %v2610 = vpack.c.b16 %v2010, %v2002
    %v2611 = vpack.c.b16 %v2011, %v2003
    %v2612 = vpack.c.b16 %v2012, %v2004
    %v2613 = vpack.c.b16 %v2013, %v2005
    %v2614 = vpack.c.b16 %v2022, %v2014
    %v2615 = vpack.c.b16 %v2023, %v2015
    %v2616 = vpack.c.b16 %v2024, %v2016
    %v2617 = vpack.c.b16 %v2025, %v2017
    %v2618 = vpack.c.b16 %v2026, %v2018
    %v2619 = vpack.c.b16 %v2027, %v2019
    %v2620 = vpack.c.b16 %v2028, %v2020
    %v2621 = vpack.c.b16 %v2029, %v2021
    %v2622 = vpack.c.b16 %v2038, %v2030
    %v2623 = vpack.c.b16 %v2039, %v2031
    %v2624 = vpack.c.b16 %v2040, %v2032
    %v2625 = vpack.c.b16 %v2041, %v2033
    %v2626 = vpack.c.b16 %v2042, %v2034
    %v2627 = vpack.c.b16 %v2043, %v2035
    %v2628 = vpack.c.b16 %v2044, %v2036
    %v2629 = vpack.c.b16 %v2045, %v2037
    %v2630 = vpack.c.b16 %v2054, %v2046
    %v2631 = vpack.c.b16 %v2055, %v2047
    %v2632 = vpack.c.b16 %v2056, %v2048
    %v2633 = vpack.c.b16 %v2057, %v2049
    %v2634 = vpack.c.b16 %v2058, %v2050
    %v2635 = vpack.c.b16 %v2059, %v2051
    %v2636 = vpack.c.b16 %v2060, %v2052
    %v2637 = vpack.c.b16 %v2061, %v2053
    %v2638 = vpack.c.b16 %v2070, %v2062
    %v2639 = vpack.c.b16 %v2071, %v2063
    %v2640 = vpack.c.b16 %v2072, %v2064
    %v2641 = vpack.c.b16 %v2073, %v2065
    %v2642 = vpack.c.b16 %v2074, %v2066
    %v2643 = vpack.c.b16 %v2075, %v2067
    %v2644 = vpack.c.b16 %v2076, %v2068
    %v2645 = vpack.c.b16 %v2077, %v2069
    %v2646 = vpack.c.b16 %v2086, %v2078
    %v2647 = vpack.c.b16 %v2087, %v2079
    %v2648 = vpack.c.b16 %v2088, %v2080
    %v2649 = vpack.c.b16 %v2089, %v2081
    %v2650 = vpack.c.b16 %v2090, %v2082
    %v2651 = vpack.c.b16 %v2091, %v2083
    %v2652 = vpack.c.b16 %v2092, %v2084
    %v2653 = vpack.c.b16 %v2093, %v2085
    %v2654 = vpack.c.b16 %v2102, %v2094
    %v2655 = vpack.c.b16 %v2103, %v2095
    %v2656 = vpack.c.b16 %v2104, %v2096
    %v2657 = vpack.c.b16 %v2105, %v2097
    %v2658 = vpack.c.b16 %v2106, %v2098
    %v2659 = vpack.c.b16 %v2107, %v2099
    %v2660 = vpack.c.b16 %v2108, %v2100
    %v2661 = vpack.c.b16 %v2109, %v2101
    %v2662 = vpack.c.b16 %v2118, %v2110
    %v2663 = vpack.c.b16 %v2119, %v2111
    %v2664 = vpack.c.b16 %v2120, %v2112
    %v2665 = vpack.c.b16 %v2121, %v2113
    %v2666 = vpack.c.b16 %v2122, %v2114
    %v2667 = vpack.c.b16 %v2123, %v2115
    %v2668 = vpack.c.b16 %v2124, %v2116
    %v2669 = vpack.c.b16 %v2125, %v2117
    %v2670 = vpack.c.b16 %v2134, %v2126
    %v2671 = vpack.c.b16 %v2135, %v2127
    %v2672 = vpack.c.b16 %v2136, %v2128
    %v2673 = vpack.c.b16 %v2137, %v2129
    %v2674 = vpack.c.b16 %v2138, %v2130
    %v2675 = vpack.c.b16 %v2139, %v2131
    %v2676 = vpack.c.b16 %v2140, %v2132
    %v2677 = vpack.c.b16 %v2141, %v2133
    %v2678 = vpack.c.b16 %v2150, %v2142
    %v2679 = vpack.c.b16 %v2151, %v2143
    %v2680 = vpack.c.b16 %v2152, %v2144
    %v2681 = vpack.c.b16 %v2153, %v2145
    %v2682 = vpack.c.b16 %v2154, %v2146
    %v2683 = vpack.c.b16 %v2155, %v2147
    %v2684 = vpack.c.b16 %v2156, %v2148
    %v2685 = vpack.c.b16 %v2157, %v2149
    %v2686 = vpack.c.b16 %v2166, %v2158
    %v2687 = vpack.c.b16 %v2167, %v2159
    %v2688 = vpack.c.b16 %v2168, %v2160
    %v2689 = vpack.c.b16 %v2169, %v2161
    %v2690 = vpack.c.b16 %v2170, %v2162
    %v2691 = vpack.c.b16 %v2171, %v2163
    %v2692 = vpack.c.b16 %v2172, %v2164
    %v2693 = vpack.c.b16 %v2173, %v2165
    %v2694 = vpack.c.b16 %v2182, %v2174
    %v2695 = vpack.c.b16 %v2183, %v2175
    %v2696 = vpack.c.b16 %v2184, %v2176
    %v2697 = vpack.c.b16 %v2185, %v2177
    %v2698 = vpack.c.b16 %v2186, %v2178
    %v2699 = vpack.c.b16 %v2187, %v2179
    %v2700 = vpack.c.b16 %v2188, %v2180
    %v2701 = vpack.c.b16 %v2189, %v2181
    %v2702 = vpack.c.b16 %v2198, %v2190
    %v2703 = vpack.c.b16 %v2199, %v2191
    %v2704 = vpack.c.b16 %v2200, %v2192
    %v2705 = vpack.c.b16 %v2201, %v2193
    %v2706 = vpack.c.b16 %v2202, %v2194
    %v2707 = vpack.c.b16 %v2203, %v2195
    %v2708 = vpack.c.b16 %v2204, %v2196
    %v2709 = vpack.c.b16 %v2205, %v2197
    %v2710 = vpack.c.b16 %v2214, %v2206
    %v2711 = vpack.c.b16 %v2215, %v2207
    %v2712 = vpack.c.b16 %v2216, %v2208
    %v2713 = vpack.c.b16 %v2217, %v2209
    %v2714 = vpack.c.b16 %v2218, %v2210
    %v2715 = vpack.c.b16 %v2219, %v2211
    %v2716 = vpack.c.b16 %v2220, %v2212
    %v2717 = vpack.c.b16 %v2221, %v2213
    %v2718 = vpack.c.b16 %v2230, %v2222
    %v2719 = vpack.c.b16 %v2231, %v2223
    %v2720 = vpack.c.b16 %v2232, %v2224
    %v2721 = vpack.c.b16 %v2233, %v2225
    %v2722 = vpack.c.b16 %v2234, %v2226
    %v2723 = vpack.c.b16 %v2235, %v2227
    %v2724 = vpack.c.b16 %v2236, %v2228
    %v2725 = vpack.c.b16 %v2237, %v2229
    %v2726 = vpack.c.b16 %v2246, %v2238
    %v2727 = vpack.c.b16 %v2247, %v2239
    %v2728 = vpack.c.b16 %v2248, %v2240
    %v2729 = vpack.c.b16 %v2249, %v2241
    %v2730 = vpack.c.b16 %v2250, %v2242
    %v2731 = vpack.c.b16 %v2251, %v2243
    %v2732 = vpack.c.b16 %v2252, %v2244
    %v2733 = vpack.c.b16 %v2253, %v2245
    %v2734 = vpack.c.b16 %v2262, %v2254
    %v2735 = vpack.c.b16 %v2263, %v2255
    %v2736 = vpack.c.b16 %v2264, %v2256
    %v2737 = vpack.c.b16 %v2265, %v2257
    %v2738 = vpack.c.b16 %v2266, %v2258
    %v2739 = vpack.c.b16 %v2267, %v2259
    %v2740 = vpack.c.b16 %v2268, %v2260
    %v2741 = vpack.c.b16 %v2269, %v2261
    %v2742 = vpack.c.b16 %v2278, %v2270
    %v2743 = vpack.c.b16 %v2279, %v2271
    %v2744 = vpack.c.b16 %v2280, %v2272
    %v2745 = vpack.c.b16 %v2281, %v2273
    %v2746 = vpack.c.b16 %v2282, %v2274
    %v2747 = vpack.c.b16 %v2283, %v2275
    %v2748 = vpack.c.b16 %v2284, %v2276
    %v2749 = vpack.c.b16 %v2285, %v2277
    %v2750 = vpack.c.b16 %v2286, %v2286
    %v2751 = vpack.c.b16 %v2287, %v2287
    %v2752 = vpack.c.b16 %v2288, %v2288
    %v2753 = vpack.c.b16 %v2289, %v2289
    %v2754 = vpack.c.b16 %v2290, %v2290
    %v2755 = vpack.c.b16 %v2291, %v2291
    %v2756 = vpack.c.b16 %v2292, %v2292
    %v2757 = vpack.c.b16 %v2293, %v2293
    %vm3214 = vcmask 195584
    %v3216 = vsel %vm3214, %v411, 0
    %vm3218 = vcmask 1043456
    %v3220 = vsel %vm3218, %v2750, 0
    %v3223 = vsel %vm3218, %v2751, 0
    %v3226 = vsel %vm3218, %v2752, 0
    %v3229 = vsel %vm3218, %v2753, 0
    %v3232 = vsel %vm3218, %v2754, 0
    %v3235 = vsel %vm3218, %v2755, 0
    %v3238 = vsel %vm3218, %v2756, 0
    %v3241 = vsel %vm3218, %v2757, 0
    %3243 = vmatprep.subr.bf16.mxu0 %v2295
    %3244 = vmatpush1.bf16.msra.mxu0 %v2294
    %3245 = vmatprep.subr.bf16.mxu0 %v2303
    %3246 = vmatpush1.bf16.msra.mxu0 %v2302
    %3247 = vmatprep.subr.bf16.mxu0 %v2311
    %3248 = vmatpush1.bf16.msra.mxu0 %v2310
    %3249 = vmatprep.subr.bf16.mxu0 %v2319
    %3250 = vmatpush1.bf16.msra.mxu0 %v2318
    %3251 = vmatprep.subr.bf16.mxu0 %v2327
    %3252 = vmatpush1.bf16.msra.mxu0 %v2326
    %3253 = vmatprep.subr.bf16.mxu0 %v2335
    %3254 = vmatpush1.bf16.msra.mxu0 %v2334
    %3255 = vmatprep.subr.bf16.mxu0 %v2343
    %3256 = vmatpush1.bf16.msra.mxu0 %v2342
    %3257 = vmatprep.subr.bf16.mxu0 %v2351
    %3258 = vmatpush1.bf16.msra.mxu0 %v2350
    %3259 = vmatprep.subr.bf16.mxu0 %v2359
    %3260 = vmatpush1.bf16.msra.mxu0 %v2358
    %3261 = vmatprep.subr.bf16.mxu0 %v2367
    %3262 = vmatpush1.bf16.msra.mxu0 %v2366
    %3263 = vmatprep.subr.bf16.mxu0 %v2375
    %3264 = vmatpush1.bf16.msra.mxu0 %v2374
    %3265 = vmatprep.subr.bf16.mxu0 %v2383
    %3266 = vmatpush1.bf16.msra.mxu0 %v2382
    %3267 = vmatprep.subr.bf16.mxu0 %v2391
    %3268 = vmatpush1.bf16.msra.mxu0 %v2390
    %3269 = vmatprep.subr.bf16.mxu0 %v2399
    %3270 = vmatpush1.bf16.msra.mxu0 %v2398
    %3271 = vmatprep.subr.bf16.mxu0 %v2407
    %3272 = vmatpush1.bf16.msra.mxu0 %v2406
    %3273 = vmatprep.subr.bf16.mxu0 %v2415
    %3274 = vmatpush1.bf16.msra.mxu0 %v2414
    %3275 = vmatprep.mubr.bf16.mxu0 %v405
    %3276 = vmatmul.mubr.bf16.gmra.mrb[0].mxu0 %v404
    %v3277 = vpop.f32.mrb[0].mxu0
    %v3278 = vadd.f32 %v877, %v3277
    %v3279 = vpop.f32.mrb[0].mxu0
    %v3280 = vadd.f32 %v881, %v3279
    %v3281 = vpop.f32.mrb[0].mxu0
    %v3282 = vpop.f32.mrb[0].mxu0
    %3283 = vdwg.mxu0
    %3284 = vmatprep.subr.bf16.mxu0 %v2423
    %3285 = vmatpush1.bf16.msra.mxu0 %v2422
    %3286 = vmatprep.subr.bf16.mxu0 %v2431
    %3287 = vmatpush1.bf16.msra.mxu0 %v2430
    %3288 = vmatprep.subr.bf16.mxu0 %v2439
    %3289 = vmatpush1.bf16.msra.mxu0 %v2438
    %3290 = vmatprep.subr.bf16.mxu0 %v2447
    %3291 = vmatpush1.bf16.msra.mxu0 %v2446
    %3292 = vmatprep.subr.bf16.mxu0 %v2455
    %3293 = vmatpush1.bf16.msra.mxu0 %v2454
    %3294 = vmatprep.subr.bf16.mxu0 %v2463
    %3295 = vmatpush1.bf16.msra.mxu0 %v2462
    %3296 = vmatprep.subr.bf16.mxu0 %v2471
    %3297 = vmatpush1.bf16.msra.mxu0 %v2470
    %3298 = vmatprep.subr.bf16.mxu0 %v2479
    %3299 = vmatpush1.bf16.msra.mxu0 %v2478
    %3300 = vmatprep.subr.bf16.mxu0 %v2487
    %3301 = vmatpush1.bf16.msra.mxu0 %v2486
    %3302 = vmatprep.subr.bf16.mxu0 %v2495
    %3303 = vmatpush1.bf16.msra.mxu0 %v2494
    %3304 = vmatprep.subr.bf16.mxu0 %v2503
    %3305 = vmatpush1.bf16.msra.mxu0 %v2502
    %3306 = vmatprep.subr.bf16.mxu0 %v2511
    %3307 = vmatpush1.bf16.msra.mxu0 %v2510
    %3308 = vmatprep.subr.bf16.mxu0 %v2519
    %3309 = vmatpush1.bf16.msra.mxu0 %v2518
    %3310 = vmatprep.subr.bf16.mxu0 %v2527
    %3311 = vmatpush1.bf16.msra.mxu0 %v2526
    %3312 = vmatprep.subr.bf16.mxu0 %v2535
    %3313 = vmatpush1.bf16.msra.mxu0 %v2534
    %3314 = vmatprep.subr.bf16.mxu0 %v2543
    %3315 = vmatpush1.bf16.msra.mxu0 %v2542
    %3316 = vmatprep.mubr.bf16.mxu0 %v407
    %3317 = vmatmul.mubr.bf16.gmra.mrb[0].mxu0 %v406
    %v3318 = vpop.f32.mrb[0].mxu0
    %v3319 = vadd.f32 %v3278, %v3318
    %v3320 = vpop.f32.mrb[0].mxu0
    %v3321 = vadd.f32 %v3280, %v3320
    %v3322 = vpop.f32.mrb[0].mxu0
    %v3323 = vpop.f32.mrb[0].mxu0
    %3324 = vdwg.mxu0
    %3325 = vmatprep.subr.bf16.mxu0 %v2551
    %3326 = vmatpush1.bf16.msra.mxu0 %v2550
    %3327 = vmatprep.subr.bf16.mxu0 %v2559
    %3328 = vmatpush1.bf16.msra.mxu0 %v2558
    %3329 = vmatprep.subr.bf16.mxu0 %v2567
    %3330 = vmatpush1.bf16.msra.mxu0 %v2566
    %3331 = vmatprep.subr.bf16.mxu0 %v2575
    %3332 = vmatpush1.bf16.msra.mxu0 %v2574
    %3333 = vmatprep.subr.bf16.mxu0 %v2583
    %3334 = vmatpush1.bf16.msra.mxu0 %v2582
    %3335 = vmatprep.subr.bf16.mxu0 %v2591
    %3336 = vmatpush1.bf16.msra.mxu0 %v2590
    %3337 = vmatprep.subr.bf16.mxu0 %v2599
    %3338 = vmatpush1.bf16.msra.mxu0 %v2598
    %3339 = vmatprep.subr.bf16.mxu0 %v2607
    %3340 = vmatpush1.bf16.msra.mxu0 %v2606
    %3341 = vmatprep.subr.bf16.mxu0 %v2615
    %3342 = vmatpush1.bf16.msra.mxu0 %v2614
    %3343 = vmatprep.subr.bf16.mxu0 %v2623
    %3344 = vmatpush1.bf16.msra.mxu0 %v2622
    %3345 = vmatprep.subr.bf16.mxu0 %v2631
    %3346 = vmatpush1.bf16.msra.mxu0 %v2630
    %3347 = vmatprep.subr.bf16.mxu0 %v2639
    %3348 = vmatpush1.bf16.msra.mxu0 %v2638
    %3349 = vmatprep.subr.bf16.mxu0 %v2647
    %3350 = vmatpush1.bf16.msra.mxu0 %v2646
    %3351 = vmatprep.subr.bf16.mxu0 %v2655
    %3352 = vmatpush1.bf16.msra.mxu0 %v2654
    %3353 = vmatprep.subr.bf16.mxu0 %v2663
    %3354 = vmatpush1.bf16.msra.mxu0 %v2662
    %3355 = vmatprep.subr.bf16.mxu0 %v2671
    %3356 = vmatpush1.bf16.msra.mxu0 %v2670
    %3357 = vmatprep.mubr.bf16.mxu0 %v409
    %3358 = vmatmul.mubr.bf16.gmra.mrb[0].mxu0 %v408
    %v3359 = vpop.f32.mrb[0].mxu0
    %v3360 = vadd.f32 %v3319, %v3359
    %v3361 = vpop.f32.mrb[0].mxu0
    %v3362 = vadd.f32 %v3321, %v3361
    %v3363 = vpop.f32.mrb[0].mxu0
    %v3364 = vpop.f32.mrb[0].mxu0
    %3365 = vdwg.mxu0
    %3366 = vmatprep.subr.bf16.mxu0 %v2679
    %3367 = vmatpush1.bf16.msra.mxu0 %v2678
    %3368 = vmatprep.subr.bf16.mxu0 %v2687
    %3369 = vmatpush1.bf16.msra.mxu0 %v2686
    %3370 = vmatprep.subr.bf16.mxu0 %v2695
    %3371 = vmatpush1.bf16.msra.mxu0 %v2694
    %3372 = vmatprep.subr.bf16.mxu0 %v2703
    %3373 = vmatpush1.bf16.msra.mxu0 %v2702
    %3374 = vmatprep.subr.bf16.mxu0 %v2711
    %3375 = vmatpush1.bf16.msra.mxu0 %v2710
    %3376 = vmatprep.subr.bf16.mxu0 %v2719
    %3377 = vmatpush1.bf16.msra.mxu0 %v2718
    %3378 = vmatprep.subr.bf16.mxu0 %v2727
    %3379 = vmatpush1.bf16.msra.mxu0 %v2726
    %3380 = vmatprep.subr.bf16.mxu0 %v2735
    %3381 = vmatpush1.bf16.msra.mxu0 %v2734
    %3382 = vmatprep.subr.bf16.mxu0 %v2743
    %3383 = vmatpush1.bf16.msra.mxu0 %v2742
    %3384 = vmatprep.subr.bf16.mxu0 %v3223
    %3385 = vmatpush1.bf16.msra.mxu0 %v3220
    %3386 = vmatprep.subr.bf16.mxu0 0
    %3387 = vmatpush1.bf16.msra.mxu0 0
    %3388 = vmatprep.subr.bf16.mxu0 0
    %3389 = vmatpush1.bf16.msra.mxu0 0
    %3390 = vmatprep.subr.bf16.mxu0 0
    %3391 = vmatpush1.bf16.msra.mxu0 0
    %3392 = vmatprep.subr.bf16.mxu0 0
    %3393 = vmatpush1.bf16.msra.mxu0 0
    %3394 = vmatprep.subr.bf16.mxu0 0
    %3395 = vmatpush1.bf16.msra.mxu0 0
    %3396 = vmatprep.subr.bf16.mxu0 0
    %3397 = vmatpush1.bf16.msra.mxu0 0
    %3398 = vmatprep.mubr.bf16.mxu0 %v3216
    %3399 = vmatmul.mubr.bf16.gmra.mrb[0].mxu0 %v410
    %v3400 = vpop.f32.mrb[0].mxu0
    %v3401 = vadd.f32 %v3360, %v3400
    %v3402 = vpop.f32.mrb[0].mxu0
    %v3403 = vadd.f32 %v3362, %v3402
    %v3404 = vpop.f32.mrb[0].mxu0
    %v3405 = vpop.f32.mrb[0].mxu0
    %3406 = vdwg.mxu0
    %3407 = vmatprep.subr.bf16.mxu0 %v2297
    %3408 = vmatpush1.bf16.msra.mxu0 %v2296
    %3409 = vmatprep.subr.bf16.mxu0 %v2305
    %3410 = vmatpush1.bf16.msra.mxu0 %v2304
    %3411 = vmatprep.subr.bf16.mxu0 %v2313
    %3412 = vmatpush1.bf16.msra.mxu0 %v2312
    %3413 = vmatprep.subr.bf16.mxu0 %v2321
    %3414 = vmatpush1.bf16.msra.mxu0 %v2320
    %3415 = vmatprep.subr.bf16.mxu0 %v2329
    %3416 = vmatpush1.bf16.msra.mxu0 %v2328
    %3417 = vmatprep.subr.bf16.mxu0 %v2337
    %3418 = vmatpush1.bf16.msra.mxu0 %v2336
    %3419 = vmatprep.subr.bf16.mxu0 %v2345
    %3420 = vmatpush1.bf16.msra.mxu0 %v2344
    %3421 = vmatprep.subr.bf16.mxu0 %v2353
    %3422 = vmatpush1.bf16.msra.mxu0 %v2352
    %3423 = vmatprep.subr.bf16.mxu0 %v2361
    %3424 = vmatpush1.bf16.msra.mxu0 %v2360
    %3425 = vmatprep.subr.bf16.mxu0 %v2369
    %3426 = vmatpush1.bf16.msra.mxu0 %v2368
    %3427 = vmatprep.subr.bf16.mxu0 %v2377
    %3428 = vmatpush1.bf16.msra.mxu0 %v2376
    %3429 = vmatprep.subr.bf16.mxu0 %v2385
    %3430 = vmatpush1.bf16.msra.mxu0 %v2384
    %3431 = vmatprep.subr.bf16.mxu0 %v2393
    %3432 = vmatpush1.bf16.msra.mxu0 %v2392
    %3433 = vmatprep.subr.bf16.mxu0 %v2401
    %3434 = vmatpush1.bf16.msra.mxu0 %v2400
    %3435 = vmatprep.subr.bf16.mxu0 %v2409
    %3436 = vmatpush1.bf16.msra.mxu0 %v2408
    %3437 = vmatprep.subr.bf16.mxu0 %v2417
    %3438 = vmatpush1.bf16.msra.mxu0 %v2416
    %3439 = vmatprep.mubr.bf16.mxu0 %v405
    %3440 = vmatmul.mubr.bf16.gmra.mrb[0].mxu0 %v404
    %v3441 = vpop.f32.mrb[0].mxu0
    %v3442 = vadd.f32 %v885, %v3441
    %v3443 = vpop.f32.mrb[0].mxu0
    %v3444 = vadd.f32 %v889, %v3443
    %v3445 = vpop.f32.mrb[0].mxu0
    %v3446 = vpop.f32.mrb[0].mxu0
    %3447 = vdwg.mxu0
    %3448 = vmatprep.subr.bf16.mxu0 %v2425
    %3449 = vmatpush1.bf16.msra.mxu0 %v2424
    %3450 = vmatprep.subr.bf16.mxu0 %v2433
    %3451 = vmatpush1.bf16.msra.mxu0 %v2432
    %3452 = vmatprep.subr.bf16.mxu0 %v2441
    %3453 = vmatpush1.bf16.msra.mxu0 %v2440
    %3454 = vmatprep.subr.bf16.mxu0 %v2449
    %3455 = vmatpush1.bf16.msra.mxu0 %v2448
    %3456 = vmatprep.subr.bf16.mxu0 %v2457
    %3457 = vmatpush1.bf16.msra.mxu0 %v2456
    %3458 = vmatprep.subr.bf16.mxu0 %v2465
    %3459 = vmatpush1.bf16.msra.mxu0 %v2464
    %3460 = vmatprep.subr.bf16.mxu0 %v2473
    %3461 = vmatpush1.bf16.msra.mxu0 %v2472
    %3462 = vmatprep.subr.bf16.mxu0 %v2481
    %3463 = vmatpush1.bf16.msra.mxu0 %v2480
    %3464 = vmatprep.subr.bf16.mxu0 %v2489
    %3465 = vmatpush1.bf16.msra.mxu0 %v2488
    %3466 = vmatprep.subr.bf16.mxu0 %v2497
    %3467 = vmatpush1.bf16.msra.mxu0 %v2496
    %3468 = vmatprep.subr.bf16.mxu0 %v2505
    %3469 = vmatpush1.bf16.msra.mxu0 %v2504
    %3470 = vmatprep.subr.bf16.mxu0 %v2513
    %3471 = vmatpush1.bf16.msra.mxu0 %v2512
    %3472 = vmatprep.subr.bf16.mxu0 %v2521
    %3473 = vmatpush1.bf16.msra.mxu0 %v2520
    %3474 = vmatprep.subr.bf16.mxu0 %v2529
    %3475 = vmatpush1.bf16.msra.mxu0 %v2528
    %3476 = vmatprep.subr.bf16.mxu0 %v2537
    %3477 = vmatpush1.bf16.msra.mxu0 %v2536
    %3478 = vmatprep.subr.bf16.mxu0 %v2545
    %3479 = vmatpush1.bf16.msra.mxu0 %v2544
    %3480 = vmatprep.mubr.bf16.mxu0 %v407
    %3481 = vmatmul.mubr.bf16.gmra.mrb[0].mxu0 %v406
    %v3482 = vpop.f32.mrb[0].mxu0
    %v3483 = vadd.f32 %v3442, %v3482
    %v3484 = vpop.f32.mrb[0].mxu0
    %v3485 = vadd.f32 %v3444, %v3484
    %v3486 = vpop.f32.mrb[0].mxu0
    %v3487 = vpop.f32.mrb[0].mxu0
    %3488 = vdwg.mxu0
    %3489 = vmatprep.subr.bf16.mxu0 %v2553
    %3490 = vmatpush1.bf16.msra.mxu0 %v2552
    %3491 = vmatprep.subr.bf16.mxu0 %v2561
    %3492 = vmatpush1.bf16.msra.mxu0 %v2560
    %3493 = vmatprep.subr.bf16.mxu0 %v2569
    %3494 = vmatpush1.bf16.msra.mxu0 %v2568
    %3495 = vmatprep.subr.bf16.mxu0 %v2577
    %3496 = vmatpush1.bf16.msra.mxu0 %v2576
    %3497 = vmatprep.subr.bf16.mxu0 %v2585
    %3498 = vmatpush1.bf16.msra.mxu0 %v2584
    %3499 = vmatprep.subr.bf16.mxu0 %v2593
    %3500 = vmatpush1.bf16.msra.mxu0 %v2592
    %3501 = vmatprep.subr.bf16.mxu0 %v2601
    %3502 = vmatpush1.bf16.msra.mxu0 %v2600
    %3503 = vmatprep.subr.bf16.mxu0 %v2609
    %3504 = vmatpush1.bf16.msra.mxu0 %v2608
    %3505 = vmatprep.subr.bf16.mxu0 %v2617
    %3506 = vmatpush1.bf16.msra.mxu0 %v2616
    %3507 = vmatprep.subr.bf16.mxu0 %v2625
    %3508 = vmatpush1.bf16.msra.mxu0 %v2624
    %3509 = vmatprep.subr.bf16.mxu0 %v2633
    %3510 = vmatpush1.bf16.msra.mxu0 %v2632
    %3511 = vmatprep.subr.bf16.mxu0 %v2641
    %3512 = vmatpush1.bf16.msra.mxu0 %v2640
    %3513 = vmatprep.subr.bf16.mxu0 %v2649
    %3514 = vmatpush1.bf16.msra.mxu0 %v2648
    %3515 = vmatprep.subr.bf16.mxu0 %v2657
    %3516 = vmatpush1.bf16.msra.mxu0 %v2656
    %3517 = vmatprep.subr.bf16.mxu0 %v2665
    %3518 = vmatpush1.bf16.msra.mxu0 %v2664
    %3519 = vmatprep.subr.bf16.mxu0 %v2673
    %3520 = vmatpush1.bf16.msra.mxu0 %v2672
    %3521 = vmatprep.mubr.bf16.mxu0 %v409
    %3522 = vmatmul.mubr.bf16.gmra.mrb[0].mxu0 %v408
    %v3523 = vpop.f32.mrb[0].mxu0
    %v3524 = vadd.f32 %v3483, %v3523
    %v3525 = vpop.f32.mrb[0].mxu0
    %v3526 = vadd.f32 %v3485, %v3525
    %v3527 = vpop.f32.mrb[0].mxu0
    %v3528 = vpop.f32.mrb[0].mxu0
    %3529 = vdwg.mxu0
    %3530 = vmatprep.subr.bf16.mxu0 %v2681
    %3531 = vmatpush1.bf16.msra.mxu0 %v2680
    %3532 = vmatprep.subr.bf16.mxu0 %v2689
    %3533 = vmatpush1.bf16.msra.mxu0 %v2688
    %3534 = vmatprep.subr.bf16.mxu0 %v2697
    %3535 = vmatpush1.bf16.msra.mxu0 %v2696
    %3536 = vmatprep.subr.bf16.mxu0 %v2705
    %3537 = vmatpush1.bf16.msra.mxu0 %v2704
    %3538 = vmatprep.subr.bf16.mxu0 %v2713
    %3539 = vmatpush1.bf16.msra.mxu0 %v2712
    %3540 = vmatprep.subr.bf16.mxu0 %v2721
    %3541 = vmatpush1.bf16.msra.mxu0 %v2720
    %3542 = vmatprep.subr.bf16.mxu0 %v2729
    %3543 = vmatpush1.bf16.msra.mxu0 %v2728
    %3544 = vmatprep.subr.bf16.mxu0 %v2737
    %3545 = vmatpush1.bf16.msra.mxu0 %v2736
    %3546 = vmatprep.subr.bf16.mxu0 %v2745
    %3547 = vmatpush1.bf16.msra.mxu0 %v2744
    %3548 = vmatprep.subr.bf16.mxu0 %v3229
    %3549 = vmatpush1.bf16.msra.mxu0 %v3226
    %3550 = vmatprep.subr.bf16.mxu0 0
    %3551 = vmatpush1.bf16.msra.mxu0 0
    %3552 = vmatprep.subr.bf16.mxu0 0
    %3553 = vmatpush1.bf16.msra.mxu0 0
    %3554 = vmatprep.subr.bf16.mxu0 0
    %3555 = vmatpush1.bf16.msra.mxu0 0
    %3556 = vmatprep.subr.bf16.mxu0 0
    %3557 = vmatpush1.bf16.msra.mxu0 0
    %3558 = vmatprep.subr.bf16.mxu0 0
    %3559 = vmatpush1.bf16.msra.mxu0 0
    %3560 = vmatprep.subr.bf16.mxu0 0
    %3561 = vmatpush1.bf16.msra.mxu0 0
    %3562 = vmatprep.mubr.bf16.mxu0 %v3216
    %3563 = vmatmul.mubr.bf16.gmra.mrb[0].mxu0 %v410
    %v3564 = vpop.f32.mrb[0].mxu0
    %v3565 = vadd.f32 %v3524, %v3564
    %v3566 = vpop.f32.mrb[0].mxu0
    %v3567 = vadd.f32 %v3526, %v3566
    %v3568 = vpop.f32.mrb[0].mxu0
    %v3569 = vpop.f32.mrb[0].mxu0
    %3570 = vdwg.mxu0
    %3571 = vmatprep.subr.bf16.mxu0 %v2299
    %3572 = vmatpush1.bf16.msra.mxu0 %v2298
    %3573 = vmatprep.subr.bf16.mxu0 %v2307
    %3574 = vmatpush1.bf16.msra.mxu0 %v2306
    %3575 = vmatprep.subr.bf16.mxu0 %v2315
    %3576 = vmatpush1.bf16.msra.mxu0 %v2314
    %3577 = vmatprep.subr.bf16.mxu0 %v2323
    %3578 = vmatpush1.bf16.msra.mxu0 %v2322
    %3579 = vmatprep.subr.bf16.mxu0 %v2331
    %3580 = vmatpush1.bf16.msra.mxu0 %v2330
    %3581 = vmatprep.subr.bf16.mxu0 %v2339
    %3582 = vmatpush1.bf16.msra.mxu0 %v2338
    %3583 = vmatprep.subr.bf16.mxu0 %v2347
    %3584 = vmatpush1.bf16.msra.mxu0 %v2346
    %3585 = vmatprep.subr.bf16.mxu0 %v2355
    %3586 = vmatpush1.bf16.msra.mxu0 %v2354
    %3587 = vmatprep.subr.bf16.mxu0 %v2363
    %3588 = vmatpush1.bf16.msra.mxu0 %v2362
    %3589 = vmatprep.subr.bf16.mxu0 %v2371
    %3590 = vmatpush1.bf16.msra.mxu0 %v2370
    %3591 = vmatprep.subr.bf16.mxu0 %v2379
    %3592 = vmatpush1.bf16.msra.mxu0 %v2378
    %3593 = vmatprep.subr.bf16.mxu0 %v2387
    %3594 = vmatpush1.bf16.msra.mxu0 %v2386
    %3595 = vmatprep.subr.bf16.mxu0 %v2395
    %3596 = vmatpush1.bf16.msra.mxu0 %v2394
    %3597 = vmatprep.subr.bf16.mxu0 %v2403
    %3598 = vmatpush1.bf16.msra.mxu0 %v2402
    %3599 = vmatprep.subr.bf16.mxu0 %v2411
    %3600 = vmatpush1.bf16.msra.mxu0 %v2410
    %3601 = vmatprep.subr.bf16.mxu0 %v2419
    %3602 = vmatpush1.bf16.msra.mxu0 %v2418
    %3603 = vmatprep.mubr.bf16.mxu0 %v405
    %3604 = vmatmul.mubr.bf16.gmra.mrb[0].mxu0 %v404
    %v3605 = vpop.f32.mrb[0].mxu0
    %v3606 = vadd.f32 %v893, %v3605
    %v3607 = vpop.f32.mrb[0].mxu0
    %v3608 = vadd.f32 %v897, %v3607
    %v3609 = vpop.f32.mrb[0].mxu0
    %v3610 = vpop.f32.mrb[0].mxu0
    %3611 = vdwg.mxu0
    %3612 = vmatprep.subr.bf16.mxu0 %v2427
    %3613 = vmatpush1.bf16.msra.mxu0 %v2426
    %3614 = vmatprep.subr.bf16.mxu0 %v2435
    %3615 = vmatpush1.bf16.msra.mxu0 %v2434
    %3616 = vmatprep.subr.bf16.mxu0 %v2443
    %3617 = vmatpush1.bf16.msra.mxu0 %v2442
    %3618 = vmatprep.subr.bf16.mxu0 %v2451
    %3619 = vmatpush1.bf16.msra.mxu0 %v2450
    %3620 = vmatprep.subr.bf16.mxu0 %v2459
    %3621 = vmatpush1.bf16.msra.mxu0 %v2458
    %3622 = vmatprep.subr.bf16.mxu0 %v2467
    %3623 = vmatpush1.bf16.msra.mxu0 %v2466
    %3624 = vmatprep.subr.bf16.mxu0 %v2475
    %3625 = vmatpush1.bf16.msra.mxu0 %v2474
    %3626 = vmatprep.subr.bf16.mxu0 %v2483
    %3627 = vmatpush1.bf16.msra.mxu0 %v2482
    %3628 = vmatprep.subr.bf16.mxu0 %v2491
    %3629 = vmatpush1.bf16.msra.mxu0 %v2490
    %3630 = vmatprep.subr.bf16.mxu0 %v2499
    %3631 = vmatpush1.bf16.msra.mxu0 %v2498
    %3632 = vmatprep.subr.bf16.mxu0 %v2507
    %3633 = vmatpush1.bf16.msra.mxu0 %v2506
    %3634 = vmatprep.subr.bf16.mxu0 %v2515
    %3635 = vmatpush1.bf16.msra.mxu0 %v2514
    %3636 = vmatprep.subr.bf16.mxu0 %v2523
    %3637 = vmatpush1.bf16.msra.mxu0 %v2522
    %3638 = vmatprep.subr.bf16.mxu0 %v2531
    %3639 = vmatpush1.bf16.msra.mxu0 %v2530
    %3640 = vmatprep.subr.bf16.mxu0 %v2539
    %3641 = vmatpush1.bf16.msra.mxu0 %v2538
    %3642 = vmatprep.subr.bf16.mxu0 %v2547
    %3643 = vmatpush1.bf16.msra.mxu0 %v2546
    %3644 = vmatprep.mubr.bf16.mxu0 %v407
    %3645 = vmatmul.mubr.bf16.gmra.mrb[0].mxu0 %v406
    %v3646 = vpop.f32.mrb[0].mxu0
    %v3647 = vadd.f32 %v3606, %v3646
    %v3648 = vpop.f32.mrb[0].mxu0
    %v3649 = vadd.f32 %v3608, %v3648
    %v3650 = vpop.f32.mrb[0].mxu0
    %v3651 = vpop.f32.mrb[0].mxu0
    %3652 = vdwg.mxu0
    %3653 = vmatprep.subr.bf16.mxu0 %v2555
    %3654 = vmatpush1.bf16.msra.mxu0 %v2554
    %3655 = vmatprep.subr.bf16.mxu0 %v2563
    %3656 = vmatpush1.bf16.msra.mxu0 %v2562
    %3657 = vmatprep.subr.bf16.mxu0 %v2571
    %3658 = vmatpush1.bf16.msra.mxu0 %v2570
    %3659 = vmatprep.subr.bf16.mxu0 %v2579
    %3660 = vmatpush1.bf16.msra.mxu0 %v2578
    %3661 = vmatprep.subr.bf16.mxu0 %v2587
    %3662 = vmatpush1.bf16.msra.mxu0 %v2586
    %3663 = vmatprep.subr.bf16.mxu0 %v2595
    %3664 = vmatpush1.bf16.msra.mxu0 %v2594
    %3665 = vmatprep.subr.bf16.mxu0 %v2603
    %3666 = vmatpush1.bf16.msra.mxu0 %v2602
    %3667 = vmatprep.subr.bf16.mxu0 %v2611
    %3668 = vmatpush1.bf16.msra.mxu0 %v2610
    %3669 = vmatprep.subr.bf16.mxu0 %v2619
    %3670 = vmatpush1.bf16.msra.mxu0 %v2618
    %3671 = vmatprep.subr.bf16.mxu0 %v2627
    %3672 = vmatpush1.bf16.msra.mxu0 %v2626
    %3673 = vmatprep.subr.bf16.mxu0 %v2635
    %3674 = vmatpush1.bf16.msra.mxu0 %v2634
    %3675 = vmatprep.subr.bf16.mxu0 %v2643
    %3676 = vmatpush1.bf16.msra.mxu0 %v2642
    %3677 = vmatprep.subr.bf16.mxu0 %v2651
    %3678 = vmatpush1.bf16.msra.mxu0 %v2650
    %3679 = vmatprep.subr.bf16.mxu0 %v2659
    %3680 = vmatpush1.bf16.msra.mxu0 %v2658
    %3681 = vmatprep.subr.bf16.mxu0 %v2667
    %3682 = vmatpush1.bf16.msra.mxu0 %v2666
    %3683 = vmatprep.subr.bf16.mxu0 %v2675
    %3684 = vmatpush1.bf16.msra.mxu0 %v2674
    %3685 = vmatprep.mubr.bf16.mxu0 %v409
    %3686 = vmatmul.mubr.bf16.gmra.mrb[0].mxu0 %v408
    %v3687 = vpop.f32.mrb[0].mxu0
    %v3688 = vadd.f32 %v3647, %v3687
    %v3689 = vpop.f32.mrb[0].mxu0
    %v3690 = vadd.f32 %v3649, %v3689
    %v3691 = vpop.f32.mrb[0].mxu0
    %v3692 = vpop.f32.mrb[0].mxu0
    %3693 = vdwg.mxu0
    %3694 = vmatprep.subr.bf16.mxu0 %v2683
    %3695 = vmatpush1.bf16.msra.mxu0 %v2682
    %3696 = vmatprep.subr.bf16.mxu0 %v2691
    %3697 = vmatpush1.bf16.msra.mxu0 %v2690
    %3698 = vmatprep.subr.bf16.mxu0 %v2699
    %3699 = vmatpush1.bf16.msra.mxu0 %v2698
    %3700 = vmatprep.subr.bf16.mxu0 %v2707
    %3701 = vmatpush1.bf16.msra.mxu0 %v2706
    %3702 = vmatprep.subr.bf16.mxu0 %v2715
    %3703 = vmatpush1.bf16.msra.mxu0 %v2714
    %3704 = vmatprep.subr.bf16.mxu0 %v2723
    %3705 = vmatpush1.bf16.msra.mxu0 %v2722
    %3706 = vmatprep.subr.bf16.mxu0 %v2731
    %3707 = vmatpush1.bf16.msra.mxu0 %v2730
    %3708 = vmatprep.subr.bf16.mxu0 %v2739
    %3709 = vmatpush1.bf16.msra.mxu0 %v2738
    %3710 = vmatprep.subr.bf16.mxu0 %v2747
    %3711 = vmatpush1.bf16.msra.mxu0 %v2746
    %3712 = vmatprep.subr.bf16.mxu0 %v3235
    %3713 = vmatpush1.bf16.msra.mxu0 %v3232
    %3714 = vmatprep.subr.bf16.mxu0 0
    %3715 = vmatpush1.bf16.msra.mxu0 0
    %3716 = vmatprep.subr.bf16.mxu0 0
    %3717 = vmatpush1.bf16.msra.mxu0 0
    %3718 = vmatprep.subr.bf16.mxu0 0
    %3719 = vmatpush1.bf16.msra.mxu0 0
    %3720 = vmatprep.subr.bf16.mxu0 0
    %3721 = vmatpush1.bf16.msra.mxu0 0
    %3722 = vmatprep.subr.bf16.mxu0 0
    %3723 = vmatpush1.bf16.msra.mxu0 0
    %3724 = vmatprep.subr.bf16.mxu0 0
    %3725 = vmatpush1.bf16.msra.mxu0 0
    %3726 = vmatprep.mubr.bf16.mxu0 %v3216
    %3727 = vmatmul.mubr.bf16.gmra.mrb[0].mxu0 %v410
    %v3728 = vpop.f32.mrb[0].mxu0
    %v3729 = vadd.f32 %v3688, %v3728
    %v3730 = vpop.f32.mrb[0].mxu0
    %v3731 = vadd.f32 %v3690, %v3730
    %v3732 = vpop.f32.mrb[0].mxu0
    %v3733 = vpop.f32.mrb[0].mxu0
    %3734 = vdwg.mxu0
    %3735 = vmatprep.subr.bf16.mxu0 %v2301
    %3736 = vmatpush1.bf16.msra.mxu0 %v2300
    %3737 = vmatprep.subr.bf16.mxu0 %v2309
    %3738 = vmatpush1.bf16.msra.mxu0 %v2308
    %3739 = vmatprep.subr.bf16.mxu0 %v2317
    %3740 = vmatpush1.bf16.msra.mxu0 %v2316
    %3741 = vmatprep.subr.bf16.mxu0 %v2325
    %3742 = vmatpush1.bf16.msra.mxu0 %v2324
    %3743 = vmatprep.subr.bf16.mxu0 %v2333
    %3744 = vmatpush1.bf16.msra.mxu0 %v2332
    %3745 = vmatprep.subr.bf16.mxu0 %v2341
    %3746 = vmatpush1.bf16.msra.mxu0 %v2340
    %3747 = vmatprep.subr.bf16.mxu0 %v2349
    %3748 = vmatpush1.bf16.msra.mxu0 %v2348
    %3749 = vmatprep.subr.bf16.mxu0 %v2357
    %3750 = vmatpush1.bf16.msra.mxu0 %v2356
    %3751 = vmatprep.subr.bf16.mxu0 %v2365
    %3752 = vmatpush1.bf16.msra.mxu0 %v2364
    %3753 = vmatprep.subr.bf16.mxu0 %v2373
    %3754 = vmatpush1.bf16.msra.mxu0 %v2372
    %3755 = vmatprep.subr.bf16.mxu0 %v2381
    %3756 = vmatpush1.bf16.msra.mxu0 %v2380
    %3757 = vmatprep.subr.bf16.mxu0 %v2389
    %3758 = vmatpush1.bf16.msra.mxu0 %v2388
    %3759 = vmatprep.subr.bf16.mxu0 %v2397
    %3760 = vmatpush1.bf16.msra.mxu0 %v2396
    %3761 = vmatprep.subr.bf16.mxu0 %v2405
    %3762 = vmatpush1.bf16.msra.mxu0 %v2404
    %3763 = vmatprep.subr.bf16.mxu0 %v2413
    %3764 = vmatpush1.bf16.msra.mxu0 %v2412
    %3765 = vmatprep.subr.bf16.mxu0 %v2421
    %3766 = vmatpush1.bf16.msra.mxu0 %v2420
    %3767 = vmatprep.mubr.bf16.mxu0 %v405
    %3768 = vmatmul.mubr.bf16.gmra.mrb[0].mxu0 %v404
    %v3769 = vpop.f32.mrb[0].mxu0
    %v3770 = vadd.f32 %v901, %v3769
    %v3771 = vpop.f32.mrb[0].mxu0
    %v3772 = vadd.f32 %v905, %v3771
    %v3773 = vpop.f32.mrb[0].mxu0
    %v3774 = vpop.f32.mrb[0].mxu0
    %3775 = vdwg.mxu0
    %3776 = vmatprep.subr.bf16.mxu0 %v2429
    %3777 = vmatpush1.bf16.msra.mxu0 %v2428
    %3778 = vmatprep.subr.bf16.mxu0 %v2437
    %3779 = vmatpush1.bf16.msra.mxu0 %v2436
    %3780 = vmatprep.subr.bf16.mxu0 %v2445
    %3781 = vmatpush1.bf16.msra.mxu0 %v2444
    %3782 = vmatprep.subr.bf16.mxu0 %v2453
    %3783 = vmatpush1.bf16.msra.mxu0 %v2452
    %3784 = vmatprep.subr.bf16.mxu0 %v2461
    %3785 = vmatpush1.bf16.msra.mxu0 %v2460
    %3786 = vmatprep.subr.bf16.mxu0 %v2469
    %3787 = vmatpush1.bf16.msra.mxu0 %v2468
    %3788 = vmatprep.subr.bf16.mxu0 %v2477
    %3789 = vmatpush1.bf16.msra.mxu0 %v2476
    %3790 = vmatprep.subr.bf16.mxu0 %v2485
    %3791 = vmatpush1.bf16.msra.mxu0 %v2484
    %3792 = vmatprep.subr.bf16.mxu0 %v2493
    %3793 = vmatpush1.bf16.msra.mxu0 %v2492
    %3794 = vmatprep.subr.bf16.mxu0 %v2501
    %3795 = vmatpush1.bf16.msra.mxu0 %v2500
    %3796 = vmatprep.subr.bf16.mxu0 %v2509
    %3797 = vmatpush1.bf16.msra.mxu0 %v2508
    %3798 = vmatprep.subr.bf16.mxu0 %v2517
    %3799 = vmatpush1.bf16.msra.mxu0 %v2516
    %3800 = vmatprep.subr.bf16.mxu0 %v2525
    %3801 = vmatpush1.bf16.msra.mxu0 %v2524
    %3802 = vmatprep.subr.bf16.mxu0 %v2533
    %3803 = vmatpush1.bf16.msra.mxu0 %v2532
    %3804 = vmatprep.subr.bf16.mxu0 %v2541
    %3805 = vmatpush1.bf16.msra.mxu0 %v2540
    %3806 = vmatprep.subr.bf16.mxu0 %v2549
    %3807 = vmatpush1.bf16.msra.mxu0 %v2548
    %3808 = vmatprep.mubr.bf16.mxu0 %v407
    %3809 = vmatmul.mubr.bf16.gmra.mrb[0].mxu0 %v406
    %v3810 = vpop.f32.mrb[0].mxu0
    %v3811 = vadd.f32 %v3770, %v3810
    %v3812 = vpop.f32.mrb[0].mxu0
    %v3813 = vadd.f32 %v3772, %v3812
    %v3814 = vpop.f32.mrb[0].mxu0
    %v3815 = vpop.f32.mrb[0].mxu0
    %3816 = vdwg.mxu0
    %3817 = vmatprep.subr.bf16.mxu0 %v2557
    %3818 = vmatpush1.bf16.msra.mxu0 %v2556
    %3819 = vmatprep.subr.bf16.mxu0 %v2565
    %3820 = vmatpush1.bf16.msra.mxu0 %v2564
    %3821 = vmatprep.subr.bf16.mxu0 %v2573
    %3822 = vmatpush1.bf16.msra.mxu0 %v2572
    %3823 = vmatprep.subr.bf16.mxu0 %v2581
    %3824 = vmatpush1.bf16.msra.mxu0 %v2580
    %3825 = vmatprep.subr.bf16.mxu0 %v2589
    %3826 = vmatpush1.bf16.msra.mxu0 %v2588
    %3827 = vmatprep.subr.bf16.mxu0 %v2597
    %3828 = vmatpush1.bf16.msra.mxu0 %v2596
    %3829 = vmatprep.subr.bf16.mxu0 %v2605
    %3830 = vmatpush1.bf16.msra.mxu0 %v2604
    %3831 = vmatprep.subr.bf16.mxu0 %v2613
    %3832 = vmatpush1.bf16.msra.mxu0 %v2612
    %3833 = vmatprep.subr.bf16.mxu0 %v2621
    %3834 = vmatpush1.bf16.msra.mxu0 %v2620
    %3835 = vmatprep.subr.bf16.mxu0 %v2629
    %3836 = vmatpush1.bf16.msra.mxu0 %v2628
    %3837 = vmatprep.subr.bf16.mxu0 %v2637
    %3838 = vmatpush1.bf16.msra.mxu0 %v2636
    %3839 = vmatprep.subr.bf16.mxu0 %v2645
    %3840 = vmatpush1.bf16.msra.mxu0 %v2644
    %3841 = vmatprep.subr.bf16.mxu0 %v2653
    %3842 = vmatpush1.bf16.msra.mxu0 %v2652
    %3843 = vmatprep.subr.bf16.mxu0 %v2661
    %3844 = vmatpush1.bf16.msra.mxu0 %v2660
    %3845 = vmatprep.subr.bf16.mxu0 %v2669
    %3846 = vmatpush1.bf16.msra.mxu0 %v2668
    %3847 = vmatprep.subr.bf16.mxu0 %v2677
    %3848 = vmatpush1.bf16.msra.mxu0 %v2676
    %3849 = vmatprep.mubr.bf16.mxu0 %v409
    %3850 = vmatmul.mubr.bf16.gmra.mrb[0].mxu0 %v408
    %v3851 = vpop.f32.mrb[0].mxu0
    %v3852 = vadd.f32 %v3811, %v3851
    %v3853 = vpop.f32.mrb[0].mxu0
    %v3854 = vadd.f32 %v3813, %v3853
    %v3855 = vpop.f32.mrb[0].mxu0
    %v3856 = vpop.f32.mrb[0].mxu0
    %3857 = vdwg.mxu0
    %3858 = vmatprep.subr.bf16.mxu0 %v2685
    %3859 = vmatpush1.bf16.msra.mxu0 %v2684
    %3860 = vmatprep.subr.bf16.mxu0 %v2693
    %3861 = vmatpush1.bf16.msra.mxu0 %v2692
    %3862 = vmatprep.subr.bf16.mxu0 %v2701
    %3863 = vmatpush1.bf16.msra.mxu0 %v2700
    %3864 = vmatprep.subr.bf16.mxu0 %v2709
    %3865 = vmatpush1.bf16.msra.mxu0 %v2708
    %3866 = vmatprep.subr.bf16.mxu0 %v2717
    %3867 = vmatpush1.bf16.msra.mxu0 %v2716
    %3868 = vmatprep.subr.bf16.mxu0 %v2725
    %3869 = vmatpush1.bf16.msra.mxu0 %v2724
    %3870 = vmatprep.subr.bf16.mxu0 %v2733
    %3871 = vmatpush1.bf16.msra.mxu0 %v2732
    %3872 = vmatprep.subr.bf16.mxu0 %v2741
    %3873 = vmatpush1.bf16.msra.mxu0 %v2740
    %3874 = vmatprep.subr.bf16.mxu0 %v2749
    %3875 = vmatpush1.bf16.msra.mxu0 %v2748
    %3876 = vmatprep.subr.bf16.mxu0 %v3241
    %3877 = vmatpush1.bf16.msra.mxu0 %v3238
    %3878 = vmatprep.subr.bf16.mxu0 0
    %3879 = vmatpush1.bf16.msra.mxu0 0
    %3880 = vmatprep.subr.bf16.mxu0 0
    %3881 = vmatpush1.bf16.msra.mxu0 0
    %3882 = vmatprep.subr.bf16.mxu0 0
    %3883 = vmatpush1.bf16.msra.mxu0 0
    %3884 = vmatprep.subr.bf16.mxu0 0
    %3885 = vmatpush1.bf16.msra.mxu0 0
    %3886 = vmatprep.subr.bf16.mxu0 0
    %3887 = vmatpush1.bf16.msra.mxu0 0
    %3888 = vmatprep.subr.bf16.mxu0 0
    %3889 = vmatpush1.bf16.msra.mxu0 0
    %3890 = vmatprep.mubr.bf16.mxu0 %v3216
    %3891 = vmatmul.mubr.bf16.gmra.mrb[0].mxu0 %v410
    %v3892 = vpop.f32.mrb[0].mxu0
    %v3893 = vadd.f32 %v3852, %v3892
    %v3894 = vpop.f32.mrb[0].mxu0
    %v3895 = vadd.f32 %v3854, %v3894
    %v3896 = vpop.f32.mrb[0].mxu0
    %v3897 = vpop.f32.mrb[0].mxu0
    %3898 = vdwg.mxu0
    %vm3899 = vcmp.ge.f32.partialorder %v3401, 0.0
    %vm3900 = vcmp.ge.f32.partialorder %v3403, 0.0
    %vm3901 = vcmp.ge.f32.partialorder %v3565, 0.0
    %vm3902 = vcmp.ge.f32.partialorder %v3567, 0.0
    %vm3903 = vcmp.ge.f32.partialorder %v3729, 0.0
    %vm3904 = vcmp.ge.f32.partialorder %v3731, 0.0
    %vm3905 = vcmp.ge.f32.partialorder %v3893, 0.0
    %vm3906 = vcmp.ge.f32.partialorder %v3895, 0.0
    %v3907 = vmul.f32 %v3401, 0.01
    %v3908 = vmul.f32 %v3403, 0.01
    %v3909 = vmul.f32 %v3565, 0.01
    %v3910 = vmul.f32 %v3567, 0.01
    %v3911 = vmul.f32 %v3729, 0.01
    %v3912 = vmul.f32 %v3731, 0.01
    %v3913 = vmul.f32 %v3893, 0.01
    %v3914 = vmul.f32 %v3895, 0.01
    %v3915 = vsel %vm3899, %v3401, %v3907
    %v3916 = vsel %vm3900, %v3403, %v3908
    %v3917 = vsel %vm3901, %v3565, %v3909
    %v3918 = vsel %vm3902, %v3567, %v3910
    %v3919 = vsel %vm3903, %v3729, %v3911
    %v3920 = vsel %vm3904, %v3731, %v3912
    %v3921 = vsel %vm3905, %v3893, %v3913
    %v3922 = vsel %vm3906, %v3895, %v3914
    %3923 = vst [vmem:[%s5] sm:$0xff] %v3915
    %3924 = vst [vmem:[%s5 + $0x8] sm:$0xff] %v3916
    %3925 = vst [vmem:[%s5 + $0x10] sm:$0xff] %v3917
    %3926 = vst [vmem:[%s5 + $0x18] sm:$0xff] %v3918
    %3927 = vst [vmem:[%s5 + $0x20] sm:$0xff] %v3919
    %3928 = vst [vmem:[%s5 + $0x28] sm:$0xff] %v3920
    %3929 = vst [vmem:[%s5 + $0x30] sm:$0xff] %v3921
    %vm3930 = vcmask 457728
    %3931 = vst.msk [vmem:[%s5 + $0x38] sm:$0xff] %vm3930, %v3922
    // Predicated region
    $region38: #{decoder_forward.2} parent=1 // pred_check
      _
    $region39: #{decoder_forward.2} parent=1 // pred_check_branch
      %3933 = sbr.rel (0) target = $region41
    $region40: #{decoder_forward.2} parent=1 // pred_region
      _
    $region41: #{decoder_forward.2} parent=1 // pred_fallthru
      _
    // Predicated region
    $region42: #{decoder_forward.2} parent=1 // pred_check
      _
    $region43: #{decoder_forward.2} parent=1 // pred_check_branch
      %3935 = sbr.rel (0) target = $region45
    $region44: #{decoder_forward.2} parent=1 // pred_region
      _
    $region45: #{decoder_forward.2} parent=1 // pred_fallthru
      _
    %3936 = vsyncpa [#allocation3], 1
    %3937 = vsyncpa [#allocation5], 1
    %3938 = vsyncpa [#allocation8], 1

// kernel: decoder_forward.3
$region0: #{decoder_forward.3}
  #allocation0 [shape = 'u32[]', space=smem, size = 0x4, offset = 0x4, fixed_abs, tag = 'smem constant byte address 0x4 - core index']
  #allocation1 [shape = 'u32[144,128]{1,0:T(1,128)}', space=vmem, size = 0x12000, scoped, tag = 'internal scratch']
  %s0 = inlined_call_operand.vmem [shape: f32[8,952], index: 0, kind: input, shape index: {}]
  %s1 = inlined_call_operand.hbm [shape: bf16[952,32768], index: 1, kind: input, shape index: {}]
  %s2 = inlined_call_operand.hbm [shape: f32[1,32768], index: 2, kind: input, shape index: {}]
  %s3 = inlined_call_operand.vmem [shape: f32[8,32768], index: 3, kind: output, shape index: {}]
  %s4 = sld [smem:[#allocation0]]
  $region53: #{decoder_forward.3} parent=0
    _
  %s6 = ssub.s32 1, %s4
  %s7 = scalar_select 0, %s6, %s4
  $region1: #{decoder_forward.3} parent=0
    #allocation2 [shape = 'u8[7798784]{0}', space=vmem, size = 0x770000, scoped, tag = 'input window, operand 1']
    #allocation3 [shape = 's32[2]{0}', space=sflag, size = 0x8, scoped, tag = 'scoped memory for decoder_forward.3']
    #allocation4 [shape = 'u8[16384]{0}', space=vmem, size = 0x4000, scoped, tag = 'input window, operand 2']
    #allocation5 [shape = 's32[2]{0}', space=sflag, size = 0x8, scoped, tag = 'scoped memory for decoder_forward.3']
    %8 = vsyncpa [#allocation3], 0
    %s9 = scalar_lea.sflag [#allocation3], 1
    %10 = vsyncpa %s9, 0
    %11 = vsyncpa [#allocation5], 0
    %s12 = scalar_lea.sflag [#allocation5], 1
    %13 = vsyncpa %s12, 0
    loop: start=0, step=1, limit=18
    $region2: #{decoder_forward.3} parent=1 // loop_pre_header
      _
    $region3: #{decoder_forward.3} parent=1 // loop_header
      %s15 = sphi 0, %s19
      %p16 = scmp.ge.s32.totalorder %s15, 18
      %s23 = sphi 0, %s23
      %s25 = sphi 0, %s23
      %s26 = sphi 0, %s25
      %s40 = sphi 0, %s26
      %s46 = sphi 0, %s48
      %s49 = sphi 0, %s46
      %s50 = sphi 0, %s49
      %s66 = sphi 0, %s50
      %s72 = sphi 0, %s74
      %s75 = sphi 0, %s72
      %s76 = sphi 0, %s75
      %s92 = sphi 0, %s76
      %s98 = sphi 0, %s100
      %s101 = sphi 0, %s98
      %s102 = sphi 0, %s101
      %s118 = sphi 0, %s102
    $region4: #{decoder_forward.3} parent=1 // loop_header_branch
      %18 = sbr.rel (%p16) target = $region8
    $region5: #{decoder_forward.3} parent=1 // loop_body
      %s20 = ssub.s32 %s15, 1
      %s21 = ssub.s32 %s15, 2
      %s22 = sadd.s32 %s15, 1
      %s24 = sadd.s32 %s23, 1
      %p27 = scmp.eq.s32.totalorder %s15, 15
      %p28 = scmp.ne.s32.totalorder %s23, %s25
      %p29 = scmp.eq.s32.totalorder %s15, 0
      %p30 = por %p28, %p29
      %p31 = scmp.ne.s32.totalorder %s23, %s25
      %p32 = scmp.eq.s32.totalorder %s20, 15
      %p33 = por %p31, %p32
      %p34 = scmp.ne.s32.totalorder %s25, %s26
      %p35 = scmp.eq.s32.totalorder %s20, 0
      %p36 = por %p34, %p35
      %p37 = scmp.ne.s32.totalorder %s25, %s26
      %p38 = scmp.eq.s32.totalorder %s21, 15
      %p39 = por %p37, %p38
      %p41 = scmp.ne.s32.totalorder %s26, %s40
      %p42 = scmp.eq.s32.totalorder %s21, 0
      %p43 = por %p41, %p42
      %s44 = ssub.s32 %s15, %s22
      %p45 = scmp.eq.s32.totalorder %s44, 0
      %s47 = sadd.s32 %s46, 1
      %s48 = scalar_select %p45, %s46, %s47
      %p51 = pneg %p45
      %p52 = scmp.eq.s32.totalorder %s15, 15
      %p53 = por %p51, %p52
      %p54 = scmp.ne.s32.totalorder %s46, %s49
      %p55 = scmp.eq.s32.totalorder %s15, 0
      %p56 = por %p54, %p55
      %p57 = scmp.ne.s32.totalorder %s46, %s49
      %p58 = scmp.eq.s32.totalorder %s20, 15
      %p59 = por %p57, %p58
      %p60 = scmp.ne.s32.totalorder %s49, %s50
      %p61 = scmp.eq.s32.totalorder %s20, 0
      %p62 = por %p60, %p61
      %p63 = scmp.ne.s32.totalorder %s49, %s50
      %p64 = scmp.eq.s32.totalorder %s21, 15
      %p65 = por %p63, %p64
      %p67 = scmp.ne.s32.totalorder %s50, %s66
      %p68 = scmp.eq.s32.totalorder %s21, 0
      %p69 = por %p67, %p68
      %s70 = ssub.s32 %s15, %s22
      %p71 = scmp.eq.s32.totalorder %s70, 0
      %s73 = sadd.s32 %s72, 1
      %s74 = scalar_select %p71, %s72, %s73
      %p77 = pneg %p71
      %p78 = scmp.eq.s32.totalorder %s15, 15
      %p79 = por %p77, %p78
      %p80 = scmp.ne.s32.totalorder %s72, %s75
      %p81 = scmp.eq.s32.totalorder %s15, 0
      %p82 = por %p80, %p81
      %p83 = scmp.ne.s32.totalorder %s72, %s75
      %p84 = scmp.eq.s32.totalorder %s20, 15
      %p85 = por %p83, %p84
      %p86 = scmp.ne.s32.totalorder %s75, %s76
      %p87 = scmp.eq.s32.totalorder %s20, 0
      %p88 = por %p86, %p87
      %p89 = scmp.ne.s32.totalorder %s75, %s76
      %p90 = scmp.eq.s32.totalorder %s21, 15
      %p91 = por %p89, %p90
      %p93 = scmp.ne.s32.totalorder %s76, %s92
      %p94 = scmp.eq.s32.totalorder %s21, 0
      %p95 = por %p93, %p94
      %s96 = ssub.s32 %s15, %s22
      %p97 = scmp.eq.s32.totalorder %s96, 0
      %s99 = sadd.s32 %s98, 1
      %s100 = scalar_select %p97, %s98, %s99
      %p103 = pneg %p97
      %p104 = scmp.eq.s32.totalorder %s15, 15
      %p105 = por %p103, %p104
      %p106 = scmp.ne.s32.totalorder %s98, %s101
      %p107 = scmp.eq.s32.totalorder %s15, 0
      %p108 = por %p106, %p107
      %p109 = scmp.ne.s32.totalorder %s98, %s101
      %p110 = scmp.eq.s32.totalorder %s20, 15
      %p111 = por %p109, %p110
      %p112 = scmp.ne.s32.totalorder %s101, %s102
      %p113 = scmp.eq.s32.totalorder %s20, 0
      %p114 = por %p112, %p113
      %p115 = scmp.ne.s32.totalorder %s101, %s102
      %p116 = scmp.eq.s32.totalorder %s21, 15
      %p117 = por %p115, %p116
      %p119 = scmp.ne.s32.totalorder %s102, %s118
      %p120 = scmp.eq.s32.totalorder %s21, 0
      %p121 = por %p119, %p120
      %p122 = scmp.le.s32.totalorder 1, %s15
      %p123 = scmp.lt.s32.totalorder %s15, 17
      %p124 = pnand %p122, %p123
      %p125 = pneg %p124
      // Predicated region
      $region9: #{decoder_forward.3} parent=5 // pred_check
        _
      $region10: #{decoder_forward.3} parent=5 // pred_check_branch
        %127 = sbr.rel (%p124) target = $region12
      $region11: #{decoder_forward.3} parent=5 // pred_region
        %s128 = ssub.s32 %s15, 1
        // Predicated region
        $region13: #{decoder_forward.3} parent=11 // pred_check
          %p129 = pneg %p36
        $region14: #{decoder_forward.3} parent=11 // pred_check_branch
          %131 = sbr.rel (%p129) target = $region16
        $region15: #{decoder_forward.3} parent=11 // pred_region
          _
        $region16: #{decoder_forward.3} parent=11 // pred_fallthru
          _
      $region12: #{decoder_forward.3} parent=5 // pred_fallthru
        _
      %p132 = scmp.lt.s32.totalorder %s15, 16
      // Predicated region
      $region17: #{decoder_forward.3} parent=5 // pred_check
        %p133 = pneg %p132
      $region18: #{decoder_forward.3} parent=5 // pred_check_branch
        %135 = sbr.rel (%p133) target = $region20
      $region19: #{decoder_forward.3} parent=5 // pred_region
        // Predicated region
        $region21: #{decoder_forward.3} parent=19 // pred_check
          %p136 = pneg %p56
        $region22: #{decoder_forward.3} parent=19 // pred_check_branch
          %138 = sbr.rel (%p136) target = $region24
        $region23: #{decoder_forward.3} parent=19 // pred_region
          %s139 = sand.u32 %s46, 1
          %s140 = scalar_lea.sflag [#allocation3], %s139
          %s141 = sand.u32 %s46, 1
          %s142 = smul.addr %s141, 7616
          %s143 = scalar_lea.vmem [#allocation2], %s142
          %s144 = smul.u32 16, %s15
          %s146 = ssub.s32 121856, 121856
          %147 = vsyncadd %s140, %s146
          %s148 = smul.addr %s144, 64
          %s149 = scalar_lea.hbm %s1, %s148
          %s150 = sshll.u32 %s143, 4
          %s151 = int_to_ptr.vmem [resolvable:$true] %s150
          %156 = dma.hbm_to_vmem [thread:$0]  %s149, 121856, %s151, %s140, 16384, 1024, 64
        $region24: #{decoder_forward.3} parent=19 // pred_fallthru
          _
        // Predicated region
        $region25: #{decoder_forward.3} parent=19 // pred_check
          %p157 = pneg %p82
        $region26: #{decoder_forward.3} parent=19 // pred_check_branch
          %159 = sbr.rel (%p157) target = $region28
        $region27: #{decoder_forward.3} parent=19 // pred_region
          %s160 = sand.u32 %s72, 1
          %s161 = scalar_lea.sflag [#allocation5], %s160
          %s162 = sand.u32 %s72, 1
          %s163 = smul.addr %s162, 16
          %s164 = scalar_lea.vmem [#allocation4], %s163
          %s165 = smul.u32 16, %s15
          %s167 = ssub.s32 256, 256
          %168 = vsyncadd %s161, %s167
          %s169 = smul.addr %s165, 16
          %s170 = scalar_lea.hbm %s2, %s169
          %s172 = sshll.u32 %s164, 4
          %s173 = int_to_ptr.vmem [resolvable:$true] %s172
          %175 = dma.hbm_to_vmem [thread:$0]  %s170, 256, %s173, %s161
        $region28: #{decoder_forward.3} parent=19 // pred_fallthru
          _
      $region20: #{decoder_forward.3} parent=5 // pred_fallthru
        _
      %p176 = scmp.le.s32.totalorder 1, %s15
      %p177 = scmp.lt.s32.totalorder %s15, 17
      %p178 = pnand %p176, %p177
      %p179 = pneg %p178
      // Predicated region
      $region29: #{decoder_forward.3} parent=5 // pred_check
        _
      $region30: #{decoder_forward.3} parent=5 // pred_check_branch
        %181 = sbr.rel (%p178) target = $region32
      $region31: #{decoder_forward.3} parent=5 // pred_region
        %s182 = ssub.s32 %s15, 1
        %s183 = sand.u32 %s49, 1
        %s184 = scalar_lea.sflag [#allocation3], %s183
        %s185 = sand.u32 %s49, 1
        %s186 = smul.addr %s185, 7616
        %s187 = scalar_lea.vmem [#allocation2], %s186
        // Predicated region
        $region33: #{decoder_forward.3} parent=31 // pred_check
          %p188 = pneg %p62
        $region34: #{decoder_forward.3} parent=31 // pred_check_branch
          %190 = sbr.rel (%p188) target = $region36
        $region35: #{decoder_forward.3} parent=31 // pred_region
          %191 = dma.done %s184, 121856
        $region36: #{decoder_forward.3} parent=31 // pred_fallthru
          _
        %s192 = sand.u32 %s75, 1
        %s193 = scalar_lea.sflag [#allocation5], %s192
        %s194 = sand.u32 %s75, 1
        %s195 = smul.addr %s194, 16
        %s196 = scalar_lea.vmem [#allocation4], %s195
        // Predicated region
        $region37: #{decoder_forward.3} parent=31 // pred_check
          %p197 = pneg %p88
        $region38: #{decoder_forward.3} parent=31 // pred_check_branch
          %199 = sbr.rel (%p197) target = $region40
        $region39: #{decoder_forward.3} parent=31 // pred_region
          %200 = dma.done %s193, 256
        $region40: #{decoder_forward.3} parent=31 // pred_fallthru
          _
        %p201 = pneg %p36
        %p202 = pneg %p33
        %s203 = sand.u32 %s49, 1
        %s204 = scalar_lea.sflag [#allocation3], %s203
        %s205 = sand.u32 %s49, 1
        %s206 = smul.addr %s205, 7616
        %s207 = scalar_lea.vmem [#allocation2], %s206
        %p208 = pneg %p62
        %p209 = pneg %p59
        %s210 = sand.u32 %s75, 1
        %s211 = scalar_lea.sflag [#allocation5], %s210
        %s212 = sand.u32 %s75, 1
        %s213 = smul.addr %s212, 16
        %s214 = scalar_lea.vmem [#allocation4], %s213
        %p215 = pneg %p88
        %p216 = pneg %p85
        %p217 = pneg %p114
        %p218 = pneg %p111
        %s219 = smul.u32 16, %s20
        %p220 = scmp.lt.s32.totalorder %s219, 255
        %s221 = scalar_select %p220, %s219, 255
        %s222 = smul.addr %s221, 8
        %s223 = scalar_lea.vmem %s3, %s222
        %s224 = smul.u32 16, %s20
        %s225 = smul.u32 16, %s20
        %s226 = smul.u32 16, %s20
        %p227 = scmp.lt.s32.totalorder %s226, 255
        %s228 = scalar_select %p227, %s226, 255
        %s229 = smul.addr %s228, 8
        %s230 = scalar_lea.vmem %s3, %s229
        %s231 = smul.u32 16, %s20
        %v233 = vld [vmem:[%s0] sm:$0xff]
        %v234 = vld [vmem:[%s0 + $0x8] sm:$0xff]
        %v235 = vld [vmem:[%s0 + $0x10] sm:$0xff]
        %v236 = vld [vmem:[%s0 + $0x18] sm:$0xff]
        %v237 = vld [vmem:[%s0 + $0x20] sm:$0xff]
        %v238 = vld [vmem:[%s0 + $0x28] sm:$0xff]
        %v239 = vld [vmem:[%s0 + $0x30] sm:$0xff]
        %v240 = vld [vmem:[%s0 + $0x38] sm:$0xff]
        %v241 = vpack.c.bf16 %v233, %v233
        %v242 = vpack.c.bf16 %v234, %v234
        %v243 = vpack.c.bf16 %v235, %v235
        %v244 = vpack.c.bf16 %v236, %v236
        %v245 = vpack.c.bf16 %v237, %v237
        %v246 = vpack.c.bf16 %v238, %v238
        %v247 = vpack.c.bf16 %v239, %v239
        %v248 = vpack.c.bf16 %v240, %v240
        %v249 = vld [vmem:[%s187] sm:$0xff]
        %v250 = vld [vmem:[%s187 + $0x8] sm:$0xff]
        %v251 = vld [vmem:[%s187 + $0x10] sm:$0xff]
        %v252 = vld [vmem:[%s187 + $0x18] sm:$0xff]
        %v253 = vld [vmem:[%s187 + $0x20] sm:$0xff]
        %v254 = vld [vmem:[%s187 + $0x28] sm:$0xff]
        %v255 = vld [vmem:[%s187 + $0x30] sm:$0xff]
        %v256 = vld [vmem:[%s187 + $0x38] sm:$0xff]
        %v257 = vld [vmem:[%s187 + $0x40] sm:$0xff]
        %v258 = vld [vmem:[%s187 + $0x48] sm:$0xff]
        %v259 = vld [vmem:[%s187 + $0x50] sm:$0xff]
        %v260 = vld [vmem:[%s187 + $0x58] sm:$0xff]
        %v261 = vld [vmem:[%s187 + $0x60] sm:$0xff]
        %v262 = vld [vmem:[%s187 + $0x68] sm:$0xff]
        %v263 = vld [vmem:[%s187 + $0x70] sm:$0xff]
        %v264 = vld [vmem:[%s187 + $0x78] sm:$0xff]
        %v265 = vld [vmem:[%s187 + $0x80] sm:$0xff]
        %v266 = vld [vmem:[%s187 + $0x88] sm:$0xff]
        %v267 = vld [vmem:[%s187 + $0x90] sm:$0xff]
        %v268 = vld [vmem:[%s187 + $0x98] sm:$0xff]
        %v269 = vld [vmem:[%s187 + $0xa0] sm:$0xff]
        %v270 = vld [vmem:[%s187 + $0xa8] sm:$0xff]
        %v271 = vld [vmem:[%s187 + $0xb0] sm:$0xff]
        %v272 = vld [vmem:[%s187 + $0xb8] sm:$0xff]
        %v273 = vld [vmem:[%s187 + $0xc0] sm:$0xff]
        %v274 = vld [vmem:[%s187 + $0xc8] sm:$0xff]
        %v275 = vld [vmem:[%s187 + $0xd0] sm:$0xff]
        %v276 = vld [vmem:[%s187 + $0xd8] sm:$0xff]
        %v277 = vld [vmem:[%s187 + $0xe0] sm:$0xff]
        %v278 = vld [vmem:[%s187 + $0xe8] sm:$0xff]
        %v279 = vld [vmem:[%s187 + $0xf0] sm:$0xff]
        %v280 = vld [vmem:[%s187 + $0xf8] sm:$0xff]
        %v281 = vld [vmem:[%s187 + $0x100] sm:$0xff]
        %v282 = vld [vmem:[%s187 + $0x108] sm:$0xff]
        %v283 = vld [vmem:[%s187 + $0x110] sm:$0xff]
        %v284 = vld [vmem:[%s187 + $0x118] sm:$0xff]
        %v285 = vld [vmem:[%s187 + $0x120] sm:$0xff]
        %v286 = vld [vmem:[%s187 + $0x128] sm:$0xff]
        %v287 = vld [vmem:[%s187 + $0x130] sm:$0xff]
        %v288 = vld [vmem:[%s187 + $0x138] sm:$0xff]
        %v289 = vld [vmem:[%s187 + $0x140] sm:$0xff]
        %v290 = vld [vmem:[%s187 + $0x148] sm:$0xff]
        %v291 = vld [vmem:[%s187 + $0x150] sm:$0xff]
        %v292 = vld [vmem:[%s187 + $0x158] sm:$0xff]
        %v293 = vld [vmem:[%s187 + $0x160] sm:$0xff]
        %v294 = vld [vmem:[%s187 + $0x168] sm:$0xff]
        %v295 = vld [vmem:[%s187 + $0x170] sm:$0xff]
        %v296 = vld [vmem:[%s187 + $0x178] sm:$0xff]
        %v297 = vld [vmem:[%s187 + $0x180] sm:$0xff]
        %v298 = vld [vmem:[%s187 + $0x188] sm:$0xff]
        %v299 = vld [vmem:[%s187 + $0x190] sm:$0xff]
        %v300 = vld [vmem:[%s187 + $0x198] sm:$0xff]
        %v301 = vld [vmem:[%s187 + $0x1a0] sm:$0xff]
        %v302 = vld [vmem:[%s187 + $0x1a8] sm:$0xff]
        %v303 = vld [vmem:[%s187 + $0x1b0] sm:$0xff]
        %v304 = vld [vmem:[%s187 + $0x1b8] sm:$0xff]
        %v305 = vld [vmem:[%s187 + $0x1c0] sm:$0xff]
        %v306 = vld [vmem:[%s187 + $0x1c8] sm:$0xff]
        %v307 = vld [vmem:[%s187 + $0x1d0] sm:$0xff]
        %v308 = vld [vmem:[%s187 + $0x1d8] sm:$0xff]
        %v309 = vld [vmem:[%s187 + $0x1e0] sm:$0xff]
        %v310 = vld [vmem:[%s187 + $0x1e8] sm:$0xff]
        %v311 = vld [vmem:[%s187 + $0x1f0] sm:$0xff]
        %v312 = vld [vmem:[%s187 + $0x1f8] sm:$0xff]
        %v313 = vld [vmem:[%s187 + $0x200] sm:$0xff]
        %v314 = vld [vmem:[%s187 + $0x208] sm:$0xff]
        %v315 = vld [vmem:[%s187 + $0x210] sm:$0xff]
        %v316 = vld [vmem:[%s187 + $0x218] sm:$0xff]
        %v317 = vld [vmem:[%s187 + $0x220] sm:$0xff]
        %v318 = vld [vmem:[%s187 + $0x228] sm:$0xff]
        %v319 = vld [vmem:[%s187 + $0x230] sm:$0xff]
        %v320 = vld [vmem:[%s187 + $0x238] sm:$0xff]
        %v321 = vld [vmem:[%s187 + $0x240] sm:$0xff]
        %v322 = vld [vmem:[%s187 + $0x248] sm:$0xff]
        %v323 = vld [vmem:[%s187 + $0x250] sm:$0xff]
        %v324 = vld [vmem:[%s187 + $0x258] sm:$0xff]
        %v325 = vld [vmem:[%s187 + $0x260] sm:$0xff]
        %v326 = vld [vmem:[%s187 + $0x268] sm:$0xff]
        %v327 = vld [vmem:[%s187 + $0x270] sm:$0xff]
        %v328 = vld [vmem:[%s187 + $0x278] sm:$0xff]
        %v329 = vld [vmem:[%s187 + $0x280] sm:$0xff]
        %v330 = vld [vmem:[%s187 + $0x288] sm:$0xff]
        %v331 = vld [vmem:[%s187 + $0x290] sm:$0xff]
        %v332 = vld [vmem:[%s187 + $0x298] sm:$0xff]
        %v333 = vld [vmem:[%s187 + $0x2a0] sm:$0xff]
        %v334 = vld [vmem:[%s187 + $0x2a8] sm:$0xff]
        %v335 = vld [vmem:[%s187 + $0x2b0] sm:$0xff]
        %v336 = vld [vmem:[%s187 + $0x2b8] sm:$0xff]
        %v337 = vld [vmem:[%s187 + $0x2c0] sm:$0xff]
        %v338 = vld [vmem:[%s187 + $0x2c8] sm:$0xff]
        %v339 = vld [vmem:[%s187 + $0x2d0] sm:$0xff]
        %v340 = vld [vmem:[%s187 + $0x2d8] sm:$0xff]
        %v341 = vld [vmem:[%s187 + $0x2e0] sm:$0xff]
        %v342 = vld [vmem:[%s187 + $0x2e8] sm:$0xff]
        %v343 = vld [vmem:[%s187 + $0x2f0] sm:$0xff]
        %v344 = vld [vmem:[%s187 + $0x2f8] sm:$0xff]
        %v345 = vld [vmem:[%s187 + $0x300] sm:$0xff]
        %v346 = vld [vmem:[%s187 + $0x308] sm:$0xff]
        %v347 = vld [vmem:[%s187 + $0x310] sm:$0xff]
        %v348 = vld [vmem:[%s187 + $0x318] sm:$0xff]
        %v349 = vld [vmem:[%s187 + $0x320] sm:$0xff]
        %v350 = vld [vmem:[%s187 + $0x328] sm:$0xff]
        %v351 = vld [vmem:[%s187 + $0x330] sm:$0xff]
        %v352 = vld [vmem:[%s187 + $0x338] sm:$0xff]
        %v353 = vld [vmem:[%s187 + $0x340] sm:$0xff]
        %v354 = vld [vmem:[%s187 + $0x348] sm:$0xff]
        %v355 = vld [vmem:[%s187 + $0x350] sm:$0xff]
        %v356 = vld [vmem:[%s187 + $0x358] sm:$0xff]
        %v357 = vld [vmem:[%s187 + $0x360] sm:$0xff]
        %v358 = vld [vmem:[%s187 + $0x368] sm:$0xff]
        %v359 = vld [vmem:[%s187 + $0x370] sm:$0xff]
        %v360 = vld [vmem:[%s187 + $0x378] sm:$0xff]
        %v361 = vld [vmem:[%s187 + $0x380] sm:$0xff]
        %v362 = vld [vmem:[%s187 + $0x388] sm:$0xff]
        %v363 = vld [vmem:[%s187 + $0x390] sm:$0xff]
        %v364 = vld [vmem:[%s187 + $0x398] sm:$0xff]
        %v365 = vld [vmem:[%s187 + $0x3a0] sm:$0xff]
        %v366 = vld [vmem:[%s187 + $0x3a8] sm:$0xff]
        %v367 = vld [vmem:[%s187 + $0x3b0] sm:$0xff]
        %v368 = vld [vmem:[%s187 + $0x3b8] sm:$0xff]
        %v369 = vld [vmem:[%s187 + $0x3c0] sm:$0xff]
        %v370 = vld [vmem:[%s187 + $0x3c8] sm:$0xff]
        %v371 = vld [vmem:[%s187 + $0x3d0] sm:$0xff]
        %v372 = vld [vmem:[%s187 + $0x3d8] sm:$0xff]
        %v373 = vld [vmem:[%s187 + $0x3e0] sm:$0xff]
        %v374 = vld [vmem:[%s187 + $0x3e8] sm:$0xff]
        %v375 = vld [vmem:[%s187 + $0x3f0] sm:$0xff]
        %v376 = vld [vmem:[%s187 + $0x3f8] sm:$0xff]
        %v377 = vld [vmem:[%s187 + $0x400] sm:$0xff]
        %v378 = vld [vmem:[%s187 + $0x408] sm:$0xff]
        %v379 = vld [vmem:[%s187 + $0x410] sm:$0xff]
        %v380 = vld [vmem:[%s187 + $0x418] sm:$0xff]
        %v381 = vld [vmem:[%s187 + $0x420] sm:$0xff]
        %v382 = vld [vmem:[%s187 + $0x428] sm:$0xff]
        %v383 = vld [vmem:[%s187 + $0x430] sm:$0xff]
        %v384 = vld [vmem:[%s187 + $0x438] sm:$0xff]
        %v385 = vld [vmem:[%s187 + $0x440] sm:$0xff]
        %v386 = vld [vmem:[%s187 + $0x448] sm:$0xff]
        %v387 = vld [vmem:[%s187 + $0x450] sm:$0xff]
        %v388 = vld [vmem:[%s187 + $0x458] sm:$0xff]
        %v389 = vld [vmem:[%s187 + $0x460] sm:$0xff]
        %v390 = vld [vmem:[%s187 + $0x468] sm:$0xff]
        %v391 = vld [vmem:[%s187 + $0x470] sm:$0xff]
        %v392 = vld [vmem:[%s187 + $0x478] sm:$0xff]
        %v393 = vld [vmem:[%s187 + $0x480] sm:$0xff]
        %v394 = vld [vmem:[%s187 + $0x488] sm:$0xff]
        %v395 = vld [vmem:[%s187 + $0x490] sm:$0xff]
        %v396 = vld [vmem:[%s187 + $0x498] sm:$0xff]
        %v397 = vld [vmem:[%s187 + $0x4a0] sm:$0xff]
        %v398 = vld [vmem:[%s187 + $0x4a8] sm:$0xff]
        %v399 = vld [vmem:[%s187 + $0x4b0] sm:$0xff]
        %v400 = vld [vmem:[%s187 + $0x4b8] sm:$0xff]
        %v401 = vld [vmem:[%s187 + $0x4c0] sm:$0xff]
        %v402 = vld [vmem:[%s187 + $0x4c8] sm:$0xff]
        %v403 = vld [vmem:[%s187 + $0x4d0] sm:$0xff]
        %v404 = vld [vmem:[%s187 + $0x4d8] sm:$0xff]
        %v405 = vld [vmem:[%s187 + $0x4e0] sm:$0xff]
        %v406 = vld [vmem:[%s187 + $0x4e8] sm:$0xff]
        %v407 = vld [vmem:[%s187 + $0x4f0] sm:$0xff]
        %v408 = vld [vmem:[%s187 + $0x4f8] sm:$0xff]
        %v409 = vld [vmem:[%s187 + $0x500] sm:$0xff]
        %v410 = vld [vmem:[%s187 + $0x508] sm:$0xff]
        %v411 = vld [vmem:[%s187 + $0x510] sm:$0xff]
        %v412 = vld [vmem:[%s187 + $0x518] sm:$0xff]
        %v413 = vld [vmem:[%s187 + $0x520] sm:$0xff]
        %v414 = vld [vmem:[%s187 + $0x528] sm:$0xff]
        %v415 = vld [vmem:[%s187 + $0x530] sm:$0xff]
        %v416 = vld [vmem:[%s187 + $0x538] sm:$0xff]
        %v417 = vld [vmem:[%s187 + $0x540] sm:$0xff]
        %v418 = vld [vmem:[%s187 + $0x548] sm:$0xff]
        %v419 = vld [vmem:[%s187 + $0x550] sm:$0xff]
        %v420 = vld [vmem:[%s187 + $0x558] sm:$0xff]
        %v421 = vld [vmem:[%s187 + $0x560] sm:$0xff]
        %v422 = vld [vmem:[%s187 + $0x568] sm:$0xff]
        %v423 = vld [vmem:[%s187 + $0x570] sm:$0xff]
        %v424 = vld [vmem:[%s187 + $0x578] sm:$0xff]
        %v425 = vld [vmem:[%s187 + $0x580] sm:$0xff]
        %v426 = vld [vmem:[%s187 + $0x588] sm:$0xff]
        %v427 = vld [vmem:[%s187 + $0x590] sm:$0xff]
        %v428 = vld [vmem:[%s187 + $0x598] sm:$0xff]
        %v429 = vld [vmem:[%s187 + $0x5a0] sm:$0xff]
        %v430 = vld [vmem:[%s187 + $0x5a8] sm:$0xff]
        %v431 = vld [vmem:[%s187 + $0x5b0] sm:$0xff]
        %v432 = vld [vmem:[%s187 + $0x5b8] sm:$0xff]
        %v433 = vld [vmem:[%s187 + $0x5c0] sm:$0xff]
        %v434 = vld [vmem:[%s187 + $0x5c8] sm:$0xff]
        %v435 = vld [vmem:[%s187 + $0x5d0] sm:$0xff]
        %v436 = vld [vmem:[%s187 + $0x5d8] sm:$0xff]
        %v437 = vld [vmem:[%s187 + $0x5e0] sm:$0xff]
        %v438 = vld [vmem:[%s187 + $0x5e8] sm:$0xff]
        %v439 = vld [vmem:[%s187 + $0x5f0] sm:$0xff]
        %v440 = vld [vmem:[%s187 + $0x5f8] sm:$0xff]
        %v441 = vld [vmem:[%s187 + $0x600] sm:$0xff]
        %v442 = vld [vmem:[%s187 + $0x608] sm:$0xff]
        %v443 = vld [vmem:[%s187 + $0x610] sm:$0xff]
        %v444 = vld [vmem:[%s187 + $0x618] sm:$0xff]
        %v445 = vld [vmem:[%s187 + $0x620] sm:$0xff]
        %v446 = vld [vmem:[%s187 + $0x628] sm:$0xff]
        %v447 = vld [vmem:[%s187 + $0x630] sm:$0xff]
        %v448 = vld [vmem:[%s187 + $0x638] sm:$0xff]
        %v449 = vld [vmem:[%s187 + $0x640] sm:$0xff]
        %v450 = vld [vmem:[%s187 + $0x648] sm:$0xff]
        %v451 = vld [vmem:[%s187 + $0x650] sm:$0xff]
        %v452 = vld [vmem:[%s187 + $0x658] sm:$0xff]
        %v453 = vld [vmem:[%s187 + $0x660] sm:$0xff]
        %v454 = vld [vmem:[%s187 + $0x668] sm:$0xff]
        %v455 = vld [vmem:[%s187 + $0x670] sm:$0xff]
        %v456 = vld [vmem:[%s187 + $0x678] sm:$0xff]
        %v457 = vld [vmem:[%s187 + $0x680] sm:$0xff]
        %v458 = vld [vmem:[%s187 + $0x688] sm:$0xff]
        %v459 = vld [vmem:[%s187 + $0x690] sm:$0xff]
        %v460 = vld [vmem:[%s187 + $0x698] sm:$0xff]
        %v461 = vld [vmem:[%s187 + $0x6a0] sm:$0xff]
        %v462 = vld [vmem:[%s187 + $0x6a8] sm:$0xff]
        %v463 = vld [vmem:[%s187 + $0x6b0] sm:$0xff]
        %v464 = vld [vmem:[%s187 + $0x6b8] sm:$0xff]
        %v465 = vld [vmem:[%s187 + $0x6c0] sm:$0xff]
        %v466 = vld [vmem:[%s187 + $0x6c8] sm:$0xff]
        %v467 = vld [vmem:[%s187 + $0x6d0] sm:$0xff]
        %v468 = vld [vmem:[%s187 + $0x6d8] sm:$0xff]
        %v469 = vld [vmem:[%s187 + $0x6e0] sm:$0xff]
        %v470 = vld [vmem:[%s187 + $0x6e8] sm:$0xff]
        %v471 = vld [vmem:[%s187 + $0x6f0] sm:$0xff]
        %v472 = vld [vmem:[%s187 + $0x6f8] sm:$0xff]
        %v473 = vld [vmem:[%s187 + $0x700] sm:$0xff]
        %v474 = vld [vmem:[%s187 + $0x708] sm:$0xff]
        %v475 = vld [vmem:[%s187 + $0x710] sm:$0xff]
        %v476 = vld [vmem:[%s187 + $0x718] sm:$0xff]
        %v477 = vld [vmem:[%s187 + $0x720] sm:$0xff]
        %v478 = vld [vmem:[%s187 + $0x728] sm:$0xff]
        %v479 = vld [vmem:[%s187 + $0x730] sm:$0xff]
        %v480 = vld [vmem:[%s187 + $0x738] sm:$0xff]
        %v481 = vld [vmem:[%s187 + $0x740] sm:$0xff]
        %v482 = vld [vmem:[%s187 + $0x748] sm:$0xff]
        %v483 = vld [vmem:[%s187 + $0x750] sm:$0xff]
        %v484 = vld [vmem:[%s187 + $0x758] sm:$0xff]
        %v485 = vld [vmem:[%s187 + $0x760] sm:$0xff]
        %v486 = vld [vmem:[%s187 + $0x768] sm:$0xff]
        %v487 = vld [vmem:[%s187 + $0x770] sm:$0xff]
        %v488 = vld [vmem:[%s187 + $0x778] sm:$0xff]
        %v489 = vld [vmem:[%s187 + $0x780] sm:$0xff]
        %v490 = vld [vmem:[%s187 + $0x788] sm:$0xff]
        %v491 = vld [vmem:[%s187 + $0x790] sm:$0xff]
        %v492 = vld [vmem:[%s187 + $0x798] sm:$0xff]
        %v493 = vld [vmem:[%s187 + $0x7a0] sm:$0xff]
        %v494 = vld [vmem:[%s187 + $0x7a8] sm:$0xff]
        %v495 = vld [vmem:[%s187 + $0x7b0] sm:$0xff]
        %v496 = vld [vmem:[%s187 + $0x7b8] sm:$0xff]
        %v497 = vld [vmem:[%s187 + $0x7c0] sm:$0xff]
        %v498 = vld [vmem:[%s187 + $0x7c8] sm:$0xff]
        %v499 = vld [vmem:[%s187 + $0x7d0] sm:$0xff]
        %v500 = vld [vmem:[%s187 + $0x7d8] sm:$0xff]
        %v501 = vld [vmem:[%s187 + $0x7e0] sm:$0xff]
        %v502 = vld [vmem:[%s187 + $0x7e8] sm:$0xff]
        %v503 = vld [vmem:[%s187 + $0x7f0] sm:$0xff]
        %v504 = vld [vmem:[%s187 + $0x7f8] sm:$0xff]
        %v505 = vld [vmem:[%s187 + $0x800] sm:$0xff]
        %v506 = vld [vmem:[%s187 + $0x808] sm:$0xff]
        %v507 = vld [vmem:[%s187 + $0x810] sm:$0xff]
        %v508 = vld [vmem:[%s187 + $0x818] sm:$0xff]
        %v509 = vld [vmem:[%s187 + $0x820] sm:$0xff]
        %v510 = vld [vmem:[%s187 + $0x828] sm:$0xff]
        %v511 = vld [vmem:[%s187 + $0x830] sm:$0xff]
        %v512 = vld [vmem:[%s187 + $0x838] sm:$0xff]
        %v513 = vld [vmem:[%s187 + $0x840] sm:$0xff]
        %v514 = vld [vmem:[%s187 + $0x848] sm:$0xff]
        %v515 = vld [vmem:[%s187 + $0x850] sm:$0xff]
        %v516 = vld [vmem:[%s187 + $0x858] sm:$0xff]
        %v517 = vld [vmem:[%s187 + $0x860] sm:$0xff]
        %v518 = vld [vmem:[%s187 + $0x868] sm:$0xff]
        %v519 = vld [vmem:[%s187 + $0x870] sm:$0xff]
        %v520 = vld [vmem:[%s187 + $0x878] sm:$0xff]
        %v521 = vld [vmem:[%s187 + $0x880] sm:$0xff]
        %v522 = vld [vmem:[%s187 + $0x888] sm:$0xff]
        %v523 = vld [vmem:[%s187 + $0x890] sm:$0xff]
        %v524 = vld [vmem:[%s187 + $0x898] sm:$0xff]
        %v525 = vld [vmem:[%s187 + $0x8a0] sm:$0xff]
        %v526 = vld [vmem:[%s187 + $0x8a8] sm:$0xff]
        %v527 = vld [vmem:[%s187 + $0x8b0] sm:$0xff]
        %v528 = vld [vmem:[%s187 + $0x8b8] sm:$0xff]
        %v529 = vld [vmem:[%s187 + $0x8c0] sm:$0xff]
        %v530 = vld [vmem:[%s187 + $0x8c8] sm:$0xff]
        %v531 = vld [vmem:[%s187 + $0x8d0] sm:$0xff]
        %v532 = vld [vmem:[%s187 + $0x8d8] sm:$0xff]
        %v533 = vld [vmem:[%s187 + $0x8e0] sm:$0xff]
        %v534 = vld [vmem:[%s187 + $0x8e8] sm:$0xff]
        %v535 = vld [vmem:[%s187 + $0x8f0] sm:$0xff]
        %v536 = vld [vmem:[%s187 + $0x8f8] sm:$0xff]
        %v537 = vld [vmem:[%s187 + $0x900] sm:$0xff]
        %v538 = vld [vmem:[%s187 + $0x908] sm:$0xff]
        %v539 = vld [vmem:[%s187 + $0x910] sm:$0xff]
        %v540 = vld [vmem:[%s187 + $0x918] sm:$0xff]
        %v541 = vld [vmem:[%s187 + $0x920] sm:$0xff]
        %v542 = vld [vmem:[%s187 + $0x928] sm:$0xff]
        %v543 = vld [vmem:[%s187 + $0x930] sm:$0xff]
        %v544 = vld [vmem:[%s187 + $0x938] sm:$0xff]
        %v545 = vld [vmem:[%s187 + $0x940] sm:$0xff]
        %v546 = vld [vmem:[%s187 + $0x948] sm:$0xff]
        %v547 = vld [vmem:[%s187 + $0x950] sm:$0xff]
        %v548 = vld [vmem:[%s187 + $0x958] sm:$0xff]
        %v549 = vld [vmem:[%s187 + $0x960] sm:$0xff]
        %v550 = vld [vmem:[%s187 + $0x968] sm:$0xff]
        %v551 = vld [vmem:[%s187 + $0x970] sm:$0xff]
        %v552 = vld [vmem:[%s187 + $0x978] sm:$0xff]
        %v553 = vld [vmem:[%s187 + $0x980] sm:$0xff]
        %v554 = vld [vmem:[%s187 + $0x988] sm:$0xff]
        %v555 = vld [vmem:[%s187 + $0x990] sm:$0xff]
        %v556 = vld [vmem:[%s187 + $0x998] sm:$0xff]
        %v557 = vld [vmem:[%s187 + $0x9a0] sm:$0xff]
        %v558 = vld [vmem:[%s187 + $0x9a8] sm:$0xff]
        %v559 = vld [vmem:[%s187 + $0x9b0] sm:$0xff]
        %v560 = vld [vmem:[%s187 + $0x9b8] sm:$0xff]
        %v561 = vld [vmem:[%s187 + $0x9c0] sm:$0xff]
        %v562 = vld [vmem:[%s187 + $0x9c8] sm:$0xff]
        %v563 = vld [vmem:[%s187 + $0x9d0] sm:$0xff]
        %v564 = vld [vmem:[%s187 + $0x9d8] sm:$0xff]
        %v565 = vld [vmem:[%s187 + $0x9e0] sm:$0xff]
        %v566 = vld [vmem:[%s187 + $0x9e8] sm:$0xff]
        %v567 = vld [vmem:[%s187 + $0x9f0] sm:$0xff]
        %v568 = vld [vmem:[%s187 + $0x9f8] sm:$0xff]
        %v569 = vld [vmem:[%s187 + $0xa00] sm:$0xff]
        %v570 = vld [vmem:[%s187 + $0xa08] sm:$0xff]
        %v571 = vld [vmem:[%s187 + $0xa10] sm:$0xff]
        %v572 = vld [vmem:[%s187 + $0xa18] sm:$0xff]
        %v573 = vld [vmem:[%s187 + $0xa20] sm:$0xff]
        %v574 = vld [vmem:[%s187 + $0xa28] sm:$0xff]
        %v575 = vld [vmem:[%s187 + $0xa30] sm:$0xff]
        %v576 = vld [vmem:[%s187 + $0xa38] sm:$0xff]
        %v577 = vld [vmem:[%s187 + $0xa40] sm:$0xff]
        %v578 = vld [vmem:[%s187 + $0xa48] sm:$0xff]
        %v579 = vld [vmem:[%s187 + $0xa50] sm:$0xff]
        %v580 = vld [vmem:[%s187 + $0xa58] sm:$0xff]
        %v581 = vld [vmem:[%s187 + $0xa60] sm:$0xff]
        %v582 = vld [vmem:[%s187 + $0xa68] sm:$0xff]
        %v583 = vld [vmem:[%s187 + $0xa70] sm:$0xff]
        %v584 = vld [vmem:[%s187 + $0xa78] sm:$0xff]
        %v585 = vld [vmem:[%s187 + $0xa80] sm:$0xff]
        %v586 = vld [vmem:[%s187 + $0xa88] sm:$0xff]
        %v587 = vld [vmem:[%s187 + $0xa90] sm:$0xff]
        %v588 = vld [vmem:[%s187 + $0xa98] sm:$0xff]
        %v589 = vld [vmem:[%s187 + $0xaa0] sm:$0xff]
        %v590 = vld [vmem:[%s187 + $0xaa8] sm:$0xff]
        %v591 = vld [vmem:[%s187 + $0xab0] sm:$0xff]
        %v592 = vld [vmem:[%s187 + $0xab8] sm:$0xff]
        %v593 = vld [vmem:[%s187 + $0xac0] sm:$0xff]
        %v594 = vld [vmem:[%s187 + $0xac8] sm:$0xff]
        %v595 = vld [vmem:[%s187 + $0xad0] sm:$0xff]
        %v596 = vld [vmem:[%s187 + $0xad8] sm:$0xff]
        %v597 = vld [vmem:[%s187 + $0xae0] sm:$0xff]
        %v598 = vld [vmem:[%s187 + $0xae8] sm:$0xff]
        %v599 = vld [vmem:[%s187 + $0xaf0] sm:$0xff]
        %v600 = vld [vmem:[%s187 + $0xaf8] sm:$0xff]
        %v601 = vld [vmem:[%s187 + $0xb00] sm:$0xff]
        %v602 = vld [vmem:[%s187 + $0xb08] sm:$0xff]
        %v603 = vld [vmem:[%s187 + $0xb10] sm:$0xff]
        %v604 = vld [vmem:[%s187 + $0xb18] sm:$0xff]
        %v605 = vld [vmem:[%s187 + $0xb20] sm:$0xff]
        %v606 = vld [vmem:[%s187 + $0xb28] sm:$0xff]
        %v607 = vld [vmem:[%s187 + $0xb30] sm:$0xff]
        %v608 = vld [vmem:[%s187 + $0xb38] sm:$0xff]
        %v609 = vld [vmem:[%s187 + $0xb40] sm:$0xff]
        %v610 = vld [vmem:[%s187 + $0xb48] sm:$0xff]
        %v611 = vld [vmem:[%s187 + $0xb50] sm:$0xff]
        %v612 = vld [vmem:[%s187 + $0xb58] sm:$0xff]
        %v613 = vld [vmem:[%s187 + $0xb60] sm:$0xff]
        %v614 = vld [vmem:[%s187 + $0xb68] sm:$0xff]
        %v615 = vld [vmem:[%s187 + $0xb70] sm:$0xff]
        %v616 = vld [vmem:[%s187 + $0xb78] sm:$0xff]
        %v617 = vld [vmem:[%s187 + $0xb80] sm:$0xff]
        %v618 = vld [vmem:[%s187 + $0xb88] sm:$0xff]
        %v619 = vld [vmem:[%s187 + $0xb90] sm:$0xff]
        %v620 = vld [vmem:[%s187 + $0xb98] sm:$0xff]
        %v621 = vld [vmem:[%s187 + $0xba0] sm:$0xff]
        %v622 = vld [vmem:[%s187 + $0xba8] sm:$0xff]
        %v623 = vld [vmem:[%s187 + $0xbb0] sm:$0xff]
        %v624 = vld [vmem:[%s187 + $0xbb8] sm:$0xff]
        %v625 = vld [vmem:[%s187 + $0xbc0] sm:$0xff]
        %v626 = vld [vmem:[%s187 + $0xbc8] sm:$0xff]
        %v627 = vld [vmem:[%s187 + $0xbd0] sm:$0xff]
        %v628 = vld [vmem:[%s187 + $0xbd8] sm:$0xff]
        %v629 = vld [vmem:[%s187 + $0xbe0] sm:$0xff]
        %v630 = vld [vmem:[%s187 + $0xbe8] sm:$0xff]
        %v631 = vld [vmem:[%s187 + $0xbf0] sm:$0xff]
        %v632 = vld [vmem:[%s187 + $0xbf8] sm:$0xff]
        %v633 = vld [vmem:[%s187 + $0xc00] sm:$0xff]
        %v634 = vld [vmem:[%s187 + $0xc08] sm:$0xff]
        %v635 = vld [vmem:[%s187 + $0xc10] sm:$0xff]
        %v636 = vld [vmem:[%s187 + $0xc18] sm:$0xff]
        %v637 = vld [vmem:[%s187 + $0xc20] sm:$0xff]
        %v638 = vld [vmem:[%s187 + $0xc28] sm:$0xff]
        %v639 = vld [vmem:[%s187 + $0xc30] sm:$0xff]
        %v640 = vld [vmem:[%s187 + $0xc38] sm:$0xff]
        %v641 = vld [vmem:[%s187 + $0xc40] sm:$0xff]
        %v642 = vld [vmem:[%s187 + $0xc48] sm:$0xff]
        %v643 = vld [vmem:[%s187 + $0xc50] sm:$0xff]
        %v644 = vld [vmem:[%s187 + $0xc58] sm:$0xff]
        %v645 = vld [vmem:[%s187 + $0xc60] sm:$0xff]
        %v646 = vld [vmem:[%s187 + $0xc68] sm:$0xff]
        %v647 = vld [vmem:[%s187 + $0xc70] sm:$0xff]
        %v648 = vld [vmem:[%s187 + $0xc78] sm:$0xff]
        %v649 = vld [vmem:[%s187 + $0xc80] sm:$0xff]
        %v650 = vld [vmem:[%s187 + $0xc88] sm:$0xff]
        %v651 = vld [vmem:[%s187 + $0xc90] sm:$0xff]
        %v652 = vld [vmem:[%s187 + $0xc98] sm:$0xff]
        %v653 = vld [vmem:[%s187 + $0xca0] sm:$0xff]
        %v654 = vld [vmem:[%s187 + $0xca8] sm:$0xff]
        %v655 = vld [vmem:[%s187 + $0xcb0] sm:$0xff]
        %v656 = vld [vmem:[%s187 + $0xcb8] sm:$0xff]
        %v657 = vld [vmem:[%s187 + $0xcc0] sm:$0xff]
        %v658 = vld [vmem:[%s187 + $0xcc8] sm:$0xff]
        %v659 = vld [vmem:[%s187 + $0xcd0] sm:$0xff]
        %v660 = vld [vmem:[%s187 + $0xcd8] sm:$0xff]
        %v661 = vld [vmem:[%s187 + $0xce0] sm:$0xff]
        %v662 = vld [vmem:[%s187 + $0xce8] sm:$0xff]
        %v663 = vld [vmem:[%s187 + $0xcf0] sm:$0xff]
        %v664 = vld [vmem:[%s187 + $0xcf8] sm:$0xff]
        %v665 = vld [vmem:[%s187 + $0xd00] sm:$0xff]
        %v666 = vld [vmem:[%s187 + $0xd08] sm:$0xff]
        %v667 = vld [vmem:[%s187 + $0xd10] sm:$0xff]
        %v668 = vld [vmem:[%s187 + $0xd18] sm:$0xff]
        %v669 = vld [vmem:[%s187 + $0xd20] sm:$0xff]
        %v670 = vld [vmem:[%s187 + $0xd28] sm:$0xff]
        %v671 = vld [vmem:[%s187 + $0xd30] sm:$0xff]
        %v672 = vld [vmem:[%s187 + $0xd38] sm:$0xff]
        %v673 = vld [vmem:[%s187 + $0xd40] sm:$0xff]
        %v674 = vld [vmem:[%s187 + $0xd48] sm:$0xff]
        %v675 = vld [vmem:[%s187 + $0xd50] sm:$0xff]
        %v676 = vld [vmem:[%s187 + $0xd58] sm:$0xff]
        %v677 = vld [vmem:[%s187 + $0xd60] sm:$0xff]
        %v678 = vld [vmem:[%s187 + $0xd68] sm:$0xff]
        %v679 = vld [vmem:[%s187 + $0xd70] sm:$0xff]
        %v680 = vld [vmem:[%s187 + $0xd78] sm:$0xff]
        %v681 = vld [vmem:[%s187 + $0xd80] sm:$0xff]
        %v682 = vld [vmem:[%s187 + $0xd88] sm:$0xff]
        %v683 = vld [vmem:[%s187 + $0xd90] sm:$0xff]
        %v684 = vld [vmem:[%s187 + $0xd98] sm:$0xff]
        %v685 = vld [vmem:[%s187 + $0xda0] sm:$0xff]
        %v686 = vld [vmem:[%s187 + $0xda8] sm:$0xff]
        %v687 = vld [vmem:[%s187 + $0xdb0] sm:$0xff]
        %v688 = vld [vmem:[%s187 + $0xdb8] sm:$0xff]
        %v689 = vld [vmem:[%s187 + $0xdc0] sm:$0xff]
        %v690 = vld [vmem:[%s187 + $0xdc8] sm:$0xff]
        %v691 = vld [vmem:[%s187 + $0xdd0] sm:$0xff]
        %v692 = vld [vmem:[%s187 + $0xdd8] sm:$0xff]
        %v693 = vld [vmem:[%s187 + $0xde0] sm:$0xff]
        %v694 = vld [vmem:[%s187 + $0xde8] sm:$0xff]
        %v695 = vld [vmem:[%s187 + $0xdf0] sm:$0xff]
        %v696 = vld [vmem:[%s187 + $0xdf8] sm:$0xff]
        %v697 = vld [vmem:[%s187 + $0xe00] sm:$0xff]
        %v698 = vld [vmem:[%s187 + $0xe08] sm:$0xff]
        %v699 = vld [vmem:[%s187 + $0xe10] sm:$0xff]
        %v700 = vld [vmem:[%s187 + $0xe18] sm:$0xff]
        %v701 = vld [vmem:[%s187 + $0xe20] sm:$0xff]
        %v702 = vld [vmem:[%s187 + $0xe28] sm:$0xff]
        %v703 = vld [vmem:[%s187 + $0xe30] sm:$0xff]
        %v704 = vld [vmem:[%s187 + $0xe38] sm:$0xff]
        %v705 = vld [vmem:[%s187 + $0xe40] sm:$0xff]
        %v706 = vld [vmem:[%s187 + $0xe48] sm:$0xff]
        %v707 = vld [vmem:[%s187 + $0xe50] sm:$0xff]
        %v708 = vld [vmem:[%s187 + $0xe58] sm:$0xff]
        %v709 = vld [vmem:[%s187 + $0xe60] sm:$0xff]
        %v710 = vld [vmem:[%s187 + $0xe68] sm:$0xff]
        %v711 = vld [vmem:[%s187 + $0xe70] sm:$0xff]
        %v712 = vld [vmem:[%s187 + $0xe78] sm:$0xff]
        %v713 = vld [vmem:[%s187 + $0xe80] sm:$0xff]
        %v714 = vld [vmem:[%s187 + $0xe88] sm:$0xff]
        %v715 = vld [vmem:[%s187 + $0xe90] sm:$0xff]
        %v716 = vld [vmem:[%s187 + $0xe98] sm:$0xff]
        %v717 = vld [vmem:[%s187 + $0xea0] sm:$0xff]
        %v718 = vld [vmem:[%s187 + $0xea8] sm:$0xff]
        %v719 = vld [vmem:[%s187 + $0xeb0] sm:$0xff]
        %v720 = vld [vmem:[%s187 + $0xeb8] sm:$0xff]
        %v721 = vld [vmem:[%s187 + $0xec0] sm:$0xff]
        %v722 = vld [vmem:[%s187 + $0xec8] sm:$0xff]
        %v723 = vld [vmem:[%s187 + $0xed0] sm:$0xff]
        %v724 = vld [vmem:[%s187 + $0xed8] sm:$0xff]
        %v725 = vld [vmem:[%s187 + $0xee0] sm:$0xff]
        %v726 = vld [vmem:[%s187 + $0xee8] sm:$0xff]
        %v727 = vld [vmem:[%s187 + $0xef0] sm:$0xff]
        %v728 = vld [vmem:[%s187 + $0xef8] sm:$0xff]
        %v729 = vld [vmem:[%s187 + $0xf00] sm:$0xff]
        %v730 = vld [vmem:[%s187 + $0xf08] sm:$0xff]
        %v731 = vld [vmem:[%s187 + $0xf10] sm:$0xff]
        %v732 = vld [vmem:[%s187 + $0xf18] sm:$0xff]
        %v733 = vld [vmem:[%s187 + $0xf20] sm:$0xff]
        %v734 = vld [vmem:[%s187 + $0xf28] sm:$0xff]
        %v735 = vld [vmem:[%s187 + $0xf30] sm:$0xff]
        %v736 = vld [vmem:[%s187 + $0xf38] sm:$0xff]
        %v737 = vld [vmem:[%s187 + $0xf40] sm:$0xff]
        %v738 = vld [vmem:[%s187 + $0xf48] sm:$0xff]
        %v739 = vld [vmem:[%s187 + $0xf50] sm:$0xff]
        %v740 = vld [vmem:[%s187 + $0xf58] sm:$0xff]
        %v741 = vld [vmem:[%s187 + $0xf60] sm:$0xff]
        %v742 = vld [vmem:[%s187 + $0xf68] sm:$0xff]
        %v743 = vld [vmem:[%s187 + $0xf70] sm:$0xff]
        %v744 = vld [vmem:[%s187 + $0xf78] sm:$0xff]
        %v745 = vld [vmem:[%s187 + $0xf80] sm:$0xff]
        %v746 = vld [vmem:[%s187 + $0xf88] sm:$0xff]
        %v747 = vld [vmem:[%s187 + $0xf90] sm:$0xff]
        %v748 = vld [vmem:[%s187 + $0xf98] sm:$0xff]
        %v749 = vld [vmem:[%s187 + $0xfa0] sm:$0xff]
        %v750 = vld [vmem:[%s187 + $0xfa8] sm:$0xff]
        %v751 = vld [vmem:[%s187 + $0xfb0] sm:$0xff]
        %v752 = vld [vmem:[%s187 + $0xfb8] sm:$0xff]
        %v753 = vld [vmem:[%s187 + $0xfc0] sm:$0xff]
        %v754 = vld [vmem:[%s187 + $0xfc8] sm:$0xff]
        %v755 = vld [vmem:[%s187 + $0xfd0] sm:$0xff]
        %v756 = vld [vmem:[%s187 + $0xfd8] sm:$0xff]
        %v757 = vld [vmem:[%s187 + $0xfe0] sm:$0xff]
        %v758 = vld [vmem:[%s187 + $0xfe8] sm:$0xff]
        %v759 = vld [vmem:[%s187 + $0xff0] sm:$0xff]
        %v760 = vld [vmem:[%s187 + $0xff8] sm:$0xff]
        %v761 = vld [vmem:[%s187 + $0x1000] sm:$0xff]
        %v762 = vld [vmem:[%s187 + $0x1008] sm:$0xff]
        %v763 = vld [vmem:[%s187 + $0x1010] sm:$0xff]
        %v764 = vld [vmem:[%s187 + $0x1018] sm:$0xff]
        %v765 = vld [vmem:[%s187 + $0x1020] sm:$0xff]
        %v766 = vld [vmem:[%s187 + $0x1028] sm:$0xff]
        %v767 = vld [vmem:[%s187 + $0x1030] sm:$0xff]
        %v768 = vld [vmem:[%s187 + $0x1038] sm:$0xff]
        %v769 = vld [vmem:[%s187 + $0x1040] sm:$0xff]
        %v770 = vld [vmem:[%s187 + $0x1048] sm:$0xff]
        %v771 = vld [vmem:[%s187 + $0x1050] sm:$0xff]
        %v772 = vld [vmem:[%s187 + $0x1058] sm:$0xff]
        %v773 = vld [vmem:[%s187 + $0x1060] sm:$0xff]
        %v774 = vld [vmem:[%s187 + $0x1068] sm:$0xff]
        %v775 = vld [vmem:[%s187 + $0x1070] sm:$0xff]
        %v776 = vld [vmem:[%s187 + $0x1078] sm:$0xff]
        %v777 = vld [vmem:[%s187 + $0x1080] sm:$0xff]
        %v778 = vld [vmem:[%s187 + $0x1088] sm:$0xff]
        %v779 = vld [vmem:[%s187 + $0x1090] sm:$0xff]
        %v780 = vld [vmem:[%s187 + $0x1098] sm:$0xff]
        %v781 = vld [vmem:[%s187 + $0x10a0] sm:$0xff]
        %v782 = vld [vmem:[%s187 + $0x10a8] sm:$0xff]
        %v783 = vld [vmem:[%s187 + $0x10b0] sm:$0xff]
        %v784 = vld [vmem:[%s187 + $0x10b8] sm:$0xff]
        %v785 = vld [vmem:[%s187 + $0x10c0] sm:$0xff]
        %v786 = vld [vmem:[%s187 + $0x10c8] sm:$0xff]
        %v787 = vld [vmem:[%s187 + $0x10d0] sm:$0xff]
        %v788 = vld [vmem:[%s187 + $0x10d8] sm:$0xff]
        %v789 = vld [vmem:[%s187 + $0x10e0] sm:$0xff]
        %v790 = vld [vmem:[%s187 + $0x10e8] sm:$0xff]
        %v791 = vld [vmem:[%s187 + $0x10f0] sm:$0xff]
        %v792 = vld [vmem:[%s187 + $0x10f8] sm:$0xff]
        %v793 = vld [vmem:[%s187 + $0x1100] sm:$0xff]
        %v794 = vld [vmem:[%s187 + $0x1108] sm:$0xff]
        %v795 = vld [vmem:[%s187 + $0x1110] sm:$0xff]
        %v796 = vld [vmem:[%s187 + $0x1118] sm:$0xff]
        %v797 = vld [vmem:[%s187 + $0x1120] sm:$0xff]
        %v798 = vld [vmem:[%s187 + $0x1128] sm:$0xff]
        %v799 = vld [vmem:[%s187 + $0x1130] sm:$0xff]
        %v800 = vld [vmem:[%s187 + $0x1138] sm:$0xff]
        %v801 = vld [vmem:[%s187 + $0x1140] sm:$0xff]
        %v802 = vld [vmem:[%s187 + $0x1148] sm:$0xff]
        %v803 = vld [vmem:[%s187 + $0x1150] sm:$0xff]
        %v804 = vld [vmem:[%s187 + $0x1158] sm:$0xff]
        %v805 = vld [vmem:[%s187 + $0x1160] sm:$0xff]
        %v806 = vld [vmem:[%s187 + $0x1168] sm:$0xff]
        %v807 = vld [vmem:[%s187 + $0x1170] sm:$0xff]
        %v808 = vld [vmem:[%s187 + $0x1178] sm:$0xff]
        %v809 = vld [vmem:[%s187 + $0x1180] sm:$0xff]
        %v810 = vld [vmem:[%s187 + $0x1188] sm:$0xff]
        %v811 = vld [vmem:[%s187 + $0x1190] sm:$0xff]
        %v812 = vld [vmem:[%s187 + $0x1198] sm:$0xff]
        %v813 = vld [vmem:[%s187 + $0x11a0] sm:$0xff]
        %v814 = vld [vmem:[%s187 + $0x11a8] sm:$0xff]
        %v815 = vld [vmem:[%s187 + $0x11b0] sm:$0xff]
        %v816 = vld [vmem:[%s187 + $0x11b8] sm:$0xff]
        %v817 = vld [vmem:[%s187 + $0x11c0] sm:$0xff]
        %v818 = vld [vmem:[%s187 + $0x11c8] sm:$0xff]
        %v819 = vld [vmem:[%s187 + $0x11d0] sm:$0xff]
        %v820 = vld [vmem:[%s187 + $0x11d8] sm:$0xff]
        %v821 = vld [vmem:[%s187 + $0x11e0] sm:$0xff]
        %v822 = vld [vmem:[%s187 + $0x11e8] sm:$0xff]
        %v823 = vld [vmem:[%s187 + $0x11f0] sm:$0xff]
        %v824 = vld [vmem:[%s187 + $0x11f8] sm:$0xff]
        %v825 = vld [vmem:[%s187 + $0x1200] sm:$0xff]
        %v826 = vld [vmem:[%s187 + $0x1208] sm:$0xff]
        %v827 = vld [vmem:[%s187 + $0x1210] sm:$0xff]
        %v828 = vld [vmem:[%s187 + $0x1218] sm:$0xff]
        %v829 = vld [vmem:[%s187 + $0x1220] sm:$0xff]
        %v830 = vld [vmem:[%s187 + $0x1228] sm:$0xff]
        %v831 = vld [vmem:[%s187 + $0x1230] sm:$0xff]
        %v832 = vld [vmem:[%s187 + $0x1238] sm:$0xff]
        %v833 = vld [vmem:[%s187 + $0x1240] sm:$0xff]
        %v834 = vld [vmem:[%s187 + $0x1248] sm:$0xff]
        %v835 = vld [vmem:[%s187 + $0x1250] sm:$0xff]
        %v836 = vld [vmem:[%s187 + $0x1258] sm:$0xff]
        %v837 = vld [vmem:[%s187 + $0x1260] sm:$0xff]
        %v838 = vld [vmem:[%s187 + $0x1268] sm:$0xff]
        %v839 = vld [vmem:[%s187 + $0x1270] sm:$0xff]
        %v840 = vld [vmem:[%s187 + $0x1278] sm:$0xff]
        %v841 = vld [vmem:[%s187 + $0x1280] sm:$0xff]
        %v842 = vld [vmem:[%s187 + $0x1288] sm:$0xff]
        %v843 = vld [vmem:[%s187 + $0x1290] sm:$0xff]
        %v844 = vld [vmem:[%s187 + $0x1298] sm:$0xff]
        %v845 = vld [vmem:[%s187 + $0x12a0] sm:$0xff]
        %v846 = vld [vmem:[%s187 + $0x12a8] sm:$0xff]
        %v847 = vld [vmem:[%s187 + $0x12b0] sm:$0xff]
        %v848 = vld [vmem:[%s187 + $0x12b8] sm:$0xff]
        %v849 = vld [vmem:[%s187 + $0x12c0] sm:$0xff]
        %v850 = vld [vmem:[%s187 + $0x12c8] sm:$0xff]
        %v851 = vld [vmem:[%s187 + $0x12d0] sm:$0xff]
        %v852 = vld [vmem:[%s187 + $0x12d8] sm:$0xff]
        %v853 = vld [vmem:[%s187 + $0x12e0] sm:$0xff]
        %v854 = vld [vmem:[%s187 + $0x12e8] sm:$0xff]
        %v855 = vld [vmem:[%s187 + $0x12f0] sm:$0xff]
        %v856 = vld [vmem:[%s187 + $0x12f8] sm:$0xff]
        %v857 = vld [vmem:[%s187 + $0x1300] sm:$0xff]
        %v858 = vld [vmem:[%s187 + $0x1308] sm:$0xff]
        %v859 = vld [vmem:[%s187 + $0x1310] sm:$0xff]
        %v860 = vld [vmem:[%s187 + $0x1318] sm:$0xff]
        %v861 = vld [vmem:[%s187 + $0x1320] sm:$0xff]
        %v862 = vld [vmem:[%s187 + $0x1328] sm:$0xff]
        %v863 = vld [vmem:[%s187 + $0x1330] sm:$0xff]
        %v864 = vld [vmem:[%s187 + $0x1338] sm:$0xff]
        %v865 = vld [vmem:[%s187 + $0x1340] sm:$0xff]
        %v866 = vld [vmem:[%s187 + $0x1348] sm:$0xff]
        %v867 = vld [vmem:[%s187 + $0x1350] sm:$0xff]
        %v868 = vld [vmem:[%s187 + $0x1358] sm:$0xff]
        %v869 = vld [vmem:[%s187 + $0x1360] sm:$0xff]
        %v870 = vld [vmem:[%s187 + $0x1368] sm:$0xff]
        %v871 = vld [vmem:[%s187 + $0x1370] sm:$0xff]
        %v872 = vld [vmem:[%s187 + $0x1378] sm:$0xff]
        %v873 = vld [vmem:[%s187 + $0x1380] sm:$0xff]
        %v874 = vld [vmem:[%s187 + $0x1388] sm:$0xff]
        %v875 = vld [vmem:[%s187 + $0x1390] sm:$0xff]
        %v876 = vld [vmem:[%s187 + $0x1398] sm:$0xff]
        %v877 = vld [vmem:[%s187 + $0x13a0] sm:$0xff]
        %v878 = vld [vmem:[%s187 + $0x13a8] sm:$0xff]
        %v879 = vld [vmem:[%s187 + $0x13b0] sm:$0xff]
        %v880 = vld [vmem:[%s187 + $0x13b8] sm:$0xff]
        %v881 = vld [vmem:[%s187 + $0x13c0] sm:$0xff]
        %v882 = vld [vmem:[%s187 + $0x13c8] sm:$0xff]
        %v883 = vld [vmem:[%s187 + $0x13d0] sm:$0xff]
        %v884 = vld [vmem:[%s187 + $0x13d8] sm:$0xff]
        %v885 = vld [vmem:[%s187 + $0x13e0] sm:$0xff]
        %v886 = vld [vmem:[%s187 + $0x13e8] sm:$0xff]
        %v887 = vld [vmem:[%s187 + $0x13f0] sm:$0xff]
        %v888 = vld [vmem:[%s187 + $0x13f8] sm:$0xff]
        %v889 = vld [vmem:[%s187 + $0x1400] sm:$0xff]
        %v890 = vld [vmem:[%s187 + $0x1408] sm:$0xff]
        %v891 = vld [vmem:[%s187 + $0x1410] sm:$0xff]
        %v892 = vld [vmem:[%s187 + $0x1418] sm:$0xff]
        %v893 = vld [vmem:[%s187 + $0x1420] sm:$0xff]
        %v894 = vld [vmem:[%s187 + $0x1428] sm:$0xff]
        %v895 = vld [vmem:[%s187 + $0x1430] sm:$0xff]
        %v896 = vld [vmem:[%s187 + $0x1438] sm:$0xff]
        %v897 = vld [vmem:[%s187 + $0x1440] sm:$0xff]
        %v898 = vld [vmem:[%s187 + $0x1448] sm:$0xff]
        %v899 = vld [vmem:[%s187 + $0x1450] sm:$0xff]
        %v900 = vld [vmem:[%s187 + $0x1458] sm:$0xff]
        %v901 = vld [vmem:[%s187 + $0x1460] sm:$0xff]
        %v902 = vld [vmem:[%s187 + $0x1468] sm:$0xff]
        %v903 = vld [vmem:[%s187 + $0x1470] sm:$0xff]
        %v904 = vld [vmem:[%s187 + $0x1478] sm:$0xff]
        %v905 = vld [vmem:[%s187 + $0x1480] sm:$0xff]
        %v906 = vld [vmem:[%s187 + $0x1488] sm:$0xff]
        %v907 = vld [vmem:[%s187 + $0x1490] sm:$0xff]
        %v908 = vld [vmem:[%s187 + $0x1498] sm:$0xff]
        %v909 = vld [vmem:[%s187 + $0x14a0] sm:$0xff]
        %v910 = vld [vmem:[%s187 + $0x14a8] sm:$0xff]
        %v911 = vld [vmem:[%s187 + $0x14b0] sm:$0xff]
        %v912 = vld [vmem:[%s187 + $0x14b8] sm:$0xff]
        %v913 = vld [vmem:[%s187 + $0x14c0] sm:$0xff]
        %v914 = vld [vmem:[%s187 + $0x14c8] sm:$0xff]
        %v915 = vld [vmem:[%s187 + $0x14d0] sm:$0xff]
        %v916 = vld [vmem:[%s187 + $0x14d8] sm:$0xff]
        %v917 = vld [vmem:[%s187 + $0x14e0] sm:$0xff]
        %v918 = vld [vmem:[%s187 + $0x14e8] sm:$0xff]
        %v919 = vld [vmem:[%s187 + $0x14f0] sm:$0xff]
        %v920 = vld [vmem:[%s187 + $0x14f8] sm:$0xff]
        %v921 = vld [vmem:[%s187 + $0x1500] sm:$0xff]
        %v922 = vld [vmem:[%s187 + $0x1508] sm:$0xff]
        %v923 = vld [vmem:[%s187 + $0x1510] sm:$0xff]
        %v924 = vld [vmem:[%s187 + $0x1518] sm:$0xff]
        %v925 = vld [vmem:[%s187 + $0x1520] sm:$0xff]
        %v926 = vld [vmem:[%s187 + $0x1528] sm:$0xff]
        %v927 = vld [vmem:[%s187 + $0x1530] sm:$0xff]
        %v928 = vld [vmem:[%s187 + $0x1538] sm:$0xff]
        %v929 = vld [vmem:[%s187 + $0x1540] sm:$0xff]
        %v930 = vld [vmem:[%s187 + $0x1548] sm:$0xff]
        %v931 = vld [vmem:[%s187 + $0x1550] sm:$0xff]
        %v932 = vld [vmem:[%s187 + $0x1558] sm:$0xff]
        %v933 = vld [vmem:[%s187 + $0x1560] sm:$0xff]
        %v934 = vld [vmem:[%s187 + $0x1568] sm:$0xff]
        %v935 = vld [vmem:[%s187 + $0x1570] sm:$0xff]
        %v936 = vld [vmem:[%s187 + $0x1578] sm:$0xff]
        %v937 = vld [vmem:[%s187 + $0x1580] sm:$0xff]
        %v938 = vld [vmem:[%s187 + $0x1588] sm:$0xff]
        %v939 = vld [vmem:[%s187 + $0x1590] sm:$0xff]
        %v940 = vld [vmem:[%s187 + $0x1598] sm:$0xff]
        %v941 = vld [vmem:[%s187 + $0x15a0] sm:$0xff]
        %v942 = vld [vmem:[%s187 + $0x15a8] sm:$0xff]
        %v943 = vld [vmem:[%s187 + $0x15b0] sm:$0xff]
        %v944 = vld [vmem:[%s187 + $0x15b8] sm:$0xff]
        %v945 = vld [vmem:[%s187 + $0x15c0] sm:$0xff]
        %v946 = vld [vmem:[%s187 + $0x15c8] sm:$0xff]
        %v947 = vld [vmem:[%s187 + $0x15d0] sm:$0xff]
        %v948 = vld [vmem:[%s187 + $0x15d8] sm:$0xff]
        %v949 = vld [vmem:[%s187 + $0x15e0] sm:$0xff]
        %v950 = vld [vmem:[%s187 + $0x15e8] sm:$0xff]
        %v951 = vld [vmem:[%s187 + $0x15f0] sm:$0xff]
        %v952 = vld [vmem:[%s187 + $0x15f8] sm:$0xff]
        %v953 = vld [vmem:[%s187 + $0x1600] sm:$0xff]
        %v954 = vld [vmem:[%s187 + $0x1608] sm:$0xff]
        %v955 = vld [vmem:[%s187 + $0x1610] sm:$0xff]
        %v956 = vld [vmem:[%s187 + $0x1618] sm:$0xff]
        %v957 = vld [vmem:[%s187 + $0x1620] sm:$0xff]
        %v958 = vld [vmem:[%s187 + $0x1628] sm:$0xff]
        %v959 = vld [vmem:[%s187 + $0x1630] sm:$0xff]
        %v960 = vld [vmem:[%s187 + $0x1638] sm:$0xff]
        %v961 = vld [vmem:[%s187 + $0x1640] sm:$0xff]
        %v962 = vld [vmem:[%s187 + $0x1648] sm:$0xff]
        %v963 = vld [vmem:[%s187 + $0x1650] sm:$0xff]
        %v964 = vld [vmem:[%s187 + $0x1658] sm:$0xff]
        %v965 = vld [vmem:[%s187 + $0x1660] sm:$0xff]
        %v966 = vld [vmem:[%s187 + $0x1668] sm:$0xff]
        %v967 = vld [vmem:[%s187 + $0x1670] sm:$0xff]
        %v968 = vld [vmem:[%s187 + $0x1678] sm:$0xff]
        %v969 = vld [vmem:[%s187 + $0x1680] sm:$0xff]
        %v970 = vld [vmem:[%s187 + $0x1688] sm:$0xff]
        %v971 = vld [vmem:[%s187 + $0x1690] sm:$0xff]
        %v972 = vld [vmem:[%s187 + $0x1698] sm:$0xff]
        %v973 = vld [vmem:[%s187 + $0x16a0] sm:$0xff]
        %v974 = vld [vmem:[%s187 + $0x16a8] sm:$0xff]
        %v975 = vld [vmem:[%s187 + $0x16b0] sm:$0xff]
        %v976 = vld [vmem:[%s187 + $0x16b8] sm:$0xff]
        %v977 = vld [vmem:[%s187 + $0x16c0] sm:$0xff]
        %v978 = vld [vmem:[%s187 + $0x16c8] sm:$0xff]
        %v979 = vld [vmem:[%s187 + $0x16d0] sm:$0xff]
        %v980 = vld [vmem:[%s187 + $0x16d8] sm:$0xff]
        %v981 = vld [vmem:[%s187 + $0x16e0] sm:$0xff]
        %v982 = vld [vmem:[%s187 + $0x16e8] sm:$0xff]
        %v983 = vld [vmem:[%s187 + $0x16f0] sm:$0xff]
        %v984 = vld [vmem:[%s187 + $0x16f8] sm:$0xff]
        %v985 = vld [vmem:[%s187 + $0x1700] sm:$0xff]
        %v986 = vld [vmem:[%s187 + $0x1708] sm:$0xff]
        %v987 = vld [vmem:[%s187 + $0x1710] sm:$0xff]
        %v988 = vld [vmem:[%s187 + $0x1718] sm:$0xff]
        %v989 = vld [vmem:[%s187 + $0x1720] sm:$0xff]
        %v990 = vld [vmem:[%s187 + $0x1728] sm:$0xff]
        %v991 = vld [vmem:[%s187 + $0x1730] sm:$0xff]
        %v992 = vld [vmem:[%s187 + $0x1738] sm:$0xff]
        %v993 = vld [vmem:[%s187 + $0x1740] sm:$0xff]
        %v994 = vld [vmem:[%s187 + $0x1748] sm:$0xff]
        %v995 = vld [vmem:[%s187 + $0x1750] sm:$0xff]
        %v996 = vld [vmem:[%s187 + $0x1758] sm:$0xff]
        %v997 = vld [vmem:[%s187 + $0x1760] sm:$0xff]
        %v998 = vld [vmem:[%s187 + $0x1768] sm:$0xff]
        %v999 = vld [vmem:[%s187 + $0x1770] sm:$0xff]
        %v1000 = vld [vmem:[%s187 + $0x1778] sm:$0xff]
        %v1001 = vld [vmem:[%s187 + $0x1780] sm:$0xff]
        %v1002 = vld [vmem:[%s187 + $0x1788] sm:$0xff]
        %v1003 = vld [vmem:[%s187 + $0x1790] sm:$0xff]
        %v1004 = vld [vmem:[%s187 + $0x1798] sm:$0xff]
        %v1005 = vld [vmem:[%s187 + $0x17a0] sm:$0xff]
        %v1006 = vld [vmem:[%s187 + $0x17a8] sm:$0xff]
        %v1007 = vld [vmem:[%s187 + $0x17b0] sm:$0xff]
        %v1008 = vld [vmem:[%s187 + $0x17b8] sm:$0xff]
        %v1009 = vld [vmem:[%s187 + $0x17c0] sm:$0xff]
        %v1010 = vld [vmem:[%s187 + $0x17c8] sm:$0xff]
        %v1011 = vld [vmem:[%s187 + $0x17d0] sm:$0xff]
        %v1012 = vld [vmem:[%s187 + $0x17d8] sm:$0xff]
        %v1013 = vld [vmem:[%s187 + $0x17e0] sm:$0xff]
        %v1014 = vld [vmem:[%s187 + $0x17e8] sm:$0xff]
        %v1015 = vld [vmem:[%s187 + $0x17f0] sm:$0xff]
        %v1016 = vld [vmem:[%s187 + $0x17f8] sm:$0xff]
        %v1017 = vld [vmem:[%s187 + $0x1800] sm:$0xff]
        %v1018 = vld [vmem:[%s187 + $0x1808] sm:$0xff]
        %v1019 = vld [vmem:[%s187 + $0x1810] sm:$0xff]
        %v1020 = vld [vmem:[%s187 + $0x1818] sm:$0xff]
        %v1021 = vld [vmem:[%s187 + $0x1820] sm:$0xff]
        %v1022 = vld [vmem:[%s187 + $0x1828] sm:$0xff]
        %v1023 = vld [vmem:[%s187 + $0x1830] sm:$0xff]
        %v1024 = vld [vmem:[%s187 + $0x1838] sm:$0xff]
        %v1025 = vld [vmem:[%s187 + $0x1840] sm:$0xff]
        %v1026 = vld [vmem:[%s187 + $0x1848] sm:$0xff]
        %v1027 = vld [vmem:[%s187 + $0x1850] sm:$0xff]
        %v1028 = vld [vmem:[%s187 + $0x1858] sm:$0xff]
        %v1029 = vld [vmem:[%s187 + $0x1860] sm:$0xff]
        %v1030 = vld [vmem:[%s187 + $0x1868] sm:$0xff]
        %v1031 = vld [vmem:[%s187 + $0x1870] sm:$0xff]
        %v1032 = vld [vmem:[%s187 + $0x1878] sm:$0xff]
        %v1033 = vld [vmem:[%s187 + $0x1880] sm:$0xff]
        %v1034 = vld [vmem:[%s187 + $0x1888] sm:$0xff]
        %v1035 = vld [vmem:[%s187 + $0x1890] sm:$0xff]
        %v1036 = vld [vmem:[%s187 + $0x1898] sm:$0xff]
        %v1037 = vld [vmem:[%s187 + $0x18a0] sm:$0xff]
        %v1038 = vld [vmem:[%s187 + $0x18a8] sm:$0xff]
        %v1039 = vld [vmem:[%s187 + $0x18b0] sm:$0xff]
        %v1040 = vld [vmem:[%s187 + $0x18b8] sm:$0xff]
        %v1041 = vld [vmem:[%s187 + $0x18c0] sm:$0xff]
        %v1042 = vld [vmem:[%s187 + $0x18c8] sm:$0xff]
        %v1043 = vld [vmem:[%s187 + $0x18d0] sm:$0xff]
        %v1044 = vld [vmem:[%s187 + $0x18d8] sm:$0xff]
        %v1045 = vld [vmem:[%s187 + $0x18e0] sm:$0xff]
        %v1046 = vld [vmem:[%s187 + $0x18e8] sm:$0xff]
        %v1047 = vld [vmem:[%s187 + $0x18f0] sm:$0xff]
        %v1048 = vld [vmem:[%s187 + $0x18f8] sm:$0xff]
        %v1049 = vld [vmem:[%s187 + $0x1900] sm:$0xff]
        %v1050 = vld [vmem:[%s187 + $0x1908] sm:$0xff]
        %v1051 = vld [vmem:[%s187 + $0x1910] sm:$0xff]
        %v1052 = vld [vmem:[%s187 + $0x1918] sm:$0xff]
        %v1053 = vld [vmem:[%s187 + $0x1920] sm:$0xff]
        %v1054 = vld [vmem:[%s187 + $0x1928] sm:$0xff]
        %v1055 = vld [vmem:[%s187 + $0x1930] sm:$0xff]
        %v1056 = vld [vmem:[%s187 + $0x1938] sm:$0xff]
        %v1057 = vld [vmem:[%s187 + $0x1940] sm:$0xff]
        %v1058 = vld [vmem:[%s187 + $0x1948] sm:$0xff]
        %v1059 = vld [vmem:[%s187 + $0x1950] sm:$0xff]
        %v1060 = vld [vmem:[%s187 + $0x1958] sm:$0xff]
        %v1061 = vld [vmem:[%s187 + $0x1960] sm:$0xff]
        %v1062 = vld [vmem:[%s187 + $0x1968] sm:$0xff]
        %v1063 = vld [vmem:[%s187 + $0x1970] sm:$0xff]
        %v1064 = vld [vmem:[%s187 + $0x1978] sm:$0xff]
        %v1065 = vld [vmem:[%s187 + $0x1980] sm:$0xff]
        %v1066 = vld [vmem:[%s187 + $0x1988] sm:$0xff]
        %v1067 = vld [vmem:[%s187 + $0x1990] sm:$0xff]
        %v1068 = vld [vmem:[%s187 + $0x1998] sm:$0xff]
        %v1069 = vld [vmem:[%s187 + $0x19a0] sm:$0xff]
        %v1070 = vld [vmem:[%s187 + $0x19a8] sm:$0xff]
        %v1071 = vld [vmem:[%s187 + $0x19b0] sm:$0xff]
        %v1072 = vld [vmem:[%s187 + $0x19b8] sm:$0xff]
        %v1073 = vld [vmem:[%s187 + $0x19c0] sm:$0xff]
        %v1074 = vld [vmem:[%s187 + $0x19c8] sm:$0xff]
        %v1075 = vld [vmem:[%s187 + $0x19d0] sm:$0xff]
        %v1076 = vld [vmem:[%s187 + $0x19d8] sm:$0xff]
        %v1077 = vld [vmem:[%s187 + $0x19e0] sm:$0xff]
        %v1078 = vld [vmem:[%s187 + $0x19e8] sm:$0xff]
        %v1079 = vld [vmem:[%s187 + $0x19f0] sm:$0xff]
        %v1080 = vld [vmem:[%s187 + $0x19f8] sm:$0xff]
        %v1081 = vld [vmem:[%s187 + $0x1a00] sm:$0xff]
        %v1082 = vld [vmem:[%s187 + $0x1a08] sm:$0xff]
        %v1083 = vld [vmem:[%s187 + $0x1a10] sm:$0xff]
        %v1084 = vld [vmem:[%s187 + $0x1a18] sm:$0xff]
        %v1085 = vld [vmem:[%s187 + $0x1a20] sm:$0xff]
        %v1086 = vld [vmem:[%s187 + $0x1a28] sm:$0xff]
        %v1087 = vld [vmem:[%s187 + $0x1a30] sm:$0xff]
        %v1088 = vld [vmem:[%s187 + $0x1a38] sm:$0xff]
        %v1089 = vld [vmem:[%s187 + $0x1a40] sm:$0xff]
        %v1090 = vld [vmem:[%s187 + $0x1a48] sm:$0xff]
        %v1091 = vld [vmem:[%s187 + $0x1a50] sm:$0xff]
        %v1092 = vld [vmem:[%s187 + $0x1a58] sm:$0xff]
        %v1093 = vld [vmem:[%s187 + $0x1a60] sm:$0xff]
        %v1094 = vld [vmem:[%s187 + $0x1a68] sm:$0xff]
        %v1095 = vld [vmem:[%s187 + $0x1a70] sm:$0xff]
        %v1096 = vld [vmem:[%s187 + $0x1a78] sm:$0xff]
        %v1097 = vld [vmem:[%s187 + $0x1a80] sm:$0xff]
        %v1098 = vld [vmem:[%s187 + $0x1a88] sm:$0xff]
        %v1099 = vld [vmem:[%s187 + $0x1a90] sm:$0xff]
        %v1100 = vld [vmem:[%s187 + $0x1a98] sm:$0xff]
        %v1101 = vld [vmem:[%s187 + $0x1aa0] sm:$0xff]
        %v1102 = vld [vmem:[%s187 + $0x1aa8] sm:$0xff]
        %v1103 = vld [vmem:[%s187 + $0x1ab0] sm:$0xff]
        %v1104 = vld [vmem:[%s187 + $0x1ab8] sm:$0xff]
        %v1105 = vld [vmem:[%s187 + $0x1ac0] sm:$0xff]
        %v1106 = vld [vmem:[%s187 + $0x1ac8] sm:$0xff]
        %v1107 = vld [vmem:[%s187 + $0x1ad0] sm:$0xff]
        %v1108 = vld [vmem:[%s187 + $0x1ad8] sm:$0xff]
        %v1109 = vld [vmem:[%s187 + $0x1ae0] sm:$0xff]
        %v1110 = vld [vmem:[%s187 + $0x1ae8] sm:$0xff]
        %v1111 = vld [vmem:[%s187 + $0x1af0] sm:$0xff]
        %v1112 = vld [vmem:[%s187 + $0x1af8] sm:$0xff]
        %v1113 = vld [vmem:[%s187 + $0x1b00] sm:$0xff]
        %v1114 = vld [vmem:[%s187 + $0x1b08] sm:$0xff]
        %v1115 = vld [vmem:[%s187 + $0x1b10] sm:$0xff]
        %v1116 = vld [vmem:[%s187 + $0x1b18] sm:$0xff]
        %v1117 = vld [vmem:[%s187 + $0x1b20] sm:$0xff]
        %v1118 = vld [vmem:[%s187 + $0x1b28] sm:$0xff]
        %v1119 = vld [vmem:[%s187 + $0x1b30] sm:$0xff]
        %v1120 = vld [vmem:[%s187 + $0x1b38] sm:$0xff]
        %v1121 = vld [vmem:[%s187 + $0x1b40] sm:$0xff]
        %v1122 = vld [vmem:[%s187 + $0x1b48] sm:$0xff]
        %v1123 = vld [vmem:[%s187 + $0x1b50] sm:$0xff]
        %v1124 = vld [vmem:[%s187 + $0x1b58] sm:$0xff]
        %v1125 = vld [vmem:[%s187 + $0x1b60] sm:$0xff]
        %v1126 = vld [vmem:[%s187 + $0x1b68] sm:$0xff]
        %v1127 = vld [vmem:[%s187 + $0x1b70] sm:$0xff]
        %v1128 = vld [vmem:[%s187 + $0x1b78] sm:$0xff]
        %v1129 = vld [vmem:[%s187 + $0x1b80] sm:$0xff]
        %v1130 = vld [vmem:[%s187 + $0x1b88] sm:$0xff]
        %v1131 = vld [vmem:[%s187 + $0x1b90] sm:$0xff]
        %v1132 = vld [vmem:[%s187 + $0x1b98] sm:$0xff]
        %v1133 = vld [vmem:[%s187 + $0x1ba0] sm:$0xff]
        %v1134 = vld [vmem:[%s187 + $0x1ba8] sm:$0xff]
        %v1135 = vld [vmem:[%s187 + $0x1bb0] sm:$0xff]
        %v1136 = vld [vmem:[%s187 + $0x1bb8] sm:$0xff]
        %v1137 = vld [vmem:[%s187 + $0x1bc0] sm:$0xff]
        %v1138 = vld [vmem:[%s187 + $0x1bc8] sm:$0xff]
        %v1139 = vld [vmem:[%s187 + $0x1bd0] sm:$0xff]
        %v1140 = vld [vmem:[%s187 + $0x1bd8] sm:$0xff]
        %v1141 = vld [vmem:[%s187 + $0x1be0] sm:$0xff]
        %v1142 = vld [vmem:[%s187 + $0x1be8] sm:$0xff]
        %v1143 = vld [vmem:[%s187 + $0x1bf0] sm:$0xff]
        %v1144 = vld [vmem:[%s187 + $0x1bf8] sm:$0xff]
        %v1145 = vld [vmem:[%s187 + $0x1c00] sm:$0xff]
        %v1146 = vld [vmem:[%s187 + $0x1c08] sm:$0xff]
        %v1147 = vld [vmem:[%s187 + $0x1c10] sm:$0xff]
        %v1148 = vld [vmem:[%s187 + $0x1c18] sm:$0xff]
        %v1149 = vld [vmem:[%s187 + $0x1c20] sm:$0xff]
        %v1150 = vld [vmem:[%s187 + $0x1c28] sm:$0xff]
        %v1151 = vld [vmem:[%s187 + $0x1c30] sm:$0xff]
        %v1152 = vld [vmem:[%s187 + $0x1c38] sm:$0xff]
        %v1153 = vld [vmem:[%s187 + $0x1c40] sm:$0xff]
        %v1154 = vld [vmem:[%s187 + $0x1c48] sm:$0xff]
        %v1155 = vld [vmem:[%s187 + $0x1c50] sm:$0xff]
        %v1156 = vld [vmem:[%s187 + $0x1c58] sm:$0xff]
        %v1157 = vld [vmem:[%s187 + $0x1c60] sm:$0xff]
        %v1158 = vld [vmem:[%s187 + $0x1c68] sm:$0xff]
        %v1159 = vld [vmem:[%s187 + $0x1c70] sm:$0xff]
        %v1160 = vld [vmem:[%s187 + $0x1c78] sm:$0xff]
        %v1161 = vld [vmem:[%s187 + $0x1c80] sm:$0xff]
        %v1162 = vld [vmem:[%s187 + $0x1c88] sm:$0xff]
        %v1163 = vld [vmem:[%s187 + $0x1c90] sm:$0xff]
        %v1164 = vld [vmem:[%s187 + $0x1c98] sm:$0xff]
        %v1165 = vld [vmem:[%s187 + $0x1ca0] sm:$0xff]
        %v1166 = vld [vmem:[%s187 + $0x1ca8] sm:$0xff]
        %v1167 = vld [vmem:[%s187 + $0x1cb0] sm:$0xff]
        %v1168 = vld [vmem:[%s187 + $0x1cb8] sm:$0xff]
        %v1169 = vld [vmem:[%s187 + $0x1cc0] sm:$0xff]
        %v1170 = vld [vmem:[%s187 + $0x1cc8] sm:$0xff]
        %v1171 = vld [vmem:[%s187 + $0x1cd0] sm:$0xff]
        %v1172 = vld [vmem:[%s187 + $0x1cd8] sm:$0xff]
        %v1173 = vld [vmem:[%s187 + $0x1ce0] sm:$0xff]
        %v1174 = vld [vmem:[%s187 + $0x1ce8] sm:$0xff]
        %v1175 = vld [vmem:[%s187 + $0x1cf0] sm:$0xff]
        %v1176 = vld [vmem:[%s187 + $0x1cf8] sm:$0xff]
        %v1177 = vld [vmem:[%s187 + $0x1d00] sm:$0xff]
        %v1178 = vld [vmem:[%s187 + $0x1d08] sm:$0xff]
        %v1179 = vld [vmem:[%s187 + $0x1d10] sm:$0xff]
        %v1180 = vld [vmem:[%s187 + $0x1d18] sm:$0xff]
        %v1181 = vld [vmem:[%s187 + $0x1d20] sm:$0xff]
        %v1182 = vld [vmem:[%s187 + $0x1d28] sm:$0xff]
        %v1183 = vld [vmem:[%s187 + $0x1d30] sm:$0xff]
        %v1184 = vld [vmem:[%s187 + $0x1d38] sm:$0xff]
        %v1185 = vld [vmem:[%s187 + $0x1d40] sm:$0xff]
        %v1186 = vld [vmem:[%s187 + $0x1d48] sm:$0xff]
        %v1187 = vld [vmem:[%s187 + $0x1d50] sm:$0xff]
        %v1188 = vld [vmem:[%s187 + $0x1d58] sm:$0xff]
        %v1189 = vld [vmem:[%s187 + $0x1d60] sm:$0xff]
        %v1190 = vld [vmem:[%s187 + $0x1d68] sm:$0xff]
        %v1191 = vld [vmem:[%s187 + $0x1d70] sm:$0xff]
        %v1192 = vld [vmem:[%s187 + $0x1d78] sm:$0xff]
        %v1193 = vld [vmem:[%s187 + $0x1d80] sm:$0xff]
        %v1194 = vld [vmem:[%s187 + $0x1d88] sm:$0xff]
        %v1195 = vld [vmem:[%s187 + $0x1d90] sm:$0xff]
        %v1196 = vld [vmem:[%s187 + $0x1d98] sm:$0xff]
        %v1197 = vld [vmem:[%s187 + $0x1da0] sm:$0xff]
        %v1198 = vld [vmem:[%s187 + $0x1da8] sm:$0xff]
        %v1199 = vld [vmem:[%s187 + $0x1db0] sm:$0xff]
        %v1200 = vld [vmem:[%s187 + $0x1db8] sm:$0xff]
        %v1201 = vld [vmem:[%s196] sm:$0xff]
        %v1202 = vld [vmem:[%s196 + $0x8] sm:$0xff]
        %v1205 = vlaneseq
        %v1206 = vshrl.u32 %v1205, 7
        %v1207 = vsub.s32 0, %v1206
        %v1208 = vrot.slane %v1201, %v1207
        %v1209 = vlaneseq
        %v1210 = vshrl.u32 %v1209, 7
        %v1211 = vsub.s32 1, %v1210
        %v1212 = vrot.slane %v1201, %v1211
        %v1213 = vlaneseq
        %v1214 = vshrl.u32 %v1213, 7
        %v1215 = vsub.s32 2, %v1214
        %v1216 = vrot.slane %v1201, %v1215
        %v1217 = vlaneseq
        %v1218 = vshrl.u32 %v1217, 7
        %v1219 = vsub.s32 3, %v1218
        %v1220 = vrot.slane %v1201, %v1219
        %v1221 = vlaneseq
        %v1222 = vshrl.u32 %v1221, 7
        %v1223 = vsub.s32 4, %v1222
        %v1224 = vrot.slane %v1201, %v1223
        %v1225 = vlaneseq
        %v1226 = vshrl.u32 %v1225, 7
        %v1227 = vsub.s32 5, %v1226
        %v1228 = vrot.slane %v1201, %v1227
        %v1229 = vlaneseq
        %v1230 = vshrl.u32 %v1229, 7
        %v1231 = vsub.s32 6, %v1230
        %v1232 = vrot.slane %v1201, %v1231
        %v1233 = vlaneseq
        %v1234 = vshrl.u32 %v1233, 7
        %v1235 = vsub.s32 7, %v1234
        %v1236 = vrot.slane %v1201, %v1235
        %v1237 = vlaneseq
        %v1238 = vshrl.u32 %v1237, 7
        %v1239 = vsub.s32 0, %v1238
        %v1240 = vrot.slane %v1202, %v1239
        %v1241 = vlaneseq
        %v1242 = vshrl.u32 %v1241, 7
        %v1243 = vsub.s32 1, %v1242
        %v1244 = vrot.slane %v1202, %v1243
        %v1245 = vlaneseq
        %v1246 = vshrl.u32 %v1245, 7
        %v1247 = vsub.s32 2, %v1246
        %v1248 = vrot.slane %v1202, %v1247
        %v1249 = vlaneseq
        %v1250 = vshrl.u32 %v1249, 7
        %v1251 = vsub.s32 3, %v1250
        %v1252 = vrot.slane %v1202, %v1251
        %v1253 = vlaneseq
        %v1254 = vshrl.u32 %v1253, 7
        %v1255 = vsub.s32 4, %v1254
        %v1256 = vrot.slane %v1202, %v1255
        %v1257 = vlaneseq
        %v1258 = vshrl.u32 %v1257, 7
        %v1259 = vsub.s32 5, %v1258
        %v1260 = vrot.slane %v1202, %v1259
        %v1261 = vlaneseq
        %v1262 = vshrl.u32 %v1261, 7
        %v1263 = vsub.s32 6, %v1262
        %v1264 = vrot.slane %v1202, %v1263
        %v1265 = vlaneseq
        %v1266 = vshrl.u32 %v1265, 7
        %v1267 = vsub.s32 7, %v1266
        %v1268 = vrot.slane %v1202, %v1267
        %v2237 = vunpack.c.l.b16 %v249
        %v2238 = vunpack.c.h.b16 %v249
        %v2239 = vunpack.c.l.b16 %v250
        %v2240 = vunpack.c.h.b16 %v250
        %v2241 = vunpack.c.l.b16 %v251
        %v2242 = vunpack.c.h.b16 %v251
        %v2243 = vunpack.c.l.b16 %v252
        %v2244 = vunpack.c.h.b16 %v252
        %v2245 = vunpack.c.l.b16 %v253
        %v2246 = vunpack.c.h.b16 %v253
        %v2247 = vunpack.c.l.b16 %v254
        %v2248 = vunpack.c.h.b16 %v254
        %v2249 = vunpack.c.l.b16 %v255
        %v2250 = vunpack.c.h.b16 %v255
        %v2251 = vunpack.c.l.b16 %v256
        %v2252 = vunpack.c.h.b16 %v256
        %v2253 = vunpack.c.l.b16 %v257
        %v2254 = vunpack.c.h.b16 %v257
        %v2255 = vunpack.c.l.b16 %v258
        %v2256 = vunpack.c.h.b16 %v258
        %v2257 = vunpack.c.l.b16 %v259
        %v2258 = vunpack.c.h.b16 %v259
        %v2259 = vunpack.c.l.b16 %v260
        %v2260 = vunpack.c.h.b16 %v260
        %v2261 = vunpack.c.l.b16 %v261
        %v2262 = vunpack.c.h.b16 %v261
        %v2263 = vunpack.c.l.b16 %v262
        %v2264 = vunpack.c.h.b16 %v262
        %v2265 = vunpack.c.l.b16 %v263
        %v2266 = vunpack.c.h.b16 %v263
        %v2267 = vunpack.c.l.b16 %v264
        %v2268 = vunpack.c.h.b16 %v264
        %v2269 = vunpack.c.l.b16 %v265
        %v2270 = vunpack.c.h.b16 %v265
        %v2271 = vunpack.c.l.b16 %v266
        %v2272 = vunpack.c.h.b16 %v266
        %v2273 = vunpack.c.l.b16 %v267
        %v2274 = vunpack.c.h.b16 %v267
        %v2275 = vunpack.c.l.b16 %v268
        %v2276 = vunpack.c.h.b16 %v268
        %v2277 = vunpack.c.l.b16 %v269
        %v2278 = vunpack.c.h.b16 %v269
        %v2279 = vunpack.c.l.b16 %v270
        %v2280 = vunpack.c.h.b16 %v270
        %v2281 = vunpack.c.l.b16 %v271
        %v2282 = vunpack.c.h.b16 %v271
        %v2283 = vunpack.c.l.b16 %v272
        %v2284 = vunpack.c.h.b16 %v272
        %v2285 = vunpack.c.l.b16 %v273
        %v2286 = vunpack.c.h.b16 %v273
        %v2287 = vunpack.c.l.b16 %v274
        %v2288 = vunpack.c.h.b16 %v274
        %v2289 = vunpack.c.l.b16 %v275
        %v2290 = vunpack.c.h.b16 %v275
        %v2291 = vunpack.c.l.b16 %v276
        %v2292 = vunpack.c.h.b16 %v276
        %v2293 = vunpack.c.l.b16 %v277
        %v2294 = vunpack.c.h.b16 %v277
        %v2295 = vunpack.c.l.b16 %v278
        %v2296 = vunpack.c.h.b16 %v278
        %v2297 = vunpack.c.l.b16 %v279
        %v2298 = vunpack.c.h.b16 %v279
        %v2299 = vunpack.c.l.b16 %v280
        %v2300 = vunpack.c.h.b16 %v280
        %v2301 = vunpack.c.l.b16 %v281
        %v2302 = vunpack.c.h.b16 %v281
        %v2303 = vunpack.c.l.b16 %v282
        %v2304 = vunpack.c.h.b16 %v282
        %v2305 = vunpack.c.l.b16 %v283
        %v2306 = vunpack.c.h.b16 %v283
        %v2307 = vunpack.c.l.b16 %v284
        %v2308 = vunpack.c.h.b16 %v284
        %v2309 = vunpack.c.l.b16 %v285
        %v2310 = vunpack.c.h.b16 %v285
        %v2311 = vunpack.c.l.b16 %v286
        %v2312 = vunpack.c.h.b16 %v286
        %v2313 = vunpack.c.l.b16 %v287
        %v2314 = vunpack.c.h.b16 %v287
        %v2315 = vunpack.c.l.b16 %v288
        %v2316 = vunpack.c.h.b16 %v288
        %v2317 = vunpack.c.l.b16 %v289
        %v2318 = vunpack.c.h.b16 %v289
        %v2319 = vunpack.c.l.b16 %v290
        %v2320 = vunpack.c.h.b16 %v290
        %v2321 = vunpack.c.l.b16 %v291
        %v2322 = vunpack.c.h.b16 %v291
        %v2323 = vunpack.c.l.b16 %v292
        %v2324 = vunpack.c.h.b16 %v292
        %v2325 = vunpack.c.l.b16 %v293
        %v2326 = vunpack.c.h.b16 %v293
        %v2327 = vunpack.c.l.b16 %v294
        %v2328 = vunpack.c.h.b16 %v294
        %v2329 = vunpack.c.l.b16 %v295
        %v2330 = vunpack.c.h.b16 %v295
        %v2331 = vunpack.c.l.b16 %v296
        %v2332 = vunpack.c.h.b16 %v296
        %v2333 = vunpack.c.l.b16 %v297
        %v2334 = vunpack.c.h.b16 %v297
        %v2335 = vunpack.c.l.b16 %v298
        %v2336 = vunpack.c.h.b16 %v298
        %v2337 = vunpack.c.l.b16 %v299
        %v2338 = vunpack.c.h.b16 %v299
        %v2339 = vunpack.c.l.b16 %v300
        %v2340 = vunpack.c.h.b16 %v300
        %v2341 = vunpack.c.l.b16 %v301
        %v2342 = vunpack.c.h.b16 %v301
        %v2343 = vunpack.c.l.b16 %v302
        %v2344 = vunpack.c.h.b16 %v302
        %v2345 = vunpack.c.l.b16 %v303
        %v2346 = vunpack.c.h.b16 %v303
        %v2347 = vunpack.c.l.b16 %v304
        %v2348 = vunpack.c.h.b16 %v304
        %v2349 = vunpack.c.l.b16 %v305
        %v2350 = vunpack.c.h.b16 %v305
        %v2351 = vunpack.c.l.b16 %v306
        %v2352 = vunpack.c.h.b16 %v306
        %v2353 = vunpack.c.l.b16 %v307
        %v2354 = vunpack.c.h.b16 %v307
        %v2355 = vunpack.c.l.b16 %v308
        %v2356 = vunpack.c.h.b16 %v308
        %v2357 = vunpack.c.l.b16 %v309
        %v2358 = vunpack.c.h.b16 %v309
        %v2359 = vunpack.c.l.b16 %v310
        %v2360 = vunpack.c.h.b16 %v310
        %v2361 = vunpack.c.l.b16 %v311
        %v2362 = vunpack.c.h.b16 %v311
        %v2363 = vunpack.c.l.b16 %v312
        %v2364 = vunpack.c.h.b16 %v312
        %v2365 = vunpack.c.l.b16 %v313
        %v2366 = vunpack.c.h.b16 %v313
        %v2367 = vunpack.c.l.b16 %v314
        %v2368 = vunpack.c.h.b16 %v314
        %v2369 = vunpack.c.l.b16 %v315
        %v2370 = vunpack.c.h.b16 %v315
        %v2371 = vunpack.c.l.b16 %v316
        %v2372 = vunpack.c.h.b16 %v316
        %v2373 = vunpack.c.l.b16 %v317
        %v2374 = vunpack.c.h.b16 %v317
        %v2375 = vunpack.c.l.b16 %v318
        %v2376 = vunpack.c.h.b16 %v318
        %v2377 = vunpack.c.l.b16 %v319
        %v2378 = vunpack.c.h.b16 %v319
        %v2379 = vunpack.c.l.b16 %v320
        %v2380 = vunpack.c.h.b16 %v320
        %v2381 = vunpack.c.l.b16 %v321
        %v2382 = vunpack.c.h.b16 %v321
        %v2383 = vunpack.c.l.b16 %v322
        %v2384 = vunpack.c.h.b16 %v322
        %v2385 = vunpack.c.l.b16 %v323
        %v2386 = vunpack.c.h.b16 %v323
        %v2387 = vunpack.c.l.b16 %v324
        %v2388 = vunpack.c.h.b16 %v324
        %v2389 = vunpack.c.l.b16 %v325
        %v2390 = vunpack.c.h.b16 %v325
        %v2391 = vunpack.c.l.b16 %v326
        %v2392 = vunpack.c.h.b16 %v326
        %v2393 = vunpack.c.l.b16 %v327
        %v2394 = vunpack.c.h.b16 %v327
        %v2395 = vunpack.c.l.b16 %v328
        %v2396 = vunpack.c.h.b16 %v328
        %v2397 = vunpack.c.l.b16 %v329
        %v2398 = vunpack.c.h.b16 %v329
        %v2399 = vunpack.c.l.b16 %v330
        %v2400 = vunpack.c.h.b16 %v330
        %v2401 = vunpack.c.l.b16 %v331
        %v2402 = vunpack.c.h.b16 %v331
        %v2403 = vunpack.c.l.b16 %v332
        %v2404 = vunpack.c.h.b16 %v332
        %v2405 = vunpack.c.l.b16 %v333
        %v2406 = vunpack.c.h.b16 %v333
        %v2407 = vunpack.c.l.b16 %v334
        %v2408 = vunpack.c.h.b16 %v334
        %v2409 = vunpack.c.l.b16 %v335
        %v2410 = vunpack.c.h.b16 %v335
        %v2411 = vunpack.c.l.b16 %v336
        %v2412 = vunpack.c.h.b16 %v336
        %v2413 = vunpack.c.l.b16 %v337
        %v2414 = vunpack.c.h.b16 %v337
        %v2415 = vunpack.c.l.b16 %v338
        %v2416 = vunpack.c.h.b16 %v338
        %v2417 = vunpack.c.l.b16 %v339
        %v2418 = vunpack.c.h.b16 %v339
        %v2419 = vunpack.c.l.b16 %v340
        %v2420 = vunpack.c.h.b16 %v340
        %v2421 = vunpack.c.l.b16 %v341
        %v2422 = vunpack.c.h.b16 %v341
        %v2423 = vunpack.c.l.b16 %v342
        %v2424 = vunpack.c.h.b16 %v342
        %v2425 = vunpack.c.l.b16 %v343
        %v2426 = vunpack.c.h.b16 %v343
        %v2427 = vunpack.c.l.b16 %v344
        %v2428 = vunpack.c.h.b16 %v344
        %v2429 = vunpack.c.l.b16 %v345
        %v2430 = vunpack.c.h.b16 %v345
        %v2431 = vunpack.c.l.b16 %v346
        %v2432 = vunpack.c.h.b16 %v346
        %v2433 = vunpack.c.l.b16 %v347
        %v2434 = vunpack.c.h.b16 %v347
        %v2435 = vunpack.c.l.b16 %v348
        %v2436 = vunpack.c.h.b16 %v348
        %v2437 = vunpack.c.l.b16 %v349
        %v2438 = vunpack.c.h.b16 %v349
        %v2439 = vunpack.c.l.b16 %v350
        %v2440 = vunpack.c.h.b16 %v350
        %v2441 = vunpack.c.l.b16 %v351
        %v2442 = vunpack.c.h.b16 %v351
        %v2443 = vunpack.c.l.b16 %v352
        %v2444 = vunpack.c.h.b16 %v352
        %v2445 = vunpack.c.l.b16 %v353
        %v2446 = vunpack.c.h.b16 %v353
        %v2447 = vunpack.c.l.b16 %v354
        %v2448 = vunpack.c.h.b16 %v354
        %v2449 = vunpack.c.l.b16 %v355
        %v2450 = vunpack.c.h.b16 %v355
        %v2451 = vunpack.c.l.b16 %v356
        %v2452 = vunpack.c.h.b16 %v356
        %v2453 = vunpack.c.l.b16 %v357
        %v2454 = vunpack.c.h.b16 %v357
        %v2455 = vunpack.c.l.b16 %v358
        %v2456 = vunpack.c.h.b16 %v358
        %v2457 = vunpack.c.l.b16 %v359
        %v2458 = vunpack.c.h.b16 %v359
        %v2459 = vunpack.c.l.b16 %v360
        %v2460 = vunpack.c.h.b16 %v360
        %v2461 = vunpack.c.l.b16 %v361
        %v2462 = vunpack.c.h.b16 %v361
        %v2463 = vunpack.c.l.b16 %v362
        %v2464 = vunpack.c.h.b16 %v362
        %v2465 = vunpack.c.l.b16 %v363
        %v2466 = vunpack.c.h.b16 %v363
        %v2467 = vunpack.c.l.b16 %v364
        %v2468 = vunpack.c.h.b16 %v364
        %v2469 = vunpack.c.l.b16 %v365
        %v2470 = vunpack.c.h.b16 %v365
        %v2471 = vunpack.c.l.b16 %v366
        %v2472 = vunpack.c.h.b16 %v366
        %v2473 = vunpack.c.l.b16 %v367
        %v2474 = vunpack.c.h.b16 %v367
        %v2475 = vunpack.c.l.b16 %v368
        %v2476 = vunpack.c.h.b16 %v368
        %v2477 = vunpack.c.l.b16 %v369
        %v2478 = vunpack.c.h.b16 %v369
        %v2479 = vunpack.c.l.b16 %v370
        %v2480 = vunpack.c.h.b16 %v370
        %v2481 = vunpack.c.l.b16 %v371
        %v2482 = vunpack.c.h.b16 %v371
        %v2483 = vunpack.c.l.b16 %v372
        %v2484 = vunpack.c.h.b16 %v372
        %v2485 = vunpack.c.l.b16 %v373
        %v2486 = vunpack.c.h.b16 %v373
        %v2487 = vunpack.c.l.b16 %v374
        %v2488 = vunpack.c.h.b16 %v374
        %v2489 = vunpack.c.l.b16 %v375
        %v2490 = vunpack.c.h.b16 %v375
        %v2491 = vunpack.c.l.b16 %v376
        %v2492 = vunpack.c.h.b16 %v376
        %v2493 = vunpack.c.l.b16 %v377
        %v2494 = vunpack.c.h.b16 %v377
        %v2495 = vunpack.c.l.b16 %v378
        %v2496 = vunpack.c.h.b16 %v378
        %v2497 = vunpack.c.l.b16 %v379
        %v2498 = vunpack.c.h.b16 %v379
        %v2499 = vunpack.c.l.b16 %v380
        %v2500 = vunpack.c.h.b16 %v380
        %v2501 = vunpack.c.l.b16 %v381
        %v2502 = vunpack.c.h.b16 %v381
        %v2503 = vunpack.c.l.b16 %v382
        %v2504 = vunpack.c.h.b16 %v382
        %v2505 = vunpack.c.l.b16 %v383
        %v2506 = vunpack.c.h.b16 %v383
        %v2507 = vunpack.c.l.b16 %v384
        %v2508 = vunpack.c.h.b16 %v384
        %v2509 = vunpack.c.l.b16 %v385
        %v2510 = vunpack.c.h.b16 %v385
        %v2511 = vunpack.c.l.b16 %v386
        %v2512 = vunpack.c.h.b16 %v386
        %v2513 = vunpack.c.l.b16 %v387
        %v2514 = vunpack.c.h.b16 %v387
        %v2515 = vunpack.c.l.b16 %v388
        %v2516 = vunpack.c.h.b16 %v388
        %v2517 = vunpack.c.l.b16 %v389
        %v2518 = vunpack.c.h.b16 %v389
        %v2519 = vunpack.c.l.b16 %v390
        %v2520 = vunpack.c.h.b16 %v390
        %v2521 = vunpack.c.l.b16 %v391
        %v2522 = vunpack.c.h.b16 %v391
        %v2523 = vunpack.c.l.b16 %v392
        %v2524 = vunpack.c.h.b16 %v392
        %v2525 = vunpack.c.l.b16 %v393
        %v2526 = vunpack.c.h.b16 %v393
        %v2527 = vunpack.c.l.b16 %v394
        %v2528 = vunpack.c.h.b16 %v394
        %v2529 = vunpack.c.l.b16 %v395
        %v2530 = vunpack.c.h.b16 %v395
        %v2531 = vunpack.c.l.b16 %v396
        %v2532 = vunpack.c.h.b16 %v396
        %v2533 = vunpack.c.l.b16 %v397
        %v2534 = vunpack.c.h.b16 %v397
        %v2535 = vunpack.c.l.b16 %v398
        %v2536 = vunpack.c.h.b16 %v398
        %v2537 = vunpack.c.l.b16 %v399
        %v2538 = vunpack.c.h.b16 %v399
        %v2539 = vunpack.c.l.b16 %v400
        %v2540 = vunpack.c.h.b16 %v400
        %v2541 = vunpack.c.l.b16 %v401
        %v2542 = vunpack.c.h.b16 %v401
        %v2543 = vunpack.c.l.b16 %v402
        %v2544 = vunpack.c.h.b16 %v402
        %v2545 = vunpack.c.l.b16 %v403
        %v2546 = vunpack.c.h.b16 %v403
        %v2547 = vunpack.c.l.b16 %v404
        %v2548 = vunpack.c.h.b16 %v404
        %v2549 = vunpack.c.l.b16 %v405
        %v2550 = vunpack.c.h.b16 %v405
        %v2551 = vunpack.c.l.b16 %v406
        %v2552 = vunpack.c.h.b16 %v406
        %v2553 = vunpack.c.l.b16 %v407
        %v2554 = vunpack.c.h.b16 %v407
        %v2555 = vunpack.c.l.b16 %v408
        %v2556 = vunpack.c.h.b16 %v408
        %v2557 = vunpack.c.l.b16 %v409
        %v2558 = vunpack.c.h.b16 %v409
        %v2559 = vunpack.c.l.b16 %v410
        %v2560 = vunpack.c.h.b16 %v410
        %v2561 = vunpack.c.l.b16 %v411
        %v2562 = vunpack.c.h.b16 %v411
        %v2563 = vunpack.c.l.b16 %v412
        %v2564 = vunpack.c.h.b16 %v412
        %v2565 = vunpack.c.l.b16 %v413
        %v2566 = vunpack.c.h.b16 %v413
        %v2567 = vunpack.c.l.b16 %v414
        %v2568 = vunpack.c.h.b16 %v414
        %v2569 = vunpack.c.l.b16 %v415
        %v2570 = vunpack.c.h.b16 %v415
        %v2571 = vunpack.c.l.b16 %v416
        %v2572 = vunpack.c.h.b16 %v416
        %v2573 = vunpack.c.l.b16 %v417
        %v2574 = vunpack.c.h.b16 %v417
        %v2575 = vunpack.c.l.b16 %v418
        %v2576 = vunpack.c.h.b16 %v418
        %v2577 = vunpack.c.l.b16 %v419
        %v2578 = vunpack.c.h.b16 %v419
        %v2579 = vunpack.c.l.b16 %v420
        %v2580 = vunpack.c.h.b16 %v420
        %v2581 = vunpack.c.l.b16 %v421
        %v2582 = vunpack.c.h.b16 %v421
        %v2583 = vunpack.c.l.b16 %v422
        %v2584 = vunpack.c.h.b16 %v422
        %v2585 = vunpack.c.l.b16 %v423
        %v2586 = vunpack.c.h.b16 %v423
        %v2587 = vunpack.c.l.b16 %v424
        %v2588 = vunpack.c.h.b16 %v424
        %v2589 = vunpack.c.l.b16 %v425
        %v2590 = vunpack.c.h.b16 %v425
        %v2591 = vunpack.c.l.b16 %v426
        %v2592 = vunpack.c.h.b16 %v426
        %v2593 = vunpack.c.l.b16 %v427
        %v2594 = vunpack.c.h.b16 %v427
        %v2595 = vunpack.c.l.b16 %v428
        %v2596 = vunpack.c.h.b16 %v428
        %v2597 = vunpack.c.l.b16 %v429
        %v2598 = vunpack.c.h.b16 %v429
        %v2599 = vunpack.c.l.b16 %v430
        %v2600 = vunpack.c.h.b16 %v430
        %v2601 = vunpack.c.l.b16 %v431
        %v2602 = vunpack.c.h.b16 %v431
        %v2603 = vunpack.c.l.b16 %v432
        %v2604 = vunpack.c.h.b16 %v432
        %v2605 = vunpack.c.l.b16 %v433
        %v2606 = vunpack.c.h.b16 %v433
        %v2607 = vunpack.c.l.b16 %v434
        %v2608 = vunpack.c.h.b16 %v434
        %v2609 = vunpack.c.l.b16 %v435
        %v2610 = vunpack.c.h.b16 %v435
        %v2611 = vunpack.c.l.b16 %v436
        %v2612 = vunpack.c.h.b16 %v436
        %v2613 = vunpack.c.l.b16 %v437
        %v2614 = vunpack.c.h.b16 %v437
        %v2615 = vunpack.c.l.b16 %v438
        %v2616 = vunpack.c.h.b16 %v438
        %v2617 = vunpack.c.l.b16 %v439
        %v2618 = vunpack.c.h.b16 %v439
        %v2619 = vunpack.c.l.b16 %v440
        %v2620 = vunpack.c.h.b16 %v440
        %v2621 = vunpack.c.l.b16 %v441
        %v2622 = vunpack.c.h.b16 %v441
        %v2623 = vunpack.c.l.b16 %v442
        %v2624 = vunpack.c.h.b16 %v442
        %v2625 = vunpack.c.l.b16 %v443
        %v2626 = vunpack.c.h.b16 %v443
        %v2627 = vunpack.c.l.b16 %v444
        %v2628 = vunpack.c.h.b16 %v444
        %v2629 = vunpack.c.l.b16 %v445
        %v2630 = vunpack.c.h.b16 %v445
        %v2631 = vunpack.c.l.b16 %v446
        %v2632 = vunpack.c.h.b16 %v446
        %v2633 = vunpack.c.l.b16 %v447
        %v2634 = vunpack.c.h.b16 %v447
        %v2635 = vunpack.c.l.b16 %v448
        %v2636 = vunpack.c.h.b16 %v448
        %v2637 = vunpack.c.l.b16 %v449
        %v2638 = vunpack.c.h.b16 %v449
        %v2639 = vunpack.c.l.b16 %v450
        %v2640 = vunpack.c.h.b16 %v450
        %v2641 = vunpack.c.l.b16 %v451
        %v2642 = vunpack.c.h.b16 %v451
        %v2643 = vunpack.c.l.b16 %v452
        %v2644 = vunpack.c.h.b16 %v452
        %v2645 = vunpack.c.l.b16 %v453
        %v2646 = vunpack.c.h.b16 %v453
        %v2647 = vunpack.c.l.b16 %v454
        %v2648 = vunpack.c.h.b16 %v454
        %v2649 = vunpack.c.l.b16 %v455
        %v2650 = vunpack.c.h.b16 %v455
        %v2651 = vunpack.c.l.b16 %v456
        %v2652 = vunpack.c.h.b16 %v456
        %v2653 = vunpack.c.l.b16 %v457
        %v2654 = vunpack.c.h.b16 %v457
        %v2655 = vunpack.c.l.b16 %v458
        %v2656 = vunpack.c.h.b16 %v458
        %v2657 = vunpack.c.l.b16 %v459
        %v2658 = vunpack.c.h.b16 %v459
        %v2659 = vunpack.c.l.b16 %v460
        %v2660 = vunpack.c.h.b16 %v460
        %v2661 = vunpack.c.l.b16 %v461
        %v2662 = vunpack.c.h.b16 %v461
        %v2663 = vunpack.c.l.b16 %v462
        %v2664 = vunpack.c.h.b16 %v462
        %v2665 = vunpack.c.l.b16 %v463
        %v2666 = vunpack.c.h.b16 %v463
        %v2667 = vunpack.c.l.b16 %v464
        %v2668 = vunpack.c.h.b16 %v464
        %v2669 = vunpack.c.l.b16 %v465
        %v2670 = vunpack.c.h.b16 %v465
        %v2671 = vunpack.c.l.b16 %v466
        %v2672 = vunpack.c.h.b16 %v466
        %v2673 = vunpack.c.l.b16 %v467
        %v2674 = vunpack.c.h.b16 %v467
        %v2675 = vunpack.c.l.b16 %v468
        %v2676 = vunpack.c.h.b16 %v468
        %v2677 = vunpack.c.l.b16 %v469
        %v2678 = vunpack.c.h.b16 %v469
        %v2679 = vunpack.c.l.b16 %v470
        %v2680 = vunpack.c.h.b16 %v470
        %v2681 = vunpack.c.l.b16 %v471
        %v2682 = vunpack.c.h.b16 %v471
        %v2683 = vunpack.c.l.b16 %v472
        %v2684 = vunpack.c.h.b16 %v472
        %v2685 = vunpack.c.l.b16 %v473
        %v2686 = vunpack.c.h.b16 %v473
        %v2687 = vunpack.c.l.b16 %v474
        %v2688 = vunpack.c.h.b16 %v474
        %v2689 = vunpack.c.l.b16 %v475
        %v2690 = vunpack.c.h.b16 %v475
        %v2691 = vunpack.c.l.b16 %v476
        %v2692 = vunpack.c.h.b16 %v476
        %v2693 = vunpack.c.l.b16 %v477
        %v2694 = vunpack.c.h.b16 %v477
        %v2695 = vunpack.c.l.b16 %v478
        %v2696 = vunpack.c.h.b16 %v478
        %v2697 = vunpack.c.l.b16 %v479
        %v2698 = vunpack.c.h.b16 %v479
        %v2699 = vunpack.c.l.b16 %v480
        %v2700 = vunpack.c.h.b16 %v480
        %v2701 = vunpack.c.l.b16 %v481
        %v2702 = vunpack.c.h.b16 %v481
        %v2703 = vunpack.c.l.b16 %v482
        %v2704 = vunpack.c.h.b16 %v482
        %v2705 = vunpack.c.l.b16 %v483
        %v2706 = vunpack.c.h.b16 %v483
        %v2707 = vunpack.c.l.b16 %v484
        %v2708 = vunpack.c.h.b16 %v484
        %v2709 = vunpack.c.l.b16 %v485
        %v2710 = vunpack.c.h.b16 %v485
        %v2711 = vunpack.c.l.b16 %v486
        %v2712 = vunpack.c.h.b16 %v486
        %v2713 = vunpack.c.l.b16 %v487
        %v2714 = vunpack.c.h.b16 %v487
        %v2715 = vunpack.c.l.b16 %v488
        %v2716 = vunpack.c.h.b16 %v488
        %v2717 = vunpack.c.l.b16 %v489
        %v2718 = vunpack.c.h.b16 %v489
        %v2719 = vunpack.c.l.b16 %v490
        %v2720 = vunpack.c.h.b16 %v490
        %v2721 = vunpack.c.l.b16 %v491
        %v2722 = vunpack.c.h.b16 %v491
        %v2723 = vunpack.c.l.b16 %v492
        %v2724 = vunpack.c.h.b16 %v492
        %v2725 = vunpack.c.l.b16 %v493
        %v2726 = vunpack.c.h.b16 %v493
        %v2727 = vunpack.c.l.b16 %v494
        %v2728 = vunpack.c.h.b16 %v494
        %v2729 = vunpack.c.l.b16 %v495
        %v2730 = vunpack.c.h.b16 %v495
        %v2731 = vunpack.c.l.b16 %v496
        %v2732 = vunpack.c.h.b16 %v496
        %v2733 = vunpack.c.l.b16 %v497
        %v2734 = vunpack.c.h.b16 %v497
        %v2735 = vunpack.c.l.b16 %v498
        %v2736 = vunpack.c.h.b16 %v498
        %v2737 = vunpack.c.l.b16 %v499
        %v2738 = vunpack.c.h.b16 %v499
        %v2739 = vunpack.c.l.b16 %v500
        %v2740 = vunpack.c.h.b16 %v500
        %v2741 = vunpack.c.l.b16 %v501
        %v2742 = vunpack.c.h.b16 %v501
        %v2743 = vunpack.c.l.b16 %v502
        %v2744 = vunpack.c.h.b16 %v502
        %v2745 = vunpack.c.l.b16 %v503
        %v2746 = vunpack.c.h.b16 %v503
        %v2747 = vunpack.c.l.b16 %v504
        %v2748 = vunpack.c.h.b16 %v504
        %v2749 = vunpack.c.l.b16 %v505
        %v2750 = vunpack.c.h.b16 %v505
        %v2751 = vunpack.c.l.b16 %v506
        %v2752 = vunpack.c.h.b16 %v506
        %v2753 = vunpack.c.l.b16 %v507
        %v2754 = vunpack.c.h.b16 %v507
        %v2755 = vunpack.c.l.b16 %v508
        %v2756 = vunpack.c.h.b16 %v508
        %v2757 = vunpack.c.l.b16 %v509
        %v2758 = vunpack.c.h.b16 %v509
        %v2759 = vunpack.c.l.b16 %v510
        %v2760 = vunpack.c.h.b16 %v510
        %v2761 = vunpack.c.l.b16 %v511
        %v2762 = vunpack.c.h.b16 %v511
        %v2763 = vunpack.c.l.b16 %v512
        %v2764 = vunpack.c.h.b16 %v512
        %v2765 = vunpack.c.l.b16 %v513
        %v2766 = vunpack.c.h.b16 %v513
        %v2767 = vunpack.c.l.b16 %v514
        %v2768 = vunpack.c.h.b16 %v514
        %v2769 = vunpack.c.l.b16 %v515
        %v2770 = vunpack.c.h.b16 %v515
        %v2771 = vunpack.c.l.b16 %v516
        %v2772 = vunpack.c.h.b16 %v516
        %v2773 = vunpack.c.l.b16 %v517
        %v2774 = vunpack.c.h.b16 %v517
        %v2775 = vunpack.c.l.b16 %v518
        %v2776 = vunpack.c.h.b16 %v518
        %v2777 = vunpack.c.l.b16 %v519
        %v2778 = vunpack.c.h.b16 %v519
        %v2779 = vunpack.c.l.b16 %v520
        %v2780 = vunpack.c.h.b16 %v520
        %v2781 = vunpack.c.l.b16 %v521
        %v2782 = vunpack.c.h.b16 %v521
        %v2783 = vunpack.c.l.b16 %v522
        %v2784 = vunpack.c.h.b16 %v522
        %v2785 = vunpack.c.l.b16 %v523
        %v2786 = vunpack.c.h.b16 %v523
        %v2787 = vunpack.c.l.b16 %v524
        %v2788 = vunpack.c.h.b16 %v524
        %v2789 = vunpack.c.l.b16 %v525
        %v2790 = vunpack.c.h.b16 %v525
        %v2791 = vunpack.c.l.b16 %v526
        %v2792 = vunpack.c.h.b16 %v526
        %v2793 = vunpack.c.l.b16 %v527
        %v2794 = vunpack.c.h.b16 %v527
        %v2795 = vunpack.c.l.b16 %v528
        %v2796 = vunpack.c.h.b16 %v528
        %v2797 = vunpack.c.l.b16 %v529
        %v2798 = vunpack.c.h.b16 %v529
        %v2799 = vunpack.c.l.b16 %v530
        %v2800 = vunpack.c.h.b16 %v530
        %v2801 = vunpack.c.l.b16 %v531
        %v2802 = vunpack.c.h.b16 %v531
        %v2803 = vunpack.c.l.b16 %v532
        %v2804 = vunpack.c.h.b16 %v532
        %v2805 = vunpack.c.l.b16 %v533
        %v2806 = vunpack.c.h.b16 %v533
        %v2807 = vunpack.c.l.b16 %v534
        %v2808 = vunpack.c.h.b16 %v534
        %v2809 = vunpack.c.l.b16 %v535
        %v2810 = vunpack.c.h.b16 %v535
        %v2811 = vunpack.c.l.b16 %v536
        %v2812 = vunpack.c.h.b16 %v536
        %v2813 = vunpack.c.l.b16 %v537
        %v2814 = vunpack.c.h.b16 %v537
        %v2815 = vunpack.c.l.b16 %v538
        %v2816 = vunpack.c.h.b16 %v538
        %v2817 = vunpack.c.l.b16 %v539
        %v2818 = vunpack.c.h.b16 %v539
        %v2819 = vunpack.c.l.b16 %v540
        %v2820 = vunpack.c.h.b16 %v540
        %v2821 = vunpack.c.l.b16 %v541
        %v2822 = vunpack.c.h.b16 %v541
        %v2823 = vunpack.c.l.b16 %v542
        %v2824 = vunpack.c.h.b16 %v542
        %v2825 = vunpack.c.l.b16 %v543
        %v2826 = vunpack.c.h.b16 %v543
        %v2827 = vunpack.c.l.b16 %v544
        %v2828 = vunpack.c.h.b16 %v544
        %v2829 = vunpack.c.l.b16 %v545
        %v2830 = vunpack.c.h.b16 %v545
        %v2831 = vunpack.c.l.b16 %v546
        %v2832 = vunpack.c.h.b16 %v546
        %v2833 = vunpack.c.l.b16 %v547
        %v2834 = vunpack.c.h.b16 %v547
        %v2835 = vunpack.c.l.b16 %v548
        %v2836 = vunpack.c.h.b16 %v548
        %v2837 = vunpack.c.l.b16 %v549
        %v2838 = vunpack.c.h.b16 %v549
        %v2839 = vunpack.c.l.b16 %v550
        %v2840 = vunpack.c.h.b16 %v550
        %v2841 = vunpack.c.l.b16 %v551
        %v2842 = vunpack.c.h.b16 %v551
        %v2843 = vunpack.c.l.b16 %v552
        %v2844 = vunpack.c.h.b16 %v552
        %v2845 = vunpack.c.l.b16 %v553
        %v2846 = vunpack.c.h.b16 %v553
        %v2847 = vunpack.c.l.b16 %v554
        %v2848 = vunpack.c.h.b16 %v554
        %v2849 = vunpack.c.l.b16 %v555
        %v2850 = vunpack.c.h.b16 %v555
        %v2851 = vunpack.c.l.b16 %v556
        %v2852 = vunpack.c.h.b16 %v556
        %v2853 = vunpack.c.l.b16 %v557
        %v2854 = vunpack.c.h.b16 %v557
        %v2855 = vunpack.c.l.b16 %v558
        %v2856 = vunpack.c.h.b16 %v558
        %v2857 = vunpack.c.l.b16 %v559
        %v2858 = vunpack.c.h.b16 %v559
        %v2859 = vunpack.c.l.b16 %v560
        %v2860 = vunpack.c.h.b16 %v560
        %v2861 = vunpack.c.l.b16 %v561
        %v2862 = vunpack.c.h.b16 %v561
        %v2863 = vunpack.c.l.b16 %v562
        %v2864 = vunpack.c.h.b16 %v562
        %v2865 = vunpack.c.l.b16 %v563
        %v2866 = vunpack.c.h.b16 %v563
        %v2867 = vunpack.c.l.b16 %v564
        %v2868 = vunpack.c.h.b16 %v564
        %v2869 = vunpack.c.l.b16 %v565
        %v2870 = vunpack.c.h.b16 %v565
        %v2871 = vunpack.c.l.b16 %v566
        %v2872 = vunpack.c.h.b16 %v566
        %v2873 = vunpack.c.l.b16 %v567
        %v2874 = vunpack.c.h.b16 %v567
        %v2875 = vunpack.c.l.b16 %v568
        %v2876 = vunpack.c.h.b16 %v568
        %v2877 = vunpack.c.l.b16 %v569
        %v2878 = vunpack.c.h.b16 %v569
        %v2879 = vunpack.c.l.b16 %v570
        %v2880 = vunpack.c.h.b16 %v570
        %v2881 = vunpack.c.l.b16 %v571
        %v2882 = vunpack.c.h.b16 %v571
        %v2883 = vunpack.c.l.b16 %v572
        %v2884 = vunpack.c.h.b16 %v572
        %v2885 = vunpack.c.l.b16 %v573
        %v2886 = vunpack.c.h.b16 %v573
        %v2887 = vunpack.c.l.b16 %v574
        %v2888 = vunpack.c.h.b16 %v574
        %v2889 = vunpack.c.l.b16 %v575
        %v2890 = vunpack.c.h.b16 %v575
        %v2891 = vunpack.c.l.b16 %v576
        %v2892 = vunpack.c.h.b16 %v576
        %v2893 = vunpack.c.l.b16 %v577
        %v2894 = vunpack.c.h.b16 %v577
        %v2895 = vunpack.c.l.b16 %v578
        %v2896 = vunpack.c.h.b16 %v578
        %v2897 = vunpack.c.l.b16 %v579
        %v2898 = vunpack.c.h.b16 %v579
        %v2899 = vunpack.c.l.b16 %v580
        %v2900 = vunpack.c.h.b16 %v580
        %v2901 = vunpack.c.l.b16 %v581
        %v2902 = vunpack.c.h.b16 %v581
        %v2903 = vunpack.c.l.b16 %v582
        %v2904 = vunpack.c.h.b16 %v582
        %v2905 = vunpack.c.l.b16 %v583
        %v2906 = vunpack.c.h.b16 %v583
        %v2907 = vunpack.c.l.b16 %v584
        %v2908 = vunpack.c.h.b16 %v584
        %v2909 = vunpack.c.l.b16 %v585
        %v2910 = vunpack.c.h.b16 %v585
        %v2911 = vunpack.c.l.b16 %v586
        %v2912 = vunpack.c.h.b16 %v586
        %v2913 = vunpack.c.l.b16 %v587
        %v2914 = vunpack.c.h.b16 %v587
        %v2915 = vunpack.c.l.b16 %v588
        %v2916 = vunpack.c.h.b16 %v588
        %v2917 = vunpack.c.l.b16 %v589
        %v2918 = vunpack.c.h.b16 %v589
        %v2919 = vunpack.c.l.b16 %v590
        %v2920 = vunpack.c.h.b16 %v590
        %v2921 = vunpack.c.l.b16 %v591
        %v2922 = vunpack.c.h.b16 %v591
        %v2923 = vunpack.c.l.b16 %v592
        %v2924 = vunpack.c.h.b16 %v592
        %v2925 = vunpack.c.l.b16 %v593
        %v2926 = vunpack.c.h.b16 %v593
        %v2927 = vunpack.c.l.b16 %v594
        %v2928 = vunpack.c.h.b16 %v594
        %v2929 = vunpack.c.l.b16 %v595
        %v2930 = vunpack.c.h.b16 %v595
        %v2931 = vunpack.c.l.b16 %v596
        %v2932 = vunpack.c.h.b16 %v596
        %v2933 = vunpack.c.l.b16 %v597
        %v2934 = vunpack.c.h.b16 %v597
        %v2935 = vunpack.c.l.b16 %v598
        %v2936 = vunpack.c.h.b16 %v598
        %v2937 = vunpack.c.l.b16 %v599
        %v2938 = vunpack.c.h.b16 %v599
        %v2939 = vunpack.c.l.b16 %v600
        %v2940 = vunpack.c.h.b16 %v600
        %v2941 = vunpack.c.l.b16 %v601
        %v2942 = vunpack.c.h.b16 %v601
        %v2943 = vunpack.c.l.b16 %v602
        %v2944 = vunpack.c.h.b16 %v602
        %v2945 = vunpack.c.l.b16 %v603
        %v2946 = vunpack.c.h.b16 %v603
        %v2947 = vunpack.c.l.b16 %v604
        %v2948 = vunpack.c.h.b16 %v604
        %v2949 = vunpack.c.l.b16 %v605
        %v2950 = vunpack.c.h.b16 %v605
        %v2951 = vunpack.c.l.b16 %v606
        %v2952 = vunpack.c.h.b16 %v606
        %v2953 = vunpack.c.l.b16 %v607
        %v2954 = vunpack.c.h.b16 %v607
        %v2955 = vunpack.c.l.b16 %v608
        %v2956 = vunpack.c.h.b16 %v608
        %v2957 = vunpack.c.l.b16 %v609
        %v2958 = vunpack.c.h.b16 %v609
        %v2959 = vunpack.c.l.b16 %v610
        %v2960 = vunpack.c.h.b16 %v610
        %v2961 = vunpack.c.l.b16 %v611
        %v2962 = vunpack.c.h.b16 %v611
        %v2963 = vunpack.c.l.b16 %v612
        %v2964 = vunpack.c.h.b16 %v612
        %v2965 = vunpack.c.l.b16 %v613
        %v2966 = vunpack.c.h.b16 %v613
        %v2967 = vunpack.c.l.b16 %v614
        %v2968 = vunpack.c.h.b16 %v614
        %v2969 = vunpack.c.l.b16 %v615
        %v2970 = vunpack.c.h.b16 %v615
        %v2971 = vunpack.c.l.b16 %v616
        %v2972 = vunpack.c.h.b16 %v616
        %v2973 = vunpack.c.l.b16 %v617
        %v2974 = vunpack.c.h.b16 %v617
        %v2975 = vunpack.c.l.b16 %v618
        %v2976 = vunpack.c.h.b16 %v618
        %v2977 = vunpack.c.l.b16 %v619
        %v2978 = vunpack.c.h.b16 %v619
        %v2979 = vunpack.c.l.b16 %v620
        %v2980 = vunpack.c.h.b16 %v620
        %v2981 = vunpack.c.l.b16 %v621
        %v2982 = vunpack.c.h.b16 %v621
        %v2983 = vunpack.c.l.b16 %v622
        %v2984 = vunpack.c.h.b16 %v622
        %v2985 = vunpack.c.l.b16 %v623
        %v2986 = vunpack.c.h.b16 %v623
        %v2987 = vunpack.c.l.b16 %v624
        %v2988 = vunpack.c.h.b16 %v624
        %v2989 = vunpack.c.l.b16 %v625
        %v2990 = vunpack.c.h.b16 %v625
        %v2991 = vunpack.c.l.b16 %v626
        %v2992 = vunpack.c.h.b16 %v626
        %v2993 = vunpack.c.l.b16 %v627
        %v2994 = vunpack.c.h.b16 %v627
        %v2995 = vunpack.c.l.b16 %v628
        %v2996 = vunpack.c.h.b16 %v628
        %v2997 = vunpack.c.l.b16 %v629
        %v2998 = vunpack.c.h.b16 %v629
        %v2999 = vunpack.c.l.b16 %v630
        %v3000 = vunpack.c.h.b16 %v630
        %v3001 = vunpack.c.l.b16 %v631
        %v3002 = vunpack.c.h.b16 %v631
        %v3003 = vunpack.c.l.b16 %v632
        %v3004 = vunpack.c.h.b16 %v632
        %v3005 = vunpack.c.l.b16 %v633
        %v3006 = vunpack.c.h.b16 %v633
        %v3007 = vunpack.c.l.b16 %v634
        %v3008 = vunpack.c.h.b16 %v634
        %v3009 = vunpack.c.l.b16 %v635
        %v3010 = vunpack.c.h.b16 %v635
        %v3011 = vunpack.c.l.b16 %v636
        %v3012 = vunpack.c.h.b16 %v636
        %v3013 = vunpack.c.l.b16 %v637
        %v3014 = vunpack.c.h.b16 %v637
        %v3015 = vunpack.c.l.b16 %v638
        %v3016 = vunpack.c.h.b16 %v638
        %v3017 = vunpack.c.l.b16 %v639
        %v3018 = vunpack.c.h.b16 %v639
        %v3019 = vunpack.c.l.b16 %v640
        %v3020 = vunpack.c.h.b16 %v640
        %v3021 = vunpack.c.l.b16 %v641
        %v3022 = vunpack.c.h.b16 %v641
        %v3023 = vunpack.c.l.b16 %v642
        %v3024 = vunpack.c.h.b16 %v642
        %v3025 = vunpack.c.l.b16 %v643
        %v3026 = vunpack.c.h.b16 %v643
        %v3027 = vunpack.c.l.b16 %v644
        %v3028 = vunpack.c.h.b16 %v644
        %v3029 = vunpack.c.l.b16 %v645
        %v3030 = vunpack.c.h.b16 %v645
        %v3031 = vunpack.c.l.b16 %v646
        %v3032 = vunpack.c.h.b16 %v646
        %v3033 = vunpack.c.l.b16 %v647
        %v3034 = vunpack.c.h.b16 %v647
        %v3035 = vunpack.c.l.b16 %v648
        %v3036 = vunpack.c.h.b16 %v648
        %v3037 = vunpack.c.l.b16 %v649
        %v3038 = vunpack.c.h.b16 %v649
        %v3039 = vunpack.c.l.b16 %v650
        %v3040 = vunpack.c.h.b16 %v650
        %v3041 = vunpack.c.l.b16 %v651
        %v3042 = vunpack.c.h.b16 %v651
        %v3043 = vunpack.c.l.b16 %v652
        %v3044 = vunpack.c.h.b16 %v652
        %v3045 = vunpack.c.l.b16 %v653
        %v3046 = vunpack.c.h.b16 %v653
        %v3047 = vunpack.c.l.b16 %v654
        %v3048 = vunpack.c.h.b16 %v654
        %v3049 = vunpack.c.l.b16 %v655
        %v3050 = vunpack.c.h.b16 %v655
        %v3051 = vunpack.c.l.b16 %v656
        %v3052 = vunpack.c.h.b16 %v656
        %v3053 = vunpack.c.l.b16 %v657
        %v3054 = vunpack.c.h.b16 %v657
        %v3055 = vunpack.c.l.b16 %v658
        %v3056 = vunpack.c.h.b16 %v658
        %v3057 = vunpack.c.l.b16 %v659
        %v3058 = vunpack.c.h.b16 %v659
        %v3059 = vunpack.c.l.b16 %v660
        %v3060 = vunpack.c.h.b16 %v660
        %v3061 = vunpack.c.l.b16 %v661
        %v3062 = vunpack.c.h.b16 %v661
        %v3063 = vunpack.c.l.b16 %v662
        %v3064 = vunpack.c.h.b16 %v662
        %v3065 = vunpack.c.l.b16 %v663
        %v3066 = vunpack.c.h.b16 %v663
        %v3067 = vunpack.c.l.b16 %v664
        %v3068 = vunpack.c.h.b16 %v664
        %v3069 = vunpack.c.l.b16 %v665
        %v3070 = vunpack.c.h.b16 %v665
        %v3071 = vunpack.c.l.b16 %v666
        %v3072 = vunpack.c.h.b16 %v666
        %v3073 = vunpack.c.l.b16 %v667
        %v3074 = vunpack.c.h.b16 %v667
        %v3075 = vunpack.c.l.b16 %v668
        %v3076 = vunpack.c.h.b16 %v668
        %v3077 = vunpack.c.l.b16 %v669
        %v3078 = vunpack.c.h.b16 %v669
        %v3079 = vunpack.c.l.b16 %v670
        %v3080 = vunpack.c.h.b16 %v670
        %v3081 = vunpack.c.l.b16 %v671
        %v3082 = vunpack.c.h.b16 %v671
        %v3083 = vunpack.c.l.b16 %v672
        %v3084 = vunpack.c.h.b16 %v672
        %v3085 = vunpack.c.l.b16 %v673
        %v3086 = vunpack.c.h.b16 %v673
        %v3087 = vunpack.c.l.b16 %v674
        %v3088 = vunpack.c.h.b16 %v674
        %v3089 = vunpack.c.l.b16 %v675
        %v3090 = vunpack.c.h.b16 %v675
        %v3091 = vunpack.c.l.b16 %v676
        %v3092 = vunpack.c.h.b16 %v676
        %v3093 = vunpack.c.l.b16 %v677
        %v3094 = vunpack.c.h.b16 %v677
        %v3095 = vunpack.c.l.b16 %v678
        %v3096 = vunpack.c.h.b16 %v678
        %v3097 = vunpack.c.l.b16 %v679
        %v3098 = vunpack.c.h.b16 %v679
        %v3099 = vunpack.c.l.b16 %v680
        %v3100 = vunpack.c.h.b16 %v680
        %v3101 = vunpack.c.l.b16 %v681
        %v3102 = vunpack.c.h.b16 %v681
        %v3103 = vunpack.c.l.b16 %v682
        %v3104 = vunpack.c.h.b16 %v682
        %v3105 = vunpack.c.l.b16 %v683
        %v3106 = vunpack.c.h.b16 %v683
        %v3107 = vunpack.c.l.b16 %v684
        %v3108 = vunpack.c.h.b16 %v684
        %v3109 = vunpack.c.l.b16 %v685
        %v3110 = vunpack.c.h.b16 %v685
        %v3111 = vunpack.c.l.b16 %v686
        %v3112 = vunpack.c.h.b16 %v686
        %v3113 = vunpack.c.l.b16 %v687
        %v3114 = vunpack.c.h.b16 %v687
        %v3115 = vunpack.c.l.b16 %v688
        %v3116 = vunpack.c.h.b16 %v688
        %v3117 = vunpack.c.l.b16 %v689
        %v3118 = vunpack.c.h.b16 %v689
        %v3119 = vunpack.c.l.b16 %v690
        %v3120 = vunpack.c.h.b16 %v690
        %v3121 = vunpack.c.l.b16 %v691
        %v3122 = vunpack.c.h.b16 %v691
        %v3123 = vunpack.c.l.b16 %v692
        %v3124 = vunpack.c.h.b16 %v692
        %v3125 = vunpack.c.l.b16 %v693
        %v3126 = vunpack.c.h.b16 %v693
        %v3127 = vunpack.c.l.b16 %v694
        %v3128 = vunpack.c.h.b16 %v694
        %v3129 = vunpack.c.l.b16 %v695
        %v3130 = vunpack.c.h.b16 %v695
        %v3131 = vunpack.c.l.b16 %v696
        %v3132 = vunpack.c.h.b16 %v696
        %v3133 = vunpack.c.l.b16 %v697
        %v3134 = vunpack.c.h.b16 %v697
        %v3135 = vunpack.c.l.b16 %v698
        %v3136 = vunpack.c.h.b16 %v698
        %v3137 = vunpack.c.l.b16 %v699
        %v3138 = vunpack.c.h.b16 %v699
        %v3139 = vunpack.c.l.b16 %v700
        %v3140 = vunpack.c.h.b16 %v700
        %v3141 = vunpack.c.l.b16 %v701
        %v3142 = vunpack.c.h.b16 %v701
        %v3143 = vunpack.c.l.b16 %v702
        %v3144 = vunpack.c.h.b16 %v702
        %v3145 = vunpack.c.l.b16 %v703
        %v3146 = vunpack.c.h.b16 %v703
        %v3147 = vunpack.c.l.b16 %v704
        %v3148 = vunpack.c.h.b16 %v704
        %v3149 = vunpack.c.l.b16 %v705
        %v3150 = vunpack.c.h.b16 %v705
        %v3151 = vunpack.c.l.b16 %v706
        %v3152 = vunpack.c.h.b16 %v706
        %v3153 = vunpack.c.l.b16 %v707
        %v3154 = vunpack.c.h.b16 %v707
        %v3155 = vunpack.c.l.b16 %v708
        %v3156 = vunpack.c.h.b16 %v708
        %v3157 = vunpack.c.l.b16 %v709
        %v3158 = vunpack.c.h.b16 %v709
        %v3159 = vunpack.c.l.b16 %v710
        %v3160 = vunpack.c.h.b16 %v710
        %v3161 = vunpack.c.l.b16 %v711
        %v3162 = vunpack.c.h.b16 %v711
        %v3163 = vunpack.c.l.b16 %v712
        %v3164 = vunpack.c.h.b16 %v712
        %v3165 = vunpack.c.l.b16 %v713
        %v3166 = vunpack.c.h.b16 %v713
        %v3167 = vunpack.c.l.b16 %v714
        %v3168 = vunpack.c.h.b16 %v714
        %v3169 = vunpack.c.l.b16 %v715
        %v3170 = vunpack.c.h.b16 %v715
        %v3171 = vunpack.c.l.b16 %v716
        %v3172 = vunpack.c.h.b16 %v716
        %v3173 = vunpack.c.l.b16 %v717
        %v3174 = vunpack.c.h.b16 %v717
        %v3175 = vunpack.c.l.b16 %v718
        %v3176 = vunpack.c.h.b16 %v718
        %v3177 = vunpack.c.l.b16 %v719
        %v3178 = vunpack.c.h.b16 %v719
        %v3179 = vunpack.c.l.b16 %v720
        %v3180 = vunpack.c.h.b16 %v720
        %v3181 = vunpack.c.l.b16 %v721
        %v3182 = vunpack.c.h.b16 %v721
        %v3183 = vunpack.c.l.b16 %v722
        %v3184 = vunpack.c.h.b16 %v722
        %v3185 = vunpack.c.l.b16 %v723
        %v3186 = vunpack.c.h.b16 %v723
        %v3187 = vunpack.c.l.b16 %v724
        %v3188 = vunpack.c.h.b16 %v724
        %v3189 = vunpack.c.l.b16 %v725
        %v3190 = vunpack.c.h.b16 %v725
        %v3191 = vunpack.c.l.b16 %v726
        %v3192 = vunpack.c.h.b16 %v726
        %v3193 = vunpack.c.l.b16 %v727
        %v3194 = vunpack.c.h.b16 %v727
        %v3195 = vunpack.c.l.b16 %v728
        %v3196 = vunpack.c.h.b16 %v728
        %v3197 = vunpack.c.l.b16 %v729
        %v3198 = vunpack.c.h.b16 %v729
        %v3199 = vunpack.c.l.b16 %v730
        %v3200 = vunpack.c.h.b16 %v730
        %v3201 = vunpack.c.l.b16 %v731
        %v3202 = vunpack.c.h.b16 %v731
        %v3203 = vunpack.c.l.b16 %v732
        %v3204 = vunpack.c.h.b16 %v732
        %v3205 = vunpack.c.l.b16 %v733
        %v3206 = vunpack.c.h.b16 %v733
        %v3207 = vunpack.c.l.b16 %v734
        %v3208 = vunpack.c.h.b16 %v734
        %v3209 = vunpack.c.l.b16 %v735
        %v3210 = vunpack.c.h.b16 %v735
        %v3211 = vunpack.c.l.b16 %v736
        %v3212 = vunpack.c.h.b16 %v736
        %v3213 = vunpack.c.l.b16 %v737
        %v3214 = vunpack.c.h.b16 %v737
        %v3215 = vunpack.c.l.b16 %v738
        %v3216 = vunpack.c.h.b16 %v738
        %v3217 = vunpack.c.l.b16 %v739
        %v3218 = vunpack.c.h.b16 %v739
        %v3219 = vunpack.c.l.b16 %v740
        %v3220 = vunpack.c.h.b16 %v740
        %v3221 = vunpack.c.l.b16 %v741
        %v3222 = vunpack.c.h.b16 %v741
        %v3223 = vunpack.c.l.b16 %v742
        %v3224 = vunpack.c.h.b16 %v742
        %v3225 = vunpack.c.l.b16 %v743
        %v3226 = vunpack.c.h.b16 %v743
        %v3227 = vunpack.c.l.b16 %v744
        %v3228 = vunpack.c.h.b16 %v744
        %v3229 = vunpack.c.l.b16 %v745
        %v3230 = vunpack.c.h.b16 %v745
        %v3231 = vunpack.c.l.b16 %v746
        %v3232 = vunpack.c.h.b16 %v746
        %v3233 = vunpack.c.l.b16 %v747
        %v3234 = vunpack.c.h.b16 %v747
        %v3235 = vunpack.c.l.b16 %v748
        %v3236 = vunpack.c.h.b16 %v748
        %v3237 = vunpack.c.l.b16 %v749
        %v3238 = vunpack.c.h.b16 %v749
        %v3239 = vunpack.c.l.b16 %v750
        %v3240 = vunpack.c.h.b16 %v750
        %v3241 = vunpack.c.l.b16 %v751
        %v3242 = vunpack.c.h.b16 %v751
        %v3243 = vunpack.c.l.b16 %v752
        %v3244 = vunpack.c.h.b16 %v752
        %v3245 = vunpack.c.l.b16 %v753
        %v3246 = vunpack.c.h.b16 %v753
        %v3247 = vunpack.c.l.b16 %v754
        %v3248 = vunpack.c.h.b16 %v754
        %v3249 = vunpack.c.l.b16 %v755
        %v3250 = vunpack.c.h.b16 %v755
        %v3251 = vunpack.c.l.b16 %v756
        %v3252 = vunpack.c.h.b16 %v756
        %v3253 = vunpack.c.l.b16 %v757
        %v3254 = vunpack.c.h.b16 %v757
        %v3255 = vunpack.c.l.b16 %v758
        %v3256 = vunpack.c.h.b16 %v758
        %v3257 = vunpack.c.l.b16 %v759
        %v3258 = vunpack.c.h.b16 %v759
        %v3259 = vunpack.c.l.b16 %v760
        %v3260 = vunpack.c.h.b16 %v760
        %v3261 = vunpack.c.l.b16 %v761
        %v3262 = vunpack.c.h.b16 %v761
        %v3263 = vunpack.c.l.b16 %v762
        %v3264 = vunpack.c.h.b16 %v762
        %v3265 = vunpack.c.l.b16 %v763
        %v3266 = vunpack.c.h.b16 %v763
        %v3267 = vunpack.c.l.b16 %v764
        %v3268 = vunpack.c.h.b16 %v764
        %v3269 = vunpack.c.l.b16 %v765
        %v3270 = vunpack.c.h.b16 %v765
        %v3271 = vunpack.c.l.b16 %v766
        %v3272 = vunpack.c.h.b16 %v766
        %v3273 = vunpack.c.l.b16 %v767
        %v3274 = vunpack.c.h.b16 %v767
        %v3275 = vunpack.c.l.b16 %v768
        %v3276 = vunpack.c.h.b16 %v768
        %v3277 = vunpack.c.l.b16 %v769
        %v3278 = vunpack.c.h.b16 %v769
        %v3279 = vunpack.c.l.b16 %v770
        %v3280 = vunpack.c.h.b16 %v770
        %v3281 = vunpack.c.l.b16 %v771
        %v3282 = vunpack.c.h.b16 %v771
        %v3283 = vunpack.c.l.b16 %v772
        %v3284 = vunpack.c.h.b16 %v772
        %v3285 = vunpack.c.l.b16 %v773
        %v3286 = vunpack.c.h.b16 %v773
        %v3287 = vunpack.c.l.b16 %v774
        %v3288 = vunpack.c.h.b16 %v774
        %v3289 = vunpack.c.l.b16 %v775
        %v3290 = vunpack.c.h.b16 %v775
        %v3291 = vunpack.c.l.b16 %v776
        %v3292 = vunpack.c.h.b16 %v776
        %v3293 = vunpack.c.l.b16 %v777
        %v3294 = vunpack.c.h.b16 %v777
        %v3295 = vunpack.c.l.b16 %v778
        %v3296 = vunpack.c.h.b16 %v778
        %v3297 = vunpack.c.l.b16 %v779
        %v3298 = vunpack.c.h.b16 %v779
        %v3299 = vunpack.c.l.b16 %v780
        %v3300 = vunpack.c.h.b16 %v780
        %v3301 = vunpack.c.l.b16 %v781
        %v3302 = vunpack.c.h.b16 %v781
        %v3303 = vunpack.c.l.b16 %v782
        %v3304 = vunpack.c.h.b16 %v782
        %v3305 = vunpack.c.l.b16 %v783
        %v3306 = vunpack.c.h.b16 %v783
        %v3307 = vunpack.c.l.b16 %v784
        %v3308 = vunpack.c.h.b16 %v784
        %v3309 = vunpack.c.l.b16 %v785
        %v3310 = vunpack.c.h.b16 %v785
        %v3311 = vunpack.c.l.b16 %v786
        %v3312 = vunpack.c.h.b16 %v786
        %v3313 = vunpack.c.l.b16 %v787
        %v3314 = vunpack.c.h.b16 %v787
        %v3315 = vunpack.c.l.b16 %v788
        %v3316 = vunpack.c.h.b16 %v788
        %v3317 = vunpack.c.l.b16 %v789
        %v3318 = vunpack.c.h.b16 %v789
        %v3319 = vunpack.c.l.b16 %v790
        %v3320 = vunpack.c.h.b16 %v790
        %v3321 = vunpack.c.l.b16 %v791
        %v3322 = vunpack.c.h.b16 %v791
        %v3323 = vunpack.c.l.b16 %v792
        %v3324 = vunpack.c.h.b16 %v792
        %v3325 = vunpack.c.l.b16 %v793
        %v3326 = vunpack.c.h.b16 %v793
        %v3327 = vunpack.c.l.b16 %v794
        %v3328 = vunpack.c.h.b16 %v794
        %v3329 = vunpack.c.l.b16 %v795
        %v3330 = vunpack.c.h.b16 %v795
        %v3331 = vunpack.c.l.b16 %v796
        %v3332 = vunpack.c.h.b16 %v796
        %v3333 = vunpack.c.l.b16 %v797
        %v3334 = vunpack.c.h.b16 %v797
        %v3335 = vunpack.c.l.b16 %v798
        %v3336 = vunpack.c.h.b16 %v798
        %v3337 = vunpack.c.l.b16 %v799
        %v3338 = vunpack.c.h.b16 %v799
        %v3339 = vunpack.c.l.b16 %v800
        %v3340 = vunpack.c.h.b16 %v800
        %v3341 = vunpack.c.l.b16 %v801
        %v3342 = vunpack.c.h.b16 %v801
        %v3343 = vunpack.c.l.b16 %v802
        %v3344 = vunpack.c.h.b16 %v802
        %v3345 = vunpack.c.l.b16 %v803
        %v3346 = vunpack.c.h.b16 %v803
        %v3347 = vunpack.c.l.b16 %v804
        %v3348 = vunpack.c.h.b16 %v804
        %v3349 = vunpack.c.l.b16 %v805
        %v3350 = vunpack.c.h.b16 %v805
        %v3351 = vunpack.c.l.b16 %v806
        %v3352 = vunpack.c.h.b16 %v806
        %v3353 = vunpack.c.l.b16 %v807
        %v3354 = vunpack.c.h.b16 %v807
        %v3355 = vunpack.c.l.b16 %v808
        %v3356 = vunpack.c.h.b16 %v808
        %v3357 = vunpack.c.l.b16 %v809
        %v3358 = vunpack.c.h.b16 %v809
        %v3359 = vunpack.c.l.b16 %v810
        %v3360 = vunpack.c.h.b16 %v810
        %v3361 = vunpack.c.l.b16 %v811
        %v3362 = vunpack.c.h.b16 %v811
        %v3363 = vunpack.c.l.b16 %v812
        %v3364 = vunpack.c.h.b16 %v812
        %v3365 = vunpack.c.l.b16 %v813
        %v3366 = vunpack.c.h.b16 %v813
        %v3367 = vunpack.c.l.b16 %v814
        %v3368 = vunpack.c.h.b16 %v814
        %v3369 = vunpack.c.l.b16 %v815
        %v3370 = vunpack.c.h.b16 %v815
        %v3371 = vunpack.c.l.b16 %v816
        %v3372 = vunpack.c.h.b16 %v816
        %v3373 = vunpack.c.l.b16 %v817
        %v3374 = vunpack.c.h.b16 %v817
        %v3375 = vunpack.c.l.b16 %v818
        %v3376 = vunpack.c.h.b16 %v818
        %v3377 = vunpack.c.l.b16 %v819
        %v3378 = vunpack.c.h.b16 %v819
        %v3379 = vunpack.c.l.b16 %v820
        %v3380 = vunpack.c.h.b16 %v820
        %v3381 = vunpack.c.l.b16 %v821
        %v3382 = vunpack.c.h.b16 %v821
        %v3383 = vunpack.c.l.b16 %v822
        %v3384 = vunpack.c.h.b16 %v822
        %v3385 = vunpack.c.l.b16 %v823
        %v3386 = vunpack.c.h.b16 %v823
        %v3387 = vunpack.c.l.b16 %v824
        %v3388 = vunpack.c.h.b16 %v824
        %v3389 = vunpack.c.l.b16 %v825
        %v3390 = vunpack.c.h.b16 %v825
        %v3391 = vunpack.c.l.b16 %v826
        %v3392 = vunpack.c.h.b16 %v826
        %v3393 = vunpack.c.l.b16 %v827
        %v3394 = vunpack.c.h.b16 %v827
        %v3395 = vunpack.c.l.b16 %v828
        %v3396 = vunpack.c.h.b16 %v828
        %v3397 = vunpack.c.l.b16 %v829
        %v3398 = vunpack.c.h.b16 %v829
        %v3399 = vunpack.c.l.b16 %v830
        %v3400 = vunpack.c.h.b16 %v830
        %v3401 = vunpack.c.l.b16 %v831
        %v3402 = vunpack.c.h.b16 %v831
        %v3403 = vunpack.c.l.b16 %v832
        %v3404 = vunpack.c.h.b16 %v832
        %v3405 = vunpack.c.l.b16 %v833
        %v3406 = vunpack.c.h.b16 %v833
        %v3407 = vunpack.c.l.b16 %v834
        %v3408 = vunpack.c.h.b16 %v834
        %v3409 = vunpack.c.l.b16 %v835
        %v3410 = vunpack.c.h.b16 %v835
        %v3411 = vunpack.c.l.b16 %v836
        %v3412 = vunpack.c.h.b16 %v836
        %v3413 = vunpack.c.l.b16 %v837
        %v3414 = vunpack.c.h.b16 %v837
        %v3415 = vunpack.c.l.b16 %v838
        %v3416 = vunpack.c.h.b16 %v838
        %v3417 = vunpack.c.l.b16 %v839
        %v3418 = vunpack.c.h.b16 %v839
        %v3419 = vunpack.c.l.b16 %v840
        %v3420 = vunpack.c.h.b16 %v840
        %v3421 = vunpack.c.l.b16 %v841
        %v3422 = vunpack.c.h.b16 %v841
        %v3423 = vunpack.c.l.b16 %v842
        %v3424 = vunpack.c.h.b16 %v842
        %v3425 = vunpack.c.l.b16 %v843
        %v3426 = vunpack.c.h.b16 %v843
        %v3427 = vunpack.c.l.b16 %v844
        %v3428 = vunpack.c.h.b16 %v844
        %v3429 = vunpack.c.l.b16 %v845
        %v3430 = vunpack.c.h.b16 %v845
        %v3431 = vunpack.c.l.b16 %v846
        %v3432 = vunpack.c.h.b16 %v846
        %v3433 = vunpack.c.l.b16 %v847
        %v3434 = vunpack.c.h.b16 %v847
        %v3435 = vunpack.c.l.b16 %v848
        %v3436 = vunpack.c.h.b16 %v848
        %v3437 = vunpack.c.l.b16 %v849
        %v3438 = vunpack.c.h.b16 %v849
        %v3439 = vunpack.c.l.b16 %v850
        %v3440 = vunpack.c.h.b16 %v850
        %v3441 = vunpack.c.l.b16 %v851
        %v3442 = vunpack.c.h.b16 %v851
        %v3443 = vunpack.c.l.b16 %v852
        %v3444 = vunpack.c.h.b16 %v852
        %v3445 = vunpack.c.l.b16 %v853
        %v3446 = vunpack.c.h.b16 %v853
        %v3447 = vunpack.c.l.b16 %v854
        %v3448 = vunpack.c.h.b16 %v854
        %v3449 = vunpack.c.l.b16 %v855
        %v3450 = vunpack.c.h.b16 %v855
        %v3451 = vunpack.c.l.b16 %v856
        %v3452 = vunpack.c.h.b16 %v856
        %v3453 = vunpack.c.l.b16 %v857
        %v3454 = vunpack.c.h.b16 %v857
        %v3455 = vunpack.c.l.b16 %v858
        %v3456 = vunpack.c.h.b16 %v858
        %v3457 = vunpack.c.l.b16 %v859
        %v3458 = vunpack.c.h.b16 %v859
        %v3459 = vunpack.c.l.b16 %v860
        %v3460 = vunpack.c.h.b16 %v860
        %v3461 = vunpack.c.l.b16 %v861
        %v3462 = vunpack.c.h.b16 %v861
        %v3463 = vunpack.c.l.b16 %v862
        %v3464 = vunpack.c.h.b16 %v862
        %v3465 = vunpack.c.l.b16 %v863
        %v3466 = vunpack.c.h.b16 %v863
        %v3467 = vunpack.c.l.b16 %v864
        %v3468 = vunpack.c.h.b16 %v864
        %v3469 = vunpack.c.l.b16 %v865
        %v3470 = vunpack.c.h.b16 %v865
        %v3471 = vunpack.c.l.b16 %v866
        %v3472 = vunpack.c.h.b16 %v866
        %v3473 = vunpack.c.l.b16 %v867
        %v3474 = vunpack.c.h.b16 %v867
        %v3475 = vunpack.c.l.b16 %v868
        %v3476 = vunpack.c.h.b16 %v868
        %v3477 = vunpack.c.l.b16 %v869
        %v3478 = vunpack.c.h.b16 %v869
        %v3479 = vunpack.c.l.b16 %v870
        %v3480 = vunpack.c.h.b16 %v870
        %v3481 = vunpack.c.l.b16 %v871
        %v3482 = vunpack.c.h.b16 %v871
        %v3483 = vunpack.c.l.b16 %v872
        %v3484 = vunpack.c.h.b16 %v872
        %v3485 = vunpack.c.l.b16 %v873
        %v3486 = vunpack.c.h.b16 %v873
        %v3487 = vunpack.c.l.b16 %v874
        %v3488 = vunpack.c.h.b16 %v874
        %v3489 = vunpack.c.l.b16 %v875
        %v3490 = vunpack.c.h.b16 %v875
        %v3491 = vunpack.c.l.b16 %v876
        %v3492 = vunpack.c.h.b16 %v876
        %v3493 = vunpack.c.l.b16 %v877
        %v3494 = vunpack.c.h.b16 %v877
        %v3495 = vunpack.c.l.b16 %v878
        %v3496 = vunpack.c.h.b16 %v878
        %v3497 = vunpack.c.l.b16 %v879
        %v3498 = vunpack.c.h.b16 %v879
        %v3499 = vunpack.c.l.b16 %v880
        %v3500 = vunpack.c.h.b16 %v880
        %v3501 = vunpack.c.l.b16 %v881
        %v3502 = vunpack.c.h.b16 %v881
        %v3503 = vunpack.c.l.b16 %v882
        %v3504 = vunpack.c.h.b16 %v882
        %v3505 = vunpack.c.l.b16 %v883
        %v3506 = vunpack.c.h.b16 %v883
        %v3507 = vunpack.c.l.b16 %v884
        %v3508 = vunpack.c.h.b16 %v884
        %v3509 = vunpack.c.l.b16 %v885
        %v3510 = vunpack.c.h.b16 %v885
        %v3511 = vunpack.c.l.b16 %v886
        %v3512 = vunpack.c.h.b16 %v886
        %v3513 = vunpack.c.l.b16 %v887
        %v3514 = vunpack.c.h.b16 %v887
        %v3515 = vunpack.c.l.b16 %v888
        %v3516 = vunpack.c.h.b16 %v888
        %v3517 = vunpack.c.l.b16 %v889
        %v3518 = vunpack.c.h.b16 %v889
        %v3519 = vunpack.c.l.b16 %v890
        %v3520 = vunpack.c.h.b16 %v890
        %v3521 = vunpack.c.l.b16 %v891
        %v3522 = vunpack.c.h.b16 %v891
        %v3523 = vunpack.c.l.b16 %v892
        %v3524 = vunpack.c.h.b16 %v892
        %v3525 = vunpack.c.l.b16 %v893
        %v3526 = vunpack.c.h.b16 %v893
        %v3527 = vunpack.c.l.b16 %v894
        %v3528 = vunpack.c.h.b16 %v894
        %v3529 = vunpack.c.l.b16 %v895
        %v3530 = vunpack.c.h.b16 %v895
        %v3531 = vunpack.c.l.b16 %v896
        %v3532 = vunpack.c.h.b16 %v896
        %v3533 = vunpack.c.l.b16 %v897
        %v3534 = vunpack.c.h.b16 %v897
        %v3535 = vunpack.c.l.b16 %v898
        %v3536 = vunpack.c.h.b16 %v898
        %v3537 = vunpack.c.l.b16 %v899
        %v3538 = vunpack.c.h.b16 %v899
        %v3539 = vunpack.c.l.b16 %v900
        %v3540 = vunpack.c.h.b16 %v900
        %v3541 = vunpack.c.l.b16 %v901
        %v3542 = vunpack.c.h.b16 %v901
        %v3543 = vunpack.c.l.b16 %v902
        %v3544 = vunpack.c.h.b16 %v902
        %v3545 = vunpack.c.l.b16 %v903
        %v3546 = vunpack.c.h.b16 %v903
        %v3547 = vunpack.c.l.b16 %v904
        %v3548 = vunpack.c.h.b16 %v904
        %v3549 = vunpack.c.l.b16 %v905
        %v3550 = vunpack.c.h.b16 %v905
        %v3551 = vunpack.c.l.b16 %v906
        %v3552 = vunpack.c.h.b16 %v906
        %v3553 = vunpack.c.l.b16 %v907
        %v3554 = vunpack.c.h.b16 %v907
        %v3555 = vunpack.c.l.b16 %v908
        %v3556 = vunpack.c.h.b16 %v908
        %v3557 = vunpack.c.l.b16 %v909
        %v3558 = vunpack.c.h.b16 %v909
        %v3559 = vunpack.c.l.b16 %v910
        %v3560 = vunpack.c.h.b16 %v910
        %v3561 = vunpack.c.l.b16 %v911
        %v3562 = vunpack.c.h.b16 %v911
        %v3563 = vunpack.c.l.b16 %v912
        %v3564 = vunpack.c.h.b16 %v912
        %v3565 = vunpack.c.l.b16 %v913
        %v3566 = vunpack.c.h.b16 %v913
        %v3567 = vunpack.c.l.b16 %v914
        %v3568 = vunpack.c.h.b16 %v914
        %v3569 = vunpack.c.l.b16 %v915
        %v3570 = vunpack.c.h.b16 %v915
        %v3571 = vunpack.c.l.b16 %v916
        %v3572 = vunpack.c.h.b16 %v916
        %v3573 = vunpack.c.l.b16 %v917
        %v3574 = vunpack.c.h.b16 %v917
        %v3575 = vunpack.c.l.b16 %v918
        %v3576 = vunpack.c.h.b16 %v918
        %v3577 = vunpack.c.l.b16 %v919
        %v3578 = vunpack.c.h.b16 %v919
        %v3579 = vunpack.c.l.b16 %v920
        %v3580 = vunpack.c.h.b16 %v920
        %v3581 = vunpack.c.l.b16 %v921
        %v3582 = vunpack.c.h.b16 %v921
        %v3583 = vunpack.c.l.b16 %v922
        %v3584 = vunpack.c.h.b16 %v922
        %v3585 = vunpack.c.l.b16 %v923
        %v3586 = vunpack.c.h.b16 %v923
        %v3587 = vunpack.c.l.b16 %v924
        %v3588 = vunpack.c.h.b16 %v924
        %v3589 = vunpack.c.l.b16 %v925
        %v3590 = vunpack.c.h.b16 %v925
        %v3591 = vunpack.c.l.b16 %v926
        %v3592 = vunpack.c.h.b16 %v926
        %v3593 = vunpack.c.l.b16 %v927
        %v3594 = vunpack.c.h.b16 %v927
        %v3595 = vunpack.c.l.b16 %v928
        %v3596 = vunpack.c.h.b16 %v928
        %v3597 = vunpack.c.l.b16 %v929
        %v3598 = vunpack.c.h.b16 %v929
        %v3599 = vunpack.c.l.b16 %v930
        %v3600 = vunpack.c.h.b16 %v930
        %v3601 = vunpack.c.l.b16 %v931
        %v3602 = vunpack.c.h.b16 %v931
        %v3603 = vunpack.c.l.b16 %v932
        %v3604 = vunpack.c.h.b16 %v932
        %v3605 = vunpack.c.l.b16 %v933
        %v3606 = vunpack.c.h.b16 %v933
        %v3607 = vunpack.c.l.b16 %v934
        %v3608 = vunpack.c.h.b16 %v934
        %v3609 = vunpack.c.l.b16 %v935
        %v3610 = vunpack.c.h.b16 %v935
        %v3611 = vunpack.c.l.b16 %v936
        %v3612 = vunpack.c.h.b16 %v936
        %v3613 = vunpack.c.l.b16 %v937
        %v3614 = vunpack.c.h.b16 %v937
        %v3615 = vunpack.c.l.b16 %v938
        %v3616 = vunpack.c.h.b16 %v938
        %v3617 = vunpack.c.l.b16 %v939
        %v3618 = vunpack.c.h.b16 %v939
        %v3619 = vunpack.c.l.b16 %v940
        %v3620 = vunpack.c.h.b16 %v940
        %v3621 = vunpack.c.l.b16 %v941
        %v3622 = vunpack.c.h.b16 %v941
        %v3623 = vunpack.c.l.b16 %v942
        %v3624 = vunpack.c.h.b16 %v942
        %v3625 = vunpack.c.l.b16 %v943
        %v3626 = vunpack.c.h.b16 %v943
        %v3627 = vunpack.c.l.b16 %v944
        %v3628 = vunpack.c.h.b16 %v944
        %v3629 = vunpack.c.l.b16 %v945
        %v3630 = vunpack.c.h.b16 %v945
        %v3631 = vunpack.c.l.b16 %v946
        %v3632 = vunpack.c.h.b16 %v946
        %v3633 = vunpack.c.l.b16 %v947
        %v3634 = vunpack.c.h.b16 %v947
        %v3635 = vunpack.c.l.b16 %v948
        %v3636 = vunpack.c.h.b16 %v948
        %v3637 = vunpack.c.l.b16 %v949
        %v3638 = vunpack.c.h.b16 %v949
        %v3639 = vunpack.c.l.b16 %v950
        %v3640 = vunpack.c.h.b16 %v950
        %v3641 = vunpack.c.l.b16 %v951
        %v3642 = vunpack.c.h.b16 %v951
        %v3643 = vunpack.c.l.b16 %v952
        %v3644 = vunpack.c.h.b16 %v952
        %v3645 = vunpack.c.l.b16 %v953
        %v3646 = vunpack.c.h.b16 %v953
        %v3647 = vunpack.c.l.b16 %v954
        %v3648 = vunpack.c.h.b16 %v954
        %v3649 = vunpack.c.l.b16 %v955
        %v3650 = vunpack.c.h.b16 %v955
        %v3651 = vunpack.c.l.b16 %v956
        %v3652 = vunpack.c.h.b16 %v956
        %v3653 = vunpack.c.l.b16 %v957
        %v3654 = vunpack.c.h.b16 %v957
        %v3655 = vunpack.c.l.b16 %v958
        %v3656 = vunpack.c.h.b16 %v958
        %v3657 = vunpack.c.l.b16 %v959
        %v3658 = vunpack.c.h.b16 %v959
        %v3659 = vunpack.c.l.b16 %v960
        %v3660 = vunpack.c.h.b16 %v960
        %v3661 = vunpack.c.l.b16 %v961
        %v3662 = vunpack.c.h.b16 %v961
        %v3663 = vunpack.c.l.b16 %v962
        %v3664 = vunpack.c.h.b16 %v962
        %v3665 = vunpack.c.l.b16 %v963
        %v3666 = vunpack.c.h.b16 %v963
        %v3667 = vunpack.c.l.b16 %v964
        %v3668 = vunpack.c.h.b16 %v964
        %v3669 = vunpack.c.l.b16 %v965
        %v3670 = vunpack.c.h.b16 %v965
        %v3671 = vunpack.c.l.b16 %v966
        %v3672 = vunpack.c.h.b16 %v966
        %v3673 = vunpack.c.l.b16 %v967
        %v3674 = vunpack.c.h.b16 %v967
        %v3675 = vunpack.c.l.b16 %v968
        %v3676 = vunpack.c.h.b16 %v968
        %v3677 = vunpack.c.l.b16 %v969
        %v3678 = vunpack.c.h.b16 %v969
        %v3679 = vunpack.c.l.b16 %v970
        %v3680 = vunpack.c.h.b16 %v970
        %v3681 = vunpack.c.l.b16 %v971
        %v3682 = vunpack.c.h.b16 %v971
        %v3683 = vunpack.c.l.b16 %v972
        %v3684 = vunpack.c.h.b16 %v972
        %v3685 = vunpack.c.l.b16 %v973
        %v3686 = vunpack.c.h.b16 %v973
        %v3687 = vunpack.c.l.b16 %v974
        %v3688 = vunpack.c.h.b16 %v974
        %v3689 = vunpack.c.l.b16 %v975
        %v3690 = vunpack.c.h.b16 %v975
        %v3691 = vunpack.c.l.b16 %v976
        %v3692 = vunpack.c.h.b16 %v976
        %v3693 = vunpack.c.l.b16 %v977
        %v3694 = vunpack.c.h.b16 %v977
        %v3695 = vunpack.c.l.b16 %v978
        %v3696 = vunpack.c.h.b16 %v978
        %v3697 = vunpack.c.l.b16 %v979
        %v3698 = vunpack.c.h.b16 %v979
        %v3699 = vunpack.c.l.b16 %v980
        %v3700 = vunpack.c.h.b16 %v980
        %v3701 = vunpack.c.l.b16 %v981
        %v3702 = vunpack.c.h.b16 %v981
        %v3703 = vunpack.c.l.b16 %v982
        %v3704 = vunpack.c.h.b16 %v982
        %v3705 = vunpack.c.l.b16 %v983
        %v3706 = vunpack.c.h.b16 %v983
        %v3707 = vunpack.c.l.b16 %v984
        %v3708 = vunpack.c.h.b16 %v984
        %v3709 = vunpack.c.l.b16 %v985
        %v3710 = vunpack.c.h.b16 %v985
        %v3711 = vunpack.c.l.b16 %v986
        %v3712 = vunpack.c.h.b16 %v986
        %v3713 = vunpack.c.l.b16 %v987
        %v3714 = vunpack.c.h.b16 %v987
        %v3715 = vunpack.c.l.b16 %v988
        %v3716 = vunpack.c.h.b16 %v988
        %v3717 = vunpack.c.l.b16 %v989
        %v3718 = vunpack.c.h.b16 %v989
        %v3719 = vunpack.c.l.b16 %v990
        %v3720 = vunpack.c.h.b16 %v990
        %v3721 = vunpack.c.l.b16 %v991
        %v3722 = vunpack.c.h.b16 %v991
        %v3723 = vunpack.c.l.b16 %v992
        %v3724 = vunpack.c.h.b16 %v992
        %v3725 = vunpack.c.l.b16 %v993
        %v3726 = vunpack.c.h.b16 %v993
        %v3727 = vunpack.c.l.b16 %v994
        %v3728 = vunpack.c.h.b16 %v994
        %v3729 = vunpack.c.l.b16 %v995
        %v3730 = vunpack.c.h.b16 %v995
        %v3731 = vunpack.c.l.b16 %v996
        %v3732 = vunpack.c.h.b16 %v996
        %v3733 = vunpack.c.l.b16 %v997
        %v3734 = vunpack.c.h.b16 %v997
        %v3735 = vunpack.c.l.b16 %v998
        %v3736 = vunpack.c.h.b16 %v998
        %v3737 = vunpack.c.l.b16 %v999
        %v3738 = vunpack.c.h.b16 %v999
        %v3739 = vunpack.c.l.b16 %v1000
        %v3740 = vunpack.c.h.b16 %v1000
        %v3741 = vunpack.c.l.b16 %v1001
        %v3742 = vunpack.c.h.b16 %v1001
        %v3743 = vunpack.c.l.b16 %v1002
        %v3744 = vunpack.c.h.b16 %v1002
        %v3745 = vunpack.c.l.b16 %v1003
        %v3746 = vunpack.c.h.b16 %v1003
        %v3747 = vunpack.c.l.b16 %v1004
        %v3748 = vunpack.c.h.b16 %v1004
        %v3749 = vunpack.c.l.b16 %v1005
        %v3750 = vunpack.c.h.b16 %v1005
        %v3751 = vunpack.c.l.b16 %v1006
        %v3752 = vunpack.c.h.b16 %v1006
        %v3753 = vunpack.c.l.b16 %v1007
        %v3754 = vunpack.c.h.b16 %v1007
        %v3755 = vunpack.c.l.b16 %v1008
        %v3756 = vunpack.c.h.b16 %v1008
        %v3757 = vunpack.c.l.b16 %v1009
        %v3758 = vunpack.c.h.b16 %v1009
        %v3759 = vunpack.c.l.b16 %v1010
        %v3760 = vunpack.c.h.b16 %v1010
        %v3761 = vunpack.c.l.b16 %v1011
        %v3762 = vunpack.c.h.b16 %v1011
        %v3763 = vunpack.c.l.b16 %v1012
        %v3764 = vunpack.c.h.b16 %v1012
        %v3765 = vunpack.c.l.b16 %v1013
        %v3766 = vunpack.c.h.b16 %v1013
        %v3767 = vunpack.c.l.b16 %v1014
        %v3768 = vunpack.c.h.b16 %v1014
        %v3769 = vunpack.c.l.b16 %v1015
        %v3770 = vunpack.c.h.b16 %v1015
        %v3771 = vunpack.c.l.b16 %v1016
        %v3772 = vunpack.c.h.b16 %v1016
        %v3773 = vunpack.c.l.b16 %v1017
        %v3774 = vunpack.c.h.b16 %v1017
        %v3775 = vunpack.c.l.b16 %v1018
        %v3776 = vunpack.c.h.b16 %v1018
        %v3777 = vunpack.c.l.b16 %v1019
        %v3778 = vunpack.c.h.b16 %v1019
        %v3779 = vunpack.c.l.b16 %v1020
        %v3780 = vunpack.c.h.b16 %v1020
        %v3781 = vunpack.c.l.b16 %v1021
        %v3782 = vunpack.c.h.b16 %v1021
        %v3783 = vunpack.c.l.b16 %v1022
        %v3784 = vunpack.c.h.b16 %v1022
        %v3785 = vunpack.c.l.b16 %v1023
        %v3786 = vunpack.c.h.b16 %v1023
        %v3787 = vunpack.c.l.b16 %v1024
        %v3788 = vunpack.c.h.b16 %v1024
        %v3789 = vunpack.c.l.b16 %v1025
        %v3790 = vunpack.c.h.b16 %v1025
        %v3791 = vunpack.c.l.b16 %v1026
        %v3792 = vunpack.c.h.b16 %v1026
        %v3793 = vunpack.c.l.b16 %v1027
        %v3794 = vunpack.c.h.b16 %v1027
        %v3795 = vunpack.c.l.b16 %v1028
        %v3796 = vunpack.c.h.b16 %v1028
        %v3797 = vunpack.c.l.b16 %v1029
        %v3798 = vunpack.c.h.b16 %v1029
        %v3799 = vunpack.c.l.b16 %v1030
        %v3800 = vunpack.c.h.b16 %v1030
        %v3801 = vunpack.c.l.b16 %v1031
        %v3802 = vunpack.c.h.b16 %v1031
        %v3803 = vunpack.c.l.b16 %v1032
        %v3804 = vunpack.c.h.b16 %v1032
        %v3805 = vunpack.c.l.b16 %v1033
        %v3806 = vunpack.c.h.b16 %v1033
        %v3807 = vunpack.c.l.b16 %v1034
        %v3808 = vunpack.c.h.b16 %v1034
        %v3809 = vunpack.c.l.b16 %v1035
        %v3810 = vunpack.c.h.b16 %v1035
        %v3811 = vunpack.c.l.b16 %v1036
        %v3812 = vunpack.c.h.b16 %v1036
        %v3813 = vunpack.c.l.b16 %v1037
        %v3814 = vunpack.c.h.b16 %v1037
        %v3815 = vunpack.c.l.b16 %v1038
        %v3816 = vunpack.c.h.b16 %v1038
        %v3817 = vunpack.c.l.b16 %v1039
        %v3818 = vunpack.c.h.b16 %v1039
        %v3819 = vunpack.c.l.b16 %v1040
        %v3820 = vunpack.c.h.b16 %v1040
        %v3821 = vunpack.c.l.b16 %v1041
        %v3822 = vunpack.c.h.b16 %v1041
        %v3823 = vunpack.c.l.b16 %v1042
        %v3824 = vunpack.c.h.b16 %v1042
        %v3825 = vunpack.c.l.b16 %v1043
        %v3826 = vunpack.c.h.b16 %v1043
        %v3827 = vunpack.c.l.b16 %v1044
        %v3828 = vunpack.c.h.b16 %v1044
        %v3829 = vunpack.c.l.b16 %v1045
        %v3830 = vunpack.c.h.b16 %v1045
        %v3831 = vunpack.c.l.b16 %v1046
        %v3832 = vunpack.c.h.b16 %v1046
        %v3833 = vunpack.c.l.b16 %v1047
        %v3834 = vunpack.c.h.b16 %v1047
        %v3835 = vunpack.c.l.b16 %v1048
        %v3836 = vunpack.c.h.b16 %v1048
        %v3837 = vunpack.c.l.b16 %v1049
        %v3838 = vunpack.c.h.b16 %v1049
        %v3839 = vunpack.c.l.b16 %v1050
        %v3840 = vunpack.c.h.b16 %v1050
        %v3841 = vunpack.c.l.b16 %v1051
        %v3842 = vunpack.c.h.b16 %v1051
        %v3843 = vunpack.c.l.b16 %v1052
        %v3844 = vunpack.c.h.b16 %v1052
        %v3845 = vunpack.c.l.b16 %v1053
        %v3846 = vunpack.c.h.b16 %v1053
        %v3847 = vunpack.c.l.b16 %v1054
        %v3848 = vunpack.c.h.b16 %v1054
        %v3849 = vunpack.c.l.b16 %v1055
        %v3850 = vunpack.c.h.b16 %v1055
        %v3851 = vunpack.c.l.b16 %v1056
        %v3852 = vunpack.c.h.b16 %v1056
        %v3853 = vunpack.c.l.b16 %v1057
        %v3854 = vunpack.c.h.b16 %v1057
        %v3855 = vunpack.c.l.b16 %v1058
        %v3856 = vunpack.c.h.b16 %v1058
        %v3857 = vunpack.c.l.b16 %v1059
        %v3858 = vunpack.c.h.b16 %v1059
        %v3859 = vunpack.c.l.b16 %v1060
        %v3860 = vunpack.c.h.b16 %v1060
        %v3861 = vunpack.c.l.b16 %v1061
        %v3862 = vunpack.c.h.b16 %v1061
        %v3863 = vunpack.c.l.b16 %v1062
        %v3864 = vunpack.c.h.b16 %v1062
        %v3865 = vunpack.c.l.b16 %v1063
        %v3866 = vunpack.c.h.b16 %v1063
        %v3867 = vunpack.c.l.b16 %v1064
        %v3868 = vunpack.c.h.b16 %v1064
        %v3869 = vunpack.c.l.b16 %v1065
        %v3870 = vunpack.c.h.b16 %v1065
        %v3871 = vunpack.c.l.b16 %v1066
        %v3872 = vunpack.c.h.b16 %v1066
        %v3873 = vunpack.c.l.b16 %v1067
        %v3874 = vunpack.c.h.b16 %v1067
        %v3875 = vunpack.c.l.b16 %v1068
        %v3876 = vunpack.c.h.b16 %v1068
        %v3877 = vunpack.c.l.b16 %v1069
        %v3878 = vunpack.c.h.b16 %v1069
        %v3879 = vunpack.c.l.b16 %v1070
        %v3880 = vunpack.c.h.b16 %v1070
        %v3881 = vunpack.c.l.b16 %v1071
        %v3882 = vunpack.c.h.b16 %v1071
        %v3883 = vunpack.c.l.b16 %v1072
        %v3884 = vunpack.c.h.b16 %v1072
        %v3885 = vunpack.c.l.b16 %v1073
        %v3886 = vunpack.c.h.b16 %v1073
        %v3887 = vunpack.c.l.b16 %v1074
        %v3888 = vunpack.c.h.b16 %v1074
        %v3889 = vunpack.c.l.b16 %v1075
        %v3890 = vunpack.c.h.b16 %v1075
        %v3891 = vunpack.c.l.b16 %v1076
        %v3892 = vunpack.c.h.b16 %v1076
        %v3893 = vunpack.c.l.b16 %v1077
        %v3894 = vunpack.c.h.b16 %v1077
        %v3895 = vunpack.c.l.b16 %v1078
        %v3896 = vunpack.c.h.b16 %v1078
        %v3897 = vunpack.c.l.b16 %v1079
        %v3898 = vunpack.c.h.b16 %v1079
        %v3899 = vunpack.c.l.b16 %v1080
        %v3900 = vunpack.c.h.b16 %v1080
        %v3901 = vunpack.c.l.b16 %v1081
        %v3902 = vunpack.c.h.b16 %v1081
        %v3903 = vunpack.c.l.b16 %v1082
        %v3904 = vunpack.c.h.b16 %v1082
        %v3905 = vunpack.c.l.b16 %v1083
        %v3906 = vunpack.c.h.b16 %v1083
        %v3907 = vunpack.c.l.b16 %v1084
        %v3908 = vunpack.c.h.b16 %v1084
        %v3909 = vunpack.c.l.b16 %v1085
        %v3910 = vunpack.c.h.b16 %v1085
        %v3911 = vunpack.c.l.b16 %v1086
        %v3912 = vunpack.c.h.b16 %v1086
        %v3913 = vunpack.c.l.b16 %v1087
        %v3914 = vunpack.c.h.b16 %v1087
        %v3915 = vunpack.c.l.b16 %v1088
        %v3916 = vunpack.c.h.b16 %v1088
        %v3917 = vunpack.c.l.b16 %v1089
        %v3918 = vunpack.c.h.b16 %v1089
        %v3919 = vunpack.c.l.b16 %v1090
        %v3920 = vunpack.c.h.b16 %v1090
        %v3921 = vunpack.c.l.b16 %v1091
        %v3922 = vunpack.c.h.b16 %v1091
        %v3923 = vunpack.c.l.b16 %v1092
        %v3924 = vunpack.c.h.b16 %v1092
        %v3925 = vunpack.c.l.b16 %v1093
        %v3926 = vunpack.c.h.b16 %v1093
        %v3927 = vunpack.c.l.b16 %v1094
        %v3928 = vunpack.c.h.b16 %v1094
        %v3929 = vunpack.c.l.b16 %v1095
        %v3930 = vunpack.c.h.b16 %v1095
        %v3931 = vunpack.c.l.b16 %v1096
        %v3932 = vunpack.c.h.b16 %v1096
        %v3933 = vunpack.c.l.b16 %v1097
        %v3934 = vunpack.c.h.b16 %v1097
        %v3935 = vunpack.c.l.b16 %v1098
        %v3936 = vunpack.c.h.b16 %v1098
        %v3937 = vunpack.c.l.b16 %v1099
        %v3938 = vunpack.c.h.b16 %v1099
        %v3939 = vunpack.c.l.b16 %v1100
        %v3940 = vunpack.c.h.b16 %v1100
        %v3941 = vunpack.c.l.b16 %v1101
        %v3942 = vunpack.c.h.b16 %v1101
        %v3943 = vunpack.c.l.b16 %v1102
        %v3944 = vunpack.c.h.b16 %v1102
        %v3945 = vunpack.c.l.b16 %v1103
        %v3946 = vunpack.c.h.b16 %v1103
        %v3947 = vunpack.c.l.b16 %v1104
        %v3948 = vunpack.c.h.b16 %v1104
        %v3949 = vunpack.c.l.b16 %v1105
        %v3950 = vunpack.c.h.b16 %v1105
        %v3951 = vunpack.c.l.b16 %v1106
        %v3952 = vunpack.c.h.b16 %v1106
        %v3953 = vunpack.c.l.b16 %v1107
        %v3954 = vunpack.c.h.b16 %v1107
        %v3955 = vunpack.c.l.b16 %v1108
        %v3956 = vunpack.c.h.b16 %v1108
        %v3957 = vunpack.c.l.b16 %v1109
        %v3958 = vunpack.c.h.b16 %v1109
        %v3959 = vunpack.c.l.b16 %v1110
        %v3960 = vunpack.c.h.b16 %v1110
        %v3961 = vunpack.c.l.b16 %v1111
        %v3962 = vunpack.c.h.b16 %v1111
        %v3963 = vunpack.c.l.b16 %v1112
        %v3964 = vunpack.c.h.b16 %v1112
        %v3965 = vunpack.c.l.b16 %v1113
        %v3966 = vunpack.c.h.b16 %v1113
        %v3967 = vunpack.c.l.b16 %v1114
        %v3968 = vunpack.c.h.b16 %v1114
        %v3969 = vunpack.c.l.b16 %v1115
        %v3970 = vunpack.c.h.b16 %v1115
        %v3971 = vunpack.c.l.b16 %v1116
        %v3972 = vunpack.c.h.b16 %v1116
        %v3973 = vunpack.c.l.b16 %v1117
        %v3974 = vunpack.c.h.b16 %v1117
        %v3975 = vunpack.c.l.b16 %v1118
        %v3976 = vunpack.c.h.b16 %v1118
        %v3977 = vunpack.c.l.b16 %v1119
        %v3978 = vunpack.c.h.b16 %v1119
        %v3979 = vunpack.c.l.b16 %v1120
        %v3980 = vunpack.c.h.b16 %v1120
        %v3981 = vunpack.c.l.b16 %v1121
        %v3982 = vunpack.c.h.b16 %v1121
        %v3983 = vunpack.c.l.b16 %v1122
        %v3984 = vunpack.c.h.b16 %v1122
        %v3985 = vunpack.c.l.b16 %v1123
        %v3986 = vunpack.c.h.b16 %v1123
        %v3987 = vunpack.c.l.b16 %v1124
        %v3988 = vunpack.c.h.b16 %v1124
        %v3989 = vunpack.c.l.b16 %v1125
        %v3990 = vunpack.c.h.b16 %v1125
        %v3991 = vunpack.c.l.b16 %v1126
        %v3992 = vunpack.c.h.b16 %v1126
        %v3993 = vunpack.c.l.b16 %v1127
        %v3994 = vunpack.c.h.b16 %v1127
        %v3995 = vunpack.c.l.b16 %v1128
        %v3996 = vunpack.c.h.b16 %v1128
        %v3997 = vunpack.c.l.b16 %v1129
        %v3998 = vunpack.c.h.b16 %v1129
        %v3999 = vunpack.c.l.b16 %v1130
        %v4000 = vunpack.c.h.b16 %v1130
        %v4001 = vunpack.c.l.b16 %v1131
        %v4002 = vunpack.c.h.b16 %v1131
        %v4003 = vunpack.c.l.b16 %v1132
        %v4004 = vunpack.c.h.b16 %v1132
        %v4005 = vunpack.c.l.b16 %v1133
        %v4006 = vunpack.c.h.b16 %v1133
        %v4007 = vunpack.c.l.b16 %v1134
        %v4008 = vunpack.c.h.b16 %v1134
        %v4009 = vunpack.c.l.b16 %v1135
        %v4010 = vunpack.c.h.b16 %v1135
        %v4011 = vunpack.c.l.b16 %v1136
        %v4012 = vunpack.c.h.b16 %v1136
        %v4013 = vunpack.c.l.b16 %v1137
        %v4014 = vunpack.c.h.b16 %v1137
        %v4015 = vunpack.c.l.b16 %v1138
        %v4016 = vunpack.c.h.b16 %v1138
        %v4017 = vunpack.c.l.b16 %v1139
        %v4018 = vunpack.c.h.b16 %v1139
        %v4019 = vunpack.c.l.b16 %v1140
        %v4020 = vunpack.c.h.b16 %v1140
        %v4021 = vunpack.c.l.b16 %v1141
        %v4022 = vunpack.c.h.b16 %v1141
        %v4023 = vunpack.c.l.b16 %v1142
        %v4024 = vunpack.c.h.b16 %v1142
        %v4025 = vunpack.c.l.b16 %v1143
        %v4026 = vunpack.c.h.b16 %v1143
        %v4027 = vunpack.c.l.b16 %v1144
        %v4028 = vunpack.c.h.b16 %v1144
        %v4029 = vunpack.c.l.b16 %v1145
        %v4030 = vunpack.c.h.b16 %v1145
        %v4031 = vunpack.c.l.b16 %v1146
        %v4032 = vunpack.c.h.b16 %v1146
        %v4033 = vunpack.c.l.b16 %v1147
        %v4034 = vunpack.c.h.b16 %v1147
        %v4035 = vunpack.c.l.b16 %v1148
        %v4036 = vunpack.c.h.b16 %v1148
        %v4037 = vunpack.c.l.b16 %v1149
        %v4038 = vunpack.c.h.b16 %v1149
        %v4039 = vunpack.c.l.b16 %v1150
        %v4040 = vunpack.c.h.b16 %v1150
        %v4041 = vunpack.c.l.b16 %v1151
        %v4042 = vunpack.c.h.b16 %v1151
        %v4043 = vunpack.c.l.b16 %v1152
        %v4044 = vunpack.c.h.b16 %v1152
        %v4045 = vunpack.c.l.b16 %v1153
        %v4046 = vunpack.c.h.b16 %v1153
        %v4047 = vunpack.c.l.b16 %v1154
        %v4048 = vunpack.c.h.b16 %v1154
        %v4049 = vunpack.c.l.b16 %v1155
        %v4050 = vunpack.c.h.b16 %v1155
        %v4051 = vunpack.c.l.b16 %v1156
        %v4052 = vunpack.c.h.b16 %v1156
        %v4053 = vunpack.c.l.b16 %v1157
        %v4054 = vunpack.c.h.b16 %v1157
        %v4055 = vunpack.c.l.b16 %v1158
        %v4056 = vunpack.c.h.b16 %v1158
        %v4057 = vunpack.c.l.b16 %v1159
        %v4058 = vunpack.c.h.b16 %v1159
        %v4059 = vunpack.c.l.b16 %v1160
        %v4060 = vunpack.c.h.b16 %v1160
        %v4061 = vunpack.c.l.b16 %v1161
        %v4062 = vunpack.c.h.b16 %v1161
        %v4063 = vunpack.c.l.b16 %v1162
        %v4064 = vunpack.c.h.b16 %v1162
        %v4065 = vunpack.c.l.b16 %v1163
        %v4066 = vunpack.c.h.b16 %v1163
        %v4067 = vunpack.c.l.b16 %v1164
        %v4068 = vunpack.c.h.b16 %v1164
        %v4069 = vunpack.c.l.b16 %v1165
        %v4070 = vunpack.c.h.b16 %v1165
        %v4071 = vunpack.c.l.b16 %v1166
        %v4072 = vunpack.c.h.b16 %v1166
        %v4073 = vunpack.c.l.b16 %v1167
        %v4074 = vunpack.c.h.b16 %v1167
        %v4075 = vunpack.c.l.b16 %v1168
        %v4076 = vunpack.c.h.b16 %v1168
        %v4077 = vunpack.c.l.b16 %v1169
        %v4078 = vunpack.c.h.b16 %v1169
        %v4079 = vunpack.c.l.b16 %v1170
        %v4080 = vunpack.c.h.b16 %v1170
        %v4081 = vunpack.c.l.b16 %v1171
        %v4082 = vunpack.c.h.b16 %v1171
        %v4083 = vunpack.c.l.b16 %v1172
        %v4084 = vunpack.c.h.b16 %v1172
        %v4085 = vunpack.c.l.b16 %v1173
        %v4086 = vunpack.c.h.b16 %v1173
        %v4087 = vunpack.c.l.b16 %v1174
        %v4088 = vunpack.c.h.b16 %v1174
        %v4089 = vunpack.c.l.b16 %v1175
        %v4090 = vunpack.c.h.b16 %v1175
        %v4091 = vunpack.c.l.b16 %v1176
        %v4092 = vunpack.c.h.b16 %v1176
        %v4093 = vunpack.c.l.b16 %v1177
        %v4094 = vunpack.c.h.b16 %v1177
        %v4095 = vunpack.c.l.b16 %v1178
        %v4096 = vunpack.c.h.b16 %v1178
        %v4097 = vunpack.c.l.b16 %v1179
        %v4098 = vunpack.c.h.b16 %v1179
        %v4099 = vunpack.c.l.b16 %v1180
        %v4100 = vunpack.c.h.b16 %v1180
        %v4101 = vunpack.c.l.b16 %v1181
        %v4102 = vunpack.c.h.b16 %v1181
        %v4103 = vunpack.c.l.b16 %v1182
        %v4104 = vunpack.c.h.b16 %v1182
        %v4105 = vunpack.c.l.b16 %v1183
        %v4106 = vunpack.c.h.b16 %v1183
        %v4107 = vunpack.c.l.b16 %v1184
        %v4108 = vunpack.c.h.b16 %v1184
        %v4109 = vunpack.c.l.b16 %v1185
        %v4110 = vunpack.c.h.b16 %v1185
        %v4111 = vunpack.c.l.b16 %v1186
        %v4112 = vunpack.c.h.b16 %v1186
        %v4113 = vunpack.c.l.b16 %v1187
        %v4114 = vunpack.c.h.b16 %v1187
        %v4115 = vunpack.c.l.b16 %v1188
        %v4116 = vunpack.c.h.b16 %v1188
        %v4117 = vunpack.c.l.b16 %v1189
        %v4118 = vunpack.c.h.b16 %v1189
        %v4119 = vunpack.c.l.b16 %v1190
        %v4120 = vunpack.c.h.b16 %v1190
        %v4121 = vunpack.c.l.b16 %v1191
        %v4122 = vunpack.c.h.b16 %v1191
        %v4123 = vunpack.c.l.b16 %v1192
        %v4124 = vunpack.c.h.b16 %v1192
        %v4125 = vunpack.c.l.b16 %v1193
        %v4126 = vunpack.c.h.b16 %v1193
        %v4127 = vunpack.c.l.b16 %v1194
        %v4128 = vunpack.c.h.b16 %v1194
        %v4129 = vunpack.c.l.b16 %v1195
        %v4130 = vunpack.c.h.b16 %v1195
        %v4131 = vunpack.c.l.b16 %v1196
        %v4132 = vunpack.c.h.b16 %v1196
        %v4133 = vunpack.c.l.b16 %v1197
        %v4134 = vunpack.c.h.b16 %v1197
        %v4135 = vunpack.c.l.b16 %v1198
        %v4136 = vunpack.c.h.b16 %v1198
        %v4137 = vunpack.c.l.b16 %v1199
        %v4138 = vunpack.c.h.b16 %v1199
        %v4139 = vunpack.c.l.b16 %v1200
        %v4140 = vunpack.c.h.b16 %v1200
        %v4141 = vpack.c.b16 %v2253, %v2237
        %v4142 = vpack.c.b16 %v2254, %v2238
        %v4143 = vpack.c.b16 %v2255, %v2239
        %v4144 = vpack.c.b16 %v2256, %v2240
        %v4145 = vpack.c.b16 %v2257, %v2241
        %v4146 = vpack.c.b16 %v2258, %v2242
        %v4147 = vpack.c.b16 %v2259, %v2243
        %v4148 = vpack.c.b16 %v2260, %v2244
        %v4149 = vpack.c.b16 %v2261, %v2245
        %v4150 = vpack.c.b16 %v2262, %v2246
        %v4151 = vpack.c.b16 %v2263, %v2247
        %v4152 = vpack.c.b16 %v2264, %v2248
        %v4153 = vpack.c.b16 %v2265, %v2249
        %v4154 = vpack.c.b16 %v2266, %v2250
        %v4155 = vpack.c.b16 %v2267, %v2251
        %v4156 = vpack.c.b16 %v2268, %v2252
        %v4157 = vpack.c.b16 %v2285, %v2269
        %v4158 = vpack.c.b16 %v2286, %v2270
        %v4159 = vpack.c.b16 %v2287, %v2271
        %v4160 = vpack.c.b16 %v2288, %v2272
        %v4161 = vpack.c.b16 %v2289, %v2273
        %v4162 = vpack.c.b16 %v2290, %v2274
        %v4163 = vpack.c.b16 %v2291, %v2275
        %v4164 = vpack.c.b16 %v2292, %v2276
        %v4165 = vpack.c.b16 %v2293, %v2277
        %v4166 = vpack.c.b16 %v2294, %v2278
        %v4167 = vpack.c.b16 %v2295, %v2279
        %v4168 = vpack.c.b16 %v2296, %v2280
        %v4169 = vpack.c.b16 %v2297, %v2281
        %v4170 = vpack.c.b16 %v2298, %v2282
        %v4171 = vpack.c.b16 %v2299, %v2283
        %v4172 = vpack.c.b16 %v2300, %v2284
        %v4173 = vpack.c.b16 %v2317, %v2301
        %v4174 = vpack.c.b16 %v2318, %v2302
        %v4175 = vpack.c.b16 %v2319, %v2303
        %v4176 = vpack.c.b16 %v2320, %v2304
        %v4177 = vpack.c.b16 %v2321, %v2305
        %v4178 = vpack.c.b16 %v2322, %v2306
        %v4179 = vpack.c.b16 %v2323, %v2307
        %v4180 = vpack.c.b16 %v2324, %v2308
        %v4181 = vpack.c.b16 %v2325, %v2309
        %v4182 = vpack.c.b16 %v2326, %v2310
        %v4183 = vpack.c.b16 %v2327, %v2311
        %v4184 = vpack.c.b16 %v2328, %v2312
        %v4185 = vpack.c.b16 %v2329, %v2313
        %v4186 = vpack.c.b16 %v2330, %v2314
        %v4187 = vpack.c.b16 %v2331, %v2315
        %v4188 = vpack.c.b16 %v2332, %v2316
        %v4189 = vpack.c.b16 %v2349, %v2333
        %v4190 = vpack.c.b16 %v2350, %v2334
        %v4191 = vpack.c.b16 %v2351, %v2335
        %v4192 = vpack.c.b16 %v2352, %v2336
        %v4193 = vpack.c.b16 %v2353, %v2337
        %v4194 = vpack.c.b16 %v2354, %v2338
        %v4195 = vpack.c.b16 %v2355, %v2339
        %v4196 = vpack.c.b16 %v2356, %v2340
        %v4197 = vpack.c.b16 %v2357, %v2341
        %v4198 = vpack.c.b16 %v2358, %v2342
        %v4199 = vpack.c.b16 %v2359, %v2343
        %v4200 = vpack.c.b16 %v2360, %v2344
        %v4201 = vpack.c.b16 %v2361, %v2345
        %v4202 = vpack.c.b16 %v2362, %v2346
        %v4203 = vpack.c.b16 %v2363, %v2347
        %v4204 = vpack.c.b16 %v2364, %v2348
        %v4205 = vpack.c.b16 %v2381, %v2365
        %v4206 = vpack.c.b16 %v2382, %v2366
        %v4207 = vpack.c.b16 %v2383, %v2367
        %v4208 = vpack.c.b16 %v2384, %v2368
        %v4209 = vpack.c.b16 %v2385, %v2369
        %v4210 = vpack.c.b16 %v2386, %v2370
        %v4211 = vpack.c.b16 %v2387, %v2371
        %v4212 = vpack.c.b16 %v2388, %v2372
        %v4213 = vpack.c.b16 %v2389, %v2373
        %v4214 = vpack.c.b16 %v2390, %v2374
        %v4215 = vpack.c.b16 %v2391, %v2375
        %v4216 = vpack.c.b16 %v2392, %v2376
        %v4217 = vpack.c.b16 %v2393, %v2377
        %v4218 = vpack.c.b16 %v2394, %v2378
        %v4219 = vpack.c.b16 %v2395, %v2379
        %v4220 = vpack.c.b16 %v2396, %v2380
        %v4221 = vpack.c.b16 %v2413, %v2397
        %v4222 = vpack.c.b16 %v2414, %v2398
        %v4223 = vpack.c.b16 %v2415, %v2399
        %v4224 = vpack.c.b16 %v2416, %v2400
        %v4225 = vpack.c.b16 %v2417, %v2401
        %v4226 = vpack.c.b16 %v2418, %v2402
        %v4227 = vpack.c.b16 %v2419, %v2403
        %v4228 = vpack.c.b16 %v2420, %v2404
        %v4229 = vpack.c.b16 %v2421, %v2405
        %v4230 = vpack.c.b16 %v2422, %v2406
        %v4231 = vpack.c.b16 %v2423, %v2407
        %v4232 = vpack.c.b16 %v2424, %v2408
        %v4233 = vpack.c.b16 %v2425, %v2409
        %v4234 = vpack.c.b16 %v2426, %v2410
        %v4235 = vpack.c.b16 %v2427, %v2411
        %v4236 = vpack.c.b16 %v2428, %v2412
        %v4237 = vpack.c.b16 %v2445, %v2429
        %v4238 = vpack.c.b16 %v2446, %v2430
        %v4239 = vpack.c.b16 %v2447, %v2431
        %v4240 = vpack.c.b16 %v2448, %v2432
        %v4241 = vpack.c.b16 %v2449, %v2433
        %v4242 = vpack.c.b16 %v2450, %v2434
        %v4243 = vpack.c.b16 %v2451, %v2435
        %v4244 = vpack.c.b16 %v2452, %v2436
        %v4245 = vpack.c.b16 %v2453, %v2437
        %v4246 = vpack.c.b16 %v2454, %v2438
        %v4247 = vpack.c.b16 %v2455, %v2439
        %v4248 = vpack.c.b16 %v2456, %v2440
        %v4249 = vpack.c.b16 %v2457, %v2441
        %v4250 = vpack.c.b16 %v2458, %v2442
        %v4251 = vpack.c.b16 %v2459, %v2443
        %v4252 = vpack.c.b16 %v2460, %v2444
        %v4253 = vpack.c.b16 %v2477, %v2461
        %v4254 = vpack.c.b16 %v2478, %v2462
        %v4255 = vpack.c.b16 %v2479, %v2463
        %v4256 = vpack.c.b16 %v2480, %v2464
        %v4257 = vpack.c.b16 %v2481, %v2465
        %v4258 = vpack.c.b16 %v2482, %v2466
        %v4259 = vpack.c.b16 %v2483, %v2467
        %v4260 = vpack.c.b16 %v2484, %v2468
        %v4261 = vpack.c.b16 %v2485, %v2469
        %v4262 = vpack.c.b16 %v2486, %v2470
        %v4263 = vpack.c.b16 %v2487, %v2471
        %v4264 = vpack.c.b16 %v2488, %v2472
        %v4265 = vpack.c.b16 %v2489, %v2473
        %v4266 = vpack.c.b16 %v2490, %v2474
        %v4267 = vpack.c.b16 %v2491, %v2475
        %v4268 = vpack.c.b16 %v2492, %v2476
        %v4269 = vpack.c.b16 %v2509, %v2493
        %v4270 = vpack.c.b16 %v2510, %v2494
        %v4271 = vpack.c.b16 %v2511, %v2495
        %v4272 = vpack.c.b16 %v2512, %v2496
        %v4273 = vpack.c.b16 %v2513, %v2497
        %v4274 = vpack.c.b16 %v2514, %v2498
        %v4275 = vpack.c.b16 %v2515, %v2499
        %v4276 = vpack.c.b16 %v2516, %v2500
        %v4277 = vpack.c.b16 %v2517, %v2501
        %v4278 = vpack.c.b16 %v2518, %v2502
        %v4279 = vpack.c.b16 %v2519, %v2503
        %v4280 = vpack.c.b16 %v2520, %v2504
        %v4281 = vpack.c.b16 %v2521, %v2505
        %v4282 = vpack.c.b16 %v2522, %v2506
        %v4283 = vpack.c.b16 %v2523, %v2507
        %v4284 = vpack.c.b16 %v2524, %v2508
        %v4285 = vpack.c.b16 %v2541, %v2525
        %v4286 = vpack.c.b16 %v2542, %v2526
        %v4287 = vpack.c.b16 %v2543, %v2527
        %v4288 = vpack.c.b16 %v2544, %v2528
        %v4289 = vpack.c.b16 %v2545, %v2529
        %v4290 = vpack.c.b16 %v2546, %v2530
        %v4291 = vpack.c.b16 %v2547, %v2531
        %v4292 = vpack.c.b16 %v2548, %v2532
        %v4293 = vpack.c.b16 %v2549, %v2533
        %v4294 = vpack.c.b16 %v2550, %v2534
        %v4295 = vpack.c.b16 %v2551, %v2535
        %v4296 = vpack.c.b16 %v2552, %v2536
        %v4297 = vpack.c.b16 %v2553, %v2537
        %v4298 = vpack.c.b16 %v2554, %v2538
        %v4299 = vpack.c.b16 %v2555, %v2539
        %v4300 = vpack.c.b16 %v2556, %v2540
        %v4301 = vpack.c.b16 %v2573, %v2557
        %v4302 = vpack.c.b16 %v2574, %v2558
        %v4303 = vpack.c.b16 %v2575, %v2559
        %v4304 = vpack.c.b16 %v2576, %v2560
        %v4305 = vpack.c.b16 %v2577, %v2561
        %v4306 = vpack.c.b16 %v2578, %v2562
        %v4307 = vpack.c.b16 %v2579, %v2563
        %v4308 = vpack.c.b16 %v2580, %v2564
        %v4309 = vpack.c.b16 %v2581, %v2565
        %v4310 = vpack.c.b16 %v2582, %v2566
        %v4311 = vpack.c.b16 %v2583, %v2567
        %v4312 = vpack.c.b16 %v2584, %v2568
        %v4313 = vpack.c.b16 %v2585, %v2569
        %v4314 = vpack.c.b16 %v2586, %v2570
        %v4315 = vpack.c.b16 %v2587, %v2571
        %v4316 = vpack.c.b16 %v2588, %v2572
        %v4317 = vpack.c.b16 %v2605, %v2589
        %v4318 = vpack.c.b16 %v2606, %v2590
        %v4319 = vpack.c.b16 %v2607, %v2591
        %v4320 = vpack.c.b16 %v2608, %v2592
        %v4321 = vpack.c.b16 %v2609, %v2593
        %v4322 = vpack.c.b16 %v2610, %v2594
        %v4323 = vpack.c.b16 %v2611, %v2595
        %v4324 = vpack.c.b16 %v2612, %v2596
        %v4325 = vpack.c.b16 %v2613, %v2597
        %v4326 = vpack.c.b16 %v2614, %v2598
        %v4327 = vpack.c.b16 %v2615, %v2599
        %v4328 = vpack.c.b16 %v2616, %v2600
        %v4329 = vpack.c.b16 %v2617, %v2601
        %v4330 = vpack.c.b16 %v2618, %v2602
        %v4331 = vpack.c.b16 %v2619, %v2603
        %v4332 = vpack.c.b16 %v2620, %v2604
        %v4333 = vpack.c.b16 %v2637, %v2621
        %v4334 = vpack.c.b16 %v2638, %v2622
        %v4335 = vpack.c.b16 %v2639, %v2623
        %v4336 = vpack.c.b16 %v2640, %v2624
        %v4337 = vpack.c.b16 %v2641, %v2625
        %v4338 = vpack.c.b16 %v2642, %v2626
        %v4339 = vpack.c.b16 %v2643, %v2627
        %v4340 = vpack.c.b16 %v2644, %v2628
        %v4341 = vpack.c.b16 %v2645, %v2629
        %v4342 = vpack.c.b16 %v2646, %v2630
        %v4343 = vpack.c.b16 %v2647, %v2631
        %v4344 = vpack.c.b16 %v2648, %v2632
        %v4345 = vpack.c.b16 %v2649, %v2633
        %v4346 = vpack.c.b16 %v2650, %v2634
        %v4347 = vpack.c.b16 %v2651, %v2635
        %v4348 = vpack.c.b16 %v2652, %v2636
        %v4349 = vpack.c.b16 %v2669, %v2653
        %v4350 = vpack.c.b16 %v2670, %v2654
        %v4351 = vpack.c.b16 %v2671, %v2655
        %v4352 = vpack.c.b16 %v2672, %v2656
        %v4353 = vpack.c.b16 %v2673, %v2657
        %v4354 = vpack.c.b16 %v2674, %v2658
        %v4355 = vpack.c.b16 %v2675, %v2659
        %v4356 = vpack.c.b16 %v2676, %v2660
        %v4357 = vpack.c.b16 %v2677, %v2661
        %v4358 = vpack.c.b16 %v2678, %v2662
        %v4359 = vpack.c.b16 %v2679, %v2663
        %v4360 = vpack.c.b16 %v2680, %v2664
        %v4361 = vpack.c.b16 %v2681, %v2665
        %v4362 = vpack.c.b16 %v2682, %v2666
        %v4363 = vpack.c.b16 %v2683, %v2667
        %v4364 = vpack.c.b16 %v2684, %v2668
        %v4365 = vpack.c.b16 %v2701, %v2685
        %v4366 = vpack.c.b16 %v2702, %v2686
        %v4367 = vpack.c.b16 %v2703, %v2687
        %v4368 = vpack.c.b16 %v2704, %v2688
        %v4369 = vpack.c.b16 %v2705, %v2689
        %v4370 = vpack.c.b16 %v2706, %v2690
        %v4371 = vpack.c.b16 %v2707, %v2691
        %v4372 = vpack.c.b16 %v2708, %v2692
        %v4373 = vpack.c.b16 %v2709, %v2693
        %v4374 = vpack.c.b16 %v2710, %v2694
        %v4375 = vpack.c.b16 %v2711, %v2695
        %v4376 = vpack.c.b16 %v2712, %v2696
        %v4377 = vpack.c.b16 %v2713, %v2697
        %v4378 = vpack.c.b16 %v2714, %v2698
        %v4379 = vpack.c.b16 %v2715, %v2699
        %v4380 = vpack.c.b16 %v2716, %v2700
        %v4381 = vpack.c.b16 %v2733, %v2717
        %v4382 = vpack.c.b16 %v2734, %v2718
        %v4383 = vpack.c.b16 %v2735, %v2719
        %v4384 = vpack.c.b16 %v2736, %v2720
        %v4385 = vpack.c.b16 %v2737, %v2721
        %v4386 = vpack.c.b16 %v2738, %v2722
        %v4387 = vpack.c.b16 %v2739, %v2723
        %v4388 = vpack.c.b16 %v2740, %v2724
        %v4389 = vpack.c.b16 %v2741, %v2725
        %v4390 = vpack.c.b16 %v2742, %v2726
        %v4391 = vpack.c.b16 %v2743, %v2727
        %v4392 = vpack.c.b16 %v2744, %v2728
        %v4393 = vpack.c.b16 %v2745, %v2729
        %v4394 = vpack.c.b16 %v2746, %v2730
        %v4395 = vpack.c.b16 %v2747, %v2731
        %v4396 = vpack.c.b16 %v2748, %v2732
        %v4397 = vpack.c.b16 %v2765, %v2749
        %v4398 = vpack.c.b16 %v2766, %v2750
        %v4399 = vpack.c.b16 %v2767, %v2751
        %v4400 = vpack.c.b16 %v2768, %v2752
        %v4401 = vpack.c.b16 %v2769, %v2753
        %v4402 = vpack.c.b16 %v2770, %v2754
        %v4403 = vpack.c.b16 %v2771, %v2755
        %v4404 = vpack.c.b16 %v2772, %v2756
        %v4405 = vpack.c.b16 %v2773, %v2757
        %v4406 = vpack.c.b16 %v2774, %v2758
        %v4407 = vpack.c.b16 %v2775, %v2759
        %v4408 = vpack.c.b16 %v2776, %v2760
        %v4409 = vpack.c.b16 %v2777, %v2761
        %v4410 = vpack.c.b16 %v2778, %v2762
        %v4411 = vpack.c.b16 %v2779, %v2763
        %v4412 = vpack.c.b16 %v2780, %v2764
        %v4413 = vpack.c.b16 %v2797, %v2781
        %v4414 = vpack.c.b16 %v2798, %v2782
        %v4415 = vpack.c.b16 %v2799, %v2783
        %v4416 = vpack.c.b16 %v2800, %v2784
        %v4417 = vpack.c.b16 %v2801, %v2785
        %v4418 = vpack.c.b16 %v2802, %v2786
        %v4419 = vpack.c.b16 %v2803, %v2787
        %v4420 = vpack.c.b16 %v2804, %v2788
        %v4421 = vpack.c.b16 %v2805, %v2789
        %v4422 = vpack.c.b16 %v2806, %v2790
        %v4423 = vpack.c.b16 %v2807, %v2791
        %v4424 = vpack.c.b16 %v2808, %v2792
        %v4425 = vpack.c.b16 %v2809, %v2793
        %v4426 = vpack.c.b16 %v2810, %v2794
        %v4427 = vpack.c.b16 %v2811, %v2795
        %v4428 = vpack.c.b16 %v2812, %v2796
        %v4429 = vpack.c.b16 %v2829, %v2813
        %v4430 = vpack.c.b16 %v2830, %v2814
        %v4431 = vpack.c.b16 %v2831, %v2815
        %v4432 = vpack.c.b16 %v2832, %v2816
        %v4433 = vpack.c.b16 %v2833, %v2817
        %v4434 = vpack.c.b16 %v2834, %v2818
        %v4435 = vpack.c.b16 %v2835, %v2819
        %v4436 = vpack.c.b16 %v2836, %v2820
        %v4437 = vpack.c.b16 %v2837, %v2821
        %v4438 = vpack.c.b16 %v2838, %v2822
        %v4439 = vpack.c.b16 %v2839, %v2823
        %v4440 = vpack.c.b16 %v2840, %v2824
        %v4441 = vpack.c.b16 %v2841, %v2825
        %v4442 = vpack.c.b16 %v2842, %v2826
        %v4443 = vpack.c.b16 %v2843, %v2827
        %v4444 = vpack.c.b16 %v2844, %v2828
        %v4445 = vpack.c.b16 %v2861, %v2845
        %v4446 = vpack.c.b16 %v2862, %v2846
        %v4447 = vpack.c.b16 %v2863, %v2847
        %v4448 = vpack.c.b16 %v2864, %v2848
        %v4449 = vpack.c.b16 %v2865, %v2849
        %v4450 = vpack.c.b16 %v2866, %v2850
        %v4451 = vpack.c.b16 %v2867, %v2851
        %v4452 = vpack.c.b16 %v2868, %v2852
        %v4453 = vpack.c.b16 %v2869, %v2853
        %v4454 = vpack.c.b16 %v2870, %v2854
        %v4455 = vpack.c.b16 %v2871, %v2855
        %v4456 = vpack.c.b16 %v2872, %v2856
        %v4457 = vpack.c.b16 %v2873, %v2857
        %v4458 = vpack.c.b16 %v2874, %v2858
        %v4459 = vpack.c.b16 %v2875, %v2859
        %v4460 = vpack.c.b16 %v2876, %v2860
        %v4461 = vpack.c.b16 %v2893, %v2877
        %v4462 = vpack.c.b16 %v2894, %v2878
        %v4463 = vpack.c.b16 %v2895, %v2879
        %v4464 = vpack.c.b16 %v2896, %v2880
        %v4465 = vpack.c.b16 %v2897, %v2881
        %v4466 = vpack.c.b16 %v2898, %v2882
        %v4467 = vpack.c.b16 %v2899, %v2883
        %v4468 = vpack.c.b16 %v2900, %v2884
        %v4469 = vpack.c.b16 %v2901, %v2885
        %v4470 = vpack.c.b16 %v2902, %v2886
        %v4471 = vpack.c.b16 %v2903, %v2887
        %v4472 = vpack.c.b16 %v2904, %v2888
        %v4473 = vpack.c.b16 %v2905, %v2889
        %v4474 = vpack.c.b16 %v2906, %v2890
        %v4475 = vpack.c.b16 %v2907, %v2891
        %v4476 = vpack.c.b16 %v2908, %v2892
        %v4477 = vpack.c.b16 %v2925, %v2909
        %v4478 = vpack.c.b16 %v2926, %v2910
        %v4479 = vpack.c.b16 %v2927, %v2911
        %v4480 = vpack.c.b16 %v2928, %v2912
        %v4481 = vpack.c.b16 %v2929, %v2913
        %v4482 = vpack.c.b16 %v2930, %v2914
        %v4483 = vpack.c.b16 %v2931, %v2915
        %v4484 = vpack.c.b16 %v2932, %v2916
        %v4485 = vpack.c.b16 %v2933, %v2917
        %v4486 = vpack.c.b16 %v2934, %v2918
        %v4487 = vpack.c.b16 %v2935, %v2919
        %v4488 = vpack.c.b16 %v2936, %v2920
        %v4489 = vpack.c.b16 %v2937, %v2921
        %v4490 = vpack.c.b16 %v2938, %v2922
        %v4491 = vpack.c.b16 %v2939, %v2923
        %v4492 = vpack.c.b16 %v2940, %v2924
        %v4493 = vpack.c.b16 %v2957, %v2941
        %v4494 = vpack.c.b16 %v2958, %v2942
        %v4495 = vpack.c.b16 %v2959, %v2943
        %v4496 = vpack.c.b16 %v2960, %v2944
        %v4497 = vpack.c.b16 %v2961, %v2945
        %v4498 = vpack.c.b16 %v2962, %v2946
        %v4499 = vpack.c.b16 %v2963, %v2947
        %v4500 = vpack.c.b16 %v2964, %v2948
        %v4501 = vpack.c.b16 %v2965, %v2949
        %v4502 = vpack.c.b16 %v2966, %v2950
        %v4503 = vpack.c.b16 %v2967, %v2951
        %v4504 = vpack.c.b16 %v2968, %v2952
        %v4505 = vpack.c.b16 %v2969, %v2953
        %v4506 = vpack.c.b16 %v2970, %v2954
        %v4507 = vpack.c.b16 %v2971, %v2955
        %v4508 = vpack.c.b16 %v2972, %v2956
        %v4509 = vpack.c.b16 %v2989, %v2973
        %v4510 = vpack.c.b16 %v2990, %v2974
        %v4511 = vpack.c.b16 %v2991, %v2975
        %v4512 = vpack.c.b16 %v2992, %v2976
        %v4513 = vpack.c.b16 %v2993, %v2977
        %v4514 = vpack.c.b16 %v2994, %v2978
        %v4515 = vpack.c.b16 %v2995, %v2979
        %v4516 = vpack.c.b16 %v2996, %v2980
        %v4517 = vpack.c.b16 %v2997, %v2981
        %v4518 = vpack.c.b16 %v2998, %v2982
        %v4519 = vpack.c.b16 %v2999, %v2983
        %v4520 = vpack.c.b16 %v3000, %v2984
        %v4521 = vpack.c.b16 %v3001, %v2985
        %v4522 = vpack.c.b16 %v3002, %v2986
        %v4523 = vpack.c.b16 %v3003, %v2987
        %v4524 = vpack.c.b16 %v3004, %v2988
        %v4525 = vpack.c.b16 %v3021, %v3005
        %v4526 = vpack.c.b16 %v3022, %v3006
        %v4527 = vpack.c.b16 %v3023, %v3007
        %v4528 = vpack.c.b16 %v3024, %v3008
        %v4529 = vpack.c.b16 %v3025, %v3009
        %v4530 = vpack.c.b16 %v3026, %v3010
        %v4531 = vpack.c.b16 %v3027, %v3011
        %v4532 = vpack.c.b16 %v3028, %v3012
        %v4533 = vpack.c.b16 %v3029, %v3013
        %v4534 = vpack.c.b16 %v3030, %v3014
        %v4535 = vpack.c.b16 %v3031, %v3015
        %v4536 = vpack.c.b16 %v3032, %v3016
        %v4537 = vpack.c.b16 %v3033, %v3017
        %v4538 = vpack.c.b16 %v3034, %v3018
        %v4539 = vpack.c.b16 %v3035, %v3019
        %v4540 = vpack.c.b16 %v3036, %v3020
        %v4541 = vpack.c.b16 %v3053, %v3037
        %v4542 = vpack.c.b16 %v3054, %v3038
        %v4543 = vpack.c.b16 %v3055, %v3039
        %v4544 = vpack.c.b16 %v3056, %v3040
        %v4545 = vpack.c.b16 %v3057, %v3041
        %v4546 = vpack.c.b16 %v3058, %v3042
        %v4547 = vpack.c.b16 %v3059, %v3043
        %v4548 = vpack.c.b16 %v3060, %v3044
        %v4549 = vpack.c.b16 %v3061, %v3045
        %v4550 = vpack.c.b16 %v3062, %v3046
        %v4551 = vpack.c.b16 %v3063, %v3047
        %v4552 = vpack.c.b16 %v3064, %v3048
        %v4553 = vpack.c.b16 %v3065, %v3049
        %v4554 = vpack.c.b16 %v3066, %v3050
        %v4555 = vpack.c.b16 %v3067, %v3051
        %v4556 = vpack.c.b16 %v3068, %v3052
        %v4557 = vpack.c.b16 %v3085, %v3069
        %v4558 = vpack.c.b16 %v3086, %v3070
        %v4559 = vpack.c.b16 %v3087, %v3071
        %v4560 = vpack.c.b16 %v3088, %v3072
        %v4561 = vpack.c.b16 %v3089, %v3073
        %v4562 = vpack.c.b16 %v3090, %v3074
        %v4563 = vpack.c.b16 %v3091, %v3075
        %v4564 = vpack.c.b16 %v3092, %v3076
        %v4565 = vpack.c.b16 %v3093, %v3077
        %v4566 = vpack.c.b16 %v3094, %v3078
        %v4567 = vpack.c.b16 %v3095, %v3079
        %v4568 = vpack.c.b16 %v3096, %v3080
        %v4569 = vpack.c.b16 %v3097, %v3081
        %v4570 = vpack.c.b16 %v3098, %v3082
        %v4571 = vpack.c.b16 %v3099, %v3083
        %v4572 = vpack.c.b16 %v3100, %v3084
        %v4573 = vpack.c.b16 %v3117, %v3101
        %v4574 = vpack.c.b16 %v3118, %v3102
        %v4575 = vpack.c.b16 %v3119, %v3103
        %v4576 = vpack.c.b16 %v3120, %v3104
        %v4577 = vpack.c.b16 %v3121, %v3105
        %v4578 = vpack.c.b16 %v3122, %v3106
        %v4579 = vpack.c.b16 %v3123, %v3107
        %v4580 = vpack.c.b16 %v3124, %v3108
        %v4581 = vpack.c.b16 %v3125, %v3109
        %v4582 = vpack.c.b16 %v3126, %v3110
        %v4583 = vpack.c.b16 %v3127, %v3111
        %v4584 = vpack.c.b16 %v3128, %v3112
        %v4585 = vpack.c.b16 %v3129, %v3113
        %v4586 = vpack.c.b16 %v3130, %v3114
        %v4587 = vpack.c.b16 %v3131, %v3115
        %v4588 = vpack.c.b16 %v3132, %v3116
        %v4589 = vpack.c.b16 %v3149, %v3133
        %v4590 = vpack.c.b16 %v3150, %v3134
        %v4591 = vpack.c.b16 %v3151, %v3135
        %v4592 = vpack.c.b16 %v3152, %v3136
        %v4593 = vpack.c.b16 %v3153, %v3137
        %v4594 = vpack.c.b16 %v3154, %v3138
        %v4595 = vpack.c.b16 %v3155, %v3139
        %v4596 = vpack.c.b16 %v3156, %v3140
        %v4597 = vpack.c.b16 %v3157, %v3141
        %v4598 = vpack.c.b16 %v3158, %v3142
        %v4599 = vpack.c.b16 %v3159, %v3143
        %v4600 = vpack.c.b16 %v3160, %v3144
        %v4601 = vpack.c.b16 %v3161, %v3145
        %v4602 = vpack.c.b16 %v3162, %v3146
        %v4603 = vpack.c.b16 %v3163, %v3147
        %v4604 = vpack.c.b16 %v3164, %v3148
        %v4605 = vpack.c.b16 %v3181, %v3165
        %v4606 = vpack.c.b16 %v3182, %v3166
        %v4607 = vpack.c.b16 %v3183, %v3167
        %v4608 = vpack.c.b16 %v3184, %v3168
        %v4609 = vpack.c.b16 %v3185, %v3169
        %v4610 = vpack.c.b16 %v3186, %v3170
        %v4611 = vpack.c.b16 %v3187, %v3171
        %v4612 = vpack.c.b16 %v3188, %v3172
        %v4613 = vpack.c.b16 %v3189, %v3173
        %v4614 = vpack.c.b16 %v3190, %v3174
        %v4615 = vpack.c.b16 %v3191, %v3175
        %v4616 = vpack.c.b16 %v3192, %v3176
        %v4617 = vpack.c.b16 %v3193, %v3177
        %v4618 = vpack.c.b16 %v3194, %v3178
        %v4619 = vpack.c.b16 %v3195, %v3179
        %v4620 = vpack.c.b16 %v3196, %v3180
        %v4621 = vpack.c.b16 %v3213, %v3197
        %v4622 = vpack.c.b16 %v3214, %v3198
        %v4623 = vpack.c.b16 %v3215, %v3199
        %v4624 = vpack.c.b16 %v3216, %v3200
        %v4625 = vpack.c.b16 %v3217, %v3201
        %v4626 = vpack.c.b16 %v3218, %v3202
        %v4627 = vpack.c.b16 %v3219, %v3203
        %v4628 = vpack.c.b16 %v3220, %v3204
        %v4629 = vpack.c.b16 %v3221, %v3205
        %v4630 = vpack.c.b16 %v3222, %v3206
        %v4631 = vpack.c.b16 %v3223, %v3207
        %v4632 = vpack.c.b16 %v3224, %v3208
        %v4633 = vpack.c.b16 %v3225, %v3209
        %v4634 = vpack.c.b16 %v3226, %v3210
        %v4635 = vpack.c.b16 %v3227, %v3211
        %v4636 = vpack.c.b16 %v3228, %v3212
        %v4637 = vpack.c.b16 %v3245, %v3229
        %v4638 = vpack.c.b16 %v3246, %v3230
        %v4639 = vpack.c.b16 %v3247, %v3231
        %v4640 = vpack.c.b16 %v3248, %v3232
        %v4641 = vpack.c.b16 %v3249, %v3233
        %v4642 = vpack.c.b16 %v3250, %v3234
        %v4643 = vpack.c.b16 %v3251, %v3235
        %v4644 = vpack.c.b16 %v3252, %v3236
        %v4645 = vpack.c.b16 %v3253, %v3237
        %v4646 = vpack.c.b16 %v3254, %v3238
        %v4647 = vpack.c.b16 %v3255, %v3239
        %v4648 = vpack.c.b16 %v3256, %v3240
        %v4649 = vpack.c.b16 %v3257, %v3241
        %v4650 = vpack.c.b16 %v3258, %v3242
        %v4651 = vpack.c.b16 %v3259, %v3243
        %v4652 = vpack.c.b16 %v3260, %v3244
        %v4653 = vpack.c.b16 %v3277, %v3261
        %v4654 = vpack.c.b16 %v3278, %v3262
        %v4655 = vpack.c.b16 %v3279, %v3263
        %v4656 = vpack.c.b16 %v3280, %v3264
        %v4657 = vpack.c.b16 %v3281, %v3265
        %v4658 = vpack.c.b16 %v3282, %v3266
        %v4659 = vpack.c.b16 %v3283, %v3267
        %v4660 = vpack.c.b16 %v3284, %v3268
        %v4661 = vpack.c.b16 %v3285, %v3269
        %v4662 = vpack.c.b16 %v3286, %v3270
        %v4663 = vpack.c.b16 %v3287, %v3271
        %v4664 = vpack.c.b16 %v3288, %v3272
        %v4665 = vpack.c.b16 %v3289, %v3273
        %v4666 = vpack.c.b16 %v3290, %v3274
        %v4667 = vpack.c.b16 %v3291, %v3275
        %v4668 = vpack.c.b16 %v3292, %v3276
        %v4669 = vpack.c.b16 %v3309, %v3293
        %v4670 = vpack.c.b16 %v3310, %v3294
        %v4671 = vpack.c.b16 %v3311, %v3295
        %v4672 = vpack.c.b16 %v3312, %v3296
        %v4673 = vpack.c.b16 %v3313, %v3297
        %v4674 = vpack.c.b16 %v3314, %v3298
        %v4675 = vpack.c.b16 %v3315, %v3299
        %v4676 = vpack.c.b16 %v3316, %v3300
        %v4677 = vpack.c.b16 %v3317, %v3301
        %v4678 = vpack.c.b16 %v3318, %v3302
        %v4679 = vpack.c.b16 %v3319, %v3303
        %v4680 = vpack.c.b16 %v3320, %v3304
        %v4681 = vpack.c.b16 %v3321, %v3305
        %v4682 = vpack.c.b16 %v3322, %v3306
        %v4683 = vpack.c.b16 %v3323, %v3307
        %v4684 = vpack.c.b16 %v3324, %v3308
        %v4685 = vpack.c.b16 %v3341, %v3325
        %v4686 = vpack.c.b16 %v3342, %v3326
        %v4687 = vpack.c.b16 %v3343, %v3327
        %v4688 = vpack.c.b16 %v3344, %v3328
        %v4689 = vpack.c.b16 %v3345, %v3329
        %v4690 = vpack.c.b16 %v3346, %v3330
        %v4691 = vpack.c.b16 %v3347, %v3331
        %v4692 = vpack.c.b16 %v3348, %v3332
        %v4693 = vpack.c.b16 %v3349, %v3333
        %v4694 = vpack.c.b16 %v3350, %v3334
        %v4695 = vpack.c.b16 %v3351, %v3335
        %v4696 = vpack.c.b16 %v3352, %v3336
        %v4697 = vpack.c.b16 %v3353, %v3337
        %v4698 = vpack.c.b16 %v3354, %v3338
        %v4699 = vpack.c.b16 %v3355, %v3339
        %v4700 = vpack.c.b16 %v3356, %v3340
        %v4701 = vpack.c.b16 %v3373, %v3357
        %v4702 = vpack.c.b16 %v3374, %v3358
        %v4703 = vpack.c.b16 %v3375, %v3359
        %v4704 = vpack.c.b16 %v3376, %v3360
        %v4705 = vpack.c.b16 %v3377, %v3361
        %v4706 = vpack.c.b16 %v3378, %v3362
        %v4707 = vpack.c.b16 %v3379, %v3363
        %v4708 = vpack.c.b16 %v3380, %v3364
        %v4709 = vpack.c.b16 %v3381, %v3365
        %v4710 = vpack.c.b16 %v3382, %v3366
        %v4711 = vpack.c.b16 %v3383, %v3367
        %v4712 = vpack.c.b16 %v3384, %v3368
        %v4713 = vpack.c.b16 %v3385, %v3369
        %v4714 = vpack.c.b16 %v3386, %v3370
        %v4715 = vpack.c.b16 %v3387, %v3371
        %v4716 = vpack.c.b16 %v3388, %v3372
        %v4717 = vpack.c.b16 %v3405, %v3389
        %v4718 = vpack.c.b16 %v3406, %v3390
        %v4719 = vpack.c.b16 %v3407, %v3391
        %v4720 = vpack.c.b16 %v3408, %v3392
        %v4721 = vpack.c.b16 %v3409, %v3393
        %v4722 = vpack.c.b16 %v3410, %v3394
        %v4723 = vpack.c.b16 %v3411, %v3395
        %v4724 = vpack.c.b16 %v3412, %v3396
        %v4725 = vpack.c.b16 %v3413, %v3397
        %v4726 = vpack.c.b16 %v3414, %v3398
        %v4727 = vpack.c.b16 %v3415, %v3399
        %v4728 = vpack.c.b16 %v3416, %v3400
        %v4729 = vpack.c.b16 %v3417, %v3401
        %v4730 = vpack.c.b16 %v3418, %v3402
        %v4731 = vpack.c.b16 %v3419, %v3403
        %v4732 = vpack.c.b16 %v3420, %v3404
        %v4733 = vpack.c.b16 %v3437, %v3421
        %v4734 = vpack.c.b16 %v3438, %v3422
        %v4735 = vpack.c.b16 %v3439, %v3423
        %v4736 = vpack.c.b16 %v3440, %v3424
        %v4737 = vpack.c.b16 %v3441, %v3425
        %v4738 = vpack.c.b16 %v3442, %v3426
        %v4739 = vpack.c.b16 %v3443, %v3427
        %v4740 = vpack.c.b16 %v3444, %v3428
        %v4741 = vpack.c.b16 %v3445, %v3429
        %v4742 = vpack.c.b16 %v3446, %v3430
        %v4743 = vpack.c.b16 %v3447, %v3431
        %v4744 = vpack.c.b16 %v3448, %v3432
        %v4745 = vpack.c.b16 %v3449, %v3433
        %v4746 = vpack.c.b16 %v3450, %v3434
        %v4747 = vpack.c.b16 %v3451, %v3435
        %v4748 = vpack.c.b16 %v3452, %v3436
        %v4749 = vpack.c.b16 %v3469, %v3453
        %v4750 = vpack.c.b16 %v3470, %v3454
        %v4751 = vpack.c.b16 %v3471, %v3455
        %v4752 = vpack.c.b16 %v3472, %v3456
        %v4753 = vpack.c.b16 %v3473, %v3457
        %v4754 = vpack.c.b16 %v3474, %v3458
        %v4755 = vpack.c.b16 %v3475, %v3459
        %v4756 = vpack.c.b16 %v3476, %v3460
        %v4757 = vpack.c.b16 %v3477, %v3461
        %v4758 = vpack.c.b16 %v3478, %v3462
        %v4759 = vpack.c.b16 %v3479, %v3463
        %v4760 = vpack.c.b16 %v3480, %v3464
        %v4761 = vpack.c.b16 %v3481, %v3465
        %v4762 = vpack.c.b16 %v3482, %v3466
        %v4763 = vpack.c.b16 %v3483, %v3467
        %v4764 = vpack.c.b16 %v3484, %v3468
        %v4765 = vpack.c.b16 %v3501, %v3485
        %v4766 = vpack.c.b16 %v3502, %v3486
        %v4767 = vpack.c.b16 %v3503, %v3487
        %v4768 = vpack.c.b16 %v3504, %v3488
        %v4769 = vpack.c.b16 %v3505, %v3489
        %v4770 = vpack.c.b16 %v3506, %v3490
        %v4771 = vpack.c.b16 %v3507, %v3491
        %v4772 = vpack.c.b16 %v3508, %v3492
        %v4773 = vpack.c.b16 %v3509, %v3493
        %v4774 = vpack.c.b16 %v3510, %v3494
        %v4775 = vpack.c.b16 %v3511, %v3495
        %v4776 = vpack.c.b16 %v3512, %v3496
        %v4777 = vpack.c.b16 %v3513, %v3497
        %v4778 = vpack.c.b16 %v3514, %v3498
        %v4779 = vpack.c.b16 %v3515, %v3499
        %v4780 = vpack.c.b16 %v3516, %v3500
        %v4781 = vpack.c.b16 %v3533, %v3517
        %v4782 = vpack.c.b16 %v3534, %v3518
        %v4783 = vpack.c.b16 %v3535, %v3519
        %v4784 = vpack.c.b16 %v3536, %v3520
        %v4785 = vpack.c.b16 %v3537, %v3521
        %v4786 = vpack.c.b16 %v3538, %v3522
        %v4787 = vpack.c.b16 %v3539, %v3523
        %v4788 = vpack.c.b16 %v3540, %v3524
        %v4789 = vpack.c.b16 %v3541, %v3525
        %v4790 = vpack.c.b16 %v3542, %v3526
        %v4791 = vpack.c.b16 %v3543, %v3527
        %v4792 = vpack.c.b16 %v3544, %v3528
        %v4793 = vpack.c.b16 %v3545, %v3529
        %v4794 = vpack.c.b16 %v3546, %v3530
        %v4795 = vpack.c.b16 %v3547, %v3531
        %v4796 = vpack.c.b16 %v3548, %v3532
        %v4797 = vpack.c.b16 %v3565, %v3549
        %v4798 = vpack.c.b16 %v3566, %v3550
        %v4799 = vpack.c.b16 %v3567, %v3551
        %v4800 = vpack.c.b16 %v3568, %v3552
        %v4801 = vpack.c.b16 %v3569, %v3553
        %v4802 = vpack.c.b16 %v3570, %v3554
        %v4803 = vpack.c.b16 %v3571, %v3555
        %v4804 = vpack.c.b16 %v3572, %v3556
        %v4805 = vpack.c.b16 %v3573, %v3557
        %v4806 = vpack.c.b16 %v3574, %v3558
        %v4807 = vpack.c.b16 %v3575, %v3559
        %v4808 = vpack.c.b16 %v3576, %v3560
        %v4809 = vpack.c.b16 %v3577, %v3561
        %v4810 = vpack.c.b16 %v3578, %v3562
        %v4811 = vpack.c.b16 %v3579, %v3563
        %v4812 = vpack.c.b16 %v3580, %v3564
        %v4813 = vpack.c.b16 %v3597, %v3581
        %v4814 = vpack.c.b16 %v3598, %v3582
        %v4815 = vpack.c.b16 %v3599, %v3583
        %v4816 = vpack.c.b16 %v3600, %v3584
        %v4817 = vpack.c.b16 %v3601, %v3585
        %v4818 = vpack.c.b16 %v3602, %v3586
        %v4819 = vpack.c.b16 %v3603, %v3587
        %v4820 = vpack.c.b16 %v3604, %v3588
        %v4821 = vpack.c.b16 %v3605, %v3589
        %v4822 = vpack.c.b16 %v3606, %v3590
        %v4823 = vpack.c.b16 %v3607, %v3591
        %v4824 = vpack.c.b16 %v3608, %v3592
        %v4825 = vpack.c.b16 %v3609, %v3593
        %v4826 = vpack.c.b16 %v3610, %v3594
        %v4827 = vpack.c.b16 %v3611, %v3595
        %v4828 = vpack.c.b16 %v3612, %v3596
        %v4829 = vpack.c.b16 %v3629, %v3613
        %v4830 = vpack.c.b16 %v3630, %v3614
        %v4831 = vpack.c.b16 %v3631, %v3615
        %v4832 = vpack.c.b16 %v3632, %v3616
        %v4833 = vpack.c.b16 %v3633, %v3617
        %v4834 = vpack.c.b16 %v3634, %v3618
        %v4835 = vpack.c.b16 %v3635, %v3619
        %v4836 = vpack.c.b16 %v3636, %v3620
        %v4837 = vpack.c.b16 %v3637, %v3621
        %v4838 = vpack.c.b16 %v3638, %v3622
        %v4839 = vpack.c.b16 %v3639, %v3623
        %v4840 = vpack.c.b16 %v3640, %v3624
        %v4841 = vpack.c.b16 %v3641, %v3625
        %v4842 = vpack.c.b16 %v3642, %v3626
        %v4843 = vpack.c.b16 %v3643, %v3627
        %v4844 = vpack.c.b16 %v3644, %v3628
        %v4845 = vpack.c.b16 %v3661, %v3645
        %v4846 = vpack.c.b16 %v3662, %v3646
        %v4847 = vpack.c.b16 %v3663, %v3647
        %v4848 = vpack.c.b16 %v3664, %v3648
        %v4849 = vpack.c.b16 %v3665, %v3649
        %v4850 = vpack.c.b16 %v3666, %v3650
        %v4851 = vpack.c.b16 %v3667, %v3651
        %v4852 = vpack.c.b16 %v3668, %v3652
        %v4853 = vpack.c.b16 %v3669, %v3653
        %v4854 = vpack.c.b16 %v3670, %v3654
        %v4855 = vpack.c.b16 %v3671, %v3655
        %v4856 = vpack.c.b16 %v3672, %v3656
        %v4857 = vpack.c.b16 %v3673, %v3657
        %v4858 = vpack.c.b16 %v3674, %v3658
        %v4859 = vpack.c.b16 %v3675, %v3659
        %v4860 = vpack.c.b16 %v3676, %v3660
        %v4861 = vpack.c.b16 %v3693, %v3677
        %v4862 = vpack.c.b16 %v3694, %v3678
        %v4863 = vpack.c.b16 %v3695, %v3679
        %v4864 = vpack.c.b16 %v3696, %v3680
        %v4865 = vpack.c.b16 %v3697, %v3681
        %v4866 = vpack.c.b16 %v3698, %v3682
        %v4867 = vpack.c.b16 %v3699, %v3683
        %v4868 = vpack.c.b16 %v3700, %v3684
        %v4869 = vpack.c.b16 %v3701, %v3685
        %v4870 = vpack.c.b16 %v3702, %v3686
        %v4871 = vpack.c.b16 %v3703, %v3687
        %v4872 = vpack.c.b16 %v3704, %v3688
        %v4873 = vpack.c.b16 %v3705, %v3689
        %v4874 = vpack.c.b16 %v3706, %v3690
        %v4875 = vpack.c.b16 %v3707, %v3691
        %v4876 = vpack.c.b16 %v3708, %v3692
        %v4877 = vpack.c.b16 %v3725, %v3709
        %v4878 = vpack.c.b16 %v3726, %v3710
        %v4879 = vpack.c.b16 %v3727, %v3711
        %v4880 = vpack.c.b16 %v3728, %v3712
        %v4881 = vpack.c.b16 %v3729, %v3713
        %v4882 = vpack.c.b16 %v3730, %v3714
        %v4883 = vpack.c.b16 %v3731, %v3715
        %v4884 = vpack.c.b16 %v3732, %v3716
        %v4885 = vpack.c.b16 %v3733, %v3717
        %v4886 = vpack.c.b16 %v3734, %v3718
        %v4887 = vpack.c.b16 %v3735, %v3719
        %v4888 = vpack.c.b16 %v3736, %v3720
        %v4889 = vpack.c.b16 %v3737, %v3721
        %v4890 = vpack.c.b16 %v3738, %v3722
        %v4891 = vpack.c.b16 %v3739, %v3723
        %v4892 = vpack.c.b16 %v3740, %v3724
        %v4893 = vpack.c.b16 %v3757, %v3741
        %v4894 = vpack.c.b16 %v3758, %v3742
        %v4895 = vpack.c.b16 %v3759, %v3743
        %v4896 = vpack.c.b16 %v3760, %v3744
        %v4897 = vpack.c.b16 %v3761, %v3745
        %v4898 = vpack.c.b16 %v3762, %v3746
        %v4899 = vpack.c.b16 %v3763, %v3747
        %v4900 = vpack.c.b16 %v3764, %v3748
        %v4901 = vpack.c.b16 %v3765, %v3749
        %v4902 = vpack.c.b16 %v3766, %v3750
        %v4903 = vpack.c.b16 %v3767, %v3751
        %v4904 = vpack.c.b16 %v3768, %v3752
        %v4905 = vpack.c.b16 %v3769, %v3753
        %v4906 = vpack.c.b16 %v3770, %v3754
        %v4907 = vpack.c.b16 %v3771, %v3755
        %v4908 = vpack.c.b16 %v3772, %v3756
        %v4909 = vpack.c.b16 %v3789, %v3773
        %v4910 = vpack.c.b16 %v3790, %v3774
        %v4911 = vpack.c.b16 %v3791, %v3775
        %v4912 = vpack.c.b16 %v3792, %v3776
        %v4913 = vpack.c.b16 %v3793, %v3777
        %v4914 = vpack.c.b16 %v3794, %v3778
        %v4915 = vpack.c.b16 %v3795, %v3779
        %v4916 = vpack.c.b16 %v3796, %v3780
        %v4917 = vpack.c.b16 %v3797, %v3781
        %v4918 = vpack.c.b16 %v3798, %v3782
        %v4919 = vpack.c.b16 %v3799, %v3783
        %v4920 = vpack.c.b16 %v3800, %v3784
        %v4921 = vpack.c.b16 %v3801, %v3785
        %v4922 = vpack.c.b16 %v3802, %v3786
        %v4923 = vpack.c.b16 %v3803, %v3787
        %v4924 = vpack.c.b16 %v3804, %v3788
        %v4925 = vpack.c.b16 %v3821, %v3805
        %v4926 = vpack.c.b16 %v3822, %v3806
        %v4927 = vpack.c.b16 %v3823, %v3807
        %v4928 = vpack.c.b16 %v3824, %v3808
        %v4929 = vpack.c.b16 %v3825, %v3809
        %v4930 = vpack.c.b16 %v3826, %v3810
        %v4931 = vpack.c.b16 %v3827, %v3811
        %v4932 = vpack.c.b16 %v3828, %v3812
        %v4933 = vpack.c.b16 %v3829, %v3813
        %v4934 = vpack.c.b16 %v3830, %v3814
        %v4935 = vpack.c.b16 %v3831, %v3815
        %v4936 = vpack.c.b16 %v3832, %v3816
        %v4937 = vpack.c.b16 %v3833, %v3817
        %v4938 = vpack.c.b16 %v3834, %v3818
        %v4939 = vpack.c.b16 %v3835, %v3819
        %v4940 = vpack.c.b16 %v3836, %v3820
        %v4941 = vpack.c.b16 %v3853, %v3837
        %v4942 = vpack.c.b16 %v3854, %v3838
        %v4943 = vpack.c.b16 %v3855, %v3839
        %v4944 = vpack.c.b16 %v3856, %v3840
        %v4945 = vpack.c.b16 %v3857, %v3841
        %v4946 = vpack.c.b16 %v3858, %v3842
        %v4947 = vpack.c.b16 %v3859, %v3843
        %v4948 = vpack.c.b16 %v3860, %v3844
        %v4949 = vpack.c.b16 %v3861, %v3845
        %v4950 = vpack.c.b16 %v3862, %v3846
        %v4951 = vpack.c.b16 %v3863, %v3847
        %v4952 = vpack.c.b16 %v3864, %v3848
        %v4953 = vpack.c.b16 %v3865, %v3849
        %v4954 = vpack.c.b16 %v3866, %v3850
        %v4955 = vpack.c.b16 %v3867, %v3851
        %v4956 = vpack.c.b16 %v3868, %v3852
        %v4957 = vpack.c.b16 %v3885, %v3869
        %v4958 = vpack.c.b16 %v3886, %v3870
        %v4959 = vpack.c.b16 %v3887, %v3871
        %v4960 = vpack.c.b16 %v3888, %v3872
        %v4961 = vpack.c.b16 %v3889, %v3873
        %v4962 = vpack.c.b16 %v3890, %v3874
        %v4963 = vpack.c.b16 %v3891, %v3875
        %v4964 = vpack.c.b16 %v3892, %v3876
        %v4965 = vpack.c.b16 %v3893, %v3877
        %v4966 = vpack.c.b16 %v3894, %v3878
        %v4967 = vpack.c.b16 %v3895, %v3879
        %v4968 = vpack.c.b16 %v3896, %v3880
        %v4969 = vpack.c.b16 %v3897, %v3881
        %v4970 = vpack.c.b16 %v3898, %v3882
        %v4971 = vpack.c.b16 %v3899, %v3883
        %v4972 = vpack.c.b16 %v3900, %v3884
        %v4973 = vpack.c.b16 %v3917, %v3901
        %v4974 = vpack.c.b16 %v3918, %v3902
        %v4975 = vpack.c.b16 %v3919, %v3903
        %v4976 = vpack.c.b16 %v3920, %v3904
        %v4977 = vpack.c.b16 %v3921, %v3905
        %v4978 = vpack.c.b16 %v3922, %v3906
        %v4979 = vpack.c.b16 %v3923, %v3907
        %v4980 = vpack.c.b16 %v3924, %v3908
        %v4981 = vpack.c.b16 %v3925, %v3909
        %v4982 = vpack.c.b16 %v3926, %v3910
        %v4983 = vpack.c.b16 %v3927, %v3911
        %v4984 = vpack.c.b16 %v3928, %v3912
        %v4985 = vpack.c.b16 %v3929, %v3913
        %v4986 = vpack.c.b16 %v3930, %v3914
        %v4987 = vpack.c.b16 %v3931, %v3915
        %v4988 = vpack.c.b16 %v3932, %v3916
        %v4989 = vpack.c.b16 %v3949, %v3933
        %v4990 = vpack.c.b16 %v3950, %v3934
        %v4991 = vpack.c.b16 %v3951, %v3935
        %v4992 = vpack.c.b16 %v3952, %v3936
        %v4993 = vpack.c.b16 %v3953, %v3937
        %v4994 = vpack.c.b16 %v3954, %v3938
        %v4995 = vpack.c.b16 %v3955, %v3939
        %v4996 = vpack.c.b16 %v3956, %v3940
        %v4997 = vpack.c.b16 %v3957, %v3941
        %v4998 = vpack.c.b16 %v3958, %v3942
        %v4999 = vpack.c.b16 %v3959, %v3943
        %v5000 = vpack.c.b16 %v3960, %v3944
        %v5001 = vpack.c.b16 %v3961, %v3945
        %v5002 = vpack.c.b16 %v3962, %v3946
        %v5003 = vpack.c.b16 %v3963, %v3947
        %v5004 = vpack.c.b16 %v3964, %v3948
        %v5005 = vpack.c.b16 %v3981, %v3965
        %v5006 = vpack.c.b16 %v3982, %v3966
        %v5007 = vpack.c.b16 %v3983, %v3967
        %v5008 = vpack.c.b16 %v3984, %v3968
        %v5009 = vpack.c.b16 %v3985, %v3969
        %v5010 = vpack.c.b16 %v3986, %v3970
        %v5011 = vpack.c.b16 %v3987, %v3971
        %v5012 = vpack.c.b16 %v3988, %v3972
        %v5013 = vpack.c.b16 %v3989, %v3973
        %v5014 = vpack.c.b16 %v3990, %v3974
        %v5015 = vpack.c.b16 %v3991, %v3975
        %v5016 = vpack.c.b16 %v3992, %v3976
        %v5017 = vpack.c.b16 %v3993, %v3977
        %v5018 = vpack.c.b16 %v3994, %v3978
        %v5019 = vpack.c.b16 %v3995, %v3979
        %v5020 = vpack.c.b16 %v3996, %v3980
        %v5021 = vpack.c.b16 %v4013, %v3997
        %v5022 = vpack.c.b16 %v4014, %v3998
        %v5023 = vpack.c.b16 %v4015, %v3999
        %v5024 = vpack.c.b16 %v4016, %v4000
        %v5025 = vpack.c.b16 %v4017, %v4001
        %v5026 = vpack.c.b16 %v4018, %v4002
        %v5027 = vpack.c.b16 %v4019, %v4003
        %v5028 = vpack.c.b16 %v4020, %v4004
        %v5029 = vpack.c.b16 %v4021, %v4005
        %v5030 = vpack.c.b16 %v4022, %v4006
        %v5031 = vpack.c.b16 %v4023, %v4007
        %v5032 = vpack.c.b16 %v4024, %v4008
        %v5033 = vpack.c.b16 %v4025, %v4009
        %v5034 = vpack.c.b16 %v4026, %v4010
        %v5035 = vpack.c.b16 %v4027, %v4011
        %v5036 = vpack.c.b16 %v4028, %v4012
        %v5037 = vpack.c.b16 %v4045, %v4029
        %v5038 = vpack.c.b16 %v4046, %v4030
        %v5039 = vpack.c.b16 %v4047, %v4031
        %v5040 = vpack.c.b16 %v4048, %v4032
        %v5041 = vpack.c.b16 %v4049, %v4033
        %v5042 = vpack.c.b16 %v4050, %v4034
        %v5043 = vpack.c.b16 %v4051, %v4035
        %v5044 = vpack.c.b16 %v4052, %v4036
        %v5045 = vpack.c.b16 %v4053, %v4037
        %v5046 = vpack.c.b16 %v4054, %v4038
        %v5047 = vpack.c.b16 %v4055, %v4039
        %v5048 = vpack.c.b16 %v4056, %v4040
        %v5049 = vpack.c.b16 %v4057, %v4041
        %v5050 = vpack.c.b16 %v4058, %v4042
        %v5051 = vpack.c.b16 %v4059, %v4043
        %v5052 = vpack.c.b16 %v4060, %v4044
        %v5053 = vpack.c.b16 %v4077, %v4061
        %v5054 = vpack.c.b16 %v4078, %v4062
        %v5055 = vpack.c.b16 %v4079, %v4063
        %v5056 = vpack.c.b16 %v4080, %v4064
        %v5057 = vpack.c.b16 %v4081, %v4065
        %v5058 = vpack.c.b16 %v4082, %v4066
        %v5059 = vpack.c.b16 %v4083, %v4067
        %v5060 = vpack.c.b16 %v4084, %v4068
        %v5061 = vpack.c.b16 %v4085, %v4069
        %v5062 = vpack.c.b16 %v4086, %v4070
        %v5063 = vpack.c.b16 %v4087, %v4071
        %v5064 = vpack.c.b16 %v4088, %v4072
        %v5065 = vpack.c.b16 %v4089, %v4073
        %v5066 = vpack.c.b16 %v4090, %v4074
        %v5067 = vpack.c.b16 %v4091, %v4075
        %v5068 = vpack.c.b16 %v4092, %v4076
        %v5069 = vpack.c.b16 %v4109, %v4093
        %v5070 = vpack.c.b16 %v4110, %v4094
        %v5071 = vpack.c.b16 %v4111, %v4095
        %v5072 = vpack.c.b16 %v4112, %v4096
        %v5073 = vpack.c.b16 %v4113, %v4097
        %v5074 = vpack.c.b16 %v4114, %v4098
        %v5075 = vpack.c.b16 %v4115, %v4099
        %v5076 = vpack.c.b16 %v4116, %v4100
        %v5077 = vpack.c.b16 %v4117, %v4101
        %v5078 = vpack.c.b16 %v4118, %v4102
        %v5079 = vpack.c.b16 %v4119, %v4103
        %v5080 = vpack.c.b16 %v4120, %v4104
        %v5081 = vpack.c.b16 %v4121, %v4105
        %v5082 = vpack.c.b16 %v4122, %v4106
        %v5083 = vpack.c.b16 %v4123, %v4107
        %v5084 = vpack.c.b16 %v4124, %v4108
        %v5085 = vpack.c.b16 %v4125, %v4125
        %v5086 = vpack.c.b16 %v4126, %v4126
        %v5087 = vpack.c.b16 %v4127, %v4127
        %v5088 = vpack.c.b16 %v4128, %v4128
        %v5089 = vpack.c.b16 %v4129, %v4129
        %v5090 = vpack.c.b16 %v4130, %v4130
        %v5091 = vpack.c.b16 %v4131, %v4131
        %v5092 = vpack.c.b16 %v4132, %v4132
        %v5093 = vpack.c.b16 %v4133, %v4133
        %v5094 = vpack.c.b16 %v4134, %v4134
        %v5095 = vpack.c.b16 %v4135, %v4135
        %v5096 = vpack.c.b16 %v4136, %v4136
        %v5097 = vpack.c.b16 %v4137, %v4137
        %v5098 = vpack.c.b16 %v4138, %v4138
        %v5099 = vpack.c.b16 %v4139, %v4139
        %v5100 = vpack.c.b16 %v4140, %v4140
        %vm6045 = vcmask 457728
        %v6047 = vsel %vm6045, %v248, 0
        %vm6049 = vcmask 1043456
        %v6051 = vsel %vm6049, %v5085, 0
        %v6054 = vsel %vm6049, %v5086, 0
        %v6057 = vsel %vm6049, %v5087, 0
        %v6060 = vsel %vm6049, %v5088, 0
        %v6063 = vsel %vm6049, %v5089, 0
        %v6066 = vsel %vm6049, %v5090, 0
        %v6069 = vsel %vm6049, %v5091, 0
        %v6072 = vsel %vm6049, %v5092, 0
        %v6075 = vsel %vm6049, %v5093, 0
        %v6078 = vsel %vm6049, %v5094, 0
        %v6081 = vsel %vm6049, %v5095, 0
        %v6084 = vsel %vm6049, %v5096, 0
        %v6087 = vsel %vm6049, %v5097, 0
        %v6090 = vsel %vm6049, %v5098, 0
        %v6093 = vsel %vm6049, %v5099, 0
        %v6096 = vsel %vm6049, %v5100, 0
        %6098 = vmatprep.subr.bf16.mxu0 %v4142
        %6099 = vmatpush1.bf16.msra.mxu0 %v4141
        %6100 = vmatprep.subr.bf16.mxu0 %v4158
        %6101 = vmatpush1.bf16.msra.mxu0 %v4157
        %6102 = vmatprep.subr.bf16.mxu0 %v4174
        %6103 = vmatpush1.bf16.msra.mxu0 %v4173
        %6104 = vmatprep.subr.bf16.mxu0 %v4190
        %6105 = vmatpush1.bf16.msra.mxu0 %v4189
        %6106 = vmatprep.subr.bf16.mxu0 %v4206
        %6107 = vmatpush1.bf16.msra.mxu0 %v4205
        %6108 = vmatprep.subr.bf16.mxu0 %v4222
        %6109 = vmatpush1.bf16.msra.mxu0 %v4221
        %6110 = vmatprep.subr.bf16.mxu0 %v4238
        %6111 = vmatpush1.bf16.msra.mxu0 %v4237
        %6112 = vmatprep.subr.bf16.mxu0 %v4254
        %6113 = vmatpush1.bf16.msra.mxu0 %v4253
        %6114 = vmatprep.subr.bf16.mxu0 %v4270
        %6115 = vmatpush1.bf16.msra.mxu0 %v4269
        %6116 = vmatprep.subr.bf16.mxu0 %v4286
        %6117 = vmatpush1.bf16.msra.mxu0 %v4285
        %6118 = vmatprep.subr.bf16.mxu0 %v4302
        %6119 = vmatpush1.bf16.msra.mxu0 %v4301
        %6120 = vmatprep.subr.bf16.mxu0 %v4318
        %6121 = vmatpush1.bf16.msra.mxu0 %v4317
        %6122 = vmatprep.subr.bf16.mxu0 %v4334
        %6123 = vmatpush1.bf16.msra.mxu0 %v4333
        %6124 = vmatprep.subr.bf16.mxu0 %v4350
        %6125 = vmatpush1.bf16.msra.mxu0 %v4349
        %6126 = vmatprep.subr.bf16.mxu0 %v4366
        %6127 = vmatpush1.bf16.msra.mxu0 %v4365
        %6128 = vmatprep.subr.bf16.mxu0 %v4382
        %6129 = vmatpush1.bf16.msra.mxu0 %v4381
        %6130 = vmatprep.mubr.bf16.mxu0 %v242
        %6131 = vmatmul.mubr.bf16.gmra.mrb[0].mxu0 %v241
        %v6132 = vpop.f32.mrb[0].mxu0
        %v6133 = vadd.f32 %v1208, %v6132
        %v6134 = vpop.f32.mrb[0].mxu0
        %v6135 = vadd.f32 %v1212, %v6134
        %v6136 = vpop.f32.mrb[0].mxu0
        %v6137 = vpop.f32.mrb[0].mxu0
        %6138 = vdwg.mxu0
        %6139 = vmatprep.subr.bf16.mxu0 %v4398
        %6140 = vmatpush1.bf16.msra.mxu0 %v4397
        %6141 = vmatprep.subr.bf16.mxu0 %v4414
        %6142 = vmatpush1.bf16.msra.mxu0 %v4413
        %6143 = vmatprep.subr.bf16.mxu0 %v4430
        %6144 = vmatpush1.bf16.msra.mxu0 %v4429
        %6145 = vmatprep.subr.bf16.mxu0 %v4446
        %6146 = vmatpush1.bf16.msra.mxu0 %v4445
        %6147 = vmatprep.subr.bf16.mxu0 %v4462
        %6148 = vmatpush1.bf16.msra.mxu0 %v4461
        %6149 = vmatprep.subr.bf16.mxu0 %v4478
        %6150 = vmatpush1.bf16.msra.mxu0 %v4477
        %6151 = vmatprep.subr.bf16.mxu0 %v4494
        %6152 = vmatpush1.bf16.msra.mxu0 %v4493
        %6153 = vmatprep.subr.bf16.mxu0 %v4510
        %6154 = vmatpush1.bf16.msra.mxu0 %v4509
        %6155 = vmatprep.subr.bf16.mxu0 %v4526
        %6156 = vmatpush1.bf16.msra.mxu0 %v4525
        %6157 = vmatprep.subr.bf16.mxu0 %v4542
        %6158 = vmatpush1.bf16.msra.mxu0 %v4541
        %6159 = vmatprep.subr.bf16.mxu0 %v4558
        %6160 = vmatpush1.bf16.msra.mxu0 %v4557
        %6161 = vmatprep.subr.bf16.mxu0 %v4574
        %6162 = vmatpush1.bf16.msra.mxu0 %v4573
        %6163 = vmatprep.subr.bf16.mxu0 %v4590
        %6164 = vmatpush1.bf16.msra.mxu0 %v4589
        %6165 = vmatprep.subr.bf16.mxu0 %v4606
        %6166 = vmatpush1.bf16.msra.mxu0 %v4605
        %6167 = vmatprep.subr.bf16.mxu0 %v4622
        %6168 = vmatpush1.bf16.msra.mxu0 %v4621
        %6169 = vmatprep.subr.bf16.mxu0 %v4638
        %6170 = vmatpush1.bf16.msra.mxu0 %v4637
        %6171 = vmatprep.mubr.bf16.mxu0 %v244
        %6172 = vmatmul.mubr.bf16.gmra.mrb[0].mxu0 %v243
        %v6173 = vpop.f32.mrb[0].mxu0
        %v6174 = vadd.f32 %v6133, %v6173
        %v6175 = vpop.f32.mrb[0].mxu0
        %v6176 = vadd.f32 %v6135, %v6175
        %v6177 = vpop.f32.mrb[0].mxu0
        %v6178 = vpop.f32.mrb[0].mxu0
        %6179 = vdwg.mxu0
        %6180 = vmatprep.subr.bf16.mxu0 %v4654
        %6181 = vmatpush1.bf16.msra.mxu0 %v4653
        %6182 = vmatprep.subr.bf16.mxu0 %v4670
        %6183 = vmatpush1.bf16.msra.mxu0 %v4669
        %6184 = vmatprep.subr.bf16.mxu0 %v4686
        %6185 = vmatpush1.bf16.msra.mxu0 %v4685
        %6186 = vmatprep.subr.bf16.mxu0 %v4702
        %6187 = vmatpush1.bf16.msra.mxu0 %v4701
        %6188 = vmatprep.subr.bf16.mxu0 %v4718
        %6189 = vmatpush1.bf16.msra.mxu0 %v4717
        %6190 = vmatprep.subr.bf16.mxu0 %v4734
        %6191 = vmatpush1.bf16.msra.mxu0 %v4733
        %6192 = vmatprep.subr.bf16.mxu0 %v4750
        %6193 = vmatpush1.bf16.msra.mxu0 %v4749
        %6194 = vmatprep.subr.bf16.mxu0 %v4766
        %6195 = vmatpush1.bf16.msra.mxu0 %v4765
        %6196 = vmatprep.subr.bf16.mxu0 %v4782
        %6197 = vmatpush1.bf16.msra.mxu0 %v4781
        %6198 = vmatprep.subr.bf16.mxu0 %v4798
        %6199 = vmatpush1.bf16.msra.mxu0 %v4797
        %6200 = vmatprep.subr.bf16.mxu0 %v4814
        %6201 = vmatpush1.bf16.msra.mxu0 %v4813
        %6202 = vmatprep.subr.bf16.mxu0 %v4830
        %6203 = vmatpush1.bf16.msra.mxu0 %v4829
        %6204 = vmatprep.subr.bf16.mxu0 %v4846
        %6205 = vmatpush1.bf16.msra.mxu0 %v4845
        %6206 = vmatprep.subr.bf16.mxu0 %v4862
        %6207 = vmatpush1.bf16.msra.mxu0 %v4861
        %6208 = vmatprep.subr.bf16.mxu0 %v4878
        %6209 = vmatpush1.bf16.msra.mxu0 %v4877
        %6210 = vmatprep.subr.bf16.mxu0 %v4894
        %6211 = vmatpush1.bf16.msra.mxu0 %v4893
        %6212 = vmatprep.mubr.bf16.mxu0 %v246
        %6213 = vmatmul.mubr.bf16.gmra.mrb[0].mxu0 %v245
        %v6214 = vpop.f32.mrb[0].mxu0
        %v6215 = vadd.f32 %v6174, %v6214
        %v6216 = vpop.f32.mrb[0].mxu0
        %v6217 = vadd.f32 %v6176, %v6216
        %v6218 = vpop.f32.mrb[0].mxu0
        %v6219 = vpop.f32.mrb[0].mxu0
        %6220 = vdwg.mxu0
        %6221 = vmatprep.subr.bf16.mxu0 %v4910
        %6222 = vmatpush1.bf16.msra.mxu0 %v4909
        %6223 = vmatprep.subr.bf16.mxu0 %v4926
        %6224 = vmatpush1.bf16.msra.mxu0 %v4925
        %6225 = vmatprep.subr.bf16.mxu0 %v4942
        %6226 = vmatpush1.bf16.msra.mxu0 %v4941
        %6227 = vmatprep.subr.bf16.mxu0 %v4958
        %6228 = vmatpush1.bf16.msra.mxu0 %v4957
        %6229 = vmatprep.subr.bf16.mxu0 %v4974
        %6230 = vmatpush1.bf16.msra.mxu0 %v4973
        %6231 = vmatprep.subr.bf16.mxu0 %v4990
        %6232 = vmatpush1.bf16.msra.mxu0 %v4989
        %6233 = vmatprep.subr.bf16.mxu0 %v5006
        %6234 = vmatpush1.bf16.msra.mxu0 %v5005
        %6235 = vmatprep.subr.bf16.mxu0 %v5022
        %6236 = vmatpush1.bf16.msra.mxu0 %v5021
        %6237 = vmatprep.subr.bf16.mxu0 %v5038
        %6238 = vmatpush1.bf16.msra.mxu0 %v5037
        %6239 = vmatprep.subr.bf16.mxu0 %v5054
        %6240 = vmatpush1.bf16.msra.mxu0 %v5053
        %6241 = vmatprep.subr.bf16.mxu0 %v5070
        %6242 = vmatpush1.bf16.msra.mxu0 %v5069
        %6243 = vmatprep.subr.bf16.mxu0 %v6054
        %6244 = vmatpush1.bf16.msra.mxu0 %v6051
        %6245 = vmatprep.subr.bf16.mxu0 0
        %6246 = vmatpush1.bf16.msra.mxu0 0
        %6247 = vmatprep.subr.bf16.mxu0 0
        %6248 = vmatpush1.bf16.msra.mxu0 0
        %6249 = vmatprep.subr.bf16.mxu0 0
        %6250 = vmatpush1.bf16.msra.mxu0 0
        %6251 = vmatprep.subr.bf16.mxu0 0
        %6252 = vmatpush1.bf16.msra.mxu0 0
        %6253 = vmatprep.mubr.bf16.mxu0 %v6047
        %6254 = vmatmul.mubr.bf16.gmra.mrb[0].mxu0 %v247
        %v6255 = vpop.f32.mrb[0].mxu0
        %v6256 = vadd.f32 %v6215, %v6255
        %v6257 = vpop.f32.mrb[0].mxu0
        %v6258 = vadd.f32 %v6217, %v6257
        %v6259 = vpop.f32.mrb[0].mxu0
        %v6260 = vpop.f32.mrb[0].mxu0
        %6261 = vdwg.mxu0
        %6262 = vmatprep.subr.bf16.mxu0 %v4144
        %6263 = vmatpush1.bf16.msra.mxu0 %v4143
        %6264 = vmatprep.subr.bf16.mxu0 %v4160
        %6265 = vmatpush1.bf16.msra.mxu0 %v4159
        %6266 = vmatprep.subr.bf16.mxu0 %v4176
        %6267 = vmatpush1.bf16.msra.mxu0 %v4175
        %6268 = vmatprep.subr.bf16.mxu0 %v4192
        %6269 = vmatpush1.bf16.msra.mxu0 %v4191
        %6270 = vmatprep.subr.bf16.mxu0 %v4208
        %6271 = vmatpush1.bf16.msra.mxu0 %v4207
        %6272 = vmatprep.subr.bf16.mxu0 %v4224
        %6273 = vmatpush1.bf16.msra.mxu0 %v4223
        %6274 = vmatprep.subr.bf16.mxu0 %v4240
        %6275 = vmatpush1.bf16.msra.mxu0 %v4239
        %6276 = vmatprep.subr.bf16.mxu0 %v4256
        %6277 = vmatpush1.bf16.msra.mxu0 %v4255
        %6278 = vmatprep.subr.bf16.mxu0 %v4272
        %6279 = vmatpush1.bf16.msra.mxu0 %v4271
        %6280 = vmatprep.subr.bf16.mxu0 %v4288
        %6281 = vmatpush1.bf16.msra.mxu0 %v4287
        %6282 = vmatprep.subr.bf16.mxu0 %v4304
        %6283 = vmatpush1.bf16.msra.mxu0 %v4303
        %6284 = vmatprep.subr.bf16.mxu0 %v4320
        %6285 = vmatpush1.bf16.msra.mxu0 %v4319
        %6286 = vmatprep.subr.bf16.mxu0 %v4336
        %6287 = vmatpush1.bf16.msra.mxu0 %v4335
        %6288 = vmatprep.subr.bf16.mxu0 %v4352
        %6289 = vmatpush1.bf16.msra.mxu0 %v4351
        %6290 = vmatprep.subr.bf16.mxu0 %v4368
        %6291 = vmatpush1.bf16.msra.mxu0 %v4367
        %6292 = vmatprep.subr.bf16.mxu0 %v4384
        %6293 = vmatpush1.bf16.msra.mxu0 %v4383
        %6294 = vmatprep.mubr.bf16.mxu0 %v242
        %6295 = vmatmul.mubr.bf16.gmra.mrb[0].mxu0 %v241
        %v6296 = vpop.f32.mrb[0].mxu0
        %v6297 = vadd.f32 %v1216, %v6296
        %v6298 = vpop.f32.mrb[0].mxu0
        %v6299 = vadd.f32 %v1220, %v6298
        %v6300 = vpop.f32.mrb[0].mxu0
        %v6301 = vpop.f32.mrb[0].mxu0
        %6302 = vdwg.mxu0
        %6303 = vmatprep.subr.bf16.mxu0 %v4400
        %6304 = vmatpush1.bf16.msra.mxu0 %v4399
        %6305 = vmatprep.subr.bf16.mxu0 %v4416
        %6306 = vmatpush1.bf16.msra.mxu0 %v4415
        %6307 = vmatprep.subr.bf16.mxu0 %v4432
        %6308 = vmatpush1.bf16.msra.mxu0 %v4431
        %6309 = vmatprep.subr.bf16.mxu0 %v4448
        %6310 = vmatpush1.bf16.msra.mxu0 %v4447
        %6311 = vmatprep.subr.bf16.mxu0 %v4464
        %6312 = vmatpush1.bf16.msra.mxu0 %v4463
        %6313 = vmatprep.subr.bf16.mxu0 %v4480
        %6314 = vmatpush1.bf16.msra.mxu0 %v4479
        %6315 = vmatprep.subr.bf16.mxu0 %v4496
        %6316 = vmatpush1.bf16.msra.mxu0 %v4495
        %6317 = vmatprep.subr.bf16.mxu0 %v4512
        %6318 = vmatpush1.bf16.msra.mxu0 %v4511
        %6319 = vmatprep.subr.bf16.mxu0 %v4528
        %6320 = vmatpush1.bf16.msra.mxu0 %v4527
        %6321 = vmatprep.subr.bf16.mxu0 %v4544
        %6322 = vmatpush1.bf16.msra.mxu0 %v4543
        %6323 = vmatprep.subr.bf16.mxu0 %v4560
        %6324 = vmatpush1.bf16.msra.mxu0 %v4559
        %6325 = vmatprep.subr.bf16.mxu0 %v4576
        %6326 = vmatpush1.bf16.msra.mxu0 %v4575
        %6327 = vmatprep.subr.bf16.mxu0 %v4592
        %6328 = vmatpush1.bf16.msra.mxu0 %v4591
        %6329 = vmatprep.subr.bf16.mxu0 %v4608
        %6330 = vmatpush1.bf16.msra.mxu0 %v4607
        %6331 = vmatprep.subr.bf16.mxu0 %v4624
        %6332 = vmatpush1.bf16.msra.mxu0 %v4623
        %6333 = vmatprep.subr.bf16.mxu0 %v4640
        %6334 = vmatpush1.bf16.msra.mxu0 %v4639
        %6335 = vmatprep.mubr.bf16.mxu0 %v244
        %6336 = vmatmul.mubr.bf16.gmra.mrb[0].mxu0 %v243
        %v6337 = vpop.f32.mrb[0].mxu0
        %v6338 = vadd.f32 %v6297, %v6337
        %v6339 = vpop.f32.mrb[0].mxu0
        %v6340 = vadd.f32 %v6299, %v6339
        %v6341 = vpop.f32.mrb[0].mxu0
        %v6342 = vpop.f32.mrb[0].mxu0
        %6343 = vdwg.mxu0
        %6344 = vmatprep.subr.bf16.mxu0 %v4656
        %6345 = vmatpush1.bf16.msra.mxu0 %v4655
        %6346 = vmatprep.subr.bf16.mxu0 %v4672
        %6347 = vmatpush1.bf16.msra.mxu0 %v4671
        %6348 = vmatprep.subr.bf16.mxu0 %v4688
        %6349 = vmatpush1.bf16.msra.mxu0 %v4687
        %6350 = vmatprep.subr.bf16.mxu0 %v4704
        %6351 = vmatpush1.bf16.msra.mxu0 %v4703
        %6352 = vmatprep.subr.bf16.mxu0 %v4720
        %6353 = vmatpush1.bf16.msra.mxu0 %v4719
        %6354 = vmatprep.subr.bf16.mxu0 %v4736
        %6355 = vmatpush1.bf16.msra.mxu0 %v4735
        %6356 = vmatprep.subr.bf16.mxu0 %v4752
        %6357 = vmatpush1.bf16.msra.mxu0 %v4751
        %6358 = vmatprep.subr.bf16.mxu0 %v4768
        %6359 = vmatpush1.bf16.msra.mxu0 %v4767
        %6360 = vmatprep.subr.bf16.mxu0 %v4784
        %6361 = vmatpush1.bf16.msra.mxu0 %v4783
        %6362 = vmatprep.subr.bf16.mxu0 %v4800
        %6363 = vmatpush1.bf16.msra.mxu0 %v4799
        %6364 = vmatprep.subr.bf16.mxu0 %v4816
        %6365 = vmatpush1.bf16.msra.mxu0 %v4815
        %6366 = vmatprep.subr.bf16.mxu0 %v4832
        %6367 = vmatpush1.bf16.msra.mxu0 %v4831
        %6368 = vmatprep.subr.bf16.mxu0 %v4848
        %6369 = vmatpush1.bf16.msra.mxu0 %v4847
        %6370 = vmatprep.subr.bf16.mxu0 %v4864
        %6371 = vmatpush1.bf16.msra.mxu0 %v4863
        %6372 = vmatprep.subr.bf16.mxu0 %v4880
        %6373 = vmatpush1.bf16.msra.mxu0 %v4879
        %6374 = vmatprep.subr.bf16.mxu0 %v4896
        %6375 = vmatpush1.bf16.msra.mxu0 %v4895
        %6376 = vmatprep.mubr.bf16.mxu0 %v246
        %6377 = vmatmul.mubr.bf16.gmra.mrb[0].mxu0 %v245
        %v6378 = vpop.f32.mrb[0].mxu0
        %v6379 = vadd.f32 %v6338, %v6378
        %v6380 = vpop.f32.mrb[0].mxu0
        %v6381 = vadd.f32 %v6340, %v6380
        %v6382 = vpop.f32.mrb[0].mxu0
        %v6383 = vpop.f32.mrb[0].mxu0
        %6384 = vdwg.mxu0
        %6385 = vmatprep.subr.bf16.mxu0 %v4912
        %6386 = vmatpush1.bf16.msra.mxu0 %v4911
        %6387 = vmatprep.subr.bf16.mxu0 %v4928
        %6388 = vmatpush1.bf16.msra.mxu0 %v4927
        %6389 = vmatprep.subr.bf16.mxu0 %v4944
        %6390 = vmatpush1.bf16.msra.mxu0 %v4943
        %6391 = vmatprep.subr.bf16.mxu0 %v4960
        %6392 = vmatpush1.bf16.msra.mxu0 %v4959
        %6393 = vmatprep.subr.bf16.mxu0 %v4976
        %6394 = vmatpush1.bf16.msra.mxu0 %v4975
        %6395 = vmatprep.subr.bf16.mxu0 %v4992
        %6396 = vmatpush1.bf16.msra.mxu0 %v4991
        %6397 = vmatprep.subr.bf16.mxu0 %v5008
        %6398 = vmatpush1.bf16.msra.mxu0 %v5007
        %6399 = vmatprep.subr.bf16.mxu0 %v5024
        %6400 = vmatpush1.bf16.msra.mxu0 %v5023
        %6401 = vmatprep.subr.bf16.mxu0 %v5040
        %6402 = vmatpush1.bf16.msra.mxu0 %v5039
        %6403 = vmatprep.subr.bf16.mxu0 %v5056
        %6404 = vmatpush1.bf16.msra.mxu0 %v5055
        %6405 = vmatprep.subr.bf16.mxu0 %v5072
        %6406 = vmatpush1.bf16.msra.mxu0 %v5071
        %6407 = vmatprep.subr.bf16.mxu0 %v6060
        %6408 = vmatpush1.bf16.msra.mxu0 %v6057
        %6409 = vmatprep.subr.bf16.mxu0 0
        %6410 = vmatpush1.bf16.msra.mxu0 0
        %6411 = vmatprep.subr.bf16.mxu0 0
        %6412 = vmatpush1.bf16.msra.mxu0 0
        %6413 = vmatprep.subr.bf16.mxu0 0
        %6414 = vmatpush1.bf16.msra.mxu0 0
        %6415 = vmatprep.subr.bf16.mxu0 0
        %6416 = vmatpush1.bf16.msra.mxu0 0
        %6417 = vmatprep.mubr.bf16.mxu0 %v6047
        %6418 = vmatmul.mubr.bf16.gmra.mrb[0].mxu0 %v247
        %v6419 = vpop.f32.mrb[0].mxu0
        %v6420 = vadd.f32 %v6379, %v6419
        %v6421 = vpop.f32.mrb[0].mxu0
        %v6422 = vadd.f32 %v6381, %v6421
        %v6423 = vpop.f32.mrb[0].mxu0
        %v6424 = vpop.f32.mrb[0].mxu0
        %6425 = vdwg.mxu0
        %6426 = vmatprep.subr.bf16.mxu0 %v4146
        %6427 = vmatpush1.bf16.msra.mxu0 %v4145
        %6428 = vmatprep.subr.bf16.mxu0 %v4162
        %6429 = vmatpush1.bf16.msra.mxu0 %v4161
        %6430 = vmatprep.subr.bf16.mxu0 %v4178
        %6431 = vmatpush1.bf16.msra.mxu0 %v4177
        %6432 = vmatprep.subr.bf16.mxu0 %v4194
        %6433 = vmatpush1.bf16.msra.mxu0 %v4193
        %6434 = vmatprep.subr.bf16.mxu0 %v4210
        %6435 = vmatpush1.bf16.msra.mxu0 %v4209
        %6436 = vmatprep.subr.bf16.mxu0 %v4226
        %6437 = vmatpush1.bf16.msra.mxu0 %v4225
        %6438 = vmatprep.subr.bf16.mxu0 %v4242
        %6439 = vmatpush1.bf16.msra.mxu0 %v4241
        %6440 = vmatprep.subr.bf16.mxu0 %v4258
        %6441 = vmatpush1.bf16.msra.mxu0 %v4257
        %6442 = vmatprep.subr.bf16.mxu0 %v4274
        %6443 = vmatpush1.bf16.msra.mxu0 %v4273
        %6444 = vmatprep.subr.bf16.mxu0 %v4290
        %6445 = vmatpush1.bf16.msra.mxu0 %v4289
        %6446 = vmatprep.subr.bf16.mxu0 %v4306
        %6447 = vmatpush1.bf16.msra.mxu0 %v4305
        %6448 = vmatprep.subr.bf16.mxu0 %v4322
        %6449 = vmatpush1.bf16.msra.mxu0 %v4321
        %6450 = vmatprep.subr.bf16.mxu0 %v4338
        %6451 = vmatpush1.bf16.msra.mxu0 %v4337
        %6452 = vmatprep.subr.bf16.mxu0 %v4354
        %6453 = vmatpush1.bf16.msra.mxu0 %v4353
        %6454 = vmatprep.subr.bf16.mxu0 %v4370
        %6455 = vmatpush1.bf16.msra.mxu0 %v4369
        %6456 = vmatprep.subr.bf16.mxu0 %v4386
        %6457 = vmatpush1.bf16.msra.mxu0 %v4385
        %6458 = vmatprep.mubr.bf16.mxu0 %v242
        %6459 = vmatmul.mubr.bf16.gmra.mrb[0].mxu0 %v241
        %v6460 = vpop.f32.mrb[0].mxu0
        %v6461 = vadd.f32 %v1224, %v6460
        %v6462 = vpop.f32.mrb[0].mxu0
        %v6463 = vadd.f32 %v1228, %v6462
        %v6464 = vpop.f32.mrb[0].mxu0
        %v6465 = vpop.f32.mrb[0].mxu0
        %6466 = vdwg.mxu0
        %6467 = vmatprep.subr.bf16.mxu0 %v4402
        %6468 = vmatpush1.bf16.msra.mxu0 %v4401
        %6469 = vmatprep.subr.bf16.mxu0 %v4418
        %6470 = vmatpush1.bf16.msra.mxu0 %v4417
        %6471 = vmatprep.subr.bf16.mxu0 %v4434
        %6472 = vmatpush1.bf16.msra.mxu0 %v4433
        %6473 = vmatprep.subr.bf16.mxu0 %v4450
        %6474 = vmatpush1.bf16.msra.mxu0 %v4449
        %6475 = vmatprep.subr.bf16.mxu0 %v4466
        %6476 = vmatpush1.bf16.msra.mxu0 %v4465
        %6477 = vmatprep.subr.bf16.mxu0 %v4482
        %6478 = vmatpush1.bf16.msra.mxu0 %v4481
        %6479 = vmatprep.subr.bf16.mxu0 %v4498
        %6480 = vmatpush1.bf16.msra.mxu0 %v4497
        %6481 = vmatprep.subr.bf16.mxu0 %v4514
        %6482 = vmatpush1.bf16.msra.mxu0 %v4513
        %6483 = vmatprep.subr.bf16.mxu0 %v4530
        %6484 = vmatpush1.bf16.msra.mxu0 %v4529
        %6485 = vmatprep.subr.bf16.mxu0 %v4546
        %6486 = vmatpush1.bf16.msra.mxu0 %v4545
        %6487 = vmatprep.subr.bf16.mxu0 %v4562
        %6488 = vmatpush1.bf16.msra.mxu0 %v4561
        %6489 = vmatprep.subr.bf16.mxu0 %v4578
        %6490 = vmatpush1.bf16.msra.mxu0 %v4577
        %6491 = vmatprep.subr.bf16.mxu0 %v4594
        %6492 = vmatpush1.bf16.msra.mxu0 %v4593
        %6493 = vmatprep.subr.bf16.mxu0 %v4610
        %6494 = vmatpush1.bf16.msra.mxu0 %v4609
        %6495 = vmatprep.subr.bf16.mxu0 %v4626
        %6496 = vmatpush1.bf16.msra.mxu0 %v4625
        %6497 = vmatprep.subr.bf16.mxu0 %v4642
        %6498 = vmatpush1.bf16.msra.mxu0 %v4641
        %6499 = vmatprep.mubr.bf16.mxu0 %v244
        %6500 = vmatmul.mubr.bf16.gmra.mrb[0].mxu0 %v243
        %v6501 = vpop.f32.mrb[0].mxu0
        %v6502 = vadd.f32 %v6461, %v6501
        %v6503 = vpop.f32.mrb[0].mxu0
        %v6504 = vadd.f32 %v6463, %v6503
        %v6505 = vpop.f32.mrb[0].mxu0
        %v6506 = vpop.f32.mrb[0].mxu0
        %6507 = vdwg.mxu0
        %6508 = vmatprep.subr.bf16.mxu0 %v4658
        %6509 = vmatpush1.bf16.msra.mxu0 %v4657
        %6510 = vmatprep.subr.bf16.mxu0 %v4674
        %6511 = vmatpush1.bf16.msra.mxu0 %v4673
        %6512 = vmatprep.subr.bf16.mxu0 %v4690
        %6513 = vmatpush1.bf16.msra.mxu0 %v4689
        %6514 = vmatprep.subr.bf16.mxu0 %v4706
        %6515 = vmatpush1.bf16.msra.mxu0 %v4705
        %6516 = vmatprep.subr.bf16.mxu0 %v4722
        %6517 = vmatpush1.bf16.msra.mxu0 %v4721
        %6518 = vmatprep.subr.bf16.mxu0 %v4738
        %6519 = vmatpush1.bf16.msra.mxu0 %v4737
        %6520 = vmatprep.subr.bf16.mxu0 %v4754
        %6521 = vmatpush1.bf16.msra.mxu0 %v4753
        %6522 = vmatprep.subr.bf16.mxu0 %v4770
        %6523 = vmatpush1.bf16.msra.mxu0 %v4769
        %6524 = vmatprep.subr.bf16.mxu0 %v4786
        %6525 = vmatpush1.bf16.msra.mxu0 %v4785
        %6526 = vmatprep.subr.bf16.mxu0 %v4802
        %6527 = vmatpush1.bf16.msra.mxu0 %v4801
        %6528 = vmatprep.subr.bf16.mxu0 %v4818
        %6529 = vmatpush1.bf16.msra.mxu0 %v4817
        %6530 = vmatprep.subr.bf16.mxu0 %v4834
        %6531 = vmatpush1.bf16.msra.mxu0 %v4833
        %6532 = vmatprep.subr.bf16.mxu0 %v4850
        %6533 = vmatpush1.bf16.msra.mxu0 %v4849
        %6534 = vmatprep.subr.bf16.mxu0 %v4866
        %6535 = vmatpush1.bf16.msra.mxu0 %v4865
        %6536 = vmatprep.subr.bf16.mxu0 %v4882
        %6537 = vmatpush1.bf16.msra.mxu0 %v4881
        %6538 = vmatprep.subr.bf16.mxu0 %v4898
        %6539 = vmatpush1.bf16.msra.mxu0 %v4897
        %6540 = vmatprep.mubr.bf16.mxu0 %v246
        %6541 = vmatmul.mubr.bf16.gmra.mrb[0].mxu0 %v245
        %v6542 = vpop.f32.mrb[0].mxu0
        %v6543 = vadd.f32 %v6502, %v6542
        %v6544 = vpop.f32.mrb[0].mxu0
        %v6545 = vadd.f32 %v6504, %v6544
        %v6546 = vpop.f32.mrb[0].mxu0
        %v6547 = vpop.f32.mrb[0].mxu0
        %6548 = vdwg.mxu0
        %6549 = vmatprep.subr.bf16.mxu0 %v4914
        %6550 = vmatpush1.bf16.msra.mxu0 %v4913
        %6551 = vmatprep.subr.bf16.mxu0 %v4930
        %6552 = vmatpush1.bf16.msra.mxu0 %v4929
        %6553 = vmatprep.subr.bf16.mxu0 %v4946
        %6554 = vmatpush1.bf16.msra.mxu0 %v4945
        %6555 = vmatprep.subr.bf16.mxu0 %v4962
        %6556 = vmatpush1.bf16.msra.mxu0 %v4961
        %6557 = vmatprep.subr.bf16.mxu0 %v4978
        %6558 = vmatpush1.bf16.msra.mxu0 %v4977
        %6559 = vmatprep.subr.bf16.mxu0 %v4994
        %6560 = vmatpush1.bf16.msra.mxu0 %v4993
        %6561 = vmatprep.subr.bf16.mxu0 %v5010
        %6562 = vmatpush1.bf16.msra.mxu0 %v5009
        %6563 = vmatprep.subr.bf16.mxu0 %v5026
        %6564 = vmatpush1.bf16.msra.mxu0 %v5025
        %6565 = vmatprep.subr.bf16.mxu0 %v5042
        %6566 = vmatpush1.bf16.msra.mxu0 %v5041
        %6567 = vmatprep.subr.bf16.mxu0 %v5058
        %6568 = vmatpush1.bf16.msra.mxu0 %v5057
        %6569 = vmatprep.subr.bf16.mxu0 %v5074
        %6570 = vmatpush1.bf16.msra.mxu0 %v5073
        %6571 = vmatprep.subr.bf16.mxu0 %v6066
        %6572 = vmatpush1.bf16.msra.mxu0 %v6063
        %6573 = vmatprep.subr.bf16.mxu0 0
        %6574 = vmatpush1.bf16.msra.mxu0 0
        %6575 = vmatprep.subr.bf16.mxu0 0
        %6576 = vmatpush1.bf16.msra.mxu0 0
        %6577 = vmatprep.subr.bf16.mxu0 0
        %6578 = vmatpush1.bf16.msra.mxu0 0
        %6579 = vmatprep.subr.bf16.mxu0 0
        %6580 = vmatpush1.bf16.msra.mxu0 0
        %6581 = vmatprep.mubr.bf16.mxu0 %v6047
        %6582 = vmatmul.mubr.bf16.gmra.mrb[0].mxu0 %v247
        %v6583 = vpop.f32.mrb[0].mxu0
        %v6584 = vadd.f32 %v6543, %v6583
        %v6585 = vpop.f32.mrb[0].mxu0
        %v6586 = vadd.f32 %v6545, %v6585
        %v6587 = vpop.f32.mrb[0].mxu0
        %v6588 = vpop.f32.mrb[0].mxu0
        %6589 = vdwg.mxu0
        %6590 = vmatprep.subr.bf16.mxu0 %v4148
        %6591 = vmatpush1.bf16.msra.mxu0 %v4147
        %6592 = vmatprep.subr.bf16.mxu0 %v4164
        %6593 = vmatpush1.bf16.msra.mxu0 %v4163
        %6594 = vmatprep.subr.bf16.mxu0 %v4180
        %6595 = vmatpush1.bf16.msra.mxu0 %v4179
        %6596 = vmatprep.subr.bf16.mxu0 %v4196
        %6597 = vmatpush1.bf16.msra.mxu0 %v4195
        %6598 = vmatprep.subr.bf16.mxu0 %v4212
        %6599 = vmatpush1.bf16.msra.mxu0 %v4211
        %6600 = vmatprep.subr.bf16.mxu0 %v4228
        %6601 = vmatpush1.bf16.msra.mxu0 %v4227
        %6602 = vmatprep.subr.bf16.mxu0 %v4244
        %6603 = vmatpush1.bf16.msra.mxu0 %v4243
        %6604 = vmatprep.subr.bf16.mxu0 %v4260
        %6605 = vmatpush1.bf16.msra.mxu0 %v4259
        %6606 = vmatprep.subr.bf16.mxu0 %v4276
        %6607 = vmatpush1.bf16.msra.mxu0 %v4275
        %6608 = vmatprep.subr.bf16.mxu0 %v4292
        %6609 = vmatpush1.bf16.msra.mxu0 %v4291
        %6610 = vmatprep.subr.bf16.mxu0 %v4308
        %6611 = vmatpush1.bf16.msra.mxu0 %v4307
        %6612 = vmatprep.subr.bf16.mxu0 %v4324
        %6613 = vmatpush1.bf16.msra.mxu0 %v4323
        %6614 = vmatprep.subr.bf16.mxu0 %v4340
        %6615 = vmatpush1.bf16.msra.mxu0 %v4339
        %6616 = vmatprep.subr.bf16.mxu0 %v4356
        %6617 = vmatpush1.bf16.msra.mxu0 %v4355
        %6618 = vmatprep.subr.bf16.mxu0 %v4372
        %6619 = vmatpush1.bf16.msra.mxu0 %v4371
        %6620 = vmatprep.subr.bf16.mxu0 %v4388
        %6621 = vmatpush1.bf16.msra.mxu0 %v4387
        %6622 = vmatprep.mubr.bf16.mxu0 %v242
        %6623 = vmatmul.mubr.bf16.gmra.mrb[0].mxu0 %v241
        %v6624 = vpop.f32.mrb[0].mxu0
        %v6625 = vadd.f32 %v1232, %v6624
        %v6626 = vpop.f32.mrb[0].mxu0
        %v6627 = vadd.f32 %v1236, %v6626
        %v6628 = vpop.f32.mrb[0].mxu0
        %v6629 = vpop.f32.mrb[0].mxu0
        %6630 = vdwg.mxu0
        %6631 = vmatprep.subr.bf16.mxu0 %v4404
        %6632 = vmatpush1.bf16.msra.mxu0 %v4403
        %6633 = vmatprep.subr.bf16.mxu0 %v4420
        %6634 = vmatpush1.bf16.msra.mxu0 %v4419
        %6635 = vmatprep.subr.bf16.mxu0 %v4436
        %6636 = vmatpush1.bf16.msra.mxu0 %v4435
        %6637 = vmatprep.subr.bf16.mxu0 %v4452
        %6638 = vmatpush1.bf16.msra.mxu0 %v4451
        %6639 = vmatprep.subr.bf16.mxu0 %v4468
        %6640 = vmatpush1.bf16.msra.mxu0 %v4467
        %6641 = vmatprep.subr.bf16.mxu0 %v4484
        %6642 = vmatpush1.bf16.msra.mxu0 %v4483
        %6643 = vmatprep.subr.bf16.mxu0 %v4500
        %6644 = vmatpush1.bf16.msra.mxu0 %v4499
        %6645 = vmatprep.subr.bf16.mxu0 %v4516
        %6646 = vmatpush1.bf16.msra.mxu0 %v4515
        %6647 = vmatprep.subr.bf16.mxu0 %v4532
        %6648 = vmatpush1.bf16.msra.mxu0 %v4531
        %6649 = vmatprep.subr.bf16.mxu0 %v4548
        %6650 = vmatpush1.bf16.msra.mxu0 %v4547
        %6651 = vmatprep.subr.bf16.mxu0 %v4564
        %6652 = vmatpush1.bf16.msra.mxu0 %v4563
        %6653 = vmatprep.subr.bf16.mxu0 %v4580
        %6654 = vmatpush1.bf16.msra.mxu0 %v4579
        %6655 = vmatprep.subr.bf16.mxu0 %v4596
        %6656 = vmatpush1.bf16.msra.mxu0 %v4595
        %6657 = vmatprep.subr.bf16.mxu0 %v4612
        %6658 = vmatpush1.bf16.msra.mxu0 %v4611
        %6659 = vmatprep.subr.bf16.mxu0 %v4628
        %6660 = vmatpush1.bf16.msra.mxu0 %v4627
        %6661 = vmatprep.subr.bf16.mxu0 %v4644
        %6662 = vmatpush1.bf16.msra.mxu0 %v4643
        %6663 = vmatprep.mubr.bf16.mxu0 %v244
        %6664 = vmatmul.mubr.bf16.gmra.mrb[0].mxu0 %v243
        %v6665 = vpop.f32.mrb[0].mxu0
        %v6666 = vadd.f32 %v6625, %v6665
        %v6667 = vpop.f32.mrb[0].mxu0
        %v6668 = vadd.f32 %v6627, %v6667
        %v6669 = vpop.f32.mrb[0].mxu0
        %v6670 = vpop.f32.mrb[0].mxu0
        %6671 = vdwg.mxu0
        %6672 = vmatprep.subr.bf16.mxu0 %v4660
        %6673 = vmatpush1.bf16.msra.mxu0 %v4659
        %6674 = vmatprep.subr.bf16.mxu0 %v4676
        %6675 = vmatpush1.bf16.msra.mxu0 %v4675
        %6676 = vmatprep.subr.bf16.mxu0 %v4692
        %6677 = vmatpush1.bf16.msra.mxu0 %v4691
        %6678 = vmatprep.subr.bf16.mxu0 %v4708
        %6679 = vmatpush1.bf16.msra.mxu0 %v4707
        %6680 = vmatprep.subr.bf16.mxu0 %v4724
        %6681 = vmatpush1.bf16.msra.mxu0 %v4723
        %6682 = vmatprep.subr.bf16.mxu0 %v4740
        %6683 = vmatpush1.bf16.msra.mxu0 %v4739
        %6684 = vmatprep.subr.bf16.mxu0 %v4756
        %6685 = vmatpush1.bf16.msra.mxu0 %v4755
        %6686 = vmatprep.subr.bf16.mxu0 %v4772
        %6687 = vmatpush1.bf16.msra.mxu0 %v4771
        %6688 = vmatprep.subr.bf16.mxu0 %v4788
        %6689 = vmatpush1.bf16.msra.mxu0 %v4787
        %6690 = vmatprep.subr.bf16.mxu0 %v4804
        %6691 = vmatpush1.bf16.msra.mxu0 %v4803
        %6692 = vmatprep.subr.bf16.mxu0 %v4820
        %6693 = vmatpush1.bf16.msra.mxu0 %v4819
        %6694 = vmatprep.subr.bf16.mxu0 %v4836
        %6695 = vmatpush1.bf16.msra.mxu0 %v4835
        %6696 = vmatprep.subr.bf16.mxu0 %v4852
        %6697 = vmatpush1.bf16.msra.mxu0 %v4851
        %6698 = vmatprep.subr.bf16.mxu0 %v4868
        %6699 = vmatpush1.bf16.msra.mxu0 %v4867
        %6700 = vmatprep.subr.bf16.mxu0 %v4884
        %6701 = vmatpush1.bf16.msra.mxu0 %v4883
        %6702 = vmatprep.subr.bf16.mxu0 %v4900
        %6703 = vmatpush1.bf16.msra.mxu0 %v4899
        %6704 = vmatprep.mubr.bf16.mxu0 %v246
        %6705 = vmatmul.mubr.bf16.gmra.mrb[0].mxu0 %v245
        %v6706 = vpop.f32.mrb[0].mxu0
        %v6707 = vadd.f32 %v6666, %v6706
        %v6708 = vpop.f32.mrb[0].mxu0
        %v6709 = vadd.f32 %v6668, %v6708
        %v6710 = vpop.f32.mrb[0].mxu0
        %v6711 = vpop.f32.mrb[0].mxu0
        %6712 = vdwg.mxu0
        %6713 = vmatprep.subr.bf16.mxu0 %v4916
        %6714 = vmatpush1.bf16.msra.mxu0 %v4915
        %6715 = vmatprep.subr.bf16.mxu0 %v4932
        %6716 = vmatpush1.bf16.msra.mxu0 %v4931
        %6717 = vmatprep.subr.bf16.mxu0 %v4948
        %6718 = vmatpush1.bf16.msra.mxu0 %v4947
        %6719 = vmatprep.subr.bf16.mxu0 %v4964
        %6720 = vmatpush1.bf16.msra.mxu0 %v4963
        %6721 = vmatprep.subr.bf16.mxu0 %v4980
        %6722 = vmatpush1.bf16.msra.mxu0 %v4979
        %6723 = vmatprep.subr.bf16.mxu0 %v4996
        %6724 = vmatpush1.bf16.msra.mxu0 %v4995
        %6725 = vmatprep.subr.bf16.mxu0 %v5012
        %6726 = vmatpush1.bf16.msra.mxu0 %v5011
        %6727 = vmatprep.subr.bf16.mxu0 %v5028
        %6728 = vmatpush1.bf16.msra.mxu0 %v5027
        %6729 = vmatprep.subr.bf16.mxu0 %v5044
        %6730 = vmatpush1.bf16.msra.mxu0 %v5043
        %6731 = vmatprep.subr.bf16.mxu0 %v5060
        %6732 = vmatpush1.bf16.msra.mxu0 %v5059
        %6733 = vmatprep.subr.bf16.mxu0 %v5076
        %6734 = vmatpush1.bf16.msra.mxu0 %v5075
        %6735 = vmatprep.subr.bf16.mxu0 %v6072
        %6736 = vmatpush1.bf16.msra.mxu0 %v6069
        %6737 = vmatprep.subr.bf16.mxu0 0
        %6738 = vmatpush1.bf16.msra.mxu0 0
        %6739 = vmatprep.subr.bf16.mxu0 0
        %6740 = vmatpush1.bf16.msra.mxu0 0
        %6741 = vmatprep.subr.bf16.mxu0 0
        %6742 = vmatpush1.bf16.msra.mxu0 0
        %6743 = vmatprep.subr.bf16.mxu0 0
        %6744 = vmatpush1.bf16.msra.mxu0 0
        %6745 = vmatprep.mubr.bf16.mxu0 %v6047
        %6746 = vmatmul.mubr.bf16.gmra.mrb[0].mxu0 %v247
        %v6747 = vpop.f32.mrb[0].mxu0
        %v6748 = vadd.f32 %v6707, %v6747
        %v6749 = vpop.f32.mrb[0].mxu0
        %v6750 = vadd.f32 %v6709, %v6749
        %v6751 = vpop.f32.mrb[0].mxu0
        %v6752 = vpop.f32.mrb[0].mxu0
        %6753 = vdwg.mxu0
        %6754 = vmatprep.subr.bf16.mxu0 %v4150
        %6755 = vmatpush1.bf16.msra.mxu0 %v4149
        %6756 = vmatprep.subr.bf16.mxu0 %v4166
        %6757 = vmatpush1.bf16.msra.mxu0 %v4165
        %6758 = vmatprep.subr.bf16.mxu0 %v4182
        %6759 = vmatpush1.bf16.msra.mxu0 %v4181
        %6760 = vmatprep.subr.bf16.mxu0 %v4198
        %6761 = vmatpush1.bf16.msra.mxu0 %v4197
        %6762 = vmatprep.subr.bf16.mxu0 %v4214
        %6763 = vmatpush1.bf16.msra.mxu0 %v4213
        %6764 = vmatprep.subr.bf16.mxu0 %v4230
        %6765 = vmatpush1.bf16.msra.mxu0 %v4229
        %6766 = vmatprep.subr.bf16.mxu0 %v4246
        %6767 = vmatpush1.bf16.msra.mxu0 %v4245
        %6768 = vmatprep.subr.bf16.mxu0 %v4262
        %6769 = vmatpush1.bf16.msra.mxu0 %v4261
        %6770 = vmatprep.subr.bf16.mxu0 %v4278
        %6771 = vmatpush1.bf16.msra.mxu0 %v4277
        %6772 = vmatprep.subr.bf16.mxu0 %v4294
        %6773 = vmatpush1.bf16.msra.mxu0 %v4293
        %6774 = vmatprep.subr.bf16.mxu0 %v4310
        %6775 = vmatpush1.bf16.msra.mxu0 %v4309
        %6776 = vmatprep.subr.bf16.mxu0 %v4326
        %6777 = vmatpush1.bf16.msra.mxu0 %v4325
        %6778 = vmatprep.subr.bf16.mxu0 %v4342
        %6779 = vmatpush1.bf16.msra.mxu0 %v4341
        %6780 = vmatprep.subr.bf16.mxu0 %v4358
        %6781 = vmatpush1.bf16.msra.mxu0 %v4357
        %6782 = vmatprep.subr.bf16.mxu0 %v4374
        %6783 = vmatpush1.bf16.msra.mxu0 %v4373
        %6784 = vmatprep.subr.bf16.mxu0 %v4390
        %6785 = vmatpush1.bf16.msra.mxu0 %v4389
        %6786 = vmatprep.mubr.bf16.mxu0 %v242
        %6787 = vmatmul.mubr.bf16.gmra.mrb[0].mxu0 %v241
        %v6788 = vpop.f32.mrb[0].mxu0
        %v6789 = vadd.f32 %v1240, %v6788
        %v6790 = vpop.f32.mrb[0].mxu0
        %v6791 = vadd.f32 %v1244, %v6790
        %v6792 = vpop.f32.mrb[0].mxu0
        %v6793 = vpop.f32.mrb[0].mxu0
        %6794 = vdwg.mxu0
        %6795 = vmatprep.subr.bf16.mxu0 %v4406
        %6796 = vmatpush1.bf16.msra.mxu0 %v4405
        %6797 = vmatprep.subr.bf16.mxu0 %v4422
        %6798 = vmatpush1.bf16.msra.mxu0 %v4421
        %6799 = vmatprep.subr.bf16.mxu0 %v4438
        %6800 = vmatpush1.bf16.msra.mxu0 %v4437
        %6801 = vmatprep.subr.bf16.mxu0 %v4454
        %6802 = vmatpush1.bf16.msra.mxu0 %v4453
        %6803 = vmatprep.subr.bf16.mxu0 %v4470
        %6804 = vmatpush1.bf16.msra.mxu0 %v4469
        %6805 = vmatprep.subr.bf16.mxu0 %v4486
        %6806 = vmatpush1.bf16.msra.mxu0 %v4485
        %6807 = vmatprep.subr.bf16.mxu0 %v4502
        %6808 = vmatpush1.bf16.msra.mxu0 %v4501
        %6809 = vmatprep.subr.bf16.mxu0 %v4518
        %6810 = vmatpush1.bf16.msra.mxu0 %v4517
        %6811 = vmatprep.subr.bf16.mxu0 %v4534
        %6812 = vmatpush1.bf16.msra.mxu0 %v4533
        %6813 = vmatprep.subr.bf16.mxu0 %v4550
        %6814 = vmatpush1.bf16.msra.mxu0 %v4549
        %6815 = vmatprep.subr.bf16.mxu0 %v4566
        %6816 = vmatpush1.bf16.msra.mxu0 %v4565
        %6817 = vmatprep.subr.bf16.mxu0 %v4582
        %6818 = vmatpush1.bf16.msra.mxu0 %v4581
        %6819 = vmatprep.subr.bf16.mxu0 %v4598
        %6820 = vmatpush1.bf16.msra.mxu0 %v4597
        %6821 = vmatprep.subr.bf16.mxu0 %v4614
        %6822 = vmatpush1.bf16.msra.mxu0 %v4613
        %6823 = vmatprep.subr.bf16.mxu0 %v4630
        %6824 = vmatpush1.bf16.msra.mxu0 %v4629
        %6825 = vmatprep.subr.bf16.mxu0 %v4646
        %6826 = vmatpush1.bf16.msra.mxu0 %v4645
        %6827 = vmatprep.mubr.bf16.mxu0 %v244
        %6828 = vmatmul.mubr.bf16.gmra.mrb[0].mxu0 %v243
        %v6829 = vpop.f32.mrb[0].mxu0
        %v6830 = vadd.f32 %v6789, %v6829
        %v6831 = vpop.f32.mrb[0].mxu0
        %v6832 = vadd.f32 %v6791, %v6831
        %v6833 = vpop.f32.mrb[0].mxu0
        %v6834 = vpop.f32.mrb[0].mxu0
        %6835 = vdwg.mxu0
        %6836 = vmatprep.subr.bf16.mxu0 %v4662
        %6837 = vmatpush1.bf16.msra.mxu0 %v4661
        %6838 = vmatprep.subr.bf16.mxu0 %v4678
        %6839 = vmatpush1.bf16.msra.mxu0 %v4677
        %6840 = vmatprep.subr.bf16.mxu0 %v4694
        %6841 = vmatpush1.bf16.msra.mxu0 %v4693
        %6842 = vmatprep.subr.bf16.mxu0 %v4710
        %6843 = vmatpush1.bf16.msra.mxu0 %v4709
        %6844 = vmatprep.subr.bf16.mxu0 %v4726
        %6845 = vmatpush1.bf16.msra.mxu0 %v4725
        %6846 = vmatprep.subr.bf16.mxu0 %v4742
        %6847 = vmatpush1.bf16.msra.mxu0 %v4741
        %6848 = vmatprep.subr.bf16.mxu0 %v4758
        %6849 = vmatpush1.bf16.msra.mxu0 %v4757
        %6850 = vmatprep.subr.bf16.mxu0 %v4774
        %6851 = vmatpush1.bf16.msra.mxu0 %v4773
        %6852 = vmatprep.subr.bf16.mxu0 %v4790
        %6853 = vmatpush1.bf16.msra.mxu0 %v4789
        %6854 = vmatprep.subr.bf16.mxu0 %v4806
        %6855 = vmatpush1.bf16.msra.mxu0 %v4805
        %6856 = vmatprep.subr.bf16.mxu0 %v4822
        %6857 = vmatpush1.bf16.msra.mxu0 %v4821
        %6858 = vmatprep.subr.bf16.mxu0 %v4838
        %6859 = vmatpush1.bf16.msra.mxu0 %v4837
        %6860 = vmatprep.subr.bf16.mxu0 %v4854
        %6861 = vmatpush1.bf16.msra.mxu0 %v4853
        %6862 = vmatprep.subr.bf16.mxu0 %v4870
        %6863 = vmatpush1.bf16.msra.mxu0 %v4869
        %6864 = vmatprep.subr.bf16.mxu0 %v4886
        %6865 = vmatpush1.bf16.msra.mxu0 %v4885
        %6866 = vmatprep.subr.bf16.mxu0 %v4902
        %6867 = vmatpush1.bf16.msra.mxu0 %v4901
        %6868 = vmatprep.mubr.bf16.mxu0 %v246
        %6869 = vmatmul.mubr.bf16.gmra.mrb[0].mxu0 %v245
        %v6870 = vpop.f32.mrb[0].mxu0
        %v6871 = vadd.f32 %v6830, %v6870
        %v6872 = vpop.f32.mrb[0].mxu0
        %v6873 = vadd.f32 %v6832, %v6872
        %v6874 = vpop.f32.mrb[0].mxu0
        %v6875 = vpop.f32.mrb[0].mxu0
        %6876 = vdwg.mxu0
        %6877 = vmatprep.subr.bf16.mxu0 %v4918
        %6878 = vmatpush1.bf16.msra.mxu0 %v4917
        %6879 = vmatprep.subr.bf16.mxu0 %v4934
        %6880 = vmatpush1.bf16.msra.mxu0 %v4933
        %6881 = vmatprep.subr.bf16.mxu0 %v4950
        %6882 = vmatpush1.bf16.msra.mxu0 %v4949
        %6883 = vmatprep.subr.bf16.mxu0 %v4966
        %6884 = vmatpush1.bf16.msra.mxu0 %v4965
        %6885 = vmatprep.subr.bf16.mxu0 %v4982
        %6886 = vmatpush1.bf16.msra.mxu0 %v4981
        %6887 = vmatprep.subr.bf16.mxu0 %v4998
        %6888 = vmatpush1.bf16.msra.mxu0 %v4997
        %6889 = vmatprep.subr.bf16.mxu0 %v5014
        %6890 = vmatpush1.bf16.msra.mxu0 %v5013
        %6891 = vmatprep.subr.bf16.mxu0 %v5030
        %6892 = vmatpush1.bf16.msra.mxu0 %v5029
        %6893 = vmatprep.subr.bf16.mxu0 %v5046
        %6894 = vmatpush1.bf16.msra.mxu0 %v5045
        %6895 = vmatprep.subr.bf16.mxu0 %v5062
        %6896 = vmatpush1.bf16.msra.mxu0 %v5061
        %6897 = vmatprep.subr.bf16.mxu0 %v5078
        %6898 = vmatpush1.bf16.msra.mxu0 %v5077
        %6899 = vmatprep.subr.bf16.mxu0 %v6078
        %6900 = vmatpush1.bf16.msra.mxu0 %v6075
        %6901 = vmatprep.subr.bf16.mxu0 0
        %6902 = vmatpush1.bf16.msra.mxu0 0
        %6903 = vmatprep.subr.bf16.mxu0 0
        %6904 = vmatpush1.bf16.msra.mxu0 0
        %6905 = vmatprep.subr.bf16.mxu0 0
        %6906 = vmatpush1.bf16.msra.mxu0 0
        %6907 = vmatprep.subr.bf16.mxu0 0
        %6908 = vmatpush1.bf16.msra.mxu0 0
        %6909 = vmatprep.mubr.bf16.mxu0 %v6047
        %6910 = vmatmul.mubr.bf16.gmra.mrb[0].mxu0 %v247
        %v6911 = vpop.f32.mrb[0].mxu0
        %v6912 = vadd.f32 %v6871, %v6911
        %v6913 = vpop.f32.mrb[0].mxu0
        %v6914 = vadd.f32 %v6873, %v6913
        %v6915 = vpop.f32.mrb[0].mxu0
        %v6916 = vpop.f32.mrb[0].mxu0
        %6917 = vdwg.mxu0
        %6918 = vmatprep.subr.bf16.mxu0 %v4152
        %6919 = vmatpush1.bf16.msra.mxu0 %v4151
        %6920 = vmatprep.subr.bf16.mxu0 %v4168
        %6921 = vmatpush1.bf16.msra.mxu0 %v4167
        %6922 = vmatprep.subr.bf16.mxu0 %v4184
        %6923 = vmatpush1.bf16.msra.mxu0 %v4183
        %6924 = vmatprep.subr.bf16.mxu0 %v4200
        %6925 = vmatpush1.bf16.msra.mxu0 %v4199
        %6926 = vmatprep.subr.bf16.mxu0 %v4216
        %6927 = vmatpush1.bf16.msra.mxu0 %v4215
        %6928 = vmatprep.subr.bf16.mxu0 %v4232
        %6929 = vmatpush1.bf16.msra.mxu0 %v4231
        %6930 = vmatprep.subr.bf16.mxu0 %v4248
        %6931 = vmatpush1.bf16.msra.mxu0 %v4247
        %6932 = vmatprep.subr.bf16.mxu0 %v4264
        %6933 = vmatpush1.bf16.msra.mxu0 %v4263
        %6934 = vmatprep.subr.bf16.mxu0 %v4280
        %6935 = vmatpush1.bf16.msra.mxu0 %v4279
        %6936 = vmatprep.subr.bf16.mxu0 %v4296
        %6937 = vmatpush1.bf16.msra.mxu0 %v4295
        %6938 = vmatprep.subr.bf16.mxu0 %v4312
        %6939 = vmatpush1.bf16.msra.mxu0 %v4311
        %6940 = vmatprep.subr.bf16.mxu0 %v4328
        %6941 = vmatpush1.bf16.msra.mxu0 %v4327
        %6942 = vmatprep.subr.bf16.mxu0 %v4344
        %6943 = vmatpush1.bf16.msra.mxu0 %v4343
        %6944 = vmatprep.subr.bf16.mxu0 %v4360
        %6945 = vmatpush1.bf16.msra.mxu0 %v4359
        %6946 = vmatprep.subr.bf16.mxu0 %v4376
        %6947 = vmatpush1.bf16.msra.mxu0 %v4375
        %6948 = vmatprep.subr.bf16.mxu0 %v4392
        %6949 = vmatpush1.bf16.msra.mxu0 %v4391
        %6950 = vmatprep.mubr.bf16.mxu0 %v242
        %6951 = vmatmul.mubr.bf16.gmra.mrb[0].mxu0 %v241
        %v6952 = vpop.f32.mrb[0].mxu0
        %v6953 = vadd.f32 %v1248, %v6952
        %v6954 = vpop.f32.mrb[0].mxu0
        %v6955 = vadd.f32 %v1252, %v6954
        %v6956 = vpop.f32.mrb[0].mxu0
        %v6957 = vpop.f32.mrb[0].mxu0
        %6958 = vdwg.mxu0
        %6959 = vmatprep.subr.bf16.mxu0 %v4408
        %6960 = vmatpush1.bf16.msra.mxu0 %v4407
        %6961 = vmatprep.subr.bf16.mxu0 %v4424
        %6962 = vmatpush1.bf16.msra.mxu0 %v4423
        %6963 = vmatprep.subr.bf16.mxu0 %v4440
        %6964 = vmatpush1.bf16.msra.mxu0 %v4439
        %6965 = vmatprep.subr.bf16.mxu0 %v4456
        %6966 = vmatpush1.bf16.msra.mxu0 %v4455
        %6967 = vmatprep.subr.bf16.mxu0 %v4472
        %6968 = vmatpush1.bf16.msra.mxu0 %v4471
        %6969 = vmatprep.subr.bf16.mxu0 %v4488
        %6970 = vmatpush1.bf16.msra.mxu0 %v4487
        %6971 = vmatprep.subr.bf16.mxu0 %v4504
        %6972 = vmatpush1.bf16.msra.mxu0 %v4503
        %6973 = vmatprep.subr.bf16.mxu0 %v4520
        %6974 = vmatpush1.bf16.msra.mxu0 %v4519
        %6975 = vmatprep.subr.bf16.mxu0 %v4536
        %6976 = vmatpush1.bf16.msra.mxu0 %v4535
        %6977 = vmatprep.subr.bf16.mxu0 %v4552
        %6978 = vmatpush1.bf16.msra.mxu0 %v4551
        %6979 = vmatprep.subr.bf16.mxu0 %v4568
        %6980 = vmatpush1.bf16.msra.mxu0 %v4567
        %6981 = vmatprep.subr.bf16.mxu0 %v4584
        %6982 = vmatpush1.bf16.msra.mxu0 %v4583
        %6983 = vmatprep.subr.bf16.mxu0 %v4600
        %6984 = vmatpush1.bf16.msra.mxu0 %v4599
        %6985 = vmatprep.subr.bf16.mxu0 %v4616
        %6986 = vmatpush1.bf16.msra.mxu0 %v4615
        %6987 = vmatprep.subr.bf16.mxu0 %v4632
        %6988 = vmatpush1.bf16.msra.mxu0 %v4631
        %6989 = vmatprep.subr.bf16.mxu0 %v4648
        %6990 = vmatpush1.bf16.msra.mxu0 %v4647
        %6991 = vmatprep.mubr.bf16.mxu0 %v244
        %6992 = vmatmul.mubr.bf16.gmra.mrb[0].mxu0 %v243
        %v6993 = vpop.f32.mrb[0].mxu0
        %v6994 = vadd.f32 %v6953, %v6993
        %v6995 = vpop.f32.mrb[0].mxu0
        %v6996 = vadd.f32 %v6955, %v6995
        %v6997 = vpop.f32.mrb[0].mxu0
        %v6998 = vpop.f32.mrb[0].mxu0
        %6999 = vdwg.mxu0
        %7000 = vmatprep.subr.bf16.mxu0 %v4664
        %7001 = vmatpush1.bf16.msra.mxu0 %v4663
        %7002 = vmatprep.subr.bf16.mxu0 %v4680
        %7003 = vmatpush1.bf16.msra.mxu0 %v4679
        %7004 = vmatprep.subr.bf16.mxu0 %v4696
        %7005 = vmatpush1.bf16.msra.mxu0 %v4695
        %7006 = vmatprep.subr.bf16.mxu0 %v4712
        %7007 = vmatpush1.bf16.msra.mxu0 %v4711
        %7008 = vmatprep.subr.bf16.mxu0 %v4728
        %7009 = vmatpush1.bf16.msra.mxu0 %v4727
        %7010 = vmatprep.subr.bf16.mxu0 %v4744
        %7011 = vmatpush1.bf16.msra.mxu0 %v4743
        %7012 = vmatprep.subr.bf16.mxu0 %v4760
        %7013 = vmatpush1.bf16.msra.mxu0 %v4759
        %7014 = vmatprep.subr.bf16.mxu0 %v4776
        %7015 = vmatpush1.bf16.msra.mxu0 %v4775
        %7016 = vmatprep.subr.bf16.mxu0 %v4792
        %7017 = vmatpush1.bf16.msra.mxu0 %v4791
        %7018 = vmatprep.subr.bf16.mxu0 %v4808
        %7019 = vmatpush1.bf16.msra.mxu0 %v4807
        %7020 = vmatprep.subr.bf16.mxu0 %v4824
        %7021 = vmatpush1.bf16.msra.mxu0 %v4823
        %7022 = vmatprep.subr.bf16.mxu0 %v4840
        %7023 = vmatpush1.bf16.msra.mxu0 %v4839
        %7024 = vmatprep.subr.bf16.mxu0 %v4856
        %7025 = vmatpush1.bf16.msra.mxu0 %v4855
        %7026 = vmatprep.subr.bf16.mxu0 %v4872
        %7027 = vmatpush1.bf16.msra.mxu0 %v4871
        %7028 = vmatprep.subr.bf16.mxu0 %v4888
        %7029 = vmatpush1.bf16.msra.mxu0 %v4887
        %7030 = vmatprep.subr.bf16.mxu0 %v4904
        %7031 = vmatpush1.bf16.msra.mxu0 %v4903
        %7032 = vmatprep.mubr.bf16.mxu0 %v246
        %7033 = vmatmul.mubr.bf16.gmra.mrb[0].mxu0 %v245
        %v7034 = vpop.f32.mrb[0].mxu0
        %v7035 = vadd.f32 %v6994, %v7034
        %v7036 = vpop.f32.mrb[0].mxu0
        %v7037 = vadd.f32 %v6996, %v7036
        %v7038 = vpop.f32.mrb[0].mxu0
        %v7039 = vpop.f32.mrb[0].mxu0
        %7040 = vdwg.mxu0
        %7041 = vmatprep.subr.bf16.mxu0 %v4920
        %7042 = vmatpush1.bf16.msra.mxu0 %v4919
        %7043 = vmatprep.subr.bf16.mxu0 %v4936
        %7044 = vmatpush1.bf16.msra.mxu0 %v4935
        %7045 = vmatprep.subr.bf16.mxu0 %v4952
        %7046 = vmatpush1.bf16.msra.mxu0 %v4951
        %7047 = vmatprep.subr.bf16.mxu0 %v4968
        %7048 = vmatpush1.bf16.msra.mxu0 %v4967
        %7049 = vmatprep.subr.bf16.mxu0 %v4984
        %7050 = vmatpush1.bf16.msra.mxu0 %v4983
        %7051 = vmatprep.subr.bf16.mxu0 %v5000
        %7052 = vmatpush1.bf16.msra.mxu0 %v4999
        %7053 = vmatprep.subr.bf16.mxu0 %v5016
        %7054 = vmatpush1.bf16.msra.mxu0 %v5015
        %7055 = vmatprep.subr.bf16.mxu0 %v5032
        %7056 = vmatpush1.bf16.msra.mxu0 %v5031
        %7057 = vmatprep.subr.bf16.mxu0 %v5048
        %7058 = vmatpush1.bf16.msra.mxu0 %v5047
        %7059 = vmatprep.subr.bf16.mxu0 %v5064
        %7060 = vmatpush1.bf16.msra.mxu0 %v5063
        %7061 = vmatprep.subr.bf16.mxu0 %v5080
        %7062 = vmatpush1.bf16.msra.mxu0 %v5079
        %7063 = vmatprep.subr.bf16.mxu0 %v6084
        %7064 = vmatpush1.bf16.msra.mxu0 %v6081
        %7065 = vmatprep.subr.bf16.mxu0 0
        %7066 = vmatpush1.bf16.msra.mxu0 0
        %7067 = vmatprep.subr.bf16.mxu0 0
        %7068 = vmatpush1.bf16.msra.mxu0 0
        %7069 = vmatprep.subr.bf16.mxu0 0
        %7070 = vmatpush1.bf16.msra.mxu0 0
        %7071 = vmatprep.subr.bf16.mxu0 0
        %7072 = vmatpush1.bf16.msra.mxu0 0
        %7073 = vmatprep.mubr.bf16.mxu0 %v6047
        %7074 = vmatmul.mubr.bf16.gmra.mrb[0].mxu0 %v247
        %v7075 = vpop.f32.mrb[0].mxu0
        %v7076 = vadd.f32 %v7035, %v7075
        %v7077 = vpop.f32.mrb[0].mxu0
        %v7078 = vadd.f32 %v7037, %v7077
        %v7079 = vpop.f32.mrb[0].mxu0
        %v7080 = vpop.f32.mrb[0].mxu0
        %7081 = vdwg.mxu0
        %7082 = vmatprep.subr.bf16.mxu0 %v4154
        %7083 = vmatpush1.bf16.msra.mxu0 %v4153
        %7084 = vmatprep.subr.bf16.mxu0 %v4170
        %7085 = vmatpush1.bf16.msra.mxu0 %v4169
        %7086 = vmatprep.subr.bf16.mxu0 %v4186
        %7087 = vmatpush1.bf16.msra.mxu0 %v4185
        %7088 = vmatprep.subr.bf16.mxu0 %v4202
        %7089 = vmatpush1.bf16.msra.mxu0 %v4201
        %7090 = vmatprep.subr.bf16.mxu0 %v4218
        %7091 = vmatpush1.bf16.msra.mxu0 %v4217
        %7092 = vmatprep.subr.bf16.mxu0 %v4234
        %7093 = vmatpush1.bf16.msra.mxu0 %v4233
        %7094 = vmatprep.subr.bf16.mxu0 %v4250
        %7095 = vmatpush1.bf16.msra.mxu0 %v4249
        %7096 = vmatprep.subr.bf16.mxu0 %v4266
        %7097 = vmatpush1.bf16.msra.mxu0 %v4265
        %7098 = vmatprep.subr.bf16.mxu0 %v4282
        %7099 = vmatpush1.bf16.msra.mxu0 %v4281
        %7100 = vmatprep.subr.bf16.mxu0 %v4298
        %7101 = vmatpush1.bf16.msra.mxu0 %v4297
        %7102 = vmatprep.subr.bf16.mxu0 %v4314
        %7103 = vmatpush1.bf16.msra.mxu0 %v4313
        %7104 = vmatprep.subr.bf16.mxu0 %v4330
        %7105 = vmatpush1.bf16.msra.mxu0 %v4329
        %7106 = vmatprep.subr.bf16.mxu0 %v4346
        %7107 = vmatpush1.bf16.msra.mxu0 %v4345
        %7108 = vmatprep.subr.bf16.mxu0 %v4362
        %7109 = vmatpush1.bf16.msra.mxu0 %v4361
        %7110 = vmatprep.subr.bf16.mxu0 %v4378
        %7111 = vmatpush1.bf16.msra.mxu0 %v4377
        %7112 = vmatprep.subr.bf16.mxu0 %v4394
        %7113 = vmatpush1.bf16.msra.mxu0 %v4393
        %7114 = vmatprep.mubr.bf16.mxu0 %v242
        %7115 = vmatmul.mubr.bf16.gmra.mrb[0].mxu0 %v241
        %v7116 = vpop.f32.mrb[0].mxu0
        %v7117 = vadd.f32 %v1256, %v7116
        %v7118 = vpop.f32.mrb[0].mxu0
        %v7119 = vadd.f32 %v1260, %v7118
        %v7120 = vpop.f32.mrb[0].mxu0
        %v7121 = vpop.f32.mrb[0].mxu0
        %7122 = vdwg.mxu0
        %7123 = vmatprep.subr.bf16.mxu0 %v4410
        %7124 = vmatpush1.bf16.msra.mxu0 %v4409
        %7125 = vmatprep.subr.bf16.mxu0 %v4426
        %7126 = vmatpush1.bf16.msra.mxu0 %v4425
        %7127 = vmatprep.subr.bf16.mxu0 %v4442
        %7128 = vmatpush1.bf16.msra.mxu0 %v4441
        %7129 = vmatprep.subr.bf16.mxu0 %v4458
        %7130 = vmatpush1.bf16.msra.mxu0 %v4457
        %7131 = vmatprep.subr.bf16.mxu0 %v4474
        %7132 = vmatpush1.bf16.msra.mxu0 %v4473
        %7133 = vmatprep.subr.bf16.mxu0 %v4490
        %7134 = vmatpush1.bf16.msra.mxu0 %v4489
        %7135 = vmatprep.subr.bf16.mxu0 %v4506
        %7136 = vmatpush1.bf16.msra.mxu0 %v4505
        %7137 = vmatprep.subr.bf16.mxu0 %v4522
        %7138 = vmatpush1.bf16.msra.mxu0 %v4521
        %7139 = vmatprep.subr.bf16.mxu0 %v4538
        %7140 = vmatpush1.bf16.msra.mxu0 %v4537
        %7141 = vmatprep.subr.bf16.mxu0 %v4554
        %7142 = vmatpush1.bf16.msra.mxu0 %v4553
        %7143 = vmatprep.subr.bf16.mxu0 %v4570
        %7144 = vmatpush1.bf16.msra.mxu0 %v4569
        %7145 = vmatprep.subr.bf16.mxu0 %v4586
        %7146 = vmatpush1.bf16.msra.mxu0 %v4585
        %7147 = vmatprep.subr.bf16.mxu0 %v4602
        %7148 = vmatpush1.bf16.msra.mxu0 %v4601
        %7149 = vmatprep.subr.bf16.mxu0 %v4618
        %7150 = vmatpush1.bf16.msra.mxu0 %v4617
        %7151 = vmatprep.subr.bf16.mxu0 %v4634
        %7152 = vmatpush1.bf16.msra.mxu0 %v4633
        %7153 = vmatprep.subr.bf16.mxu0 %v4650
        %7154 = vmatpush1.bf16.msra.mxu0 %v4649
        %7155 = vmatprep.mubr.bf16.mxu0 %v244
        %7156 = vmatmul.mubr.bf16.gmra.mrb[0].mxu0 %v243
        %v7157 = vpop.f32.mrb[0].mxu0
        %v7158 = vadd.f32 %v7117, %v7157
        %v7159 = vpop.f32.mrb[0].mxu0
        %v7160 = vadd.f32 %v7119, %v7159
        %v7161 = vpop.f32.mrb[0].mxu0
        %v7162 = vpop.f32.mrb[0].mxu0
        %7163 = vdwg.mxu0
        %7164 = vmatprep.subr.bf16.mxu0 %v4666
        %7165 = vmatpush1.bf16.msra.mxu0 %v4665
        %7166 = vmatprep.subr.bf16.mxu0 %v4682
        %7167 = vmatpush1.bf16.msra.mxu0 %v4681
        %7168 = vmatprep.subr.bf16.mxu0 %v4698
        %7169 = vmatpush1.bf16.msra.mxu0 %v4697
        %7170 = vmatprep.subr.bf16.mxu0 %v4714
        %7171 = vmatpush1.bf16.msra.mxu0 %v4713
        %7172 = vmatprep.subr.bf16.mxu0 %v4730
        %7173 = vmatpush1.bf16.msra.mxu0 %v4729
        %7174 = vmatprep.subr.bf16.mxu0 %v4746
        %7175 = vmatpush1.bf16.msra.mxu0 %v4745
        %7176 = vmatprep.subr.bf16.mxu0 %v4762
        %7177 = vmatpush1.bf16.msra.mxu0 %v4761
        %7178 = vmatprep.subr.bf16.mxu0 %v4778
        %7179 = vmatpush1.bf16.msra.mxu0 %v4777
        %7180 = vmatprep.subr.bf16.mxu0 %v4794
        %7181 = vmatpush1.bf16.msra.mxu0 %v4793
        %7182 = vmatprep.subr.bf16.mxu0 %v4810
        %7183 = vmatpush1.bf16.msra.mxu0 %v4809
        %7184 = vmatprep.subr.bf16.mxu0 %v4826
        %7185 = vmatpush1.bf16.msra.mxu0 %v4825
        %7186 = vmatprep.subr.bf16.mxu0 %v4842
        %7187 = vmatpush1.bf16.msra.mxu0 %v4841
        %7188 = vmatprep.subr.bf16.mxu0 %v4858
        %7189 = vmatpush1.bf16.msra.mxu0 %v4857
        %7190 = vmatprep.subr.bf16.mxu0 %v4874
        %7191 = vmatpush1.bf16.msra.mxu0 %v4873
        %7192 = vmatprep.subr.bf16.mxu0 %v4890
        %7193 = vmatpush1.bf16.msra.mxu0 %v4889
        %7194 = vmatprep.subr.bf16.mxu0 %v4906
        %7195 = vmatpush1.bf16.msra.mxu0 %v4905
        %7196 = vmatprep.mubr.bf16.mxu0 %v246
        %7197 = vmatmul.mubr.bf16.gmra.mrb[0].mxu0 %v245
        %v7198 = vpop.f32.mrb[0].mxu0
        %v7199 = vadd.f32 %v7158, %v7198
        %v7200 = vpop.f32.mrb[0].mxu0
        %v7201 = vadd.f32 %v7160, %v7200
        %v7202 = vpop.f32.mrb[0].mxu0
        %v7203 = vpop.f32.mrb[0].mxu0
        %7204 = vdwg.mxu0
        %7205 = vmatprep.subr.bf16.mxu0 %v4922
        %7206 = vmatpush1.bf16.msra.mxu0 %v4921
        %7207 = vmatprep.subr.bf16.mxu0 %v4938
        %7208 = vmatpush1.bf16.msra.mxu0 %v4937
        %7209 = vmatprep.subr.bf16.mxu0 %v4954
        %7210 = vmatpush1.bf16.msra.mxu0 %v4953
        %7211 = vmatprep.subr.bf16.mxu0 %v4970
        %7212 = vmatpush1.bf16.msra.mxu0 %v4969
        %7213 = vmatprep.subr.bf16.mxu0 %v4986
        %7214 = vmatpush1.bf16.msra.mxu0 %v4985
        %7215 = vmatprep.subr.bf16.mxu0 %v5002
        %7216 = vmatpush1.bf16.msra.mxu0 %v5001
        %7217 = vmatprep.subr.bf16.mxu0 %v5018
        %7218 = vmatpush1.bf16.msra.mxu0 %v5017
        %7219 = vmatprep.subr.bf16.mxu0 %v5034
        %7220 = vmatpush1.bf16.msra.mxu0 %v5033
        %7221 = vmatprep.subr.bf16.mxu0 %v5050
        %7222 = vmatpush1.bf16.msra.mxu0 %v5049
        %7223 = vmatprep.subr.bf16.mxu0 %v5066
        %7224 = vmatpush1.bf16.msra.mxu0 %v5065
        %7225 = vmatprep.subr.bf16.mxu0 %v5082
        %7226 = vmatpush1.bf16.msra.mxu0 %v5081
        %7227 = vmatprep.subr.bf16.mxu0 %v6090
        %7228 = vmatpush1.bf16.msra.mxu0 %v6087
        %7229 = vmatprep.subr.bf16.mxu0 0
        %7230 = vmatpush1.bf16.msra.mxu0 0
        %7231 = vmatprep.subr.bf16.mxu0 0
        %7232 = vmatpush1.bf16.msra.mxu0 0
        %7233 = vmatprep.subr.bf16.mxu0 0
        %7234 = vmatpush1.bf16.msra.mxu0 0
        %7235 = vmatprep.subr.bf16.mxu0 0
        %7236 = vmatpush1.bf16.msra.mxu0 0
        %7237 = vmatprep.mubr.bf16.mxu0 %v6047
        %7238 = vmatmul.mubr.bf16.gmra.mrb[0].mxu0 %v247
        %v7239 = vpop.f32.mrb[0].mxu0
        %v7240 = vadd.f32 %v7199, %v7239
        %v7241 = vpop.f32.mrb[0].mxu0
        %v7242 = vadd.f32 %v7201, %v7241
        %v7243 = vpop.f32.mrb[0].mxu0
        %v7244 = vpop.f32.mrb[0].mxu0
        %7245 = vdwg.mxu0
        %7246 = vmatprep.subr.bf16.mxu0 %v4156
        %7247 = vmatpush1.bf16.msra.mxu0 %v4155
        %7248 = vmatprep.subr.bf16.mxu0 %v4172
        %7249 = vmatpush1.bf16.msra.mxu0 %v4171
        %7250 = vmatprep.subr.bf16.mxu0 %v4188
        %7251 = vmatpush1.bf16.msra.mxu0 %v4187
        %7252 = vmatprep.subr.bf16.mxu0 %v4204
        %7253 = vmatpush1.bf16.msra.mxu0 %v4203
        %7254 = vmatprep.subr.bf16.mxu0 %v4220
        %7255 = vmatpush1.bf16.msra.mxu0 %v4219
        %7256 = vmatprep.subr.bf16.mxu0 %v4236
        %7257 = vmatpush1.bf16.msra.mxu0 %v4235
        %7258 = vmatprep.subr.bf16.mxu0 %v4252
        %7259 = vmatpush1.bf16.msra.mxu0 %v4251
        %7260 = vmatprep.subr.bf16.mxu0 %v4268
        %7261 = vmatpush1.bf16.msra.mxu0 %v4267
        %7262 = vmatprep.subr.bf16.mxu0 %v4284
        %7263 = vmatpush1.bf16.msra.mxu0 %v4283
        %7264 = vmatprep.subr.bf16.mxu0 %v4300
        %7265 = vmatpush1.bf16.msra.mxu0 %v4299
        %7266 = vmatprep.subr.bf16.mxu0 %v4316
        %7267 = vmatpush1.bf16.msra.mxu0 %v4315
        %7268 = vmatprep.subr.bf16.mxu0 %v4332
        %7269 = vmatpush1.bf16.msra.mxu0 %v4331
        %7270 = vmatprep.subr.bf16.mxu0 %v4348
        %7271 = vmatpush1.bf16.msra.mxu0 %v4347
        %7272 = vmatprep.subr.bf16.mxu0 %v4364
        %7273 = vmatpush1.bf16.msra.mxu0 %v4363
        %7274 = vmatprep.subr.bf16.mxu0 %v4380
        %7275 = vmatpush1.bf16.msra.mxu0 %v4379
        %7276 = vmatprep.subr.bf16.mxu0 %v4396
        %7277 = vmatpush1.bf16.msra.mxu0 %v4395
        %7278 = vmatprep.mubr.bf16.mxu0 %v242
        %7279 = vmatmul.mubr.bf16.gmra.mrb[0].mxu0 %v241
        %v7280 = vpop.f32.mrb[0].mxu0
        %v7281 = vadd.f32 %v1264, %v7280
        %v7282 = vpop.f32.mrb[0].mxu0
        %v7283 = vadd.f32 %v1268, %v7282
        %v7284 = vpop.f32.mrb[0].mxu0
        %v7285 = vpop.f32.mrb[0].mxu0
        %7286 = vdwg.mxu0
        %7287 = vmatprep.subr.bf16.mxu0 %v4412
        %7288 = vmatpush1.bf16.msra.mxu0 %v4411
        %7289 = vmatprep.subr.bf16.mxu0 %v4428
        %7290 = vmatpush1.bf16.msra.mxu0 %v4427
        %7291 = vmatprep.subr.bf16.mxu0 %v4444
        %7292 = vmatpush1.bf16.msra.mxu0 %v4443
        %7293 = vmatprep.subr.bf16.mxu0 %v4460
        %7294 = vmatpush1.bf16.msra.mxu0 %v4459
        %7295 = vmatprep.subr.bf16.mxu0 %v4476
        %7296 = vmatpush1.bf16.msra.mxu0 %v4475
        %7297 = vmatprep.subr.bf16.mxu0 %v4492
        %7298 = vmatpush1.bf16.msra.mxu0 %v4491
        %7299 = vmatprep.subr.bf16.mxu0 %v4508
        %7300 = vmatpush1.bf16.msra.mxu0 %v4507
        %7301 = vmatprep.subr.bf16.mxu0 %v4524
        %7302 = vmatpush1.bf16.msra.mxu0 %v4523
        %7303 = vmatprep.subr.bf16.mxu0 %v4540
        %7304 = vmatpush1.bf16.msra.mxu0 %v4539
        %7305 = vmatprep.subr.bf16.mxu0 %v4556
        %7306 = vmatpush1.bf16.msra.mxu0 %v4555
        %7307 = vmatprep.subr.bf16.mxu0 %v4572
        %7308 = vmatpush1.bf16.msra.mxu0 %v4571
        %7309 = vmatprep.subr.bf16.mxu0 %v4588
        %7310 = vmatpush1.bf16.msra.mxu0 %v4587
        %7311 = vmatprep.subr.bf16.mxu0 %v4604
        %7312 = vmatpush1.bf16.msra.mxu0 %v4603
        %7313 = vmatprep.subr.bf16.mxu0 %v4620
        %7314 = vmatpush1.bf16.msra.mxu0 %v4619
        %7315 = vmatprep.subr.bf16.mxu0 %v4636
        %7316 = vmatpush1.bf16.msra.mxu0 %v4635
        %7317 = vmatprep.subr.bf16.mxu0 %v4652
        %7318 = vmatpush1.bf16.msra.mxu0 %v4651
        %7319 = vmatprep.mubr.bf16.mxu0 %v244
        %7320 = vmatmul.mubr.bf16.gmra.mrb[0].mxu0 %v243
        %v7321 = vpop.f32.mrb[0].mxu0
        %v7322 = vadd.f32 %v7281, %v7321
        %v7323 = vpop.f32.mrb[0].mxu0
        %v7324 = vadd.f32 %v7283, %v7323
        %v7325 = vpop.f32.mrb[0].mxu0
        %v7326 = vpop.f32.mrb[0].mxu0
        %7327 = vdwg.mxu0
        %7328 = vmatprep.subr.bf16.mxu0 %v4668
        %7329 = vmatpush1.bf16.msra.mxu0 %v4667
        %7330 = vmatprep.subr.bf16.mxu0 %v4684
        %7331 = vmatpush1.bf16.msra.mxu0 %v4683
        %7332 = vmatprep.subr.bf16.mxu0 %v4700
        %7333 = vmatpush1.bf16.msra.mxu0 %v4699
        %7334 = vmatprep.subr.bf16.mxu0 %v4716
        %7335 = vmatpush1.bf16.msra.mxu0 %v4715
        %7336 = vmatprep.subr.bf16.mxu0 %v4732
        %7337 = vmatpush1.bf16.msra.mxu0 %v4731
        %7338 = vmatprep.subr.bf16.mxu0 %v4748
        %7339 = vmatpush1.bf16.msra.mxu0 %v4747
        %7340 = vmatprep.subr.bf16.mxu0 %v4764
        %7341 = vmatpush1.bf16.msra.mxu0 %v4763
        %7342 = vmatprep.subr.bf16.mxu0 %v4780
        %7343 = vmatpush1.bf16.msra.mxu0 %v4779
        %7344 = vmatprep.subr.bf16.mxu0 %v4796
        %7345 = vmatpush1.bf16.msra.mxu0 %v4795
        %7346 = vmatprep.subr.bf16.mxu0 %v4812
        %7347 = vmatpush1.bf16.msra.mxu0 %v4811
        %7348 = vmatprep.subr.bf16.mxu0 %v4828
        %7349 = vmatpush1.bf16.msra.mxu0 %v4827
        %7350 = vmatprep.subr.bf16.mxu0 %v4844
        %7351 = vmatpush1.bf16.msra.mxu0 %v4843
        %7352 = vmatprep.subr.bf16.mxu0 %v4860
        %7353 = vmatpush1.bf16.msra.mxu0 %v4859
        %7354 = vmatprep.subr.bf16.mxu0 %v4876
        %7355 = vmatpush1.bf16.msra.mxu0 %v4875
        %7356 = vmatprep.subr.bf16.mxu0 %v4892
        %7357 = vmatpush1.bf16.msra.mxu0 %v4891
        %7358 = vmatprep.subr.bf16.mxu0 %v4908
        %7359 = vmatpush1.bf16.msra.mxu0 %v4907
        %7360 = vmatprep.mubr.bf16.mxu0 %v246
        %7361 = vmatmul.mubr.bf16.gmra.mrb[0].mxu0 %v245
        %v7362 = vpop.f32.mrb[0].mxu0
        %v7363 = vadd.f32 %v7322, %v7362
        %v7364 = vpop.f32.mrb[0].mxu0
        %v7365 = vadd.f32 %v7324, %v7364
        %v7366 = vpop.f32.mrb[0].mxu0
        %v7367 = vpop.f32.mrb[0].mxu0
        %7368 = vdwg.mxu0
        %7369 = vmatprep.subr.bf16.mxu0 %v4924
        %7370 = vmatpush1.bf16.msra.mxu0 %v4923
        %7371 = vmatprep.subr.bf16.mxu0 %v4940
        %7372 = vmatpush1.bf16.msra.mxu0 %v4939
        %7373 = vmatprep.subr.bf16.mxu0 %v4956
        %7374 = vmatpush1.bf16.msra.mxu0 %v4955
        %7375 = vmatprep.subr.bf16.mxu0 %v4972
        %7376 = vmatpush1.bf16.msra.mxu0 %v4971
        %7377 = vmatprep.subr.bf16.mxu0 %v4988
        %7378 = vmatpush1.bf16.msra.mxu0 %v4987
        %7379 = vmatprep.subr.bf16.mxu0 %v5004
        %7380 = vmatpush1.bf16.msra.mxu0 %v5003
        %7381 = vmatprep.subr.bf16.mxu0 %v5020
        %7382 = vmatpush1.bf16.msra.mxu0 %v5019
        %7383 = vmatprep.subr.bf16.mxu0 %v5036
        %7384 = vmatpush1.bf16.msra.mxu0 %v5035
        %7385 = vmatprep.subr.bf16.mxu0 %v5052
        %7386 = vmatpush1.bf16.msra.mxu0 %v5051
        %7387 = vmatprep.subr.bf16.mxu0 %v5068
        %7388 = vmatpush1.bf16.msra.mxu0 %v5067
        %7389 = vmatprep.subr.bf16.mxu0 %v5084
        %7390 = vmatpush1.bf16.msra.mxu0 %v5083
        %7391 = vmatprep.subr.bf16.mxu0 %v6096
        %7392 = vmatpush1.bf16.msra.mxu0 %v6093
        %7393 = vmatprep.subr.bf16.mxu0 0
        %7394 = vmatpush1.bf16.msra.mxu0 0
        %7395 = vmatprep.subr.bf16.mxu0 0
        %7396 = vmatpush1.bf16.msra.mxu0 0
        %7397 = vmatprep.subr.bf16.mxu0 0
        %7398 = vmatpush1.bf16.msra.mxu0 0
        %7399 = vmatprep.subr.bf16.mxu0 0
        %7400 = vmatpush1.bf16.msra.mxu0 0
        %7401 = vmatprep.mubr.bf16.mxu0 %v6047
        %7402 = vmatmul.mubr.bf16.gmra.mrb[0].mxu0 %v247
        %v7403 = vpop.f32.mrb[0].mxu0
        %v7404 = vadd.f32 %v7363, %v7403
        %v7405 = vpop.f32.mrb[0].mxu0
        %v7406 = vadd.f32 %v7365, %v7405
        %v7407 = vpop.f32.mrb[0].mxu0
        %v7408 = vpop.f32.mrb[0].mxu0
        %7409 = vdwg.mxu0
        %v7410 = vxor.u32 %v6256, 2147483648
        %v7411 = vxor.u32 %v6258, 2147483648
        %v7412 = vxor.u32 %v6420, 2147483648
        %v7413 = vxor.u32 %v6422, 2147483648
        %v7414 = vxor.u32 %v6584, 2147483648
        %v7415 = vxor.u32 %v6586, 2147483648
        %v7416 = vxor.u32 %v6748, 2147483648
        %v7417 = vxor.u32 %v6750, 2147483648
        %v7418 = vxor.u32 %v6912, 2147483648
        %v7419 = vxor.u32 %v6914, 2147483648
        %v7420 = vxor.u32 %v7076, 2147483648
        %v7421 = vxor.u32 %v7078, 2147483648
        %v7422 = vxor.u32 %v7240, 2147483648
        %v7423 = vxor.u32 %v7242, 2147483648
        %v7424 = vxor.u32 %v7404, 2147483648
        %v7425 = vxor.u32 %v7406, 2147483648
        %v7426 = vmul.f32 %v7410, 1.442695
        %v7427 = vpow.pop %v7426
        %v7428 = vmul.f32 %v7411, 1.442695
        %v7429 = vpow.pop %v7428
        %v7430 = vmul.f32 %v7412, 1.442695
        %v7431 = vpow.pop %v7430
        %v7432 = vmul.f32 %v7413, 1.442695
        %v7433 = vpow.pop %v7432
        %v7434 = vmul.f32 %v7414, 1.442695
        %v7435 = vpow.pop %v7434
        %v7436 = vmul.f32 %v7415, 1.442695
        %v7437 = vpow.pop %v7436
        %v7438 = vmul.f32 %v7416, 1.442695
        %v7439 = vpow.pop %v7438
        %v7440 = vmul.f32 %v7417, 1.442695
        %v7441 = vpow.pop %v7440
        %v7442 = vmul.f32 %v7418, 1.442695
        %v7443 = vpow.pop %v7442
        %v7444 = vmul.f32 %v7419, 1.442695
        %v7445 = vpow.pop %v7444
        %v7446 = vmul.f32 %v7420, 1.442695
        %v7447 = vpow.pop %v7446
        %v7448 = vmul.f32 %v7421, 1.442695
        %v7449 = vpow.pop %v7448
        %v7450 = vmul.f32 %v7422, 1.442695
        %v7451 = vpow.pop %v7450
        %v7452 = vmul.f32 %v7423, 1.442695
        %v7453 = vpow.pop %v7452
        %v7454 = vmul.f32 %v7424, 1.442695
        %v7455 = vpow.pop %v7454
        %v7456 = vmul.f32 %v7425, 1.442695
        %v7457 = vpow.pop %v7456
        %v7458 = vadd.f32 %v7427, 1.0
        %v7459 = vadd.f32 %v7429, 1.0
        %v7460 = vadd.f32 %v7431, 1.0
        %v7461 = vadd.f32 %v7433, 1.0
        %v7462 = vadd.f32 %v7435, 1.0
        %v7463 = vadd.f32 %v7437, 1.0
        %v7464 = vadd.f32 %v7439, 1.0
        %v7465 = vadd.f32 %v7441, 1.0
        %v7466 = vadd.f32 %v7443, 1.0
        %v7467 = vadd.f32 %v7445, 1.0
        %v7468 = vadd.f32 %v7447, 1.0
        %v7469 = vadd.f32 %v7449, 1.0
        %v7470 = vadd.f32 %v7451, 1.0
        %v7471 = vadd.f32 %v7453, 1.0
        %v7472 = vadd.f32 %v7455, 1.0
        %v7473 = vadd.f32 %v7457, 1.0
        %v7474 = vrcp.pop %v7458
        %v7475 = vmul.f32 1.0, %v7474
        %v7476 = vrcp.pop %v7459
        %v7477 = vmul.f32 1.0, %v7476
        %v7478 = vrcp.pop %v7460
        %v7479 = vmul.f32 1.0, %v7478
        %v7480 = vrcp.pop %v7461
        %v7481 = vmul.f32 1.0, %v7480
        %v7482 = vrcp.pop %v7462
        %v7483 = vmul.f32 1.0, %v7482
        %v7484 = vrcp.pop %v7463
        %v7485 = vmul.f32 1.0, %v7484
        %v7486 = vrcp.pop %v7464
        %v7487 = vmul.f32 1.0, %v7486
        %v7488 = vrcp.pop %v7465
        %v7489 = vmul.f32 1.0, %v7488
        %v7490 = vrcp.pop %v7466
        %v7491 = vmul.f32 1.0, %v7490
        %v7492 = vrcp.pop %v7467
        %v7493 = vmul.f32 1.0, %v7492
        %v7494 = vrcp.pop %v7468
        %v7495 = vmul.f32 1.0, %v7494
        %v7496 = vrcp.pop %v7469
        %v7497 = vmul.f32 1.0, %v7496
        %v7498 = vrcp.pop %v7470
        %v7499 = vmul.f32 1.0, %v7498
        %v7500 = vrcp.pop %v7471
        %v7501 = vmul.f32 1.0, %v7500
        %v7502 = vrcp.pop %v7472
        %v7503 = vmul.f32 1.0, %v7502
        %v7504 = vrcp.pop %v7473
        %v7505 = vmul.f32 1.0, %v7504
        %7506 = vst [vmem:[%s230] sm:$0xff] %v7475
        %7507 = vst [vmem:[%s230 + $0x8] sm:$0xff] %v7477
        %7508 = vst [vmem:[%s230 + $0x10] sm:$0xff] %v7479
        %7509 = vst [vmem:[%s230 + $0x18] sm:$0xff] %v7481
        %7510 = vst [vmem:[%s230 + $0x20] sm:$0xff] %v7483
        %7511 = vst [vmem:[%s230 + $0x28] sm:$0xff] %v7485
        %7512 = vst [vmem:[%s230 + $0x30] sm:$0xff] %v7487
        %7513 = vst [vmem:[%s230 + $0x38] sm:$0xff] %v7489
        %7514 = vst [vmem:[%s230 + $0x40] sm:$0xff] %v7491
        %7515 = vst [vmem:[%s230 + $0x48] sm:$0xff] %v7493
        %7516 = vst [vmem:[%s230 + $0x50] sm:$0xff] %v7495
        %7517 = vst [vmem:[%s230 + $0x58] sm:$0xff] %v7497
        %7518 = vst [vmem:[%s230 + $0x60] sm:$0xff] %v7499
        %7519 = vst [vmem:[%s230 + $0x68] sm:$0xff] %v7501
        %7520 = vst [vmem:[%s230 + $0x70] sm:$0xff] %v7503
        %7521 = vst [vmem:[%s230 + $0x78] sm:$0xff] %v7505
        %s7522 = smul.u32 16, %s20
        %p7523 = scmp.lt.s32.totalorder %s7522, 255
        %s7524 = scalar_select %p7523, %s7522, 255
        %s7525 = smul.addr %s7524, 8
        %s7526 = scalar_lea.vmem %s3, %s7525
        // Predicated region
        $region41: #{decoder_forward.3} parent=31 // pred_check
          %p7527 = pneg %p111
        $region42: #{decoder_forward.3} parent=31 // pred_check_branch
          %7529 = sbr.rel (%p7527) target = $region44
        $region43: #{decoder_forward.3} parent=31 // pred_region
          %s7530 = smul.u32 16, %s20
        $region44: #{decoder_forward.3} parent=31 // pred_fallthru
          _
      $region32: #{decoder_forward.3} parent=5 // pred_fallthru
        _
      %p7531 = scmp.le.s32.totalorder 2, %s15
      // Predicated region
      $region45: #{decoder_forward.3} parent=5 // pred_check
        %p7532 = pneg %p7531
      $region46: #{decoder_forward.3} parent=5 // pred_check_branch
        %7534 = sbr.rel (%p7532) target = $region48
      $region47: #{decoder_forward.3} parent=5 // pred_region
        %s7535 = ssub.s32 %s15, 2
        // Predicated region
        $region49: #{decoder_forward.3} parent=47 // pred_check
          %p7536 = pneg %p117
        $region50: #{decoder_forward.3} parent=47 // pred_check_branch
          %7538 = sbr.rel (%p7536) target = $region52
        $region51: #{decoder_forward.3} parent=47 // pred_region
          %s7539 = smul.u32 16, %s21
          %p7540 = scmp.lt.s32.totalorder %s7539, 255
          %s7541 = scalar_select %p7540, %s7539, 255
          %s7542 = smul.addr %s7541, 8
          %s7543 = scalar_lea.vmem %s3, %s7542
        $region52: #{decoder_forward.3} parent=47 // pred_fallthru
          _
      $region48: #{decoder_forward.3} parent=5 // pred_fallthru
        _
    $region6: #{decoder_forward.3} parent=1 // loop_footer
      %s19 = sadd.s32 1, %s15
    $region7: #{decoder_forward.3} parent=1 // loop_footer_branch
      %14 = sbr.rel target = $region3
    $region8: #{decoder_forward.3} parent=1 // loop_exit
      _
    %7544 = vsyncpa [#allocation3], 1
    %s7545 = scalar_lea.sflag [#allocation3], 1
    %7546 = vsyncpa %s7545, 1
    %7547 = vsyncpa [#allocation5], 1
    %s7548 = scalar_lea.sflag [#allocation5], 1
    %7549 = vsyncpa %s7548, 1

</llo_original>
